<compile_context>
chip_gen: v7x
topology: tpu7x:2x2x1
jax: 0.10.0
libtpu: 0.0.40
codegen_flags: <defaults>
</compile_context>

<pallas_src>
import math

import jax
import jax.numpy as jnp
from jax.experimental import pallas as pl
from jax.experimental.pallas import tpu as pltpu

# ----------------------------------------------------------------------------
# Model hyper-parameters (small shapes consistent with the module constructor)
# ----------------------------------------------------------------------------
N_HEAD = 4
N_LAYERS = 2          # n_decoder_layer
EMBED = 32            # embedding_size (d_model)
FFN = 2048            # nn.TransformerDecoderLayer default dim_feedforward
FF_CHUNK = 512        # FFN consumed in 512-lane chunks (bounds vreg pressure)
VOCAB = 64            # stand-in for vocabs['vocab_size']
OUT_PAD = 128         # vocab padded to 128 lanes for unmasked stores
MAX_SEQ_LEN = 8       # stand-in for vocabs['max_seq_len']
LN_EPS = 1e-5
NEG_INF = -1e30       # additive mask value (same softmax result as -inf)


# ----------------------------------------------------------------------------
# In-kernel helpers (traced inside the single fused Pallas kernel)
# ----------------------------------------------------------------------------
def _layer_norm(x, gamma, beta):
    """x: (M, E) f32; gamma/beta: (1, E) f32.  Biased variance (PyTorch LN)."""
    mu = jnp.mean(x, axis=-1, keepdims=True)
    var = jnp.mean(jnp.square(x - mu), axis=-1, keepdims=True)
    return (x - mu) * jax.lax.rsqrt(var + LN_EPS) * gamma + beta


def _bd_attention(q, k, v, out_w, out_b, add_mask):
    """Block-diagonal (head,batch)-major multi-head attention.

    q: (lq, E) f32, k/v: (lk, E) f32 (already projected, lq/lk include the
    folded batch).  add_mask: (H*lq, H*lk) additive f32 mask whose layout is
    row = h*lq + r, col = h*lk + c; it also kills cross-head / cross-batch
    blocks, so one score matmul and one PV matmul cover all heads and batches.
    """
    lq, e = q.shape
    dh = e // N_HEAD
    scale = 1.0 / math.sqrt(dh)

    q16 = q.astype(jnp.bfloat16)
    k16 = k.astype(jnp.bfloat16)
    v16 = v.astype(jnp.bfloat16)

    # TODO(synk): dh=8 head-major pack/unpack below are XLU lane/sublane
    # relayouts; verify with a bundle dump that they don't saturate the vex
    # slot vs. 4 unrolled per-head dots kept in lanes.
    q_cat = jnp.concatenate([q16[:, i * dh:(i + 1) * dh] for i in range(N_HEAD)], axis=0)
    k_cat = jnp.concatenate([k16[:, i * dh:(i + 1) * dh] for i in range(N_HEAD)], axis=0)
    v_cat = jnp.concatenate([v16[:, i * dh:(i + 1) * dh] for i in range(N_HEAD)], axis=0)

    s = jax.lax.dot_general(q_cat, k_cat, (((1,), (1,)), ((), ())),
                            preferred_element_type=jnp.float32) * scale
    s = s + add_mask                                            # (H*lq, H*lk)
    m = jnp.max(s, axis=-1, keepdims=True)
    p = jnp.exp(s - m)
    denom = jnp.sum(p, axis=-1, keepdims=True)
    probs = (p * pl.reciprocal(denom, approx=True)).astype(jnp.bfloat16)
    # TODO(synk): fully-masked query rows give a uniform softmax here, while
    # PyTorch MultiheadAttention would emit NaN for such rows.

    ctx_cat = jnp.dot(probs, v_cat, preferred_element_type=jnp.float32)  # (H*lq, dh)
    ctx = jnp.concatenate([ctx_cat[i * lq:(i + 1) * lq, :] for i in range(N_HEAD)],
                          axis=-1)                              # (lq, E)
    return jnp.dot(ctx.astype(jnp.bfloat16), out_w,
                   preferred_element_type=jnp.float32) + out_b


# ----------------------------------------------------------------------------
# The single fused kernel: both decoder layers + final (padded) linear,
# batch folded into rows, single invocation (no grid).
# ----------------------------------------------------------------------------
def fused_caption_kernel(x_ref, mem_ref, self_mask_ref, cross_mask_ref,
                         sa_in_w_ref, sa_in_b_ref, sa_out_w_ref, sa_out_b_ref,
                         ca_q_w_ref, ca_q_b_ref, ca_kv_w_ref, ca_kv_b_ref,
                         ca_out_w_ref, ca_out_b_ref,
                         ff_w1_ref, ff_b1_ref, ff_w2_ref, ff_b2_ref,
                         ln_g_ref, ln_b_ref,
                         out_w_ref, out_b_ref,
                         o_ref):
    E = x_ref.shape[1]

    self_mask = self_mask_ref[...]        # (H*B*T, H*B*T) additive f32
    cross_mask = cross_mask_ref[...]      # (H*B*T, H*B*S) additive f32
    mem16 = mem_ref[...].astype(jnp.bfloat16)   # (B*S, E)

    h = x_ref[...]                        # (B*T, E) f32 token embeddings (+PE)

    # ---- N_LAYERS post-norm nn.TransformerDecoderLayer (relu, eval mode) ---
    for l in range(N_LAYERS):                      # static unroll, N_LAYERS=2
        # masked self-attention: ONE fused QKV matmul, slice the f32 result.
        h16 = h.astype(jnp.bfloat16)
        qkv = jnp.dot(h16, sa_in_w_ref[l],
                      preferred_element_type=jnp.float32) + sa_in_b_ref[l]
        sa = _bd_attention(qkv[:, 0:E], qkv[:, E:2 * E], qkv[:, 2 * E:3 * E],
                           sa_out_w_ref[l], sa_out_b_ref[l], self_mask)
        x1 = _layer_norm(h + sa, ln_g_ref[l, 0:1, :], ln_b_ref[l, 0:1, :])

        # cross-attention over the image memory: Q matmul + fused K/V matmul.
        q = jnp.dot(x1.astype(jnp.bfloat16), ca_q_w_ref[l],
                    preferred_element_type=jnp.float32) + ca_q_b_ref[l]
        kv = jnp.dot(mem16, ca_kv_w_ref[l],
                     preferred_element_type=jnp.float32) + ca_kv_b_ref[l]
        ca = _bd_attention(q, kv[:, 0:E], kv[:, E:2 * E],
                           ca_out_w_ref[l], ca_out_b_ref[l], cross_mask)
        x2 = _layer_norm(x1 + ca, ln_g_ref[l, 1:2, :], ln_b_ref[l, 1:2, :])

        # feed-forward (relu), consumed in 512-lane chunks (bounded vregs).
        x2_16 = x2.astype(jnp.bfloat16)
        ff = jnp.zeros(x2.shape, jnp.float32)
        for c in range(FFN // FF_CHUNK):           # static unroll, 4 chunks
            c0, c1 = c * FF_CHUNK, (c + 1) * FF_CHUNK
            hid = jnp.dot(x2_16, ff_w1_ref[l, :, c0:c1],
                          preferred_element_type=jnp.float32) + ff_b1_ref[l, :, c0:c1]
            hid = jnp.maximum(hid, 0.0)
            ff = ff + jnp.dot(hid.astype(jnp.bfloat16), ff_w2_ref[l, c0:c1, :],
                              preferred_element_type=jnp.float32)
        ff = ff + ff_b2_ref[l]
        h = _layer_norm(x2 + ff, ln_g_ref[l, 2:3, :], ln_b_ref[l, 2:3, :])

    # ---- final linear layer (vocab zero-padded to 128 lanes) ---------------
    logits = jnp.dot(h.astype(jnp.bfloat16), out_w_ref[...],
                     preferred_element_type=jnp.float32) + out_b_ref[...]
    o_ref[...] = logits                    # (B*T, 128) lane-dense store

    # TODO(synk): dropout (p=0.1) in PositionalEncoding / decoder layers is
    # the identity here (eval-mode semantics).


# ----------------------------------------------------------------------------
# Wrapper: one pallas_call for the whole forward (no grid; everything in VMEM)
# ----------------------------------------------------------------------------
def run_fused_forward(x, mem, self_mask, cross_mask, params):
    M = x.shape[0]                                  # B*T rows

    args = (
        x, mem, self_mask, cross_mask,
        params['sa_in_w'], params['sa_in_b'], params['sa_out_w'], params['sa_out_b'],
        params['ca_q_w'], params['ca_q_b'], params['ca_kv_w'], params['ca_kv_b'],
        params['ca_out_w'], params['ca_out_b'],
        params['ff_w1'], params['ff_b1'], params['ff_w2'], params['ff_b2'],
        params['ln_g'], params['ln_b'],
        params['out_w'], params['out_b'],
    )
    vmem_spec = pl.BlockSpec(memory_space=pltpu.MemorySpace.VMEM)

    return pl.pallas_call(
        fused_caption_kernel,
        out_shape=jax.ShapeDtypeStruct((M, OUT_PAD), jnp.float32),
        in_specs=[vmem_spec] * len(args),
        out_specs=vmem_spec,
    )(*args)


# ----------------------------------------------------------------------------
# Deterministic parameter initialisation (shapes follow the PyTorch module);
# per-layer weights stacked on a leading N_LAYERS axis, matmul weights in bf16.
# ----------------------------------------------------------------------------
def _sinusoidal_pe(max_len, d_model):
    pos = jnp.arange(max_len, dtype=jnp.float32)[:, None]
    div = jnp.exp(jnp.arange(0, d_model, 2, dtype=jnp.float32)
                  * (-math.log(10000.0) / d_model))
    pe = jnp.zeros((max_len, d_model), jnp.float32)
    pe = pe.at[:, 0::2].set(jnp.sin(pos * div))
    pe = pe.at[:, 1::2].set(jnp.cos(pos * div))
    return pe


def init_params(key):
    E, F, V, L = EMBED, FFN, VOCAB, N_LAYERS
    ks = iter(jax.random.split(key, 12))

    def unif(kk, shape, bound):
        return jax.random.uniform(kk, shape, jnp.float32, -bound, bound)

    xb_attn = math.sqrt(6.0 / (E + E))
    xb_ff1 = math.sqrt(6.0 / (E + F))
    xb_ff2 = math.sqrt(6.0 / (F + E))

    out_w_real = unif(next(ks), (E, V), 0.1)        # last_linear (x @ W layout)
    out_w = jnp.zeros((E, OUT_PAD), jnp.float32).at[:, :V].set(out_w_real)

    return {
        'embedding': unif(next(ks), (V, E), 0.1),              # nn.Embedding
        'pe': _sinusoidal_pe(MAX_SEQ_LEN, E),
        'out_w': out_w.astype(jnp.bfloat16),                   # (E, 128) padded
        'out_b': jnp.zeros((1, OUT_PAD), jnp.float32),
        # self-attn fused in-projection (E, 3E), bf16; out-projection (E, E)
        'sa_in_w': unif(next(ks), (L, E, 3 * E), xb_attn).astype(jnp.bfloat16),
        'sa_in_b': jnp.zeros((L, 1, 3 * E), jnp.float32),
        'sa_out_w': unif(next(ks), (L, E, E), xb_attn).astype(jnp.bfloat16),
        'sa_out_b': jnp.zeros((L, 1, E), jnp.float32),
        # cross-attn: Q projection (E, E) and fused K/V projection (E, 2E)
        'ca_q_w': unif(next(ks), (L, E, E), xb_attn).astype(jnp.bfloat16),
        'ca_q_b': jnp.zeros((L, 1, E), jnp.float32),
        'ca_kv_w': unif(next(ks), (L, E, 2 * E), xb_attn).astype(jnp.bfloat16),
        'ca_kv_b': jnp.zeros((L, 1, 2 * E), jnp.float32),
        'ca_out_w': unif(next(ks), (L, E, E), xb_attn).astype(jnp.bfloat16),
        'ca_out_b': jnp.zeros((L, 1, E), jnp.float32),
        # FFN: w1 (E, F); w2 stored K-major as (F, E) (native MXU layout)
        'ff_w1': unif(next(ks), (L, E, F), xb_ff1).astype(jnp.bfloat16),
        'ff_b1': jnp.zeros((L, 1, F), jnp.float32),
        'ff_w2': unif(next(ks), (L, F, E), xb_ff2).astype(jnp.bfloat16),
        'ff_b2': jnp.zeros((L, 1, E), jnp.float32),
        'ln_g': jnp.ones((L, 3, E), jnp.float32),              # norm1/norm2/norm3
        'ln_b': jnp.zeros((L, 3, E), jnp.float32),
    }


# ----------------------------------------------------------------------------
# Full forward pass.  Embedding gather, PE add and the tiny additive masks are
# plain JAX; everything heavy is one fused Pallas call.
# ----------------------------------------------------------------------------
@jax.jit
def image_caption_forward(encoded_image, decoder_inp, params):
    B, T = decoder_inp.shape
    S = encoded_image.shape[1]
    E = EMBED
    H = N_HEAD

    # embedding lookup * sqrt(E) + sinusoidal positional encoding, batch-fold
    x = params['embedding'][decoder_inp] * math.sqrt(E) + params['pe'][None, :T, :]
    x = x.astype(jnp.float32).reshape(B * T, E)
    mem = encoded_image.astype(jnp.float32).reshape(B * S, E)

    # ---- additive masks for the (head,batch)-block-diagonal score layout ---
    # self: row = h*B*T + b*T + q, col = h*B*T + b*T + k
    HBT, HBS = H * B * T, H * B * S
    r = jnp.arange(HBT, dtype=jnp.int32)[:, None]
    c = jnp.arange(HBT, dtype=jnp.int32)[None, :]
    same_block = (r // T) == (c // T)               # same head AND same batch
    causal = (c % T) <= (r % T)
    key_is_pad = jnp.tile((decoder_inp == 0).reshape(-1), (H,))       # (HBT,)
    allowed = same_block & causal & jnp.logical_not(key_is_pad)[None, :]
    self_mask = jnp.where(allowed, 0.0, NEG_INF).astype(jnp.float32)  # (HBT,HBT)

    # cross: row = h*B*T + b*T + q, col = h*B*S + b*S + k (static -> folded)
    rc = jnp.arange(HBT, dtype=jnp.int32)[:, None]
    cc = jnp.arange(HBS, dtype=jnp.int32)[None, :]
    cross_mask = jnp.where((rc // T) == (cc // S), 0.0,
                           NEG_INF).astype(jnp.float32)               # (HBT,HBS)

    logits_padded = run_fused_forward(x, mem, self_mask, cross_mask, params)
    logits = logits_padded[:, :VOCAB].reshape(B, T, VOCAB)

    decoder_input_pad_mask = (decoder_inp > 0).astype(jnp.float32)    # (B, T)

    # match the PyTorch return layout: final_output is (T, B, vocab_size)
    return jnp.transpose(logits, (1, 0, 2)), decoder_input_pad_mask


# ----------------------------------------------------------------------------
if __name__ == "__main__":
    key = jax.random.PRNGKey(0)
    k_params, k_img, k_tok = jax.random.split(key, 3)

    params = init_params(k_params)

    B, S, T = 2, 16, MAX_SEQ_LEN
    encoded_image = jax.random.normal(k_img, (B, S, EMBED), jnp.float32)   # (B, S, E)
    decoder_inp = jax.random.randint(k_tok, (B, T), 1, VOCAB)              # non-pad tokens
    decoder_inp = decoder_inp.at[:, T - 2:].set(0)                         # trailing padding

    final_output, pad_mask = image_caption_forward(encoded_image, decoder_inp, params)
    jax.block_until_ready((final_output, pad_mask))

    assert final_output.shape == (T, B, VOCAB)
    assert pad_mask.shape == (B, T)
    assert bool(jnp.all(jnp.isfinite(final_output)))
    print("KERNEL_OK")
</pallas_src>

<mosaic_0001>
module attributes {stable_mosaic.version = 11 : i64} {
  func.func @fused_caption_kernel(%arg0: memref<16x32xf32, #tpu.memory_space<vmem>>, %arg1: memref<32x32xf32, #tpu.memory_space<vmem>>, %arg2: memref<64x64xf32, #tpu.memory_space<vmem>>, %arg3: memref<64x128xf32, #tpu.memory_space<vmem>>, %arg4: memref<2x32x96xbf16, #tpu.memory_space<vmem>>, %arg5: memref<2x1x96xf32, #tpu.memory_space<vmem>>, %arg6: memref<2x32x32xbf16, #tpu.memory_space<vmem>>, %arg7: memref<2x1x32xf32, #tpu.memory_space<vmem>>, %arg8: memref<2x32x32xbf16, #tpu.memory_space<vmem>>, %arg9: memref<2x1x32xf32, #tpu.memory_space<vmem>>, %arg10: memref<2x32x64xbf16, #tpu.memory_space<vmem>>, %arg11: memref<2x1x64xf32, #tpu.memory_space<vmem>>, %arg12: memref<2x32x32xbf16, #tpu.memory_space<vmem>>, %arg13: memref<2x1x32xf32, #tpu.memory_space<vmem>>, %arg14: memref<2x32x2048xbf16, #tpu.memory_space<vmem>>, %arg15: memref<2x1x2048xf32, #tpu.memory_space<vmem>>, %arg16: memref<2x2048x32xbf16, #tpu.memory_space<vmem>>, %arg17: memref<2x1x32xf32, #tpu.memory_space<vmem>>, %arg18: memref<2x3x32xf32, #tpu.memory_space<vmem>>, %arg19: memref<2x3x32xf32, #tpu.memory_space<vmem>>, %arg20: memref<32x128xbf16, #tpu.memory_space<vmem>>, %arg21: memref<1x128xf32, #tpu.memory_space<vmem>>, %arg22: memref<16x128xf32, #tpu.memory_space<vmem>>) attributes {dimension_semantics = [], scalar_prefetch = 0 : i64, scratch_operands = 0 : i64, tpu.core_type = #tpu.core_type<tc>} {
    %c0 = arith.constant 0 : index
    %c0_0 = arith.constant 0 : index
    %0 = vector.load %arg2[%c0, %c0_0] : memref<64x64xf32, #tpu.memory_space<vmem>>, vector<64x64xf32>
    %c0_1 = arith.constant 0 : index
    %c0_2 = arith.constant 0 : index
    %1 = vector.load %arg3[%c0_1, %c0_2] : memref<64x128xf32, #tpu.memory_space<vmem>>, vector<64x128xf32>
    %c0_3 = arith.constant 0 : index
    %c0_4 = arith.constant 0 : index
    %2 = vector.load %arg1[%c0_3, %c0_4] : memref<32x32xf32, #tpu.memory_space<vmem>>, vector<32x32xf32>
    %3 = arith.truncf %2 : vector<32x32xf32> to vector<32x32xbf16>
    %c0_5 = arith.constant 0 : index
    %c0_6 = arith.constant 0 : index
    %4 = vector.load %arg0[%c0_5, %c0_6] : memref<16x32xf32, #tpu.memory_space<vmem>>, vector<16x32xf32>
    %5 = arith.truncf %4 : vector<16x32xf32> to vector<16x32xbf16>
    %c0_7 = arith.constant 0 : index
    %c0_8 = arith.constant 0 : index
    %c0_9 = arith.constant 0 : index
    %6 = vector.load %arg4[%c0_7, %c0_8, %c0_9] : memref<2x32x96xbf16, #tpu.memory_space<vmem>>, vector<1x32x96xbf16>
    %7 = vector.shape_cast %6 : vector<1x32x96xbf16> to vector<32x96xbf16>
    %cst = arith.constant dense<0.000000e+00> : vector<16x96xf32>
    %8 = tpu.matmul %5, %7, %cst {dimension_numbers = #tpu.dot_dimension_numbers<[1], [0], [0], [1], [0, 0, 1, 1], [], []>} : vector<16x32xbf16>, vector<32x96xbf16>, vector<16x96xf32> -> vector<16x96xf32>
    %c0_10 = arith.constant 0 : index
    %c0_11 = arith.constant 0 : index
    %c0_12 = arith.constant 0 : index
    %9 = vector.load %arg5[%c0_10, %c0_11, %c0_12] : memref<2x1x96xf32, #tpu.memory_space<vmem>>, vector<1x1x96xf32>
    %10 = vector.shape_cast %9 : vector<1x1x96xf32> to vector<1x96xf32>
    %11 = vector.broadcast %10 : vector<1x96xf32> to vector<16x96xf32>
    %12 = arith.addf %8, %11 : vector<16x96xf32>
    %13 = vector.extract_strided_slice %12 {offsets = [0, 0], sizes = [16, 32], strides = [1, 1]} : vector<16x96xf32> to vector<16x32xf32>
    %14 = vector.extract_strided_slice %12 {offsets = [0, 32], sizes = [16, 32], strides = [1, 1]} : vector<16x96xf32> to vector<16x32xf32>
    %15 = vector.extract_strided_slice %12 {offsets = [0, 64], sizes = [16, 32], strides = [1, 1]} : vector<16x96xf32> to vector<16x32xf32>
    %c0_13 = arith.constant 0 : index
    %c0_14 = arith.constant 0 : index
    %c0_15 = arith.constant 0 : index
    %16 = vector.load %arg6[%c0_13, %c0_14, %c0_15] : memref<2x32x32xbf16, #tpu.memory_space<vmem>>, vector<1x32x32xbf16>
    %17 = vector.shape_cast %16 : vector<1x32x32xbf16> to vector<32x32xbf16>
    %c0_16 = arith.constant 0 : index
    %c0_17 = arith.constant 0 : index
    %c0_18 = arith.constant 0 : index
    %18 = vector.load %arg7[%c0_16, %c0_17, %c0_18] : memref<2x1x32xf32, #tpu.memory_space<vmem>>, vector<1x1x32xf32>
    %19 = vector.shape_cast %18 : vector<1x1x32xf32> to vector<1x32xf32>
    %20 = arith.truncf %13 : vector<16x32xf32> to vector<16x32xbf16>
    %21 = arith.truncf %14 : vector<16x32xf32> to vector<16x32xbf16>
    %22 = arith.truncf %15 : vector<16x32xf32> to vector<16x32xbf16>
    %23 = vector.extract_strided_slice %20 {offsets = [0, 0], sizes = [16, 8], strides = [1, 1]} : vector<16x32xbf16> to vector<16x8xbf16>
    %24 = vector.extract_strided_slice %20 {offsets = [0, 8], sizes = [16, 8], strides = [1, 1]} : vector<16x32xbf16> to vector<16x8xbf16>
    %25 = vector.extract_strided_slice %20 {offsets = [0, 16], sizes = [16, 8], strides = [1, 1]} : vector<16x32xbf16> to vector<16x8xbf16>
    %26 = vector.extract_strided_slice %20 {offsets = [0, 24], sizes = [16, 8], strides = [1, 1]} : vector<16x32xbf16> to vector<16x8xbf16>
    %27 = tpu.concatenate %23, %24, %25, %26 in 0 : vector<16x8xbf16>, vector<16x8xbf16>, vector<16x8xbf16>, vector<16x8xbf16> -> vector<64x8xbf16>
    %28 = vector.extract_strided_slice %21 {offsets = [0, 0], sizes = [16, 8], strides = [1, 1]} : vector<16x32xbf16> to vector<16x8xbf16>
    %29 = vector.extract_strided_slice %21 {offsets = [0, 8], sizes = [16, 8], strides = [1, 1]} : vector<16x32xbf16> to vector<16x8xbf16>
    %30 = vector.extract_strided_slice %21 {offsets = [0, 16], sizes = [16, 8], strides = [1, 1]} : vector<16x32xbf16> to vector<16x8xbf16>
    %31 = vector.extract_strided_slice %21 {offsets = [0, 24], sizes = [16, 8], strides = [1, 1]} : vector<16x32xbf16> to vector<16x8xbf16>
    %32 = tpu.concatenate %28, %29, %30, %31 in 0 : vector<16x8xbf16>, vector<16x8xbf16>, vector<16x8xbf16>, vector<16x8xbf16> -> vector<64x8xbf16>
    %33 = vector.extract_strided_slice %22 {offsets = [0, 0], sizes = [16, 8], strides = [1, 1]} : vector<16x32xbf16> to vector<16x8xbf16>
    %34 = vector.extract_strided_slice %22 {offsets = [0, 8], sizes = [16, 8], strides = [1, 1]} : vector<16x32xbf16> to vector<16x8xbf16>
    %35 = vector.extract_strided_slice %22 {offsets = [0, 16], sizes = [16, 8], strides = [1, 1]} : vector<16x32xbf16> to vector<16x8xbf16>
    %36 = vector.extract_strided_slice %22 {offsets = [0, 24], sizes = [16, 8], strides = [1, 1]} : vector<16x32xbf16> to vector<16x8xbf16>
    %37 = tpu.concatenate %33, %34, %35, %36 in 0 : vector<16x8xbf16>, vector<16x8xbf16>, vector<16x8xbf16>, vector<16x8xbf16> -> vector<64x8xbf16>
    %cst_19 = arith.constant dense<0.000000e+00> : vector<64x64xf32>
    %38 = tpu.matmul %27, %32, %cst_19 {dimension_numbers = #tpu.dot_dimension_numbers<[1], [1], [0], [0], [0, 0, 1, 0], [], []>} : vector<64x8xbf16>, vector<64x8xbf16>, vector<64x64xf32> -> vector<64x64xf32>
    %cst_20 = arith.constant 0.353553385 : f32
    %39 = vector.broadcast %cst_20 : f32 to vector<64x64xf32>
    %40 = arith.mulf %38, %39 : vector<64x64xf32>
    %41 = arith.addf %40, %0 : vector<64x64xf32>
    %cst_21 = arith.constant dense<0xFF800000> : vector<64xf32>
    %42 = vector.multi_reduction <maximumf>, %41, %cst_21 [1] : vector<64x64xf32> to vector<64xf32>
    %43 = vector.shape_cast %42 : vector<64xf32> to vector<64x1xf32>
    %44 = vector.broadcast %43 : vector<64x1xf32> to vector<64x64xf32>
    %45 = arith.subf %41, %44 : vector<64x64xf32>
    %46 = math.exp %45 : vector<64x64xf32>
    %cst_22 = arith.constant dense<0.000000e+00> : vector<64xf32>
    %47 = vector.multi_reduction <add>, %46, %cst_22 [1] : vector<64x64xf32> to vector<64xf32>
    %48 = vector.shape_cast %47 : vector<64xf32> to vector<64x1xf32>
    %49 = tpu.reciprocal %48 {approx = true} : vector<64x1xf32> -> vector<64x1xf32>
    %50 = vector.broadcast %49 : vector<64x1xf32> to vector<64x64xf32>
    %51 = arith.mulf %46, %50 : vector<64x64xf32>
    %52 = arith.truncf %51 : vector<64x64xf32> to vector<64x64xbf16>
    %cst_23 = arith.constant dense<0.000000e+00> : vector<64x8xf32>
    %53 = tpu.matmul %52, %37, %cst_23 {dimension_numbers = #tpu.dot_dimension_numbers<[1], [0], [0], [1], [0, 0, 1, 1], [], []>} : vector<64x64xbf16>, vector<64x8xbf16>, vector<64x8xf32> -> vector<64x8xf32>
    %54 = vector.extract_strided_slice %53 {offsets = [0, 0], sizes = [16, 8], strides = [1, 1]} : vector<64x8xf32> to vector<16x8xf32>
    %55 = vector.extract_strided_slice %53 {offsets = [16, 0], sizes = [16, 8], strides = [1, 1]} : vector<64x8xf32> to vector<16x8xf32>
    %56 = vector.extract_strided_slice %53 {offsets = [32, 0], sizes = [16, 8], strides = [1, 1]} : vector<64x8xf32> to vector<16x8xf32>
    %57 = vector.extract_strided_slice %53 {offsets = [48, 0], sizes = [16, 8], strides = [1, 1]} : vector<64x8xf32> to vector<16x8xf32>
    %58 = tpu.concatenate %54, %55, %56, %57 in 1 : vector<16x8xf32>, vector<16x8xf32>, vector<16x8xf32>, vector<16x8xf32> -> vector<16x32xf32>
    %59 = arith.truncf %58 : vector<16x32xf32> to vector<16x32xbf16>
    %cst_24 = arith.constant dense<0.000000e+00> : vector<16x32xf32>
    %60 = tpu.matmul %59, %17, %cst_24 {dimension_numbers = #tpu.dot_dimension_numbers<[1], [0], [0], [1], [0, 0, 1, 1], [], []>} : vector<16x32xbf16>, vector<32x32xbf16>, vector<16x32xf32> -> vector<16x32xf32>
    %61 = vector.broadcast %19 : vector<1x32xf32> to vector<16x32xf32>
    %62 = arith.addf %60, %61 : vector<16x32xf32>
    %63 = arith.addf %4, %62 : vector<16x32xf32>
    %c0_25 = arith.constant 0 : index
    %c0_26 = arith.constant 0 : index
    %c0_27 = arith.constant 0 : index
    %64 = vector.load %arg18[%c0_25, %c0_26, %c0_27] : memref<2x3x32xf32, #tpu.memory_space<vmem>>, vector<1x1x32xf32>
    %65 = vector.shape_cast %64 : vector<1x1x32xf32> to vector<1x32xf32>
    %c0_28 = arith.constant 0 : index
    %c0_29 = arith.constant 0 : index
    %c0_30 = arith.constant 0 : index
    %66 = vector.load %arg19[%c0_28, %c0_29, %c0_30] : memref<2x3x32xf32, #tpu.memory_space<vmem>>, vector<1x1x32xf32>
    %67 = vector.shape_cast %66 : vector<1x1x32xf32> to vector<1x32xf32>
    %cst_31 = arith.constant dense<0.000000e+00> : vector<16xf32>
    %68 = vector.multi_reduction <add>, %63, %cst_31 [1] : vector<16x32xf32> to vector<16xf32>
    %69 = vector.shape_cast %68 : vector<16xf32> to vector<16x1xf32>
    %cst_32 = arith.constant 3.200000e+01 : f32
    %70 = vector.broadcast %cst_32 : f32 to vector<16x1xf32>
    %71 = arith.divf %69, %70 : vector<16x1xf32>
    %72 = vector.broadcast %71 : vector<16x1xf32> to vector<16x32xf32>
    %73 = arith.subf %63, %72 : vector<16x32xf32>
    %74 = arith.mulf %73, %73 : vector<16x32xf32>
    %cst_33 = arith.constant dense<0.000000e+00> : vector<16xf32>
    %75 = vector.multi_reduction <add>, %74, %cst_33 [1] : vector<16x32xf32> to vector<16xf32>
    %76 = vector.shape_cast %75 : vector<16xf32> to vector<16x1xf32>
    %cst_34 = arith.constant 3.200000e+01 : f32
    %77 = vector.broadcast %cst_34 : f32 to vector<16x1xf32>
    %78 = arith.divf %76, %77 : vector<16x1xf32>
    %79 = vector.broadcast %71 : vector<16x1xf32> to vector<16x32xf32>
    %80 = arith.subf %63, %79 : vector<16x32xf32>
    %cst_35 = arith.constant 9.99999974E-6 : f32
    %81 = vector.broadcast %cst_35 : f32 to vector<16x1xf32>
    %82 = arith.addf %78, %81 : vector<16x1xf32>
    %83 = math.rsqrt %82 : vector<16x1xf32>
    %84 = vector.broadcast %83 : vector<16x1xf32> to vector<16x32xf32>
    %85 = arith.mulf %80, %84 : vector<16x32xf32>
    %86 = vector.broadcast %65 : vector<1x32xf32> to vector<16x32xf32>
    %87 = arith.mulf %85, %86 : vector<16x32xf32>
    %88 = vector.broadcast %67 : vector<1x32xf32> to vector<16x32xf32>
    %89 = arith.addf %87, %88 : vector<16x32xf32>
    %90 = arith.truncf %89 : vector<16x32xf32> to vector<16x32xbf16>
    %c0_36 = arith.constant 0 : index
    %c0_37 = arith.constant 0 : index
    %c0_38 = arith.constant 0 : index
    %91 = vector.load %arg8[%c0_36, %c0_37, %c0_38] : memref<2x32x32xbf16, #tpu.memory_space<vmem>>, vector<1x32x32xbf16>
    %92 = vector.shape_cast %91 : vector<1x32x32xbf16> to vector<32x32xbf16>
    %cst_39 = arith.constant dense<0.000000e+00> : vector<16x32xf32>
    %93 = tpu.matmul %90, %92, %cst_39 {dimension_numbers = #tpu.dot_dimension_numbers<[1], [0], [0], [1], [0, 0, 1, 1], [], []>} : vector<16x32xbf16>, vector<32x32xbf16>, vector<16x32xf32> -> vector<16x32xf32>
    %c0_40 = arith.constant 0 : index
    %c0_41 = arith.constant 0 : index
    %c0_42 = arith.constant 0 : index
    %94 = vector.load %arg9[%c0_40, %c0_41, %c0_42] : memref<2x1x32xf32, #tpu.memory_space<vmem>>, vector<1x1x32xf32>
    %95 = vector.shape_cast %94 : vector<1x1x32xf32> to vector<1x32xf32>
    %96 = vector.broadcast %95 : vector<1x32xf32> to vector<16x32xf32>
    %97 = arith.addf %93, %96 : vector<16x32xf32>
    %c0_43 = arith.constant 0 : index
    %c0_44 = arith.constant 0 : index
    %c0_45 = arith.constant 0 : index
    %98 = vector.load %arg10[%c0_43, %c0_44, %c0_45] : memref<2x32x64xbf16, #tpu.memory_space<vmem>>, vector<1x32x64xbf16>
    %99 = vector.shape_cast %98 : vector<1x32x64xbf16> to vector<32x64xbf16>
    %cst_46 = arith.constant dense<0.000000e+00> : vector<32x64xf32>
    %100 = tpu.matmul %3, %99, %cst_46 {dimension_numbers = #tpu.dot_dimension_numbers<[1], [0], [0], [1], [0, 0, 1, 1], [], []>} : vector<32x32xbf16>, vector<32x64xbf16>, vector<32x64xf32> -> vector<32x64xf32>
    %c0_47 = arith.constant 0 : index
    %c0_48 = arith.constant 0 : index
    %c0_49 = arith.constant 0 : index
    %101 = vector.load %arg11[%c0_47, %c0_48, %c0_49] : memref<2x1x64xf32, #tpu.memory_space<vmem>>, vector<1x1x64xf32>
    %102 = vector.shape_cast %101 : vector<1x1x64xf32> to vector<1x64xf32>
    %103 = vector.broadcast %102 : vector<1x64xf32> to vector<32x64xf32>
    %104 = arith.addf %100, %103 : vector<32x64xf32>
    %105 = vector.extract_strided_slice %104 {offsets = [0, 0], sizes = [32, 32], strides = [1, 1]} : vector<32x64xf32> to vector<32x32xf32>
    %106 = vector.extract_strided_slice %104 {offsets = [0, 32], sizes = [32, 32], strides = [1, 1]} : vector<32x64xf32> to vector<32x32xf32>
    %c0_50 = arith.constant 0 : index
    %c0_51 = arith.constant 0 : index
    %c0_52 = arith.constant 0 : index
    %107 = vector.load %arg12[%c0_50, %c0_51, %c0_52] : memref<2x32x32xbf16, #tpu.memory_space<vmem>>, vector<1x32x32xbf16>
    %108 = vector.shape_cast %107 : vector<1x32x32xbf16> to vector<32x32xbf16>
    %c0_53 = arith.constant 0 : index
    %c0_54 = arith.constant 0 : index
    %c0_55 = arith.constant 0 : index
    %109 = vector.load %arg13[%c0_53, %c0_54, %c0_55] : memref<2x1x32xf32, #tpu.memory_space<vmem>>, vector<1x1x32xf32>
    %110 = vector.shape_cast %109 : vector<1x1x32xf32> to vector<1x32xf32>
    %111 = arith.truncf %97 : vector<16x32xf32> to vector<16x32xbf16>
    %112 = arith.truncf %105 : vector<32x32xf32> to vector<32x32xbf16>
    %113 = arith.truncf %106 : vector<32x32xf32> to vector<32x32xbf16>
    %114 = vector.extract_strided_slice %111 {offsets = [0, 0], sizes = [16, 8], strides = [1, 1]} : vector<16x32xbf16> to vector<16x8xbf16>
    %115 = vector.extract_strided_slice %111 {offsets = [0, 8], sizes = [16, 8], strides = [1, 1]} : vector<16x32xbf16> to vector<16x8xbf16>
    %116 = vector.extract_strided_slice %111 {offsets = [0, 16], sizes = [16, 8], strides = [1, 1]} : vector<16x32xbf16> to vector<16x8xbf16>
    %117 = vector.extract_strided_slice %111 {offsets = [0, 24], sizes = [16, 8], strides = [1, 1]} : vector<16x32xbf16> to vector<16x8xbf16>
    %118 = tpu.concatenate %114, %115, %116, %117 in 0 : vector<16x8xbf16>, vector<16x8xbf16>, vector<16x8xbf16>, vector<16x8xbf16> -> vector<64x8xbf16>
    %119 = vector.extract_strided_slice %112 {offsets = [0, 0], sizes = [32, 8], strides = [1, 1]} : vector<32x32xbf16> to vector<32x8xbf16>
    %120 = vector.extract_strided_slice %112 {offsets = [0, 8], sizes = [32, 8], strides = [1, 1]} : vector<32x32xbf16> to vector<32x8xbf16>
    %121 = vector.extract_strided_slice %112 {offsets = [0, 16], sizes = [32, 8], strides = [1, 1]} : vector<32x32xbf16> to vector<32x8xbf16>
    %122 = vector.extract_strided_slice %112 {offsets = [0, 24], sizes = [32, 8], strides = [1, 1]} : vector<32x32xbf16> to vector<32x8xbf16>
    %123 = tpu.concatenate %119, %120, %121, %122 in 0 : vector<32x8xbf16>, vector<32x8xbf16>, vector<32x8xbf16>, vector<32x8xbf16> -> vector<128x8xbf16>
    %124 = vector.extract_strided_slice %113 {offsets = [0, 0], sizes = [32, 8], strides = [1, 1]} : vector<32x32xbf16> to vector<32x8xbf16>
    %125 = vector.extract_strided_slice %113 {offsets = [0, 8], sizes = [32, 8], strides = [1, 1]} : vector<32x32xbf16> to vector<32x8xbf16>
    %126 = vector.extract_strided_slice %113 {offsets = [0, 16], sizes = [32, 8], strides = [1, 1]} : vector<32x32xbf16> to vector<32x8xbf16>
    %127 = vector.extract_strided_slice %113 {offsets = [0, 24], sizes = [32, 8], strides = [1, 1]} : vector<32x32xbf16> to vector<32x8xbf16>
    %128 = tpu.concatenate %124, %125, %126, %127 in 0 : vector<32x8xbf16>, vector<32x8xbf16>, vector<32x8xbf16>, vector<32x8xbf16> -> vector<128x8xbf16>
    %cst_56 = arith.constant dense<0.000000e+00> : vector<64x128xf32>
    %129 = tpu.matmul %118, %123, %cst_56 {dimension_numbers = #tpu.dot_dimension_numbers<[1], [1], [0], [0], [0, 0, 1, 0], [], []>} : vector<64x8xbf16>, vector<128x8xbf16>, vector<64x128xf32> -> vector<64x128xf32>
    %cst_57 = arith.constant 0.353553385 : f32
    %130 = vector.broadcast %cst_57 : f32 to vector<64x128xf32>
    %131 = arith.mulf %129, %130 : vector<64x128xf32>
    %132 = arith.addf %131, %1 : vector<64x128xf32>
    %cst_58 = arith.constant dense<0xFF800000> : vector<64xf32>
    %133 = vector.multi_reduction <maximumf>, %132, %cst_58 [1] : vector<64x128xf32> to vector<64xf32>
    %134 = vector.shape_cast %133 : vector<64xf32> to vector<64x1xf32>
    %135 = vector.broadcast %134 : vector<64x1xf32> to vector<64x128xf32>
    %136 = arith.subf %132, %135 : vector<64x128xf32>
    %137 = math.exp %136 : vector<64x128xf32>
    %cst_59 = arith.constant dense<0.000000e+00> : vector<64xf32>
    %138 = vector.multi_reduction <add>, %137, %cst_59 [1] : vector<64x128xf32> to vector<64xf32>
    %139 = vector.shape_cast %138 : vector<64xf32> to vector<64x1xf32>
    %140 = tpu.reciprocal %139 {approx = true} : vector<64x1xf32> -> vector<64x1xf32>
    %141 = vector.broadcast %140 : vector<64x1xf32> to vector<64x128xf32>
    %142 = arith.mulf %137, %141 : vector<64x128xf32>
    %143 = arith.truncf %142 : vector<64x128xf32> to vector<64x128xbf16>
    %cst_60 = arith.constant dense<0.000000e+00> : vector<64x8xf32>
    %144 = tpu.matmul %143, %128, %cst_60 {dimension_numbers = #tpu.dot_dimension_numbers<[1], [0], [0], [1], [0, 0, 1, 1], [], []>} : vector<64x128xbf16>, vector<128x8xbf16>, vector<64x8xf32> -> vector<64x8xf32>
    %145 = vector.extract_strided_slice %144 {offsets = [0, 0], sizes = [16, 8], strides = [1, 1]} : vector<64x8xf32> to vector<16x8xf32>
    %146 = vector.extract_strided_slice %144 {offsets = [16, 0], sizes = [16, 8], strides = [1, 1]} : vector<64x8xf32> to vector<16x8xf32>
    %147 = vector.extract_strided_slice %144 {offsets = [32, 0], sizes = [16, 8], strides = [1, 1]} : vector<64x8xf32> to vector<16x8xf32>
    %148 = vector.extract_strided_slice %144 {offsets = [48, 0], sizes = [16, 8], strides = [1, 1]} : vector<64x8xf32> to vector<16x8xf32>
    %149 = tpu.concatenate %145, %146, %147, %148 in 1 : vector<16x8xf32>, vector<16x8xf32>, vector<16x8xf32>, vector<16x8xf32> -> vector<16x32xf32>
    %150 = arith.truncf %149 : vector<16x32xf32> to vector<16x32xbf16>
    %cst_61 = arith.constant dense<0.000000e+00> : vector<16x32xf32>
    %151 = tpu.matmul %150, %108, %cst_61 {dimension_numbers = #tpu.dot_dimension_numbers<[1], [0], [0], [1], [0, 0, 1, 1], [], []>} : vector<16x32xbf16>, vector<32x32xbf16>, vector<16x32xf32> -> vector<16x32xf32>
    %152 = vector.broadcast %110 : vector<1x32xf32> to vector<16x32xf32>
    %153 = arith.addf %151, %152 : vector<16x32xf32>
    %154 = arith.addf %89, %153 : vector<16x32xf32>
    %c0_62 = arith.constant 0 : index
    %c1 = arith.constant 1 : index
    %c0_63 = arith.constant 0 : index
    %155 = vector.load %arg18[%c0_62, %c1, %c0_63] : memref<2x3x32xf32, #tpu.memory_space<vmem>>, vector<1x1x32xf32>
    %156 = vector.shape_cast %155 : vector<1x1x32xf32> to vector<1x32xf32>
    %c0_64 = arith.constant 0 : index
    %c1_65 = arith.constant 1 : index
    %c0_66 = arith.constant 0 : index
    %157 = vector.load %arg19[%c0_64, %c1_65, %c0_66] : memref<2x3x32xf32, #tpu.memory_space<vmem>>, vector<1x1x32xf32>
    %158 = vector.shape_cast %157 : vector<1x1x32xf32> to vector<1x32xf32>
    %cst_67 = arith.constant dense<0.000000e+00> : vector<16xf32>
    %159 = vector.multi_reduction <add>, %154, %cst_67 [1] : vector<16x32xf32> to vector<16xf32>
    %160 = vector.shape_cast %159 : vector<16xf32> to vector<16x1xf32>
    %cst_68 = arith.constant 3.200000e+01 : f32
    %161 = vector.broadcast %cst_68 : f32 to vector<16x1xf32>
    %162 = arith.divf %160, %161 : vector<16x1xf32>
    %163 = vector.broadcast %162 : vector<16x1xf32> to vector<16x32xf32>
    %164 = arith.subf %154, %163 : vector<16x32xf32>
    %165 = arith.mulf %164, %164 : vector<16x32xf32>
    %cst_69 = arith.constant dense<0.000000e+00> : vector<16xf32>
    %166 = vector.multi_reduction <add>, %165, %cst_69 [1] : vector<16x32xf32> to vector<16xf32>
    %167 = vector.shape_cast %166 : vector<16xf32> to vector<16x1xf32>
    %cst_70 = arith.constant 3.200000e+01 : f32
    %168 = vector.broadcast %cst_70 : f32 to vector<16x1xf32>
    %169 = arith.divf %167, %168 : vector<16x1xf32>
    %170 = vector.broadcast %162 : vector<16x1xf32> to vector<16x32xf32>
    %171 = arith.subf %154, %170 : vector<16x32xf32>
    %cst_71 = arith.constant 9.99999974E-6 : f32
    %172 = vector.broadcast %cst_71 : f32 to vector<16x1xf32>
    %173 = arith.addf %169, %172 : vector<16x1xf32>
    %174 = math.rsqrt %173 : vector<16x1xf32>
    %175 = vector.broadcast %174 : vector<16x1xf32> to vector<16x32xf32>
    %176 = arith.mulf %171, %175 : vector<16x32xf32>
    %177 = vector.broadcast %156 : vector<1x32xf32> to vector<16x32xf32>
    %178 = arith.mulf %176, %177 : vector<16x32xf32>
    %179 = vector.broadcast %158 : vector<1x32xf32> to vector<16x32xf32>
    %180 = arith.addf %178, %179 : vector<16x32xf32>
    %181 = arith.truncf %180 : vector<16x32xf32> to vector<16x32xbf16>
    %cst_72 = arith.constant 0.000000e+00 : f32
    %182 = vector.broadcast %cst_72 : f32 to vector<16x32xf32>
    %c0_73 = arith.constant 0 : index
    %c0_74 = arith.constant 0 : index
    %c0_75 = arith.constant 0 : index
    %183 = vector.load %arg14[%c0_73, %c0_74, %c0_75] : memref<2x32x2048xbf16, #tpu.memory_space<vmem>>, vector<1x32x512xbf16>
    %184 = vector.shape_cast %183 : vector<1x32x512xbf16> to vector<32x512xbf16>
    %cst_76 = arith.constant dense<0.000000e+00> : vector<16x512xf32>
    %185 = tpu.matmul %181, %184, %cst_76 {dimension_numbers = #tpu.dot_dimension_numbers<[1], [0], [0], [1], [0, 0, 1, 1], [], []>} : vector<16x32xbf16>, vector<32x512xbf16>, vector<16x512xf32> -> vector<16x512xf32>
    %c0_77 = arith.constant 0 : index
    %c0_78 = arith.constant 0 : index
    %c0_79 = arith.constant 0 : index
    %186 = vector.load %arg15[%c0_77, %c0_78, %c0_79] : memref<2x1x2048xf32, #tpu.memory_space<vmem>>, vector<1x1x512xf32>
    %187 = vector.shape_cast %186 : vector<1x1x512xf32> to vector<1x512xf32>
    %188 = vector.broadcast %187 : vector<1x512xf32> to vector<16x512xf32>
    %189 = arith.addf %185, %188 : vector<16x512xf32>
    %cst_80 = arith.constant 0.000000e+00 : f32
    %190 = vector.broadcast %cst_80 : f32 to vector<16x512xf32>
    %191 = arith.maximumf %189, %190 : vector<16x512xf32>
    %192 = arith.truncf %191 : vector<16x512xf32> to vector<16x512xbf16>
    %c0_81 = arith.constant 0 : index
    %c0_82 = arith.constant 0 : index
    %c0_83 = arith.constant 0 : index
    %193 = vector.load %arg16[%c0_81, %c0_82, %c0_83] : memref<2x2048x32xbf16, #tpu.memory_space<vmem>>, vector<1x512x32xbf16>
    %194 = vector.shape_cast %193 : vector<1x512x32xbf16> to vector<512x32xbf16>
    %cst_84 = arith.constant dense<0.000000e+00> : vector<16x32xf32>
    %195 = tpu.matmul %192, %194, %cst_84 {dimension_numbers = #tpu.dot_dimension_numbers<[1], [0], [0], [1], [0, 0, 1, 1], [], []>} : vector<16x512xbf16>, vector<512x32xbf16>, vector<16x32xf32> -> vector<16x32xf32>
    %196 = arith.addf %182, %195 : vector<16x32xf32>
    %c0_85 = arith.constant 0 : index
    %c0_86 = arith.constant 0 : index
    %c512 = arith.constant 512 : index
    %197 = vector.load %arg14[%c0_85, %c0_86, %c512] : memref<2x32x2048xbf16, #tpu.memory_space<vmem>>, vector<1x32x512xbf16>
    %198 = vector.shape_cast %197 : vector<1x32x512xbf16> to vector<32x512xbf16>
    %cst_87 = arith.constant dense<0.000000e+00> : vector<16x512xf32>
    %199 = tpu.matmul %181, %198, %cst_87 {dimension_numbers = #tpu.dot_dimension_numbers<[1], [0], [0], [1], [0, 0, 1, 1], [], []>} : vector<16x32xbf16>, vector<32x512xbf16>, vector<16x512xf32> -> vector<16x512xf32>
    %c0_88 = arith.constant 0 : index
    %c0_89 = arith.constant 0 : index
    %c512_90 = arith.constant 512 : index
    %200 = vector.load %arg15[%c0_88, %c0_89, %c512_90] : memref<2x1x2048xf32, #tpu.memory_space<vmem>>, vector<1x1x512xf32>
    %201 = vector.shape_cast %200 : vector<1x1x512xf32> to vector<1x512xf32>
    %202 = vector.broadcast %201 : vector<1x512xf32> to vector<16x512xf32>
    %203 = arith.addf %199, %202 : vector<16x512xf32>
    %cst_91 = arith.constant 0.000000e+00 : f32
    %204 = vector.broadcast %cst_91 : f32 to vector<16x512xf32>
    %205 = arith.maximumf %203, %204 : vector<16x512xf32>
    %206 = arith.truncf %205 : vector<16x512xf32> to vector<16x512xbf16>
    %c0_92 = arith.constant 0 : index
    %c512_93 = arith.constant 512 : index
    %c0_94 = arith.constant 0 : index
    %207 = vector.load %arg16[%c0_92, %c512_93, %c0_94] : memref<2x2048x32xbf16, #tpu.memory_space<vmem>>, vector<1x512x32xbf16>
    %208 = vector.shape_cast %207 : vector<1x512x32xbf16> to vector<512x32xbf16>
    %cst_95 = arith.constant dense<0.000000e+00> : vector<16x32xf32>
    %209 = tpu.matmul %206, %208, %cst_95 {dimension_numbers = #tpu.dot_dimension_numbers<[1], [0], [0], [1], [0, 0, 1, 1], [], []>} : vector<16x512xbf16>, vector<512x32xbf16>, vector<16x32xf32> -> vector<16x32xf32>
    %210 = arith.addf %196, %209 : vector<16x32xf32>
    %c0_96 = arith.constant 0 : index
    %c0_97 = arith.constant 0 : index
    %c1024 = arith.constant 1024 : index
    %211 = vector.load %arg14[%c0_96, %c0_97, %c1024] : memref<2x32x2048xbf16, #tpu.memory_space<vmem>>, vector<1x32x512xbf16>
    %212 = vector.shape_cast %211 : vector<1x32x512xbf16> to vector<32x512xbf16>
    %cst_98 = arith.constant dense<0.000000e+00> : vector<16x512xf32>
    %213 = tpu.matmul %181, %212, %cst_98 {dimension_numbers = #tpu.dot_dimension_numbers<[1], [0], [0], [1], [0, 0, 1, 1], [], []>} : vector<16x32xbf16>, vector<32x512xbf16>, vector<16x512xf32> -> vector<16x512xf32>
    %c0_99 = arith.constant 0 : index
    %c0_100 = arith.constant 0 : index
    %c1024_101 = arith.constant 1024 : index
    %214 = vector.load %arg15[%c0_99, %c0_100, %c1024_101] : memref<2x1x2048xf32, #tpu.memory_space<vmem>>, vector<1x1x512xf32>
    %215 = vector.shape_cast %214 : vector<1x1x512xf32> to vector<1x512xf32>
    %216 = vector.broadcast %215 : vector<1x512xf32> to vector<16x512xf32>
    %217 = arith.addf %213, %216 : vector<16x512xf32>
    %cst_102 = arith.constant 0.000000e+00 : f32
    %218 = vector.broadcast %cst_102 : f32 to vector<16x512xf32>
    %219 = arith.maximumf %217, %218 : vector<16x512xf32>
    %220 = arith.truncf %219 : vector<16x512xf32> to vector<16x512xbf16>
    %c0_103 = arith.constant 0 : index
    %c1024_104 = arith.constant 1024 : index
    %c0_105 = arith.constant 0 : index
    %221 = vector.load %arg16[%c0_103, %c1024_104, %c0_105] : memref<2x2048x32xbf16, #tpu.memory_space<vmem>>, vector<1x512x32xbf16>
    %222 = vector.shape_cast %221 : vector<1x512x32xbf16> to vector<512x32xbf16>
    %cst_106 = arith.constant dense<0.000000e+00> : vector<16x32xf32>
    %223 = tpu.matmul %220, %222, %cst_106 {dimension_numbers = #tpu.dot_dimension_numbers<[1], [0], [0], [1], [0, 0, 1, 1], [], []>} : vector<16x512xbf16>, vector<512x32xbf16>, vector<16x32xf32> -> vector<16x32xf32>
    %224 = arith.addf %210, %223 : vector<16x32xf32>
    %c0_107 = arith.constant 0 : index
    %c0_108 = arith.constant 0 : index
    %c1536 = arith.constant 1536 : index
    %225 = vector.load %arg14[%c0_107, %c0_108, %c1536] : memref<2x32x2048xbf16, #tpu.memory_space<vmem>>, vector<1x32x512xbf16>
    %226 = vector.shape_cast %225 : vector<1x32x512xbf16> to vector<32x512xbf16>
    %cst_109 = arith.constant dense<0.000000e+00> : vector<16x512xf32>
    %227 = tpu.matmul %181, %226, %cst_109 {dimension_numbers = #tpu.dot_dimension_numbers<[1], [0], [0], [1], [0, 0, 1, 1], [], []>} : vector<16x32xbf16>, vector<32x512xbf16>, vector<16x512xf32> -> vector<16x512xf32>
    %c0_110 = arith.constant 0 : index
    %c0_111 = arith.constant 0 : index
    %c1536_112 = arith.constant 1536 : index
    %228 = vector.load %arg15[%c0_110, %c0_111, %c1536_112] : memref<2x1x2048xf32, #tpu.memory_space<vmem>>, vector<1x1x512xf32>
    %229 = vector.shape_cast %228 : vector<1x1x512xf32> to vector<1x512xf32>
    %230 = vector.broadcast %229 : vector<1x512xf32> to vector<16x512xf32>
    %231 = arith.addf %227, %230 : vector<16x512xf32>
    %cst_113 = arith.constant 0.000000e+00 : f32
    %232 = vector.broadcast %cst_113 : f32 to vector<16x512xf32>
    %233 = arith.maximumf %231, %232 : vector<16x512xf32>
    %234 = arith.truncf %233 : vector<16x512xf32> to vector<16x512xbf16>
    %c0_114 = arith.constant 0 : index
    %c1536_115 = arith.constant 1536 : index
    %c0_116 = arith.constant 0 : index
    %235 = vector.load %arg16[%c0_114, %c1536_115, %c0_116] : memref<2x2048x32xbf16, #tpu.memory_space<vmem>>, vector<1x512x32xbf16>
    %236 = vector.shape_cast %235 : vector<1x512x32xbf16> to vector<512x32xbf16>
    %cst_117 = arith.constant dense<0.000000e+00> : vector<16x32xf32>
    %237 = tpu.matmul %234, %236, %cst_117 {dimension_numbers = #tpu.dot_dimension_numbers<[1], [0], [0], [1], [0, 0, 1, 1], [], []>} : vector<16x512xbf16>, vector<512x32xbf16>, vector<16x32xf32> -> vector<16x32xf32>
    %238 = arith.addf %224, %237 : vector<16x32xf32>
    %c0_118 = arith.constant 0 : index
    %c0_119 = arith.constant 0 : index
    %c0_120 = arith.constant 0 : index
    %239 = vector.load %arg17[%c0_118, %c0_119, %c0_120] : memref<2x1x32xf32, #tpu.memory_space<vmem>>, vector<1x1x32xf32>
    %240 = vector.shape_cast %239 : vector<1x1x32xf32> to vector<1x32xf32>
    %241 = vector.broadcast %240 : vector<1x32xf32> to vector<16x32xf32>
    %242 = arith.addf %238, %241 : vector<16x32xf32>
    %243 = arith.addf %180, %242 : vector<16x32xf32>
    %c0_121 = arith.constant 0 : index
    %c2 = arith.constant 2 : index
    %c0_122 = arith.constant 0 : index
    %244 = vector.load %arg18[%c0_121, %c2, %c0_122] : memref<2x3x32xf32, #tpu.memory_space<vmem>>, vector<1x1x32xf32>
    %245 = vector.shape_cast %244 : vector<1x1x32xf32> to vector<1x32xf32>
    %c0_123 = arith.constant 0 : index
    %c2_124 = arith.constant 2 : index
    %c0_125 = arith.constant 0 : index
    %246 = vector.load %arg19[%c0_123, %c2_124, %c0_125] : memref<2x3x32xf32, #tpu.memory_space<vmem>>, vector<1x1x32xf32>
    %247 = vector.shape_cast %246 : vector<1x1x32xf32> to vector<1x32xf32>
    %cst_126 = arith.constant dense<0.000000e+00> : vector<16xf32>
    %248 = vector.multi_reduction <add>, %243, %cst_126 [1] : vector<16x32xf32> to vector<16xf32>
    %249 = vector.shape_cast %248 : vector<16xf32> to vector<16x1xf32>
    %cst_127 = arith.constant 3.200000e+01 : f32
    %250 = vector.broadcast %cst_127 : f32 to vector<16x1xf32>
    %251 = arith.divf %249, %250 : vector<16x1xf32>
    %252 = vector.broadcast %251 : vector<16x1xf32> to vector<16x32xf32>
    %253 = arith.subf %243, %252 : vector<16x32xf32>
    %254 = arith.mulf %253, %253 : vector<16x32xf32>
    %cst_128 = arith.constant dense<0.000000e+00> : vector<16xf32>
    %255 = vector.multi_reduction <add>, %254, %cst_128 [1] : vector<16x32xf32> to vector<16xf32>
    %256 = vector.shape_cast %255 : vector<16xf32> to vector<16x1xf32>
    %cst_129 = arith.constant 3.200000e+01 : f32
    %257 = vector.broadcast %cst_129 : f32 to vector<16x1xf32>
    %258 = arith.divf %256, %257 : vector<16x1xf32>
    %259 = vector.broadcast %251 : vector<16x1xf32> to vector<16x32xf32>
    %260 = arith.subf %243, %259 : vector<16x32xf32>
    %cst_130 = arith.constant 9.99999974E-6 : f32
    %261 = vector.broadcast %cst_130 : f32 to vector<16x1xf32>
    %262 = arith.addf %258, %261 : vector<16x1xf32>
    %263 = math.rsqrt %262 : vector<16x1xf32>
    %264 = vector.broadcast %263 : vector<16x1xf32> to vector<16x32xf32>
    %265 = arith.mulf %260, %264 : vector<16x32xf32>
    %266 = vector.broadcast %245 : vector<1x32xf32> to vector<16x32xf32>
    %267 = arith.mulf %265, %266 : vector<16x32xf32>
    %268 = vector.broadcast %247 : vector<1x32xf32> to vector<16x32xf32>
    %269 = arith.addf %267, %268 : vector<16x32xf32>
    %270 = arith.truncf %269 : vector<16x32xf32> to vector<16x32xbf16>
    %c1_131 = arith.constant 1 : index
    %c0_132 = arith.constant 0 : index
    %c0_133 = arith.constant 0 : index
    %271 = vector.load %arg4[%c1_131, %c0_132, %c0_133] : memref<2x32x96xbf16, #tpu.memory_space<vmem>>, vector<1x32x96xbf16>
    %272 = vector.shape_cast %271 : vector<1x32x96xbf16> to vector<32x96xbf16>
    %cst_134 = arith.constant dense<0.000000e+00> : vector<16x96xf32>
    %273 = tpu.matmul %270, %272, %cst_134 {dimension_numbers = #tpu.dot_dimension_numbers<[1], [0], [0], [1], [0, 0, 1, 1], [], []>} : vector<16x32xbf16>, vector<32x96xbf16>, vector<16x96xf32> -> vector<16x96xf32>
    %c1_135 = arith.constant 1 : index
    %c0_136 = arith.constant 0 : index
    %c0_137 = arith.constant 0 : index
    %274 = vector.load %arg5[%c1_135, %c0_136, %c0_137] : memref<2x1x96xf32, #tpu.memory_space<vmem>>, vector<1x1x96xf32>
    %275 = vector.shape_cast %274 : vector<1x1x96xf32> to vector<1x96xf32>
    %276 = vector.broadcast %275 : vector<1x96xf32> to vector<16x96xf32>
    %277 = arith.addf %273, %276 : vector<16x96xf32>
    %278 = vector.extract_strided_slice %277 {offsets = [0, 0], sizes = [16, 32], strides = [1, 1]} : vector<16x96xf32> to vector<16x32xf32>
    %279 = vector.extract_strided_slice %277 {offsets = [0, 32], sizes = [16, 32], strides = [1, 1]} : vector<16x96xf32> to vector<16x32xf32>
    %280 = vector.extract_strided_slice %277 {offsets = [0, 64], sizes = [16, 32], strides = [1, 1]} : vector<16x96xf32> to vector<16x32xf32>
    %c1_138 = arith.constant 1 : index
    %c0_139 = arith.constant 0 : index
    %c0_140 = arith.constant 0 : index
    %281 = vector.load %arg6[%c1_138, %c0_139, %c0_140] : memref<2x32x32xbf16, #tpu.memory_space<vmem>>, vector<1x32x32xbf16>
    %282 = vector.shape_cast %281 : vector<1x32x32xbf16> to vector<32x32xbf16>
    %c1_141 = arith.constant 1 : index
    %c0_142 = arith.constant 0 : index
    %c0_143 = arith.constant 0 : index
    %283 = vector.load %arg7[%c1_141, %c0_142, %c0_143] : memref<2x1x32xf32, #tpu.memory_space<vmem>>, vector<1x1x32xf32>
    %284 = vector.shape_cast %283 : vector<1x1x32xf32> to vector<1x32xf32>
    %285 = arith.truncf %278 : vector<16x32xf32> to vector<16x32xbf16>
    %286 = arith.truncf %279 : vector<16x32xf32> to vector<16x32xbf16>
    %287 = arith.truncf %280 : vector<16x32xf32> to vector<16x32xbf16>
    %288 = vector.extract_strided_slice %285 {offsets = [0, 0], sizes = [16, 8], strides = [1, 1]} : vector<16x32xbf16> to vector<16x8xbf16>
    %289 = vector.extract_strided_slice %285 {offsets = [0, 8], sizes = [16, 8], strides = [1, 1]} : vector<16x32xbf16> to vector<16x8xbf16>
    %290 = vector.extract_strided_slice %285 {offsets = [0, 16], sizes = [16, 8], strides = [1, 1]} : vector<16x32xbf16> to vector<16x8xbf16>
    %291 = vector.extract_strided_slice %285 {offsets = [0, 24], sizes = [16, 8], strides = [1, 1]} : vector<16x32xbf16> to vector<16x8xbf16>
    %292 = tpu.concatenate %288, %289, %290, %291 in 0 : vector<16x8xbf16>, vector<16x8xbf16>, vector<16x8xbf16>, vector<16x8xbf16> -> vector<64x8xbf16>
    %293 = vector.extract_strided_slice %286 {offsets = [0, 0], sizes = [16, 8], strides = [1, 1]} : vector<16x32xbf16> to vector<16x8xbf16>
    %294 = vector.extract_strided_slice %286 {offsets = [0, 8], sizes = [16, 8], strides = [1, 1]} : vector<16x32xbf16> to vector<16x8xbf16>
    %295 = vector.extract_strided_slice %286 {offsets = [0, 16], sizes = [16, 8], strides = [1, 1]} : vector<16x32xbf16> to vector<16x8xbf16>
    %296 = vector.extract_strided_slice %286 {offsets = [0, 24], sizes = [16, 8], strides = [1, 1]} : vector<16x32xbf16> to vector<16x8xbf16>
    %297 = tpu.concatenate %293, %294, %295, %296 in 0 : vector<16x8xbf16>, vector<16x8xbf16>, vector<16x8xbf16>, vector<16x8xbf16> -> vector<64x8xbf16>
    %298 = vector.extract_strided_slice %287 {offsets = [0, 0], sizes = [16, 8], strides = [1, 1]} : vector<16x32xbf16> to vector<16x8xbf16>
    %299 = vector.extract_strided_slice %287 {offsets = [0, 8], sizes = [16, 8], strides = [1, 1]} : vector<16x32xbf16> to vector<16x8xbf16>
    %300 = vector.extract_strided_slice %287 {offsets = [0, 16], sizes = [16, 8], strides = [1, 1]} : vector<16x32xbf16> to vector<16x8xbf16>
    %301 = vector.extract_strided_slice %287 {offsets = [0, 24], sizes = [16, 8], strides = [1, 1]} : vector<16x32xbf16> to vector<16x8xbf16>
    %302 = tpu.concatenate %298, %299, %300, %301 in 0 : vector<16x8xbf16>, vector<16x8xbf16>, vector<16x8xbf16>, vector<16x8xbf16> -> vector<64x8xbf16>
    %cst_144 = arith.constant dense<0.000000e+00> : vector<64x64xf32>
    %303 = tpu.matmul %292, %297, %cst_144 {dimension_numbers = #tpu.dot_dimension_numbers<[1], [1], [0], [0], [0, 0, 1, 0], [], []>} : vector<64x8xbf16>, vector<64x8xbf16>, vector<64x64xf32> -> vector<64x64xf32>
    %cst_145 = arith.constant 0.353553385 : f32
    %304 = vector.broadcast %cst_145 : f32 to vector<64x64xf32>
    %305 = arith.mulf %303, %304 : vector<64x64xf32>
    %306 = arith.addf %305, %0 : vector<64x64xf32>
    %cst_146 = arith.constant dense<0xFF800000> : vector<64xf32>
    %307 = vector.multi_reduction <maximumf>, %306, %cst_146 [1] : vector<64x64xf32> to vector<64xf32>
    %308 = vector.shape_cast %307 : vector<64xf32> to vector<64x1xf32>
    %309 = vector.broadcast %308 : vector<64x1xf32> to vector<64x64xf32>
    %310 = arith.subf %306, %309 : vector<64x64xf32>
    %311 = math.exp %310 : vector<64x64xf32>
    %cst_147 = arith.constant dense<0.000000e+00> : vector<64xf32>
    %312 = vector.multi_reduction <add>, %311, %cst_147 [1] : vector<64x64xf32> to vector<64xf32>
    %313 = vector.shape_cast %312 : vector<64xf32> to vector<64x1xf32>
    %314 = tpu.reciprocal %313 {approx = true} : vector<64x1xf32> -> vector<64x1xf32>
    %315 = vector.broadcast %314 : vector<64x1xf32> to vector<64x64xf32>
    %316 = arith.mulf %311, %315 : vector<64x64xf32>
    %317 = arith.truncf %316 : vector<64x64xf32> to vector<64x64xbf16>
    %cst_148 = arith.constant dense<0.000000e+00> : vector<64x8xf32>
    %318 = tpu.matmul %317, %302, %cst_148 {dimension_numbers = #tpu.dot_dimension_numbers<[1], [0], [0], [1], [0, 0, 1, 1], [], []>} : vector<64x64xbf16>, vector<64x8xbf16>, vector<64x8xf32> -> vector<64x8xf32>
    %319 = vector.extract_strided_slice %318 {offsets = [0, 0], sizes = [16, 8], strides = [1, 1]} : vector<64x8xf32> to vector<16x8xf32>
    %320 = vector.extract_strided_slice %318 {offsets = [16, 0], sizes = [16, 8], strides = [1, 1]} : vector<64x8xf32> to vector<16x8xf32>
    %321 = vector.extract_strided_slice %318 {offsets = [32, 0], sizes = [16, 8], strides = [1, 1]} : vector<64x8xf32> to vector<16x8xf32>
    %322 = vector.extract_strided_slice %318 {offsets = [48, 0], sizes = [16, 8], strides = [1, 1]} : vector<64x8xf32> to vector<16x8xf32>
    %323 = tpu.concatenate %319, %320, %321, %322 in 1 : vector<16x8xf32>, vector<16x8xf32>, vector<16x8xf32>, vector<16x8xf32> -> vector<16x32xf32>
    %324 = arith.truncf %323 : vector<16x32xf32> to vector<16x32xbf16>
    %cst_149 = arith.constant dense<0.000000e+00> : vector<16x32xf32>
    %325 = tpu.matmul %324, %282, %cst_149 {dimension_numbers = #tpu.dot_dimension_numbers<[1], [0], [0], [1], [0, 0, 1, 1], [], []>} : vector<16x32xbf16>, vector<32x32xbf16>, vector<16x32xf32> -> vector<16x32xf32>
    %326 = vector.broadcast %284 : vector<1x32xf32> to vector<16x32xf32>
    %327 = arith.addf %325, %326 : vector<16x32xf32>
    %328 = arith.addf %269, %327 : vector<16x32xf32>
    %c1_150 = arith.constant 1 : index
    %c0_151 = arith.constant 0 : index
    %c0_152 = arith.constant 0 : index
    %329 = vector.load %arg18[%c1_150, %c0_151, %c0_152] : memref<2x3x32xf32, #tpu.memory_space<vmem>>, vector<1x1x32xf32>
    %330 = vector.shape_cast %329 : vector<1x1x32xf32> to vector<1x32xf32>
    %c1_153 = arith.constant 1 : index
    %c0_154 = arith.constant 0 : index
    %c0_155 = arith.constant 0 : index
    %331 = vector.load %arg19[%c1_153, %c0_154, %c0_155] : memref<2x3x32xf32, #tpu.memory_space<vmem>>, vector<1x1x32xf32>
    %332 = vector.shape_cast %331 : vector<1x1x32xf32> to vector<1x32xf32>
    %cst_156 = arith.constant dense<0.000000e+00> : vector<16xf32>
    %333 = vector.multi_reduction <add>, %328, %cst_156 [1] : vector<16x32xf32> to vector<16xf32>
    %334 = vector.shape_cast %333 : vector<16xf32> to vector<16x1xf32>
    %cst_157 = arith.constant 3.200000e+01 : f32
    %335 = vector.broadcast %cst_157 : f32 to vector<16x1xf32>
    %336 = arith.divf %334, %335 : vector<16x1xf32>
    %337 = vector.broadcast %336 : vector<16x1xf32> to vector<16x32xf32>
    %338 = arith.subf %328, %337 : vector<16x32xf32>
    %339 = arith.mulf %338, %338 : vector<16x32xf32>
    %cst_158 = arith.constant dense<0.000000e+00> : vector<16xf32>
    %340 = vector.multi_reduction <add>, %339, %cst_158 [1] : vector<16x32xf32> to vector<16xf32>
    %341 = vector.shape_cast %340 : vector<16xf32> to vector<16x1xf32>
    %cst_159 = arith.constant 3.200000e+01 : f32
    %342 = vector.broadcast %cst_159 : f32 to vector<16x1xf32>
    %343 = arith.divf %341, %342 : vector<16x1xf32>
    %344 = vector.broadcast %336 : vector<16x1xf32> to vector<16x32xf32>
    %345 = arith.subf %328, %344 : vector<16x32xf32>
    %cst_160 = arith.constant 9.99999974E-6 : f32
    %346 = vector.broadcast %cst_160 : f32 to vector<16x1xf32>
    %347 = arith.addf %343, %346 : vector<16x1xf32>
    %348 = math.rsqrt %347 : vector<16x1xf32>
    %349 = vector.broadcast %348 : vector<16x1xf32> to vector<16x32xf32>
    %350 = arith.mulf %345, %349 : vector<16x32xf32>
    %351 = vector.broadcast %330 : vector<1x32xf32> to vector<16x32xf32>
    %352 = arith.mulf %350, %351 : vector<16x32xf32>
    %353 = vector.broadcast %332 : vector<1x32xf32> to vector<16x32xf32>
    %354 = arith.addf %352, %353 : vector<16x32xf32>
    %355 = arith.truncf %354 : vector<16x32xf32> to vector<16x32xbf16>
    %c1_161 = arith.constant 1 : index
    %c0_162 = arith.constant 0 : index
    %c0_163 = arith.constant 0 : index
    %356 = vector.load %arg8[%c1_161, %c0_162, %c0_163] : memref<2x32x32xbf16, #tpu.memory_space<vmem>>, vector<1x32x32xbf16>
    %357 = vector.shape_cast %356 : vector<1x32x32xbf16> to vector<32x32xbf16>
    %cst_164 = arith.constant dense<0.000000e+00> : vector<16x32xf32>
    %358 = tpu.matmul %355, %357, %cst_164 {dimension_numbers = #tpu.dot_dimension_numbers<[1], [0], [0], [1], [0, 0, 1, 1], [], []>} : vector<16x32xbf16>, vector<32x32xbf16>, vector<16x32xf32> -> vector<16x32xf32>
    %c1_165 = arith.constant 1 : index
    %c0_166 = arith.constant 0 : index
    %c0_167 = arith.constant 0 : index
    %359 = vector.load %arg9[%c1_165, %c0_166, %c0_167] : memref<2x1x32xf32, #tpu.memory_space<vmem>>, vector<1x1x32xf32>
    %360 = vector.shape_cast %359 : vector<1x1x32xf32> to vector<1x32xf32>
    %361 = vector.broadcast %360 : vector<1x32xf32> to vector<16x32xf32>
    %362 = arith.addf %358, %361 : vector<16x32xf32>
    %c1_168 = arith.constant 1 : index
    %c0_169 = arith.constant 0 : index
    %c0_170 = arith.constant 0 : index
    %363 = vector.load %arg10[%c1_168, %c0_169, %c0_170] : memref<2x32x64xbf16, #tpu.memory_space<vmem>>, vector<1x32x64xbf16>
    %364 = vector.shape_cast %363 : vector<1x32x64xbf16> to vector<32x64xbf16>
    %cst_171 = arith.constant dense<0.000000e+00> : vector<32x64xf32>
    %365 = tpu.matmul %3, %364, %cst_171 {dimension_numbers = #tpu.dot_dimension_numbers<[1], [0], [0], [1], [0, 0, 1, 1], [], []>} : vector<32x32xbf16>, vector<32x64xbf16>, vector<32x64xf32> -> vector<32x64xf32>
    %c1_172 = arith.constant 1 : index
    %c0_173 = arith.constant 0 : index
    %c0_174 = arith.constant 0 : index
    %366 = vector.load %arg11[%c1_172, %c0_173, %c0_174] : memref<2x1x64xf32, #tpu.memory_space<vmem>>, vector<1x1x64xf32>
    %367 = vector.shape_cast %366 : vector<1x1x64xf32> to vector<1x64xf32>
    %368 = vector.broadcast %367 : vector<1x64xf32> to vector<32x64xf32>
    %369 = arith.addf %365, %368 : vector<32x64xf32>
    %370 = vector.extract_strided_slice %369 {offsets = [0, 0], sizes = [32, 32], strides = [1, 1]} : vector<32x64xf32> to vector<32x32xf32>
    %371 = vector.extract_strided_slice %369 {offsets = [0, 32], sizes = [32, 32], strides = [1, 1]} : vector<32x64xf32> to vector<32x32xf32>
    %c1_175 = arith.constant 1 : index
    %c0_176 = arith.constant 0 : index
    %c0_177 = arith.constant 0 : index
    %372 = vector.load %arg12[%c1_175, %c0_176, %c0_177] : memref<2x32x32xbf16, #tpu.memory_space<vmem>>, vector<1x32x32xbf16>
    %373 = vector.shape_cast %372 : vector<1x32x32xbf16> to vector<32x32xbf16>
    %c1_178 = arith.constant 1 : index
    %c0_179 = arith.constant 0 : index
    %c0_180 = arith.constant 0 : index
    %374 = vector.load %arg13[%c1_178, %c0_179, %c0_180] : memref<2x1x32xf32, #tpu.memory_space<vmem>>, vector<1x1x32xf32>
    %375 = vector.shape_cast %374 : vector<1x1x32xf32> to vector<1x32xf32>
    %376 = arith.truncf %362 : vector<16x32xf32> to vector<16x32xbf16>
    %377 = arith.truncf %370 : vector<32x32xf32> to vector<32x32xbf16>
    %378 = arith.truncf %371 : vector<32x32xf32> to vector<32x32xbf16>
    %379 = vector.extract_strided_slice %376 {offsets = [0, 0], sizes = [16, 8], strides = [1, 1]} : vector<16x32xbf16> to vector<16x8xbf16>
    %380 = vector.extract_strided_slice %376 {offsets = [0, 8], sizes = [16, 8], strides = [1, 1]} : vector<16x32xbf16> to vector<16x8xbf16>
    %381 = vector.extract_strided_slice %376 {offsets = [0, 16], sizes = [16, 8], strides = [1, 1]} : vector<16x32xbf16> to vector<16x8xbf16>
    %382 = vector.extract_strided_slice %376 {offsets = [0, 24], sizes = [16, 8], strides = [1, 1]} : vector<16x32xbf16> to vector<16x8xbf16>
    %383 = tpu.concatenate %379, %380, %381, %382 in 0 : vector<16x8xbf16>, vector<16x8xbf16>, vector<16x8xbf16>, vector<16x8xbf16> -> vector<64x8xbf16>
    %384 = vector.extract_strided_slice %377 {offsets = [0, 0], sizes = [32, 8], strides = [1, 1]} : vector<32x32xbf16> to vector<32x8xbf16>
    %385 = vector.extract_strided_slice %377 {offsets = [0, 8], sizes = [32, 8], strides = [1, 1]} : vector<32x32xbf16> to vector<32x8xbf16>
    %386 = vector.extract_strided_slice %377 {offsets = [0, 16], sizes = [32, 8], strides = [1, 1]} : vector<32x32xbf16> to vector<32x8xbf16>
    %387 = vector.extract_strided_slice %377 {offsets = [0, 24], sizes = [32, 8], strides = [1, 1]} : vector<32x32xbf16> to vector<32x8xbf16>
    %388 = tpu.concatenate %384, %385, %386, %387 in 0 : vector<32x8xbf16>, vector<32x8xbf16>, vector<32x8xbf16>, vector<32x8xbf16> -> vector<128x8xbf16>
    %389 = vector.extract_strided_slice %378 {offsets = [0, 0], sizes = [32, 8], strides = [1, 1]} : vector<32x32xbf16> to vector<32x8xbf16>
    %390 = vector.extract_strided_slice %378 {offsets = [0, 8], sizes = [32, 8], strides = [1, 1]} : vector<32x32xbf16> to vector<32x8xbf16>
    %391 = vector.extract_strided_slice %378 {offsets = [0, 16], sizes = [32, 8], strides = [1, 1]} : vector<32x32xbf16> to vector<32x8xbf16>
    %392 = vector.extract_strided_slice %378 {offsets = [0, 24], sizes = [32, 8], strides = [1, 1]} : vector<32x32xbf16> to vector<32x8xbf16>
    %393 = tpu.concatenate %389, %390, %391, %392 in 0 : vector<32x8xbf16>, vector<32x8xbf16>, vector<32x8xbf16>, vector<32x8xbf16> -> vector<128x8xbf16>
    %cst_181 = arith.constant dense<0.000000e+00> : vector<64x128xf32>
    %394 = tpu.matmul %383, %388, %cst_181 {dimension_numbers = #tpu.dot_dimension_numbers<[1], [1], [0], [0], [0, 0, 1, 0], [], []>} : vector<64x8xbf16>, vector<128x8xbf16>, vector<64x128xf32> -> vector<64x128xf32>
    %cst_182 = arith.constant 0.353553385 : f32
    %395 = vector.broadcast %cst_182 : f32 to vector<64x128xf32>
    %396 = arith.mulf %394, %395 : vector<64x128xf32>
    %397 = arith.addf %396, %1 : vector<64x128xf32>
    %cst_183 = arith.constant dense<0xFF800000> : vector<64xf32>
    %398 = vector.multi_reduction <maximumf>, %397, %cst_183 [1] : vector<64x128xf32> to vector<64xf32>
    %399 = vector.shape_cast %398 : vector<64xf32> to vector<64x1xf32>
    %400 = vector.broadcast %399 : vector<64x1xf32> to vector<64x128xf32>
    %401 = arith.subf %397, %400 : vector<64x128xf32>
    %402 = math.exp %401 : vector<64x128xf32>
    %cst_184 = arith.constant dense<0.000000e+00> : vector<64xf32>
    %403 = vector.multi_reduction <add>, %402, %cst_184 [1] : vector<64x128xf32> to vector<64xf32>
    %404 = vector.shape_cast %403 : vector<64xf32> to vector<64x1xf32>
    %405 = tpu.reciprocal %404 {approx = true} : vector<64x1xf32> -> vector<64x1xf32>
    %406 = vector.broadcast %405 : vector<64x1xf32> to vector<64x128xf32>
    %407 = arith.mulf %402, %406 : vector<64x128xf32>
    %408 = arith.truncf %407 : vector<64x128xf32> to vector<64x128xbf16>
    %cst_185 = arith.constant dense<0.000000e+00> : vector<64x8xf32>
    %409 = tpu.matmul %408, %393, %cst_185 {dimension_numbers = #tpu.dot_dimension_numbers<[1], [0], [0], [1], [0, 0, 1, 1], [], []>} : vector<64x128xbf16>, vector<128x8xbf16>, vector<64x8xf32> -> vector<64x8xf32>
    %410 = vector.extract_strided_slice %409 {offsets = [0, 0], sizes = [16, 8], strides = [1, 1]} : vector<64x8xf32> to vector<16x8xf32>
    %411 = vector.extract_strided_slice %409 {offsets = [16, 0], sizes = [16, 8], strides = [1, 1]} : vector<64x8xf32> to vector<16x8xf32>
    %412 = vector.extract_strided_slice %409 {offsets = [32, 0], sizes = [16, 8], strides = [1, 1]} : vector<64x8xf32> to vector<16x8xf32>
    %413 = vector.extract_strided_slice %409 {offsets = [48, 0], sizes = [16, 8], strides = [1, 1]} : vector<64x8xf32> to vector<16x8xf32>
    %414 = tpu.concatenate %410, %411, %412, %413 in 1 : vector<16x8xf32>, vector<16x8xf32>, vector<16x8xf32>, vector<16x8xf32> -> vector<16x32xf32>
    %415 = arith.truncf %414 : vector<16x32xf32> to vector<16x32xbf16>
    %cst_186 = arith.constant dense<0.000000e+00> : vector<16x32xf32>
    %416 = tpu.matmul %415, %373, %cst_186 {dimension_numbers = #tpu.dot_dimension_numbers<[1], [0], [0], [1], [0, 0, 1, 1], [], []>} : vector<16x32xbf16>, vector<32x32xbf16>, vector<16x32xf32> -> vector<16x32xf32>
    %417 = vector.broadcast %375 : vector<1x32xf32> to vector<16x32xf32>
    %418 = arith.addf %416, %417 : vector<16x32xf32>
    %419 = arith.addf %354, %418 : vector<16x32xf32>
    %c1_187 = arith.constant 1 : index
    %c1_188 = arith.constant 1 : index
    %c0_189 = arith.constant 0 : index
    %420 = vector.load %arg18[%c1_187, %c1_188, %c0_189] : memref<2x3x32xf32, #tpu.memory_space<vmem>>, vector<1x1x32xf32>
    %421 = vector.shape_cast %420 : vector<1x1x32xf32> to vector<1x32xf32>
    %c1_190 = arith.constant 1 : index
    %c1_191 = arith.constant 1 : index
    %c0_192 = arith.constant 0 : index
    %422 = vector.load %arg19[%c1_190, %c1_191, %c0_192] : memref<2x3x32xf32, #tpu.memory_space<vmem>>, vector<1x1x32xf32>
    %423 = vector.shape_cast %422 : vector<1x1x32xf32> to vector<1x32xf32>
    %cst_193 = arith.constant dense<0.000000e+00> : vector<16xf32>
    %424 = vector.multi_reduction <add>, %419, %cst_193 [1] : vector<16x32xf32> to vector<16xf32>
    %425 = vector.shape_cast %424 : vector<16xf32> to vector<16x1xf32>
    %cst_194 = arith.constant 3.200000e+01 : f32
    %426 = vector.broadcast %cst_194 : f32 to vector<16x1xf32>
    %427 = arith.divf %425, %426 : vector<16x1xf32>
    %428 = vector.broadcast %427 : vector<16x1xf32> to vector<16x32xf32>
    %429 = arith.subf %419, %428 : vector<16x32xf32>
    %430 = arith.mulf %429, %429 : vector<16x32xf32>
    %cst_195 = arith.constant dense<0.000000e+00> : vector<16xf32>
    %431 = vector.multi_reduction <add>, %430, %cst_195 [1] : vector<16x32xf32> to vector<16xf32>
    %432 = vector.shape_cast %431 : vector<16xf32> to vector<16x1xf32>
    %cst_196 = arith.constant 3.200000e+01 : f32
    %433 = vector.broadcast %cst_196 : f32 to vector<16x1xf32>
    %434 = arith.divf %432, %433 : vector<16x1xf32>
    %435 = vector.broadcast %427 : vector<16x1xf32> to vector<16x32xf32>
    %436 = arith.subf %419, %435 : vector<16x32xf32>
    %cst_197 = arith.constant 9.99999974E-6 : f32
    %437 = vector.broadcast %cst_197 : f32 to vector<16x1xf32>
    %438 = arith.addf %434, %437 : vector<16x1xf32>
    %439 = math.rsqrt %438 : vector<16x1xf32>
    %440 = vector.broadcast %439 : vector<16x1xf32> to vector<16x32xf32>
    %441 = arith.mulf %436, %440 : vector<16x32xf32>
    %442 = vector.broadcast %421 : vector<1x32xf32> to vector<16x32xf32>
    %443 = arith.mulf %441, %442 : vector<16x32xf32>
    %444 = vector.broadcast %423 : vector<1x32xf32> to vector<16x32xf32>
    %445 = arith.addf %443, %444 : vector<16x32xf32>
    %446 = arith.truncf %445 : vector<16x32xf32> to vector<16x32xbf16>
    %cst_198 = arith.constant 0.000000e+00 : f32
    %447 = vector.broadcast %cst_198 : f32 to vector<16x32xf32>
    %c1_199 = arith.constant 1 : index
    %c0_200 = arith.constant 0 : index
    %c0_201 = arith.constant 0 : index
    %448 = vector.load %arg14[%c1_199, %c0_200, %c0_201] : memref<2x32x2048xbf16, #tpu.memory_space<vmem>>, vector<1x32x512xbf16>
    %449 = vector.shape_cast %448 : vector<1x32x512xbf16> to vector<32x512xbf16>
    %cst_202 = arith.constant dense<0.000000e+00> : vector<16x512xf32>
    %450 = tpu.matmul %446, %449, %cst_202 {dimension_numbers = #tpu.dot_dimension_numbers<[1], [0], [0], [1], [0, 0, 1, 1], [], []>} : vector<16x32xbf16>, vector<32x512xbf16>, vector<16x512xf32> -> vector<16x512xf32>
    %c1_203 = arith.constant 1 : index
    %c0_204 = arith.constant 0 : index
    %c0_205 = arith.constant 0 : index
    %451 = vector.load %arg15[%c1_203, %c0_204, %c0_205] : memref<2x1x2048xf32, #tpu.memory_space<vmem>>, vector<1x1x512xf32>
    %452 = vector.shape_cast %451 : vector<1x1x512xf32> to vector<1x512xf32>
    %453 = vector.broadcast %452 : vector<1x512xf32> to vector<16x512xf32>
    %454 = arith.addf %450, %453 : vector<16x512xf32>
    %cst_206 = arith.constant 0.000000e+00 : f32
    %455 = vector.broadcast %cst_206 : f32 to vector<16x512xf32>
    %456 = arith.maximumf %454, %455 : vector<16x512xf32>
    %457 = arith.truncf %456 : vector<16x512xf32> to vector<16x512xbf16>
    %c1_207 = arith.constant 1 : index
    %c0_208 = arith.constant 0 : index
    %c0_209 = arith.constant 0 : index
    %458 = vector.load %arg16[%c1_207, %c0_208, %c0_209] : memref<2x2048x32xbf16, #tpu.memory_space<vmem>>, vector<1x512x32xbf16>
    %459 = vector.shape_cast %458 : vector<1x512x32xbf16> to vector<512x32xbf16>
    %cst_210 = arith.constant dense<0.000000e+00> : vector<16x32xf32>
    %460 = tpu.matmul %457, %459, %cst_210 {dimension_numbers = #tpu.dot_dimension_numbers<[1], [0], [0], [1], [0, 0, 1, 1], [], []>} : vector<16x512xbf16>, vector<512x32xbf16>, vector<16x32xf32> -> vector<16x32xf32>
    %461 = arith.addf %447, %460 : vector<16x32xf32>
    %c1_211 = arith.constant 1 : index
    %c0_212 = arith.constant 0 : index
    %c512_213 = arith.constant 512 : index
    %462 = vector.load %arg14[%c1_211, %c0_212, %c512_213] : memref<2x32x2048xbf16, #tpu.memory_space<vmem>>, vector<1x32x512xbf16>
    %463 = vector.shape_cast %462 : vector<1x32x512xbf16> to vector<32x512xbf16>
    %cst_214 = arith.constant dense<0.000000e+00> : vector<16x512xf32>
    %464 = tpu.matmul %446, %463, %cst_214 {dimension_numbers = #tpu.dot_dimension_numbers<[1], [0], [0], [1], [0, 0, 1, 1], [], []>} : vector<16x32xbf16>, vector<32x512xbf16>, vector<16x512xf32> -> vector<16x512xf32>
    %c1_215 = arith.constant 1 : index
    %c0_216 = arith.constant 0 : index
    %c512_217 = arith.constant 512 : index
    %465 = vector.load %arg15[%c1_215, %c0_216, %c512_217] : memref<2x1x2048xf32, #tpu.memory_space<vmem>>, vector<1x1x512xf32>
    %466 = vector.shape_cast %465 : vector<1x1x512xf32> to vector<1x512xf32>
    %467 = vector.broadcast %466 : vector<1x512xf32> to vector<16x512xf32>
    %468 = arith.addf %464, %467 : vector<16x512xf32>
    %cst_218 = arith.constant 0.000000e+00 : f32
    %469 = vector.broadcast %cst_218 : f32 to vector<16x512xf32>
    %470 = arith.maximumf %468, %469 : vector<16x512xf32>
    %471 = arith.truncf %470 : vector<16x512xf32> to vector<16x512xbf16>
    %c1_219 = arith.constant 1 : index
    %c512_220 = arith.constant 512 : index
    %c0_221 = arith.constant 0 : index
    %472 = vector.load %arg16[%c1_219, %c512_220, %c0_221] : memref<2x2048x32xbf16, #tpu.memory_space<vmem>>, vector<1x512x32xbf16>
    %473 = vector.shape_cast %472 : vector<1x512x32xbf16> to vector<512x32xbf16>
    %cst_222 = arith.constant dense<0.000000e+00> : vector<16x32xf32>
    %474 = tpu.matmul %471, %473, %cst_222 {dimension_numbers = #tpu.dot_dimension_numbers<[1], [0], [0], [1], [0, 0, 1, 1], [], []>} : vector<16x512xbf16>, vector<512x32xbf16>, vector<16x32xf32> -> vector<16x32xf32>
    %475 = arith.addf %461, %474 : vector<16x32xf32>
    %c1_223 = arith.constant 1 : index
    %c0_224 = arith.constant 0 : index
    %c1024_225 = arith.constant 1024 : index
    %476 = vector.load %arg14[%c1_223, %c0_224, %c1024_225] : memref<2x32x2048xbf16, #tpu.memory_space<vmem>>, vector<1x32x512xbf16>
    %477 = vector.shape_cast %476 : vector<1x32x512xbf16> to vector<32x512xbf16>
    %cst_226 = arith.constant dense<0.000000e+00> : vector<16x512xf32>
    %478 = tpu.matmul %446, %477, %cst_226 {dimension_numbers = #tpu.dot_dimension_numbers<[1], [0], [0], [1], [0, 0, 1, 1], [], []>} : vector<16x32xbf16>, vector<32x512xbf16>, vector<16x512xf32> -> vector<16x512xf32>
    %c1_227 = arith.constant 1 : index
    %c0_228 = arith.constant 0 : index
    %c1024_229 = arith.constant 1024 : index
    %479 = vector.load %arg15[%c1_227, %c0_228, %c1024_229] : memref<2x1x2048xf32, #tpu.memory_space<vmem>>, vector<1x1x512xf32>
    %480 = vector.shape_cast %479 : vector<1x1x512xf32> to vector<1x512xf32>
    %481 = vector.broadcast %480 : vector<1x512xf32> to vector<16x512xf32>
    %482 = arith.addf %478, %481 : vector<16x512xf32>
    %cst_230 = arith.constant 0.000000e+00 : f32
    %483 = vector.broadcast %cst_230 : f32 to vector<16x512xf32>
    %484 = arith.maximumf %482, %483 : vector<16x512xf32>
    %485 = arith.truncf %484 : vector<16x512xf32> to vector<16x512xbf16>
    %c1_231 = arith.constant 1 : index
    %c1024_232 = arith.constant 1024 : index
    %c0_233 = arith.constant 0 : index
    %486 = vector.load %arg16[%c1_231, %c1024_232, %c0_233] : memref<2x2048x32xbf16, #tpu.memory_space<vmem>>, vector<1x512x32xbf16>
    %487 = vector.shape_cast %486 : vector<1x512x32xbf16> to vector<512x32xbf16>
    %cst_234 = arith.constant dense<0.000000e+00> : vector<16x32xf32>
    %488 = tpu.matmul %485, %487, %cst_234 {dimension_numbers = #tpu.dot_dimension_numbers<[1], [0], [0], [1], [0, 0, 1, 1], [], []>} : vector<16x512xbf16>, vector<512x32xbf16>, vector<16x32xf32> -> vector<16x32xf32>
    %489 = arith.addf %475, %488 : vector<16x32xf32>
    %c1_235 = arith.constant 1 : index
    %c0_236 = arith.constant 0 : index
    %c1536_237 = arith.constant 1536 : index
    %490 = vector.load %arg14[%c1_235, %c0_236, %c1536_237] : memref<2x32x2048xbf16, #tpu.memory_space<vmem>>, vector<1x32x512xbf16>
    %491 = vector.shape_cast %490 : vector<1x32x512xbf16> to vector<32x512xbf16>
    %cst_238 = arith.constant dense<0.000000e+00> : vector<16x512xf32>
    %492 = tpu.matmul %446, %491, %cst_238 {dimension_numbers = #tpu.dot_dimension_numbers<[1], [0], [0], [1], [0, 0, 1, 1], [], []>} : vector<16x32xbf16>, vector<32x512xbf16>, vector<16x512xf32> -> vector<16x512xf32>
    %c1_239 = arith.constant 1 : index
    %c0_240 = arith.constant 0 : index
    %c1536_241 = arith.constant 1536 : index
    %493 = vector.load %arg15[%c1_239, %c0_240, %c1536_241] : memref<2x1x2048xf32, #tpu.memory_space<vmem>>, vector<1x1x512xf32>
    %494 = vector.shape_cast %493 : vector<1x1x512xf32> to vector<1x512xf32>
    %495 = vector.broadcast %494 : vector<1x512xf32> to vector<16x512xf32>
    %496 = arith.addf %492, %495 : vector<16x512xf32>
    %cst_242 = arith.constant 0.000000e+00 : f32
    %497 = vector.broadcast %cst_242 : f32 to vector<16x512xf32>
    %498 = arith.maximumf %496, %497 : vector<16x512xf32>
    %499 = arith.truncf %498 : vector<16x512xf32> to vector<16x512xbf16>
    %c1_243 = arith.constant 1 : index
    %c1536_244 = arith.constant 1536 : index
    %c0_245 = arith.constant 0 : index
    %500 = vector.load %arg16[%c1_243, %c1536_244, %c0_245] : memref<2x2048x32xbf16, #tpu.memory_space<vmem>>, vector<1x512x32xbf16>
    %501 = vector.shape_cast %500 : vector<1x512x32xbf16> to vector<512x32xbf16>
    %cst_246 = arith.constant dense<0.000000e+00> : vector<16x32xf32>
    %502 = tpu.matmul %499, %501, %cst_246 {dimension_numbers = #tpu.dot_dimension_numbers<[1], [0], [0], [1], [0, 0, 1, 1], [], []>} : vector<16x512xbf16>, vector<512x32xbf16>, vector<16x32xf32> -> vector<16x32xf32>
    %503 = arith.addf %489, %502 : vector<16x32xf32>
    %c1_247 = arith.constant 1 : index
    %c0_248 = arith.constant 0 : index
    %c0_249 = arith.constant 0 : index
    %504 = vector.load %arg17[%c1_247, %c0_248, %c0_249] : memref<2x1x32xf32, #tpu.memory_space<vmem>>, vector<1x1x32xf32>
    %505 = vector.shape_cast %504 : vector<1x1x32xf32> to vector<1x32xf32>
    %506 = vector.broadcast %505 : vector<1x32xf32> to vector<16x32xf32>
    %507 = arith.addf %503, %506 : vector<16x32xf32>
    %508 = arith.addf %445, %507 : vector<16x32xf32>
    %c1_250 = arith.constant 1 : index
    %c2_251 = arith.constant 2 : index
    %c0_252 = arith.constant 0 : index
    %509 = vector.load %arg18[%c1_250, %c2_251, %c0_252] : memref<2x3x32xf32, #tpu.memory_space<vmem>>, vector<1x1x32xf32>
    %510 = vector.shape_cast %509 : vector<1x1x32xf32> to vector<1x32xf32>
    %c1_253 = arith.constant 1 : index
    %c2_254 = arith.constant 2 : index
    %c0_255 = arith.constant 0 : index
    %511 = vector.load %arg19[%c1_253, %c2_254, %c0_255] : memref<2x3x32xf32, #tpu.memory_space<vmem>>, vector<1x1x32xf32>
    %512 = vector.shape_cast %511 : vector<1x1x32xf32> to vector<1x32xf32>
    %cst_256 = arith.constant dense<0.000000e+00> : vector<16xf32>
    %513 = vector.multi_reduction <add>, %508, %cst_256 [1] : vector<16x32xf32> to vector<16xf32>
    %514 = vector.shape_cast %513 : vector<16xf32> to vector<16x1xf32>
    %cst_257 = arith.constant 3.200000e+01 : f32
    %515 = vector.broadcast %cst_257 : f32 to vector<16x1xf32>
    %516 = arith.divf %514, %515 : vector<16x1xf32>
    %517 = vector.broadcast %516 : vector<16x1xf32> to vector<16x32xf32>
    %518 = arith.subf %508, %517 : vector<16x32xf32>
    %519 = arith.mulf %518, %518 : vector<16x32xf32>
    %cst_258 = arith.constant dense<0.000000e+00> : vector<16xf32>
    %520 = vector.multi_reduction <add>, %519, %cst_258 [1] : vector<16x32xf32> to vector<16xf32>
    %521 = vector.shape_cast %520 : vector<16xf32> to vector<16x1xf32>
    %cst_259 = arith.constant 3.200000e+01 : f32
    %522 = vector.broadcast %cst_259 : f32 to vector<16x1xf32>
    %523 = arith.divf %521, %522 : vector<16x1xf32>
    %524 = vector.broadcast %516 : vector<16x1xf32> to vector<16x32xf32>
    %525 = arith.subf %508, %524 : vector<16x32xf32>
    %cst_260 = arith.constant 9.99999974E-6 : f32
    %526 = vector.broadcast %cst_260 : f32 to vector<16x1xf32>
    %527 = arith.addf %523, %526 : vector<16x1xf32>
    %528 = math.rsqrt %527 : vector<16x1xf32>
    %529 = vector.broadcast %528 : vector<16x1xf32> to vector<16x32xf32>
    %530 = arith.mulf %525, %529 : vector<16x32xf32>
    %531 = vector.broadcast %510 : vector<1x32xf32> to vector<16x32xf32>
    %532 = arith.mulf %530, %531 : vector<16x32xf32>
    %533 = vector.broadcast %512 : vector<1x32xf32> to vector<16x32xf32>
    %534 = arith.addf %532, %533 : vector<16x32xf32>
    %535 = arith.truncf %534 : vector<16x32xf32> to vector<16x32xbf16>
    %c0_261 = arith.constant 0 : index
    %c0_262 = arith.constant 0 : index
    %536 = vector.load %arg20[%c0_261, %c0_262] : memref<32x128xbf16, #tpu.memory_space<vmem>>, vector<32x128xbf16>
    %cst_263 = arith.constant dense<0.000000e+00> : vector<16x128xf32>
    %537 = tpu.matmul %535, %536, %cst_263 {dimension_numbers = #tpu.dot_dimension_numbers<[1], [0], [0], [1], [0, 0, 1, 1], [], []>} : vector<16x32xbf16>, vector<32x128xbf16>, vector<16x128xf32> -> vector<16x128xf32>
    %c0_264 = arith.constant 0 : index
    %c0_265 = arith.constant 0 : index
    %538 = vector.load %arg21[%c0_264, %c0_265] : memref<1x128xf32, #tpu.memory_space<vmem>>, vector<1x128xf32>
    %539 = vector.broadcast %538 : vector<1x128xf32> to vector<16x128xf32>
    %540 = arith.addf %537, %539 : vector<16x128xf32>
    %c0_266 = arith.constant 0 : index
    %c0_267 = arith.constant 0 : index
    %541 = vector.load %arg22[%c0_266, %c0_267] : memref<16x128xf32, #tpu.memory_space<vmem>>, vector<16x128xf32>
    tpu.vector_store %arg22[%c0_266, %c0_267], %540 {strides = array<i32>} : memref<16x128xf32, #tpu.memory_space<vmem>>, vector<16x128xf32>,
    return
  }
}

</mosaic_0001>

<llo_original>
// kernel: image_caption_forward.1
$region0: #{image_caption_forward.1}
  #allocation0 [shape = 'u32[]', space=smem, size = 0x4, offset = 0x4, fixed_abs, tag = 'smem constant byte address 0x4 - core index']
  #allocation1 [shape = 'u32[144,128]{1,0:T(1,128)}', space=vmem, size = 0x12000, scoped, tag = 'internal scratch']
  %s0 = inlined_call_operand.vmem [shape: f32[16,32], index: 0, kind: input, shape index: {}]
  %s1 = inlined_call_operand.vmem [shape: f32[32,32], index: 1, kind: input, shape index: {}]
  %s2 = inlined_call_operand.vmem [shape: f32[64,64], index: 2, kind: input, shape index: {}]
  %s3 = inlined_call_operand.vmem [shape: f32[64,128], index: 3, kind: input, shape index: {}]
  %s4 = inlined_call_operand.vmem [shape: bf16[2,32,96], index: 4, kind: input, shape index: {}]
  %s5 = inlined_call_operand.vmem [shape: f32[2,1,96], index: 5, kind: input, shape index: {}]
  %s6 = inlined_call_operand.vmem [shape: bf16[2,32,32], index: 6, kind: input, shape index: {}]
  %s7 = inlined_call_operand.vmem [shape: f32[2,1,32], index: 7, kind: input, shape index: {}]
  %s8 = inlined_call_operand.vmem [shape: bf16[2,32,32], index: 8, kind: input, shape index: {}]
  %s9 = inlined_call_operand.vmem [shape: f32[2,1,32], index: 9, kind: input, shape index: {}]
  %s10 = inlined_call_operand.vmem [shape: bf16[2,32,64], index: 10, kind: input, shape index: {}]
  %s11 = inlined_call_operand.vmem [shape: f32[2,1,64], index: 11, kind: input, shape index: {}]
  %s12 = inlined_call_operand.vmem [shape: bf16[2,32,32], index: 12, kind: input, shape index: {}]
  %s13 = inlined_call_operand.vmem [shape: f32[2,1,32], index: 13, kind: input, shape index: {}]
  %s14 = inlined_call_operand.vmem [shape: bf16[2,32,2048], index: 14, kind: input, shape index: {}]
  %s15 = inlined_call_operand.vmem [shape: f32[2,1,2048], index: 15, kind: input, shape index: {}]
  %s16 = inlined_call_operand.vmem [shape: bf16[2,2048,32], index: 16, kind: input, shape index: {}]
  %s17 = inlined_call_operand.vmem [shape: f32[2,1,32], index: 17, kind: input, shape index: {}]
  %s18 = inlined_call_operand.vmem [shape: f32[2,3,32], index: 18, kind: input, shape index: {}]
  %s19 = inlined_call_operand.vmem [shape: f32[2,3,32], index: 19, kind: input, shape index: {}]
  %s20 = inlined_call_operand.vmem [shape: bf16[32,128], index: 20, kind: input, shape index: {}]
  %s21 = inlined_call_operand.vmem [shape: f32[1,128], index: 21, kind: input, shape index: {}]
  %s22 = inlined_call_operand.vmem [shape: f32[16,128], index: 22, kind: output, shape index: {}]
  %s23 = sld [smem:[#allocation0]]
  $region98: #{image_caption_forward.1} parent=0
    _
  %s25 = ssub.s32 1, %s23
  %s26 = scalar_select 0, %s25, %s23
  // Predicated region
  $region2: #{image_caption_forward.1} parent=0 // pred_check
    _
  $region3: #{image_caption_forward.1} parent=0 // pred_check_branch
    %28 = sbr.rel (0) target = $region5
  $region4: #{image_caption_forward.1} parent=0 // pred_region
    _
  $region5: #{image_caption_forward.1} parent=0 // pred_fallthru
    _
  // Predicated region
  $region6: #{image_caption_forward.1} parent=0 // pred_check
    _
  $region7: #{image_caption_forward.1} parent=0 // pred_check_branch
    %30 = sbr.rel (0) target = $region9
  $region8: #{image_caption_forward.1} parent=0 // pred_region
    _
  $region9: #{image_caption_forward.1} parent=0 // pred_fallthru
    _
  // Predicated region
  $region10: #{image_caption_forward.1} parent=0 // pred_check
    _
  $region11: #{image_caption_forward.1} parent=0 // pred_check_branch
    %32 = sbr.rel (0) target = $region13
  $region12: #{image_caption_forward.1} parent=0 // pred_region
    _
  $region13: #{image_caption_forward.1} parent=0 // pred_fallthru
    _
  // Predicated region
  $region14: #{image_caption_forward.1} parent=0 // pred_check
    _
  $region15: #{image_caption_forward.1} parent=0 // pred_check_branch
    %34 = sbr.rel (0) target = $region17
  $region16: #{image_caption_forward.1} parent=0 // pred_region
    _
  $region17: #{image_caption_forward.1} parent=0 // pred_fallthru
    _
  // Predicated region
  $region18: #{image_caption_forward.1} parent=0 // pred_check
    _
  $region19: #{image_caption_forward.1} parent=0 // pred_check_branch
    %36 = sbr.rel (0) target = $region21
  $region20: #{image_caption_forward.1} parent=0 // pred_region
    _
  $region21: #{image_caption_forward.1} parent=0 // pred_fallthru
    _
  // Predicated region
  $region22: #{image_caption_forward.1} parent=0 // pred_check
    _
  $region23: #{image_caption_forward.1} parent=0 // pred_check_branch
    %38 = sbr.rel (0) target = $region25
  $region24: #{image_caption_forward.1} parent=0 // pred_region
    _
  $region25: #{image_caption_forward.1} parent=0 // pred_fallthru
    _
  // Predicated region
  $region26: #{image_caption_forward.1} parent=0 // pred_check
    _
  $region27: #{image_caption_forward.1} parent=0 // pred_check_branch
    %40 = sbr.rel (0) target = $region29
  $region28: #{image_caption_forward.1} parent=0 // pred_region
    _
  $region29: #{image_caption_forward.1} parent=0 // pred_fallthru
    _
  // Predicated region
  $region30: #{image_caption_forward.1} parent=0 // pred_check
    _
  $region31: #{image_caption_forward.1} parent=0 // pred_check_branch
    %42 = sbr.rel (0) target = $region33
  $region32: #{image_caption_forward.1} parent=0 // pred_region
    _
  $region33: #{image_caption_forward.1} parent=0 // pred_fallthru
    _
  // Predicated region
  $region34: #{image_caption_forward.1} parent=0 // pred_check
    _
  $region35: #{image_caption_forward.1} parent=0 // pred_check_branch
    %44 = sbr.rel (0) target = $region37
  $region36: #{image_caption_forward.1} parent=0 // pred_region
    _
  $region37: #{image_caption_forward.1} parent=0 // pred_fallthru
    _
  // Predicated region
  $region38: #{image_caption_forward.1} parent=0 // pred_check
    _
  $region39: #{image_caption_forward.1} parent=0 // pred_check_branch
    %46 = sbr.rel (0) target = $region41
  $region40: #{image_caption_forward.1} parent=0 // pred_region
    _
  $region41: #{image_caption_forward.1} parent=0 // pred_fallthru
    _
  // Predicated region
  $region42: #{image_caption_forward.1} parent=0 // pred_check
    _
  $region43: #{image_caption_forward.1} parent=0 // pred_check_branch
    %48 = sbr.rel (0) target = $region45
  $region44: #{image_caption_forward.1} parent=0 // pred_region
    _
  $region45: #{image_caption_forward.1} parent=0 // pred_fallthru
    _
  // Predicated region
  $region46: #{image_caption_forward.1} parent=0 // pred_check
    _
  $region47: #{image_caption_forward.1} parent=0 // pred_check_branch
    %50 = sbr.rel (0) target = $region49
  $region48: #{image_caption_forward.1} parent=0 // pred_region
    _
  $region49: #{image_caption_forward.1} parent=0 // pred_fallthru
    _
  // Predicated region
  $region50: #{image_caption_forward.1} parent=0 // pred_check
    _
  $region51: #{image_caption_forward.1} parent=0 // pred_check_branch
    %52 = sbr.rel (0) target = $region53
  $region52: #{image_caption_forward.1} parent=0 // pred_region
    _
  $region53: #{image_caption_forward.1} parent=0 // pred_fallthru
    _
  // Predicated region
  $region54: #{image_caption_forward.1} parent=0 // pred_check
    _
  $region55: #{image_caption_forward.1} parent=0 // pred_check_branch
    %54 = sbr.rel (0) target = $region57
  $region56: #{image_caption_forward.1} parent=0 // pred_region
    _
  $region57: #{image_caption_forward.1} parent=0 // pred_fallthru
    _
  // Predicated region
  $region58: #{image_caption_forward.1} parent=0 // pred_check
    _
  $region59: #{image_caption_forward.1} parent=0 // pred_check_branch
    %56 = sbr.rel (0) target = $region61
  $region60: #{image_caption_forward.1} parent=0 // pred_region
    _
  $region61: #{image_caption_forward.1} parent=0 // pred_fallthru
    _
  // Predicated region
  $region62: #{image_caption_forward.1} parent=0 // pred_check
    _
  $region63: #{image_caption_forward.1} parent=0 // pred_check_branch
    %58 = sbr.rel (0) target = $region65
  $region64: #{image_caption_forward.1} parent=0 // pred_region
    _
  $region65: #{image_caption_forward.1} parent=0 // pred_fallthru
    _
  // Predicated region
  $region66: #{image_caption_forward.1} parent=0 // pred_check
    _
  $region67: #{image_caption_forward.1} parent=0 // pred_check_branch
    %60 = sbr.rel (0) target = $region69
  $region68: #{image_caption_forward.1} parent=0 // pred_region
    _
  $region69: #{image_caption_forward.1} parent=0 // pred_fallthru
    _
  // Predicated region
  $region70: #{image_caption_forward.1} parent=0 // pred_check
    _
  $region71: #{image_caption_forward.1} parent=0 // pred_check_branch
    %62 = sbr.rel (0) target = $region73
  $region72: #{image_caption_forward.1} parent=0 // pred_region
    _
  $region73: #{image_caption_forward.1} parent=0 // pred_fallthru
    _
  // Predicated region
  $region74: #{image_caption_forward.1} parent=0 // pred_check
    _
  $region75: #{image_caption_forward.1} parent=0 // pred_check_branch
    %64 = sbr.rel (0) target = $region77
  $region76: #{image_caption_forward.1} parent=0 // pred_region
    _
  $region77: #{image_caption_forward.1} parent=0 // pred_fallthru
    _
  // Predicated region
  $region78: #{image_caption_forward.1} parent=0 // pred_check
    _
  $region79: #{image_caption_forward.1} parent=0 // pred_check_branch
    %66 = sbr.rel (0) target = $region81
  $region80: #{image_caption_forward.1} parent=0 // pred_region
    _
  $region81: #{image_caption_forward.1} parent=0 // pred_fallthru
    _
  // Predicated region
  $region82: #{image_caption_forward.1} parent=0 // pred_check
    _
  $region83: #{image_caption_forward.1} parent=0 // pred_check_branch
    %68 = sbr.rel (0) target = $region85
  $region84: #{image_caption_forward.1} parent=0 // pred_region
    _
  $region85: #{image_caption_forward.1} parent=0 // pred_fallthru
    _
  // Predicated region
  $region86: #{image_caption_forward.1} parent=0 // pred_check
    _
  $region87: #{image_caption_forward.1} parent=0 // pred_check_branch
    %70 = sbr.rel (0) target = $region89
  $region88: #{image_caption_forward.1} parent=0 // pred_region
    _
  $region89: #{image_caption_forward.1} parent=0 // pred_fallthru
    _
  %v72 = vld [vmem:[%s2] sm:$0xff]
  %v73 = vld [vmem:[%s2 + $0x8] sm:$0xff]
  %v74 = vld [vmem:[%s2 + $0x10] sm:$0xff]
  %v75 = vld [vmem:[%s2 + $0x18] sm:$0xff]
  %v76 = vld [vmem:[%s2 + $0x20] sm:$0xff]
  %v77 = vld [vmem:[%s2 + $0x28] sm:$0xff]
  %v78 = vld [vmem:[%s2 + $0x30] sm:$0xff]
  %v79 = vld [vmem:[%s2 + $0x38] sm:$0xff]
  %v80 = vld [vmem:[%s3] sm:$0xff]
  %v81 = vld [vmem:[%s3 + $0x8] sm:$0xff]
  %v82 = vld [vmem:[%s3 + $0x10] sm:$0xff]
  %v83 = vld [vmem:[%s3 + $0x18] sm:$0xff]
  %v84 = vld [vmem:[%s3 + $0x20] sm:$0xff]
  %v85 = vld [vmem:[%s3 + $0x28] sm:$0xff]
  %v86 = vld [vmem:[%s3 + $0x30] sm:$0xff]
  %v87 = vld [vmem:[%s3 + $0x38] sm:$0xff]
  %v88 = vld [vmem:[%s1] sm:$0xff]
  %v89 = vld [vmem:[%s1 + $0x8] sm:$0xff]
  %v90 = vld [vmem:[%s1 + $0x10] sm:$0xff]
  %v91 = vld [vmem:[%s1 + $0x18] sm:$0xff]
  %v92 = vpack.c.bf16 %v89, %v88
  %v93 = vpack.c.bf16 %v91, %v90
  %v94 = vld [vmem:[%s0] sm:$0xff]
  %v95 = vld [vmem:[%s0 + $0x8] sm:$0xff]
  %v96 = vpack.c.bf16 %v95, %v94
  %v97 = vld [vmem:[%s4] sm:$0xf]
  %v98 = vld [vmem:[%s4 + $0x4] sm:$0xf]
  %v99 = vld [vmem:[%s4 + $0x8] sm:$0xf]
  %v100 = vld [vmem:[%s4 + $0xc] sm:$0xf]
  %v101 = vld [vmem:[%s5] sm:$0x1]
  %v103 = vlaneseq
  %v104 = vshrl.u32 %v103, 7
  %v105 = vsub.s32 0, %v104
  %v106 = vrot.slane %v101, %v105
  %v112 = vunpack.c.l.b16 %v97
  %v113 = vunpack.c.l.b16 %v98
  %v114 = vunpack.c.l.b16 %v99
  %v115 = vunpack.c.l.b16 %v100
  %v116 = vpack.c.b16 %v113, %v112
  %v117 = vpack.c.b16 %v115, %v114
  %vm120 = vcmask 261120
  %v122 = vsel %vm120, %v96, 0
  %124 = vmatprep.subr.bf16.mxu0 0
  %125 = vmatpush1.bf16.msra.mxu0 %v116
  %126 = vmatprep.subr.bf16.mxu0 0
  %127 = vmatpush1.bf16.msra.mxu0 %v117
  %128 = vmatprep.subr.bf16.mxu0 0
  %129 = vmatpush1.bf16.msra.mxu0 0
  %130 = vmatprep.subr.bf16.mxu0 0
  %131 = vmatpush1.bf16.msra.mxu0 0
  %132 = vmatprep.subr.bf16.mxu0 0
  %133 = vmatpush1.bf16.msra.mxu0 0
  %134 = vmatprep.subr.bf16.mxu0 0
  %135 = vmatpush1.bf16.msra.mxu0 0
  %136 = vmatprep.subr.bf16.mxu0 0
  %137 = vmatpush1.bf16.msra.mxu0 0
  %138 = vmatprep.subr.bf16.mxu0 0
  %139 = vmatpush1.bf16.msra.mxu0 0
  %140 = vmatprep.subr.bf16.mxu0 0
  %141 = vmatpush1.bf16.msra.mxu0 0
  %142 = vmatprep.subr.bf16.mxu0 0
  %143 = vmatpush1.bf16.msra.mxu0 0
  %144 = vmatprep.subr.bf16.mxu0 0
  %145 = vmatpush1.bf16.msra.mxu0 0
  %146 = vmatprep.subr.bf16.mxu0 0
  %147 = vmatpush1.bf16.msra.mxu0 0
  %148 = vmatprep.subr.bf16.mxu0 0
  %149 = vmatpush1.bf16.msra.mxu0 0
  %150 = vmatprep.subr.bf16.mxu0 0
  %151 = vmatpush1.bf16.msra.mxu0 0
  %152 = vmatprep.subr.bf16.mxu0 0
  %153 = vmatpush1.bf16.msra.mxu0 0
  %154 = vmatprep.subr.bf16.mxu0 0
  %155 = vmatpush1.bf16.msra.mxu0 0
  %156 = vmatprep.mubr.bf16.mxu0 0
  %157 = vmatmul.mubr.bf16.gmra.mrb[0].mxu0 %v122
  %v158 = vpop.f32.mrb[0].mxu0
  %v159 = vadd.f32 %v106, %v158
  %v160 = vpop.f32.mrb[0].mxu0
  %v161 = vpop.f32.mrb[0].mxu0
  %v162 = vadd.f32 %v106, %v161
  %v163 = vpop.f32.mrb[0].mxu0
  %164 = vdwg.mxu0
  %v165 = vld [vmem:[%s6] sm:$0xf]
  %v166 = vld [vmem:[%s6 + $0x4] sm:$0xf]
  %v167 = vld [vmem:[%s6 + $0x8] sm:$0xf]
  %v168 = vld [vmem:[%s6 + $0xc] sm:$0xf]
  %v169 = vld [vmem:[%s7] sm:$0x1]
  %v170 = vpack.c.bf16 %v162, %v159
  %172 = vrot.lane.b32.xlu0 %v170, 120
  %v173 = vpop.permute.xlu0 %172
  %174 = vrot.lane.b32.xlu0 %v170, 112
  %v175 = vpop.permute.xlu0 %174
  %176 = vrot.lane.b32.xlu0 %v170, 104
  %v177 = vpop.permute.xlu0 %176
  %178 = vrot.lane.b32.xlu0 %v170, 96
  %v179 = vpop.permute.xlu0 %178
  %180 = vrot.lane.b32.xlu0 %v173, 96
  %v181 = vpop.permute.xlu0 %180
  %182 = vrot.lane.b32.xlu0 %v175, 96
  %v183 = vpop.permute.xlu0 %182
  %184 = vrot.lane.b32.xlu0 %v177, 96
  %v185 = vpop.permute.xlu0 %184
  %vm186 = vcmask 64512
  %v188 = vsel %vm186, %v170, 0
  %v191 = vsel %vm186, %v173, 0
  %v194 = vsel %vm186, %v175, 0
  %v197 = vsel %vm186, %v177, 0
  %v200 = vsel %vm186, %v179, 0
  %v203 = vsel %vm186, %v181, 0
  %v206 = vsel %vm186, %v183, 0
  %v209 = vsel %vm186, %v185, 0
  %211 = vmatprep.subr.bf16.mxu0 0
  %212 = vmatpush1.bf16.xpose.msra.mxu0 %v200
  %213 = vmatprep.subr.bf16.mxu0 0
  %214 = vmatpush1.bf16.xpose.msra.mxu0 %v203
  %215 = vmatprep.subr.bf16.mxu0 0
  %216 = vmatpush1.bf16.xpose.msra.mxu0 %v206
  %217 = vmatprep.subr.bf16.mxu0 0
  %218 = vmatpush1.bf16.xpose.msra.mxu0 %v209
  %219 = vmatprep.subr.bf16.mxu0 0
  %220 = vmatpush1.bf16.xpose.msra.mxu0 0
  %221 = vmatprep.subr.bf16.mxu0 0
  %222 = vmatpush1.bf16.xpose.msra.mxu0 0
  %223 = vmatprep.subr.bf16.mxu0 0
  %224 = vmatpush1.bf16.xpose.msra.mxu0 0
  %225 = vmatprep.subr.bf16.mxu0 0
  %226 = vmatpush1.bf16.xpose.msra.mxu0 0
  %227 = vmatprep.subr.bf16.mxu0 0
  %228 = vmatpush1.bf16.xpose.msra.mxu0 0
  %229 = vmatprep.subr.bf16.mxu0 0
  %230 = vmatpush1.bf16.xpose.msra.mxu0 0
  %231 = vmatprep.subr.bf16.mxu0 0
  %232 = vmatpush1.bf16.xpose.msra.mxu0 0
  %233 = vmatprep.subr.bf16.mxu0 0
  %234 = vmatpush1.bf16.xpose.msra.mxu0 0
  %235 = vmatprep.subr.bf16.mxu0 0
  %236 = vmatpush1.bf16.xpose.msra.mxu0 0
  %237 = vmatprep.subr.bf16.mxu0 0
  %238 = vmatpush1.bf16.xpose.msra.mxu0 0
  %239 = vmatprep.subr.bf16.mxu0 0
  %240 = vmatpush1.bf16.xpose.msra.mxu0 0
  %241 = vmatprep.subr.bf16.mxu0 0
  %242 = vmatpush1.bf16.xpose.msra.mxu0 0
  %243 = vmatprep.mubr.bf16.mxu0 0
  %244 = vmatmul.mubr.bf16.gmra.mrb[0].mxu0 %v188
  %v245 = vpop.f32.mrb[0].mxu0
  %v246 = vadd.f32 0.0, %v245
  %v247 = vpop.f32.mrb[0].mxu0
  %v248 = vpop.f32.mrb[0].mxu0
  %v249 = vadd.f32 0.0, %v248
  %v250 = vpop.f32.mrb[0].mxu0
  %251 = vmatprep.mubr.bf16.mxu0 0
  %252 = vmatmul.mubr.bf16.gmra.mrb[0].mxu0 %v191
  %v253 = vpop.f32.mrb[0].mxu0
  %v254 = vadd.f32 0.0, %v253
  %v255 = vpop.f32.mrb[0].mxu0
  %v256 = vpop.f32.mrb[0].mxu0
  %v257 = vadd.f32 0.0, %v256
  %v258 = vpop.f32.mrb[0].mxu0
  %259 = vmatprep.mubr.bf16.mxu0 0
  %260 = vmatmul.mubr.bf16.gmra.mrb[0].mxu0 %v194
  %v261 = vpop.f32.mrb[0].mxu0
  %v262 = vadd.f32 0.0, %v261
  %v263 = vpop.f32.mrb[0].mxu0
  %v264 = vpop.f32.mrb[0].mxu0
  %v265 = vadd.f32 0.0, %v264
  %v266 = vpop.f32.mrb[0].mxu0
  %267 = vmatprep.mubr.bf16.mxu0 0
  %268 = vmatmul.mubr.bf16.gmra.mrb[0].mxu0 %v197
  %v269 = vpop.f32.mrb[0].mxu0
  %v270 = vadd.f32 0.0, %v269
  %v271 = vpop.f32.mrb[0].mxu0
  %v272 = vpop.f32.mrb[0].mxu0
  %v273 = vadd.f32 0.0, %v272
  %v274 = vpop.f32.mrb[0].mxu0
  %275 = vdwg.mxu0
  %v276 = vmul.f32 %v246, 0.35355338
  %v277 = vmul.f32 %v249, 0.35355338
  %v278 = vmul.f32 %v254, 0.35355338
  %v279 = vmul.f32 %v257, 0.35355338
  %v280 = vmul.f32 %v262, 0.35355338
  %v281 = vmul.f32 %v265, 0.35355338
  %v282 = vmul.f32 %v270, 0.35355338
  %v283 = vmul.f32 %v273, 0.35355338
  %v284 = vadd.f32 %v276, %v72
  %v285 = vadd.f32 %v277, %v73
  %v286 = vadd.f32 %v278, %v74
  %v287 = vadd.f32 %v279, %v75
  %v288 = vadd.f32 %v280, %v76
  %v289 = vadd.f32 %v281, %v77
  %v290 = vadd.f32 %v282, %v78
  %v291 = vadd.f32 %v283, %v79
  %vm292 = vcmask 523264
  %v293 = vsel %vm292, %v284, -inf
  %294 = vmax.xlane.f32.xlu0 %v293
  %v295 = vpop.xlane.xlu0 %294
  %v296 = vsel %vm292, %v285, -inf
  %297 = vmax.xlane.f32.xlu0 %v296
  %v298 = vpop.xlane.xlu0 %297
  %v299 = vsel %vm292, %v286, -inf
  %300 = vmax.xlane.f32.xlu0 %v299
  %v301 = vpop.xlane.xlu0 %300
  %v302 = vsel %vm292, %v287, -inf
  %303 = vmax.xlane.f32.xlu0 %v302
  %v304 = vpop.xlane.xlu0 %303
  %v305 = vsel %vm292, %v288, -inf
  %306 = vmax.xlane.f32.xlu0 %v305
  %v307 = vpop.xlane.xlu0 %306
  %v308 = vsel %vm292, %v289, -inf
  %309 = vmax.xlane.f32.xlu0 %v308
  %v310 = vpop.xlane.xlu0 %309
  %v311 = vsel %vm292, %v290, -inf
  %312 = vmax.xlane.f32.xlu0 %v311
  %v313 = vpop.xlane.xlu0 %312
  %v314 = vsel %vm292, %v291, -inf
  %315 = vmax.xlane.f32.xlu0 %v314
  %v316 = vpop.xlane.xlu0 %315
  %v317 = vsub.f32 %v284, %v295
  %v318 = vsub.f32 %v285, %v298
  %v319 = vsub.f32 %v286, %v301
  %v320 = vsub.f32 %v287, %v304
  %v321 = vsub.f32 %v288, %v307
  %v322 = vsub.f32 %v289, %v310
  %v323 = vsub.f32 %v290, %v313
  %v324 = vsub.f32 %v291, %v316
  %v325 = vmul.f32 %v317, 1.442695
  %v326 = vpow.pop %v325
  %v327 = vmul.f32 %v318, 1.442695
  %v328 = vpow.pop %v327
  %v329 = vmul.f32 %v319, 1.442695
  %v330 = vpow.pop %v329
  %v331 = vmul.f32 %v320, 1.442695
  %v332 = vpow.pop %v331
  %v333 = vmul.f32 %v321, 1.442695
  %v334 = vpow.pop %v333
  %v335 = vmul.f32 %v322, 1.442695
  %v336 = vpow.pop %v335
  %v337 = vmul.f32 %v323, 1.442695
  %v338 = vpow.pop %v337
  %v339 = vmul.f32 %v324, 1.442695
  %v340 = vpow.pop %v339
  %v341 = vsel %vm292, %v326, 0.0
  %342 = vadd.xlane.f32.xlu0 %v341
  %v343 = vpop.xlane.xlu0 %342
  %v344 = vsel %vm292, %v328, 0.0
  %345 = vadd.xlane.f32.xlu0 %v344
  %v346 = vpop.xlane.xlu0 %345
  %v347 = vsel %vm292, %v330, 0.0
  %348 = vadd.xlane.f32.xlu0 %v347
  %v349 = vpop.xlane.xlu0 %348
  %v350 = vsel %vm292, %v332, 0.0
  %351 = vadd.xlane.f32.xlu0 %v350
  %v352 = vpop.xlane.xlu0 %351
  %v353 = vsel %vm292, %v334, 0.0
  %354 = vadd.xlane.f32.xlu0 %v353
  %v355 = vpop.xlane.xlu0 %354
  %v356 = vsel %vm292, %v336, 0.0
  %357 = vadd.xlane.f32.xlu0 %v356
  %v358 = vpop.xlane.xlu0 %357
  %v359 = vsel %vm292, %v338, 0.0
  %360 = vadd.xlane.f32.xlu0 %v359
  %v361 = vpop.xlane.xlu0 %360
  %v362 = vsel %vm292, %v340, 0.0
  %363 = vadd.xlane.f32.xlu0 %v362
  %v364 = vpop.xlane.xlu0 %363
  %v365 = vrcp.pop %v343
  %v366 = vrcp.pop %v346
  %v367 = vrcp.pop %v349
  %v368 = vrcp.pop %v352
  %v369 = vrcp.pop %v355
  %v370 = vrcp.pop %v358
  %v371 = vrcp.pop %v361
  %v372 = vrcp.pop %v364
  %v373 = vmul.f32 %v326, %v365
  %v374 = vmul.f32 %v328, %v366
  %v375 = vmul.f32 %v330, %v367
  %v376 = vmul.f32 %v332, %v368
  %v377 = vmul.f32 %v334, %v369
  %v378 = vmul.f32 %v336, %v370
  %v379 = vmul.f32 %v338, %v371
  %v380 = vmul.f32 %v340, %v372
  %v381 = vpack.c.bf16 %v374, %v373
  %v382 = vpack.c.bf16 %v376, %v375
  %v383 = vpack.c.bf16 %v378, %v377
  %v384 = vpack.c.bf16 %v380, %v379
  %385 = vrot.lane.b32.xlu0 %v170, 64
  %v386 = vpop.permute.xlu0 %385
  %387 = vrot.lane.b32.xlu0 %v173, 64
  %v388 = vpop.permute.xlu0 %387
  %389 = vrot.lane.b32.xlu0 %v175, 64
  %v390 = vpop.permute.xlu0 %389
  %391 = vrot.lane.b32.xlu0 %v177, 64
  %v392 = vpop.permute.xlu0 %391
  %v398 = vsel %vm292, %v381, 0
  %v401 = vsel %vm292, %v382, 0
  %v404 = vsel %vm292, %v383, 0
  %v407 = vsel %vm292, %v384, 0
  %409 = vmatprep.subr.bf16.mxu0 0
  %410 = vmatpush1.bf16.msra.mxu0 %v386
  %411 = vmatprep.subr.bf16.mxu0 0
  %412 = vmatpush1.bf16.msra.mxu0 %v388
  %413 = vmatprep.subr.bf16.mxu0 0
  %414 = vmatpush1.bf16.msra.mxu0 %v390
  %415 = vmatprep.subr.bf16.mxu0 0
  %416 = vmatpush1.bf16.msra.mxu0 %v392
  %417 = vmatprep.subr.bf16.mxu0 0
  %418 = vmatpush1.bf16.msra.mxu0 0
  %419 = vmatprep.subr.bf16.mxu0 0
  %420 = vmatpush1.bf16.msra.mxu0 0
  %421 = vmatprep.subr.bf16.mxu0 0
  %422 = vmatpush1.bf16.msra.mxu0 0
  %423 = vmatprep.subr.bf16.mxu0 0
  %424 = vmatpush1.bf16.msra.mxu0 0
  %425 = vmatprep.subr.bf16.mxu0 0
  %426 = vmatpush1.bf16.msra.mxu0 0
  %427 = vmatprep.subr.bf16.mxu0 0
  %428 = vmatpush1.bf16.msra.mxu0 0
  %429 = vmatprep.subr.bf16.mxu0 0
  %430 = vmatpush1.bf16.msra.mxu0 0
  %431 = vmatprep.subr.bf16.mxu0 0
  %432 = vmatpush1.bf16.msra.mxu0 0
  %433 = vmatprep.subr.bf16.mxu0 0
  %434 = vmatpush1.bf16.msra.mxu0 0
  %435 = vmatprep.subr.bf16.mxu0 0
  %436 = vmatpush1.bf16.msra.mxu0 0
  %437 = vmatprep.subr.bf16.mxu0 0
  %438 = vmatpush1.bf16.msra.mxu0 0
  %439 = vmatprep.subr.bf16.mxu0 0
  %440 = vmatpush1.bf16.msra.mxu0 0
  %441 = vmatprep.mubr.bf16.mxu0 0
  %442 = vmatmul.mubr.bf16.gmra.mrb[0].mxu0 %v398
  %v443 = vpop.f32.mrb[0].mxu0
  %v444 = vadd.f32 0.0, %v443
  %v445 = vpop.f32.mrb[0].mxu0
  %v446 = vpop.f32.mrb[0].mxu0
  %v447 = vadd.f32 0.0, %v446
  %v448 = vpop.f32.mrb[0].mxu0
  %449 = vmatprep.mubr.bf16.mxu0 0
  %450 = vmatmul.mubr.bf16.gmra.mrb[0].mxu0 %v401
  %v451 = vpop.f32.mrb[0].mxu0
  %v452 = vadd.f32 0.0, %v451
  %v453 = vpop.f32.mrb[0].mxu0
  %v454 = vpop.f32.mrb[0].mxu0
  %v455 = vadd.f32 0.0, %v454
  %v456 = vpop.f32.mrb[0].mxu0
  %457 = vmatprep.mubr.bf16.mxu0 0
  %458 = vmatmul.mubr.bf16.gmra.mrb[0].mxu0 %v404
  %v459 = vpop.f32.mrb[0].mxu0
  %v460 = vadd.f32 0.0, %v459
  %v461 = vpop.f32.mrb[0].mxu0
  %v462 = vpop.f32.mrb[0].mxu0
  %v463 = vadd.f32 0.0, %v462
  %v464 = vpop.f32.mrb[0].mxu0
  %465 = vmatprep.mubr.bf16.mxu0 0
  %466 = vmatmul.mubr.bf16.gmra.mrb[0].mxu0 %v407
  %v467 = vpop.f32.mrb[0].mxu0
  %v468 = vadd.f32 0.0, %v467
  %v469 = vpop.f32.mrb[0].mxu0
  %v470 = vpop.f32.mrb[0].mxu0
  %v471 = vadd.f32 0.0, %v470
  %v472 = vpop.f32.mrb[0].mxu0
  %473 = vdwg.mxu0
  %476 = vrot.lane.b32.xlu0 %v452, 8
  %v477 = vpop.permute.xlu0 %476
  %478 = vrot.lane.b32.xlu0 %v455, 8
  %v479 = vpop.permute.xlu0 %478
  %484 = vrot.lane.b32.xlu0 %v460, 16
  %v485 = vpop.permute.xlu0 %484
  %486 = vrot.lane.b32.xlu0 %v463, 16
  %v487 = vpop.permute.xlu0 %486
  %492 = vrot.lane.b32.xlu0 %v468, 24
  %v493 = vpop.permute.xlu0 %492
  %494 = vrot.lane.b32.xlu0 %v471, 24
  %v495 = vpop.permute.xlu0 %494
  %v498 = vsel %vm186, %v444, %v477
  %v499 = vsel %vm186, %v447, %v479
  %vm500 = vcmask 130048
  %v501 = vsel %vm500, %v498, %v485
  %v502 = vsel %vm500, %v499, %v487
  %vm503 = vcmask 195584
  %v504 = vsel %vm503, %v501, %v493
  %v505 = vsel %vm503, %v502, %v495
  %v506 = vpack.c.bf16 %v505, %v504
  %v508 = vlaneseq
  %v509 = vshrl.u32 %v508, 7
  %v510 = vsub.s32 0, %v509
  %v511 = vrot.slane %v169, %v510
  %v517 = vunpack.c.l.b16 %v165
  %v518 = vunpack.c.l.b16 %v166
  %v519 = vunpack.c.l.b16 %v167
  %v520 = vunpack.c.l.b16 %v168
  %v521 = vpack.c.b16 %v518, %v517
  %v522 = vpack.c.b16 %v520, %v519
  %v526 = vsel %vm120, %v506, 0
  %528 = vmatprep.subr.bf16.mxu0 0
  %529 = vmatpush1.bf16.msra.mxu0 %v521
  %530 = vmatprep.subr.bf16.mxu0 0
  %531 = vmatpush1.bf16.msra.mxu0 %v522
  %532 = vmatprep.subr.bf16.mxu0 0
  %533 = vmatpush1.bf16.msra.mxu0 0
  %534 = vmatprep.subr.bf16.mxu0 0
  %535 = vmatpush1.bf16.msra.mxu0 0
  %536 = vmatprep.subr.bf16.mxu0 0
  %537 = vmatpush1.bf16.msra.mxu0 0
  %538 = vmatprep.subr.bf16.mxu0 0
  %539 = vmatpush1.bf16.msra.mxu0 0
  %540 = vmatprep.subr.bf16.mxu0 0
  %541 = vmatpush1.bf16.msra.mxu0 0
  %542 = vmatprep.subr.bf16.mxu0 0
  %543 = vmatpush1.bf16.msra.mxu0 0
  %544 = vmatprep.subr.bf16.mxu0 0
  %545 = vmatpush1.bf16.msra.mxu0 0
  %546 = vmatprep.subr.bf16.mxu0 0
  %547 = vmatpush1.bf16.msra.mxu0 0
  %548 = vmatprep.subr.bf16.mxu0 0
  %549 = vmatpush1.bf16.msra.mxu0 0
  %550 = vmatprep.subr.bf16.mxu0 0
  %551 = vmatpush1.bf16.msra.mxu0 0
  %552 = vmatprep.subr.bf16.mxu0 0
  %553 = vmatpush1.bf16.msra.mxu0 0
  %554 = vmatprep.subr.bf16.mxu0 0
  %555 = vmatpush1.bf16.msra.mxu0 0
  %556 = vmatprep.subr.bf16.mxu0 0
  %557 = vmatpush1.bf16.msra.mxu0 0
  %558 = vmatprep.subr.bf16.mxu0 0
  %559 = vmatpush1.bf16.msra.mxu0 0
  %560 = vmatprep.mubr.bf16.mxu0 0
  %561 = vmatmul.mubr.bf16.gmra.mrb[0].mxu0 %v526
  %v562 = vpop.f32.mrb[0].mxu0
  %v563 = vadd.f32 %v511, %v562
  %v564 = vpop.f32.mrb[0].mxu0
  %v565 = vpop.f32.mrb[0].mxu0
  %v566 = vadd.f32 %v511, %v565
  %v567 = vpop.f32.mrb[0].mxu0
  %568 = vdwg.mxu0
  %v569 = vadd.f32 %v94, %v563
  %v570 = vadd.f32 %v95, %v566
  %v571 = vld [vmem:[%s18] sm:$0x1]
  %v572 = vld [vmem:[%s19] sm:$0x1]
  %v573 = vsel %vm120, %v569, 0.0
  %574 = vadd.xlane.f32.xlu0 %v573
  %v575 = vpop.xlane.xlu0 %574
  %v576 = vsel %vm120, %v570, 0.0
  %577 = vadd.xlane.f32.xlu0 %v576
  %v578 = vpop.xlane.xlu0 %577
  %v579 = vrcp.pop 32.0
  %v580 = vmul.f32 %v575, %v579
  %v581 = vmul.f32 %v578, %v579
  %v582 = vsub.f32 %v569, %v580
  %v583 = vsub.f32 %v570, %v581
  %v584 = vmul.f32 %v582, %v582
  %v585 = vmul.f32 %v583, %v583
  %v586 = vsel %vm120, %v584, 0.0
  %587 = vadd.xlane.f32.xlu0 %v586
  %v588 = vpop.xlane.xlu0 %587
  %v589 = vsel %vm120, %v585, 0.0
  %590 = vadd.xlane.f32.xlu0 %v589
  %v591 = vpop.xlane.xlu0 %590
  %v592 = vmul.f32 %v588, %v579
  %v593 = vmul.f32 %v591, %v579
  %v594 = vadd.f32 %v592, 1e-05
  %v595 = vadd.f32 %v593, 1e-05
  %v596 = vrsqrt.pop %v594
  %v597 = vrsqrt.pop %v595
  %v598 = vmul.f32 %v582, %v596
  %v599 = vmul.f32 %v583, %v597
  %v600 = vlaneseq
  %v601 = vshrl.u32 %v600, 7
  %v602 = vsub.s32 0, %v601
  %v603 = vrot.slane %v571, %v602
  %v604 = vmul.f32 %v598, %v603
  %v605 = vmul.f32 %v599, %v603
  %v606 = vlaneseq
  %v607 = vshrl.u32 %v606, 7
  %v608 = vsub.s32 0, %v607
  %v609 = vrot.slane %v572, %v608
  %v610 = vadd.f32 %v604, %v609
  %v611 = vadd.f32 %v605, %v609
  %v612 = vpack.c.bf16 %v611, %v610
  %v613 = vld [vmem:[%s8] sm:$0xf]
  %v614 = vld [vmem:[%s8 + $0x4] sm:$0xf]
  %v615 = vld [vmem:[%s8 + $0x8] sm:$0xf]
  %v616 = vld [vmem:[%s8 + $0xc] sm:$0xf]
  %v617 = vld [vmem:[%s9] sm:$0x1]
  %v619 = vlaneseq
  %v620 = vshrl.u32 %v619, 7
  %v621 = vsub.s32 0, %v620
  %v622 = vrot.slane %v617, %v621
  %v628 = vunpack.c.l.b16 %v613
  %v629 = vunpack.c.l.b16 %v614
  %v630 = vunpack.c.l.b16 %v615
  %v631 = vunpack.c.l.b16 %v616
  %v632 = vpack.c.b16 %v629, %v628
  %v633 = vpack.c.b16 %v631, %v630
  %v637 = vsel %vm120, %v612, 0
  %639 = vmatprep.subr.bf16.mxu0 0
  %640 = vmatpush1.bf16.msra.mxu0 %v632
  %641 = vmatprep.subr.bf16.mxu0 0
  %642 = vmatpush1.bf16.msra.mxu0 %v633
  %643 = vmatprep.subr.bf16.mxu0 0
  %644 = vmatpush1.bf16.msra.mxu0 0
  %645 = vmatprep.subr.bf16.mxu0 0
  %646 = vmatpush1.bf16.msra.mxu0 0
  %647 = vmatprep.subr.bf16.mxu0 0
  %648 = vmatpush1.bf16.msra.mxu0 0
  %649 = vmatprep.subr.bf16.mxu0 0
  %650 = vmatpush1.bf16.msra.mxu0 0
  %651 = vmatprep.subr.bf16.mxu0 0
  %652 = vmatpush1.bf16.msra.mxu0 0
  %653 = vmatprep.subr.bf16.mxu0 0
  %654 = vmatpush1.bf16.msra.mxu0 0
  %655 = vmatprep.subr.bf16.mxu0 0
  %656 = vmatpush1.bf16.msra.mxu0 0
  %657 = vmatprep.subr.bf16.mxu0 0
  %658 = vmatpush1.bf16.msra.mxu0 0
  %659 = vmatprep.subr.bf16.mxu0 0
  %660 = vmatpush1.bf16.msra.mxu0 0
  %661 = vmatprep.subr.bf16.mxu0 0
  %662 = vmatpush1.bf16.msra.mxu0 0
  %663 = vmatprep.subr.bf16.mxu0 0
  %664 = vmatpush1.bf16.msra.mxu0 0
  %665 = vmatprep.subr.bf16.mxu0 0
  %666 = vmatpush1.bf16.msra.mxu0 0
  %667 = vmatprep.subr.bf16.mxu0 0
  %668 = vmatpush1.bf16.msra.mxu0 0
  %669 = vmatprep.subr.bf16.mxu0 0
  %670 = vmatpush1.bf16.msra.mxu0 0
  %671 = vmatprep.mubr.bf16.mxu0 0
  %672 = vmatmul.mubr.bf16.gmra.mrb[0].mxu0 %v637
  %v673 = vpop.f32.mrb[0].mxu0
  %v674 = vadd.f32 %v622, %v673
  %v675 = vpop.f32.mrb[0].mxu0
  %v676 = vpop.f32.mrb[0].mxu0
  %v677 = vadd.f32 %v622, %v676
  %v678 = vpop.f32.mrb[0].mxu0
  %679 = vdwg.mxu0
  %v680 = vld [vmem:[%s10] sm:$0xf]
  %v681 = vld [vmem:[%s10 + $0x4] sm:$0xf]
  %v682 = vld [vmem:[%s10 + $0x8] sm:$0xf]
  %v683 = vld [vmem:[%s10 + $0xc] sm:$0xf]
  %v684 = vld [vmem:[%s11] sm:$0x1]
  %v686 = vlaneseq
  %v687 = vshrl.u32 %v686, 7
  %v688 = vsub.s32 0, %v687
  %v689 = vrot.slane %v684, %v688
  %v695 = vunpack.c.l.b16 %v680
  %v696 = vunpack.c.l.b16 %v681
  %v697 = vunpack.c.l.b16 %v682
  %v698 = vunpack.c.l.b16 %v683
  %v699 = vpack.c.b16 %v696, %v695
  %v700 = vpack.c.b16 %v698, %v697
  %v704 = vsel %vm120, %v92, 0
  %v707 = vsel %vm120, %v93, 0
  %709 = vmatprep.subr.bf16.mxu0 0
  %710 = vmatpush1.bf16.msra.mxu0 %v699
  %711 = vmatprep.subr.bf16.mxu0 0
  %712 = vmatpush1.bf16.msra.mxu0 %v700
  %713 = vmatprep.subr.bf16.mxu0 0
  %714 = vmatpush1.bf16.msra.mxu0 0
  %715 = vmatprep.subr.bf16.mxu0 0
  %716 = vmatpush1.bf16.msra.mxu0 0
  %717 = vmatprep.subr.bf16.mxu0 0
  %718 = vmatpush1.bf16.msra.mxu0 0
  %719 = vmatprep.subr.bf16.mxu0 0
  %720 = vmatpush1.bf16.msra.mxu0 0
  %721 = vmatprep.subr.bf16.mxu0 0
  %722 = vmatpush1.bf16.msra.mxu0 0
  %723 = vmatprep.subr.bf16.mxu0 0
  %724 = vmatpush1.bf16.msra.mxu0 0
  %725 = vmatprep.subr.bf16.mxu0 0
  %726 = vmatpush1.bf16.msra.mxu0 0
  %727 = vmatprep.subr.bf16.mxu0 0
  %728 = vmatpush1.bf16.msra.mxu0 0
  %729 = vmatprep.subr.bf16.mxu0 0
  %730 = vmatpush1.bf16.msra.mxu0 0
  %731 = vmatprep.subr.bf16.mxu0 0
  %732 = vmatpush1.bf16.msra.mxu0 0
  %733 = vmatprep.subr.bf16.mxu0 0
  %734 = vmatpush1.bf16.msra.mxu0 0
  %735 = vmatprep.subr.bf16.mxu0 0
  %736 = vmatpush1.bf16.msra.mxu0 0
  %737 = vmatprep.subr.bf16.mxu0 0
  %738 = vmatpush1.bf16.msra.mxu0 0
  %739 = vmatprep.subr.bf16.mxu0 0
  %740 = vmatpush1.bf16.msra.mxu0 0
  %741 = vmatprep.mubr.bf16.mxu0 0
  %742 = vmatmul.mubr.bf16.gmra.mrb[0].mxu0 %v704
  %v743 = vpop.f32.mrb[0].mxu0
  %v744 = vadd.f32 %v689, %v743
  %v745 = vpop.f32.mrb[0].mxu0
  %v746 = vpop.f32.mrb[0].mxu0
  %v747 = vadd.f32 %v689, %v746
  %v748 = vpop.f32.mrb[0].mxu0
  %749 = vmatprep.mubr.bf16.mxu0 0
  %750 = vmatmul.mubr.bf16.gmra.mrb[0].mxu0 %v707
  %v751 = vpop.f32.mrb[0].mxu0
  %v752 = vadd.f32 %v689, %v751
  %v753 = vpop.f32.mrb[0].mxu0
  %v754 = vpop.f32.mrb[0].mxu0
  %v755 = vadd.f32 %v689, %v754
  %v756 = vpop.f32.mrb[0].mxu0
  %757 = vdwg.mxu0
  %v758 = vld [vmem:[%s12] sm:$0xf]
  %v759 = vld [vmem:[%s12 + $0x4] sm:$0xf]
  %v760 = vld [vmem:[%s12 + $0x8] sm:$0xf]
  %v761 = vld [vmem:[%s12 + $0xc] sm:$0xf]
  %v762 = vld [vmem:[%s13] sm:$0x1]
  %v763 = vpack.c.bf16 %v677, %v674
  %v764 = vpack.c.bf16 %v747, %v744
  %v765 = vpack.c.bf16 %v755, %v752
  %767 = vrot.lane.b32.xlu0 %v763, 120
  %v768 = vpop.permute.xlu0 %767
  %769 = vrot.lane.b32.xlu0 %v763, 112
  %v770 = vpop.permute.xlu0 %769
  %771 = vrot.lane.b32.xlu0 %v763, 104
  %v772 = vpop.permute.xlu0 %771
  %775 = vrot.lane.b32.xlu0 %v764, 120
  %v776 = vpop.permute.xlu0 %775
  %777 = vrot.lane.b32.xlu0 %v765, 120
  %v778 = vpop.permute.xlu0 %777
  %779 = vrot.lane.b32.xlu0 %v764, 112
  %v780 = vpop.permute.xlu0 %779
  %781 = vrot.lane.b32.xlu0 %v765, 112
  %v782 = vpop.permute.xlu0 %781
  %783 = vrot.lane.b32.xlu0 %v764, 104
  %v784 = vpop.permute.xlu0 %783
  %785 = vrot.lane.b32.xlu0 %v765, 104
  %v786 = vpop.permute.xlu0 %785
  %v788 = vsel %vm186, %v763, 0
  %v791 = vsel %vm186, %v768, 0
  %v794 = vsel %vm186, %v770, 0
  %v797 = vsel %vm186, %v772, 0
  %v800 = vsel %vm186, %v764, 0
  %v803 = vsel %vm186, %v765, 0
  %v806 = vsel %vm186, %v776, 0
  %v809 = vsel %vm186, %v778, 0
  %v812 = vsel %vm186, %v780, 0
  %v815 = vsel %vm186, %v782, 0
  %v818 = vsel %vm186, %v784, 0
  %v821 = vsel %vm186, %v786, 0
  %823 = vmatprep.subr.bf16.mxu0 0
  %824 = vmatpush1.bf16.xpose.msra.mxu0 %v800
  %825 = vmatprep.subr.bf16.mxu0 0
  %826 = vmatpush1.bf16.xpose.msra.mxu0 %v803
  %827 = vmatprep.subr.bf16.mxu0 0
  %828 = vmatpush1.bf16.xpose.msra.mxu0 %v806
  %829 = vmatprep.subr.bf16.mxu0 0
  %830 = vmatpush1.bf16.xpose.msra.mxu0 %v809
  %831 = vmatprep.subr.bf16.mxu0 0
  %832 = vmatpush1.bf16.xpose.msra.mxu0 %v812
  %833 = vmatprep.subr.bf16.mxu0 0
  %834 = vmatpush1.bf16.xpose.msra.mxu0 %v815
  %835 = vmatprep.subr.bf16.mxu0 0
  %836 = vmatpush1.bf16.xpose.msra.mxu0 %v818
  %837 = vmatprep.subr.bf16.mxu0 0
  %838 = vmatpush1.bf16.xpose.msra.mxu0 %v821
  %839 = vmatprep.subr.bf16.mxu0 0
  %840 = vmatpush1.bf16.xpose.msra.mxu0 0
  %841 = vmatprep.subr.bf16.mxu0 0
  %842 = vmatpush1.bf16.xpose.msra.mxu0 0
  %843 = vmatprep.subr.bf16.mxu0 0
  %844 = vmatpush1.bf16.xpose.msra.mxu0 0
  %845 = vmatprep.subr.bf16.mxu0 0
  %846 = vmatpush1.bf16.xpose.msra.mxu0 0
  %847 = vmatprep.subr.bf16.mxu0 0
  %848 = vmatpush1.bf16.xpose.msra.mxu0 0
  %849 = vmatprep.subr.bf16.mxu0 0
  %850 = vmatpush1.bf16.xpose.msra.mxu0 0
  %851 = vmatprep.subr.bf16.mxu0 0
  %852 = vmatpush1.bf16.xpose.msra.mxu0 0
  %853 = vmatprep.subr.bf16.mxu0 0
  %854 = vmatpush1.bf16.xpose.msra.mxu0 0
  %855 = vmatprep.mubr.bf16.mxu0 0
  %856 = vmatmul.mubr.bf16.gmra.mrb[0].mxu0 %v788
  %v857 = vpop.f32.mrb[0].mxu0
  %v858 = vadd.f32 0.0, %v857
  %v859 = vpop.f32.mrb[0].mxu0
  %v860 = vpop.f32.mrb[0].mxu0
  %v861 = vadd.f32 0.0, %v860
  %v862 = vpop.f32.mrb[0].mxu0
  %863 = vmatprep.mubr.bf16.mxu0 0
  %864 = vmatmul.mubr.bf16.gmra.mrb[0].mxu0 %v791
  %v865 = vpop.f32.mrb[0].mxu0
  %v866 = vadd.f32 0.0, %v865
  %v867 = vpop.f32.mrb[0].mxu0
  %v868 = vpop.f32.mrb[0].mxu0
  %v869 = vadd.f32 0.0, %v868
  %v870 = vpop.f32.mrb[0].mxu0
  %871 = vmatprep.mubr.bf16.mxu0 0
  %872 = vmatmul.mubr.bf16.gmra.mrb[0].mxu0 %v794
  %v873 = vpop.f32.mrb[0].mxu0
  %v874 = vadd.f32 0.0, %v873
  %v875 = vpop.f32.mrb[0].mxu0
  %v876 = vpop.f32.mrb[0].mxu0
  %v877 = vadd.f32 0.0, %v876
  %v878 = vpop.f32.mrb[0].mxu0
  %879 = vmatprep.mubr.bf16.mxu0 0
  %880 = vmatmul.mubr.bf16.gmra.mrb[0].mxu0 %v797
  %v881 = vpop.f32.mrb[0].mxu0
  %v882 = vadd.f32 0.0, %v881
  %v883 = vpop.f32.mrb[0].mxu0
  %v884 = vpop.f32.mrb[0].mxu0
  %v885 = vadd.f32 0.0, %v884
  %v886 = vpop.f32.mrb[0].mxu0
  %887 = vdwg.mxu0
  %v888 = vmul.f32 %v858, 0.35355338
  %v889 = vmul.f32 %v861, 0.35355338
  %v890 = vmul.f32 %v866, 0.35355338
  %v891 = vmul.f32 %v869, 0.35355338
  %v892 = vmul.f32 %v874, 0.35355338
  %v893 = vmul.f32 %v877, 0.35355338
  %v894 = vmul.f32 %v882, 0.35355338
  %v895 = vmul.f32 %v885, 0.35355338
  %v896 = vadd.f32 %v888, %v80
  %v897 = vadd.f32 %v889, %v81
  %v898 = vadd.f32 %v890, %v82
  %v899 = vadd.f32 %v891, %v83
  %v900 = vadd.f32 %v892, %v84
  %v901 = vadd.f32 %v893, %v85
  %v902 = vadd.f32 %v894, %v86
  %v903 = vadd.f32 %v895, %v87
  %904 = vmax.xlane.f32.xlu0 %v896
  %v905 = vpop.xlane.xlu0 %904
  %906 = vmax.xlane.f32.xlu0 %v897
  %v907 = vpop.xlane.xlu0 %906
  %908 = vmax.xlane.f32.xlu0 %v898
  %v909 = vpop.xlane.xlu0 %908
  %910 = vmax.xlane.f32.xlu0 %v899
  %v911 = vpop.xlane.xlu0 %910
  %912 = vmax.xlane.f32.xlu0 %v900
  %v913 = vpop.xlane.xlu0 %912
  %914 = vmax.xlane.f32.xlu0 %v901
  %v915 = vpop.xlane.xlu0 %914
  %916 = vmax.xlane.f32.xlu0 %v902
  %v917 = vpop.xlane.xlu0 %916
  %918 = vmax.xlane.f32.xlu0 %v903
  %v919 = vpop.xlane.xlu0 %918
  %v920 = vsub.f32 %v896, %v905
  %v921 = vsub.f32 %v897, %v907
  %v922 = vsub.f32 %v898, %v909
  %v923 = vsub.f32 %v899, %v911
  %v924 = vsub.f32 %v900, %v913
  %v925 = vsub.f32 %v901, %v915
  %v926 = vsub.f32 %v902, %v917
  %v927 = vsub.f32 %v903, %v919
  %v928 = vmul.f32 %v920, 1.442695
  %v929 = vpow.pop %v928
  %v930 = vmul.f32 %v921, 1.442695
  %v931 = vpow.pop %v930
  %v932 = vmul.f32 %v922, 1.442695
  %v933 = vpow.pop %v932
  %v934 = vmul.f32 %v923, 1.442695
  %v935 = vpow.pop %v934
  %v936 = vmul.f32 %v924, 1.442695
  %v937 = vpow.pop %v936
  %v938 = vmul.f32 %v925, 1.442695
  %v939 = vpow.pop %v938
  %v940 = vmul.f32 %v926, 1.442695
  %v941 = vpow.pop %v940
  %v942 = vmul.f32 %v927, 1.442695
  %v943 = vpow.pop %v942
  %944 = vadd.xlane.f32.xlu0 %v929
  %v945 = vpop.xlane.xlu0 %944
  %946 = vadd.xlane.f32.xlu0 %v931
  %v947 = vpop.xlane.xlu0 %946
  %948 = vadd.xlane.f32.xlu0 %v933
  %v949 = vpop.xlane.xlu0 %948
  %950 = vadd.xlane.f32.xlu0 %v935
  %v951 = vpop.xlane.xlu0 %950
  %952 = vadd.xlane.f32.xlu0 %v937
  %v953 = vpop.xlane.xlu0 %952
  %954 = vadd.xlane.f32.xlu0 %v939
  %v955 = vpop.xlane.xlu0 %954
  %956 = vadd.xlane.f32.xlu0 %v941
  %v957 = vpop.xlane.xlu0 %956
  %958 = vadd.xlane.f32.xlu0 %v943
  %v959 = vpop.xlane.xlu0 %958
  %v960 = vrcp.pop %v945
  %v961 = vrcp.pop %v947
  %v962 = vrcp.pop %v949
  %v963 = vrcp.pop %v951
  %v964 = vrcp.pop %v953
  %v965 = vrcp.pop %v955
  %v966 = vrcp.pop %v957
  %v967 = vrcp.pop %v959
  %v968 = vmul.f32 %v929, %v960
  %v969 = vmul.f32 %v931, %v961
  %v970 = vmul.f32 %v933, %v962
  %v971 = vmul.f32 %v935, %v963
  %v972 = vmul.f32 %v937, %v964
  %v973 = vmul.f32 %v939, %v965
  %v974 = vmul.f32 %v941, %v966
  %v975 = vmul.f32 %v943, %v967
  %v976 = vpack.c.bf16 %v969, %v968
  %v977 = vpack.c.bf16 %v971, %v970
  %v978 = vpack.c.bf16 %v973, %v972
  %v979 = vpack.c.bf16 %v975, %v974
  %980 = vrot.lane.b32.xlu0 %v764, 96
  %v981 = vpop.permute.xlu0 %980
  %982 = vrot.lane.b32.xlu0 %v765, 96
  %v983 = vpop.permute.xlu0 %982
  %984 = vrot.lane.b32.xlu0 %v776, 96
  %v985 = vpop.permute.xlu0 %984
  %986 = vrot.lane.b32.xlu0 %v778, 96
  %v987 = vpop.permute.xlu0 %986
  %988 = vrot.lane.b32.xlu0 %v780, 96
  %v989 = vpop.permute.xlu0 %988
  %990 = vrot.lane.b32.xlu0 %v782, 96
  %v991 = vpop.permute.xlu0 %990
  %992 = vrot.lane.b32.xlu0 %v784, 96
  %v993 = vpop.permute.xlu0 %992
  %994 = vrot.lane.b32.xlu0 %v786, 96
  %v995 = vpop.permute.xlu0 %994
  %1004 = vmatprep.subr.bf16.mxu0 0
  %1005 = vmatpush1.bf16.msra.mxu0 %v981
  %1006 = vmatprep.subr.bf16.mxu0 0
  %1007 = vmatpush1.bf16.msra.mxu0 %v983
  %1008 = vmatprep.subr.bf16.mxu0 0
  %1009 = vmatpush1.bf16.msra.mxu0 %v985
  %1010 = vmatprep.subr.bf16.mxu0 0
  %1011 = vmatpush1.bf16.msra.mxu0 %v987
  %1012 = vmatprep.subr.bf16.mxu0 0
  %1013 = vmatpush1.bf16.msra.mxu0 %v989
  %1014 = vmatprep.subr.bf16.mxu0 0
  %1015 = vmatpush1.bf16.msra.mxu0 %v991
  %1016 = vmatprep.subr.bf16.mxu0 0
  %1017 = vmatpush1.bf16.msra.mxu0 %v993
  %1018 = vmatprep.subr.bf16.mxu0 0
  %1019 = vmatpush1.bf16.msra.mxu0 %v995
  %1020 = vmatprep.subr.bf16.mxu0 0
  %1021 = vmatpush1.bf16.msra.mxu0 0
  %1022 = vmatprep.subr.bf16.mxu0 0
  %1023 = vmatpush1.bf16.msra.mxu0 0
  %1024 = vmatprep.subr.bf16.mxu0 0
  %1025 = vmatpush1.bf16.msra.mxu0 0
  %1026 = vmatprep.subr.bf16.mxu0 0
  %1027 = vmatpush1.bf16.msra.mxu0 0
  %1028 = vmatprep.subr.bf16.mxu0 0
  %1029 = vmatpush1.bf16.msra.mxu0 0
  %1030 = vmatprep.subr.bf16.mxu0 0
  %1031 = vmatpush1.bf16.msra.mxu0 0
  %1032 = vmatprep.subr.bf16.mxu0 0
  %1033 = vmatpush1.bf16.msra.mxu0 0
  %1034 = vmatprep.subr.bf16.mxu0 0
  %1035 = vmatpush1.bf16.msra.mxu0 0
  %1036 = vmatprep.mubr.bf16.mxu0 0
  %1037 = vmatmul.mubr.bf16.gmra.mrb[0].mxu0 %v976
  %v1038 = vpop.f32.mrb[0].mxu0
  %v1039 = vadd.f32 0.0, %v1038
  %v1040 = vpop.f32.mrb[0].mxu0
  %v1041 = vpop.f32.mrb[0].mxu0
  %v1042 = vadd.f32 0.0, %v1041
  %v1043 = vpop.f32.mrb[0].mxu0
  %1044 = vmatprep.mubr.bf16.mxu0 0
  %1045 = vmatmul.mubr.bf16.gmra.mrb[0].mxu0 %v977
  %v1046 = vpop.f32.mrb[0].mxu0
  %v1047 = vadd.f32 0.0, %v1046
  %v1048 = vpop.f32.mrb[0].mxu0
  %v1049 = vpop.f32.mrb[0].mxu0
  %v1050 = vadd.f32 0.0, %v1049
  %v1051 = vpop.f32.mrb[0].mxu0
  %1052 = vmatprep.mubr.bf16.mxu0 0
  %1053 = vmatmul.mubr.bf16.gmra.mrb[0].mxu0 %v978
  %v1054 = vpop.f32.mrb[0].mxu0
  %v1055 = vadd.f32 0.0, %v1054
  %v1056 = vpop.f32.mrb[0].mxu0
  %v1057 = vpop.f32.mrb[0].mxu0
  %v1058 = vadd.f32 0.0, %v1057
  %v1059 = vpop.f32.mrb[0].mxu0
  %1060 = vmatprep.mubr.bf16.mxu0 0
  %1061 = vmatmul.mubr.bf16.gmra.mrb[0].mxu0 %v979
  %v1062 = vpop.f32.mrb[0].mxu0
  %v1063 = vadd.f32 0.0, %v1062
  %v1064 = vpop.f32.mrb[0].mxu0
  %v1065 = vpop.f32.mrb[0].mxu0
  %v1066 = vadd.f32 0.0, %v1065
  %v1067 = vpop.f32.mrb[0].mxu0
  %1068 = vdwg.mxu0
  %1071 = vrot.lane.b32.xlu0 %v1047, 8
  %v1072 = vpop.permute.xlu0 %1071
  %1073 = vrot.lane.b32.xlu0 %v1050, 8
  %v1074 = vpop.permute.xlu0 %1073
  %1079 = vrot.lane.b32.xlu0 %v1055, 16
  %v1080 = vpop.permute.xlu0 %1079
  %1081 = vrot.lane.b32.xlu0 %v1058, 16
  %v1082 = vpop.permute.xlu0 %1081
  %1087 = vrot.lane.b32.xlu0 %v1063, 24
  %v1088 = vpop.permute.xlu0 %1087
  %1089 = vrot.lane.b32.xlu0 %v1066, 24
  %v1090 = vpop.permute.xlu0 %1089
  %v1093 = vsel %vm186, %v1039, %v1072
  %v1094 = vsel %vm186, %v1042, %v1074
  %v1095 = vsel %vm500, %v1093, %v1080
  %v1096 = vsel %vm500, %v1094, %v1082
  %v1097 = vsel %vm503, %v1095, %v1088
  %v1098 = vsel %vm503, %v1096, %v1090
  %v1099 = vpack.c.bf16 %v1098, %v1097
  %v1101 = vlaneseq
  %v1102 = vshrl.u32 %v1101, 7
  %v1103 = vsub.s32 0, %v1102
  %v1104 = vrot.slane %v762, %v1103
  %v1110 = vunpack.c.l.b16 %v758
  %v1111 = vunpack.c.l.b16 %v759
  %v1112 = vunpack.c.l.b16 %v760
  %v1113 = vunpack.c.l.b16 %v761
  %v1114 = vpack.c.b16 %v1111, %v1110
  %v1115 = vpack.c.b16 %v1113, %v1112
  %v1119 = vsel %vm120, %v1099, 0
  %1121 = vmatprep.subr.bf16.mxu0 0
  %1122 = vmatpush1.bf16.msra.mxu0 %v1114
  %1123 = vmatprep.subr.bf16.mxu0 0
  %1124 = vmatpush1.bf16.msra.mxu0 %v1115
  %1125 = vmatprep.subr.bf16.mxu0 0
  %1126 = vmatpush1.bf16.msra.mxu0 0
  %1127 = vmatprep.subr.bf16.mxu0 0
  %1128 = vmatpush1.bf16.msra.mxu0 0
  %1129 = vmatprep.subr.bf16.mxu0 0
  %1130 = vmatpush1.bf16.msra.mxu0 0
  %1131 = vmatprep.subr.bf16.mxu0 0
  %1132 = vmatpush1.bf16.msra.mxu0 0
  %1133 = vmatprep.subr.bf16.mxu0 0
  %1134 = vmatpush1.bf16.msra.mxu0 0
  %1135 = vmatprep.subr.bf16.mxu0 0
  %1136 = vmatpush1.bf16.msra.mxu0 0
  %1137 = vmatprep.subr.bf16.mxu0 0
  %1138 = vmatpush1.bf16.msra.mxu0 0
  %1139 = vmatprep.subr.bf16.mxu0 0
  %1140 = vmatpush1.bf16.msra.mxu0 0
  %1141 = vmatprep.subr.bf16.mxu0 0
  %1142 = vmatpush1.bf16.msra.mxu0 0
  %1143 = vmatprep.subr.bf16.mxu0 0
  %1144 = vmatpush1.bf16.msra.mxu0 0
  %1145 = vmatprep.subr.bf16.mxu0 0
  %1146 = vmatpush1.bf16.msra.mxu0 0
  %1147 = vmatprep.subr.bf16.mxu0 0
  %1148 = vmatpush1.bf16.msra.mxu0 0
  %1149 = vmatprep.subr.bf16.mxu0 0
  %1150 = vmatpush1.bf16.msra.mxu0 0
  %1151 = vmatprep.subr.bf16.mxu0 0
  %1152 = vmatpush1.bf16.msra.mxu0 0
  %1153 = vmatprep.mubr.bf16.mxu0 0
  %1154 = vmatmul.mubr.bf16.gmra.mrb[0].mxu0 %v1119
  %v1155 = vpop.f32.mrb[0].mxu0
  %v1156 = vadd.f32 %v1104, %v1155
  %v1157 = vpop.f32.mrb[0].mxu0
  %v1158 = vpop.f32.mrb[0].mxu0
  %v1159 = vadd.f32 %v1104, %v1158
  %v1160 = vpop.f32.mrb[0].mxu0
  %1161 = vdwg.mxu0
  %v1162 = vadd.f32 %v610, %v1156
  %v1163 = vadd.f32 %v611, %v1159
  %v1164 = vld [vmem:[%s18 + $0x1] sm:$0x1]
  %v1165 = vld [vmem:[%s19 + $0x1] sm:$0x1]
  %v1166 = vsel %vm120, %v1162, 0.0
  %1167 = vadd.xlane.f32.xlu0 %v1166
  %v1168 = vpop.xlane.xlu0 %1167
  %v1169 = vsel %vm120, %v1163, 0.0
  %1170 = vadd.xlane.f32.xlu0 %v1169
  %v1171 = vpop.xlane.xlu0 %1170
  %v1172 = vmul.f32 %v1168, %v579
  %v1173 = vmul.f32 %v1171, %v579
  %v1174 = vsub.f32 %v1162, %v1172
  %v1175 = vsub.f32 %v1163, %v1173
  %v1176 = vmul.f32 %v1174, %v1174
  %v1177 = vmul.f32 %v1175, %v1175
  %v1178 = vsel %vm120, %v1176, 0.0
  %1179 = vadd.xlane.f32.xlu0 %v1178
  %v1180 = vpop.xlane.xlu0 %1179
  %v1181 = vsel %vm120, %v1177, 0.0
  %1182 = vadd.xlane.f32.xlu0 %v1181
  %v1183 = vpop.xlane.xlu0 %1182
  %v1184 = vmul.f32 %v1180, %v579
  %v1185 = vmul.f32 %v1183, %v579
  %v1186 = vadd.f32 %v1184, 1e-05
  %v1187 = vadd.f32 %v1185, 1e-05
  %v1188 = vrsqrt.pop %v1186
  %v1189 = vrsqrt.pop %v1187
  %v1190 = vmul.f32 %v1174, %v1188
  %v1191 = vmul.f32 %v1175, %v1189
  %v1192 = vlaneseq
  %v1193 = vshrl.u32 %v1192, 7
  %v1194 = vsub.s32 0, %v1193
  %v1195 = vrot.slane %v1164, %v1194
  %v1196 = vmul.f32 %v1190, %v1195
  %v1197 = vmul.f32 %v1191, %v1195
  %v1198 = vlaneseq
  %v1199 = vshrl.u32 %v1198, 7
  %v1200 = vsub.s32 0, %v1199
  %v1201 = vrot.slane %v1165, %v1200
  %v1202 = vadd.f32 %v1196, %v1201
  %v1203 = vadd.f32 %v1197, %v1201
  %v1204 = vpack.c.bf16 %v1203, %v1202
  %v1205 = vld [vmem:[%s14] sm:$0xff]
  %v1206 = vld [vmem:[%s14 + $0x8] sm:$0xff]
  %v1207 = vld [vmem:[%s14 + $0x40] sm:$0xff]
  %v1208 = vld [vmem:[%s14 + $0x48] sm:$0xff]
  %v1209 = vld [vmem:[%s14 + $0x80] sm:$0xff]
  %v1210 = vld [vmem:[%s14 + $0x88] sm:$0xff]
  %v1211 = vld [vmem:[%s14 + $0xc0] sm:$0xff]
  %v1212 = vld [vmem:[%s14 + $0xc8] sm:$0xff]
  %v1213 = vld [vmem:[%s15] sm:$0xf]
  %v1215 = vlaneseq
  %v1216 = vshrl.u32 %v1215, 7
  %v1217 = vsub.s32 0, %v1216
  %v1218 = vrot.slane %v1213, %v1217
  %v1219 = vlaneseq
  %v1220 = vshrl.u32 %v1219, 7
  %v1221 = vsub.s32 1, %v1220
  %v1222 = vrot.slane %v1213, %v1221
  %v1223 = vlaneseq
  %v1224 = vshrl.u32 %v1223, 7
  %v1225 = vsub.s32 2, %v1224
  %v1226 = vrot.slane %v1213, %v1225
  %v1227 = vlaneseq
  %v1228 = vshrl.u32 %v1227, 7
  %v1229 = vsub.s32 3, %v1228
  %v1230 = vrot.slane %v1213, %v1229
  %v1243 = vunpack.c.l.b16 %v1205
  %v1244 = vunpack.c.h.b16 %v1205
  %v1245 = vunpack.c.l.b16 %v1206
  %v1246 = vunpack.c.h.b16 %v1206
  %v1247 = vunpack.c.l.b16 %v1207
  %v1248 = vunpack.c.h.b16 %v1207
  %v1249 = vunpack.c.l.b16 %v1208
  %v1250 = vunpack.c.h.b16 %v1208
  %v1251 = vunpack.c.l.b16 %v1209
  %v1252 = vunpack.c.h.b16 %v1209
  %v1253 = vunpack.c.l.b16 %v1210
  %v1254 = vunpack.c.h.b16 %v1210
  %v1255 = vunpack.c.l.b16 %v1211
  %v1256 = vunpack.c.h.b16 %v1211
  %v1257 = vunpack.c.l.b16 %v1212
  %v1258 = vunpack.c.h.b16 %v1212
  %v1259 = vpack.c.b16 %v1247, %v1243
  %v1260 = vpack.c.b16 %v1248, %v1244
  %v1261 = vpack.c.b16 %v1249, %v1245
  %v1262 = vpack.c.b16 %v1250, %v1246
  %v1263 = vpack.c.b16 %v1255, %v1251
  %v1264 = vpack.c.b16 %v1256, %v1252
  %v1265 = vpack.c.b16 %v1257, %v1253
  %v1266 = vpack.c.b16 %v1258, %v1254
  %v1276 = vsel %vm120, %v1204, 0
  %1278 = vmatprep.subr.bf16.mxu0 %v1260
  %1279 = vmatpush1.bf16.msra.mxu0 %v1259
  %1280 = vmatprep.subr.bf16.mxu0 %v1264
  %1281 = vmatpush1.bf16.msra.mxu0 %v1263
  %1282 = vmatprep.subr.bf16.mxu0 0
  %1283 = vmatpush1.bf16.msra.mxu0 0
  %1284 = vmatprep.subr.bf16.mxu0 0
  %1285 = vmatpush1.bf16.msra.mxu0 0
  %1286 = vmatprep.subr.bf16.mxu0 0
  %1287 = vmatpush1.bf16.msra.mxu0 0
  %1288 = vmatprep.subr.bf16.mxu0 0
  %1289 = vmatpush1.bf16.msra.mxu0 0
  %1290 = vmatprep.subr.bf16.mxu0 0
  %1291 = vmatpush1.bf16.msra.mxu0 0
  %1292 = vmatprep.subr.bf16.mxu0 0
  %1293 = vmatpush1.bf16.msra.mxu0 0
  %1294 = vmatprep.subr.bf16.mxu0 0
  %1295 = vmatpush1.bf16.msra.mxu0 0
  %1296 = vmatprep.subr.bf16.mxu0 0
  %1297 = vmatpush1.bf16.msra.mxu0 0
  %1298 = vmatprep.subr.bf16.mxu0 0
  %1299 = vmatpush1.bf16.msra.mxu0 0
  %1300 = vmatprep.subr.bf16.mxu0 0
  %1301 = vmatpush1.bf16.msra.mxu0 0
  %1302 = vmatprep.subr.bf16.mxu0 0
  %1303 = vmatpush1.bf16.msra.mxu0 0
  %1304 = vmatprep.subr.bf16.mxu0 0
  %1305 = vmatpush1.bf16.msra.mxu0 0
  %1306 = vmatprep.subr.bf16.mxu0 0
  %1307 = vmatpush1.bf16.msra.mxu0 0
  %1308 = vmatprep.subr.bf16.mxu0 0
  %1309 = vmatpush1.bf16.msra.mxu0 0
  %1310 = vmatprep.mubr.bf16.mxu0 0
  %1311 = vmatmul.mubr.bf16.gmra.mrb[0].mxu0 %v1276
  %v1312 = vpop.f32.mrb[0].mxu0
  %v1313 = vadd.f32 %v1218, %v1312
  %v1314 = vpop.f32.mrb[0].mxu0
  %v1315 = vadd.f32 %v1222, %v1314
  %v1316 = vpop.f32.mrb[0].mxu0
  %v1317 = vadd.f32 %v1218, %v1316
  %v1318 = vpop.f32.mrb[0].mxu0
  %v1319 = vadd.f32 %v1222, %v1318
  %1320 = vdwg.mxu0
  %1321 = vmatprep.subr.bf16.mxu0 %v1262
  %1322 = vmatpush1.bf16.msra.mxu0 %v1261
  %1323 = vmatprep.subr.bf16.mxu0 %v1266
  %1324 = vmatpush1.bf16.msra.mxu0 %v1265
  %1325 = vmatprep.subr.bf16.mxu0 0
  %1326 = vmatpush1.bf16.msra.mxu0 0
  %1327 = vmatprep.subr.bf16.mxu0 0
  %1328 = vmatpush1.bf16.msra.mxu0 0
  %1329 = vmatprep.subr.bf16.mxu0 0
  %1330 = vmatpush1.bf16.msra.mxu0 0
  %1331 = vmatprep.subr.bf16.mxu0 0
  %1332 = vmatpush1.bf16.msra.mxu0 0
  %1333 = vmatprep.subr.bf16.mxu0 0
  %1334 = vmatpush1.bf16.msra.mxu0 0
  %1335 = vmatprep.subr.bf16.mxu0 0
  %1336 = vmatpush1.bf16.msra.mxu0 0
  %1337 = vmatprep.subr.bf16.mxu0 0
  %1338 = vmatpush1.bf16.msra.mxu0 0
  %1339 = vmatprep.subr.bf16.mxu0 0
  %1340 = vmatpush1.bf16.msra.mxu0 0
  %1341 = vmatprep.subr.bf16.mxu0 0
  %1342 = vmatpush1.bf16.msra.mxu0 0
  %1343 = vmatprep.subr.bf16.mxu0 0
  %1344 = vmatpush1.bf16.msra.mxu0 0
  %1345 = vmatprep.subr.bf16.mxu0 0
  %1346 = vmatpush1.bf16.msra.mxu0 0
  %1347 = vmatprep.subr.bf16.mxu0 0
  %1348 = vmatpush1.bf16.msra.mxu0 0
  %1349 = vmatprep.subr.bf16.mxu0 0
  %1350 = vmatpush1.bf16.msra.mxu0 0
  %1351 = vmatprep.subr.bf16.mxu0 0
  %1352 = vmatpush1.bf16.msra.mxu0 0
  %1353 = vmatprep.mubr.bf16.mxu0 0
  %1354 = vmatmul.mubr.bf16.gmra.mrb[0].mxu0 %v1276
  %v1355 = vpop.f32.mrb[0].mxu0
  %v1356 = vadd.f32 %v1226, %v1355
  %v1357 = vpop.f32.mrb[0].mxu0
  %v1358 = vadd.f32 %v1230, %v1357
  %v1359 = vpop.f32.mrb[0].mxu0
  %v1360 = vadd.f32 %v1226, %v1359
  %v1361 = vpop.f32.mrb[0].mxu0
  %v1362 = vadd.f32 %v1230, %v1361
  %1363 = vdwg.mxu0
  %v1364 = vmax.f32 %v1313, 0.0
  %v1365 = vmax.f32 %v1315, 0.0
  %v1366 = vmax.f32 %v1356, 0.0
  %v1367 = vmax.f32 %v1358, 0.0
  %v1368 = vmax.f32 %v1317, 0.0
  %v1369 = vmax.f32 %v1319, 0.0
  %v1370 = vmax.f32 %v1360, 0.0
  %v1371 = vmax.f32 %v1362, 0.0
  %v1372 = vpack.c.bf16 %v1368, %v1364
  %v1373 = vpack.c.bf16 %v1369, %v1365
  %v1374 = vpack.c.bf16 %v1370, %v1366
  %v1375 = vpack.c.bf16 %v1371, %v1367
  %v1376 = vld [vmem:[%s16] sm:$0xf]
  %v1377 = vld [vmem:[%s16 + $0x4] sm:$0xf]
  %v1378 = vld [vmem:[%s16 + $0x8] sm:$0xf]
  %v1379 = vld [vmem:[%s16 + $0xc] sm:$0xf]
  %v1380 = vld [vmem:[%s16 + $0x10] sm:$0xf]
  %v1381 = vld [vmem:[%s16 + $0x14] sm:$0xf]
  %v1382 = vld [vmem:[%s16 + $0x18] sm:$0xf]
  %v1383 = vld [vmem:[%s16 + $0x1c] sm:$0xf]
  %v1384 = vld [vmem:[%s16 + $0x20] sm:$0xf]
  %v1385 = vld [vmem:[%s16 + $0x24] sm:$0xf]
  %v1386 = vld [vmem:[%s16 + $0x28] sm:$0xf]
  %v1387 = vld [vmem:[%s16 + $0x2c] sm:$0xf]
  %v1388 = vld [vmem:[%s16 + $0x30] sm:$0xf]
  %v1389 = vld [vmem:[%s16 + $0x34] sm:$0xf]
  %v1390 = vld [vmem:[%s16 + $0x38] sm:$0xf]
  %v1391 = vld [vmem:[%s16 + $0x3c] sm:$0xf]
  %v1392 = vld [vmem:[%s16 + $0x40] sm:$0xf]
  %v1393 = vld [vmem:[%s16 + $0x44] sm:$0xf]
  %v1394 = vld [vmem:[%s16 + $0x48] sm:$0xf]
  %v1395 = vld [vmem:[%s16 + $0x4c] sm:$0xf]
  %v1396 = vld [vmem:[%s16 + $0x50] sm:$0xf]
  %v1397 = vld [vmem:[%s16 + $0x54] sm:$0xf]
  %v1398 = vld [vmem:[%s16 + $0x58] sm:$0xf]
  %v1399 = vld [vmem:[%s16 + $0x5c] sm:$0xf]
  %v1400 = vld [vmem:[%s16 + $0x60] sm:$0xf]
  %v1401 = vld [vmem:[%s16 + $0x64] sm:$0xf]
  %v1402 = vld [vmem:[%s16 + $0x68] sm:$0xf]
  %v1403 = vld [vmem:[%s16 + $0x6c] sm:$0xf]
  %v1404 = vld [vmem:[%s16 + $0x70] sm:$0xf]
  %v1405 = vld [vmem:[%s16 + $0x74] sm:$0xf]
  %v1406 = vld [vmem:[%s16 + $0x78] sm:$0xf]
  %v1407 = vld [vmem:[%s16 + $0x7c] sm:$0xf]
  %v1408 = vld [vmem:[%s16 + $0x80] sm:$0xf]
  %v1409 = vld [vmem:[%s16 + $0x84] sm:$0xf]
  %v1410 = vld [vmem:[%s16 + $0x88] sm:$0xf]
  %v1411 = vld [vmem:[%s16 + $0x8c] sm:$0xf]
  %v1412 = vld [vmem:[%s16 + $0x90] sm:$0xf]
  %v1413 = vld [vmem:[%s16 + $0x94] sm:$0xf]
  %v1414 = vld [vmem:[%s16 + $0x98] sm:$0xf]
  %v1415 = vld [vmem:[%s16 + $0x9c] sm:$0xf]
  %v1416 = vld [vmem:[%s16 + $0xa0] sm:$0xf]
  %v1417 = vld [vmem:[%s16 + $0xa4] sm:$0xf]
  %v1418 = vld [vmem:[%s16 + $0xa8] sm:$0xf]
  %v1419 = vld [vmem:[%s16 + $0xac] sm:$0xf]
  %v1420 = vld [vmem:[%s16 + $0xb0] sm:$0xf]
  %v1421 = vld [vmem:[%s16 + $0xb4] sm:$0xf]
  %v1422 = vld [vmem:[%s16 + $0xb8] sm:$0xf]
  %v1423 = vld [vmem:[%s16 + $0xbc] sm:$0xf]
  %v1424 = vld [vmem:[%s16 + $0xc0] sm:$0xf]
  %v1425 = vld [vmem:[%s16 + $0xc4] sm:$0xf]
  %v1426 = vld [vmem:[%s16 + $0xc8] sm:$0xf]
  %v1427 = vld [vmem:[%s16 + $0xcc] sm:$0xf]
  %v1428 = vld [vmem:[%s16 + $0xd0] sm:$0xf]
  %v1429 = vld [vmem:[%s16 + $0xd4] sm:$0xf]
  %v1430 = vld [vmem:[%s16 + $0xd8] sm:$0xf]
  %v1431 = vld [vmem:[%s16 + $0xdc] sm:$0xf]
  %v1432 = vld [vmem:[%s16 + $0xe0] sm:$0xf]
  %v1433 = vld [vmem:[%s16 + $0xe4] sm:$0xf]
  %v1434 = vld [vmem:[%s16 + $0xe8] sm:$0xf]
  %v1435 = vld [vmem:[%s16 + $0xec] sm:$0xf]
  %v1436 = vld [vmem:[%s16 + $0xf0] sm:$0xf]
  %v1437 = vld [vmem:[%s16 + $0xf4] sm:$0xf]
  %v1438 = vld [vmem:[%s16 + $0xf8] sm:$0xf]
  %v1439 = vld [vmem:[%s16 + $0xfc] sm:$0xf]
  %v1440 = vld [vmem:[%s14 + $0x10] sm:$0xff]
  %v1441 = vld [vmem:[%s14 + $0x18] sm:$0xff]
  %v1442 = vld [vmem:[%s14 + $0x50] sm:$0xff]
  %v1443 = vld [vmem:[%s14 + $0x58] sm:$0xff]
  %v1444 = vld [vmem:[%s14 + $0x90] sm:$0xff]
  %v1445 = vld [vmem:[%s14 + $0x98] sm:$0xff]
  %v1446 = vld [vmem:[%s14 + $0xd0] sm:$0xff]
  %v1447 = vld [vmem:[%s14 + $0xd8] sm:$0xff]
  %v1448 = vld [vmem:[%s15 + $0x4] sm:$0xf]
  %v1450 = vlaneseq
  %v1451 = vshrl.u32 %v1450, 7
  %v1452 = vsub.s32 0, %v1451
  %v1453 = vrot.slane %v1448, %v1452
  %v1454 = vlaneseq
  %v1455 = vshrl.u32 %v1454, 7
  %v1456 = vsub.s32 1, %v1455
  %v1457 = vrot.slane %v1448, %v1456
  %v1458 = vlaneseq
  %v1459 = vshrl.u32 %v1458, 7
  %v1460 = vsub.s32 2, %v1459
  %v1461 = vrot.slane %v1448, %v1460
  %v1462 = vlaneseq
  %v1463 = vshrl.u32 %v1462, 7
  %v1464 = vsub.s32 3, %v1463
  %v1465 = vrot.slane %v1448, %v1464
  %v1478 = vunpack.c.l.b16 %v1440
  %v1479 = vunpack.c.h.b16 %v1440
  %v1480 = vunpack.c.l.b16 %v1441
  %v1481 = vunpack.c.h.b16 %v1441
  %v1482 = vunpack.c.l.b16 %v1442
  %v1483 = vunpack.c.h.b16 %v1442
  %v1484 = vunpack.c.l.b16 %v1443
  %v1485 = vunpack.c.h.b16 %v1443
  %v1486 = vunpack.c.l.b16 %v1444
  %v1487 = vunpack.c.h.b16 %v1444
  %v1488 = vunpack.c.l.b16 %v1445
  %v1489 = vunpack.c.h.b16 %v1445
  %v1490 = vunpack.c.l.b16 %v1446
  %v1491 = vunpack.c.h.b16 %v1446
  %v1492 = vunpack.c.l.b16 %v1447
  %v1493 = vunpack.c.h.b16 %v1447
  %v1494 = vpack.c.b16 %v1482, %v1478
  %v1495 = vpack.c.b16 %v1483, %v1479
  %v1496 = vpack.c.b16 %v1484, %v1480
  %v1497 = vpack.c.b16 %v1485, %v1481
  %v1498 = vpack.c.b16 %v1490, %v1486
  %v1499 = vpack.c.b16 %v1491, %v1487
  %v1500 = vpack.c.b16 %v1492, %v1488
  %v1501 = vpack.c.b16 %v1493, %v1489
  %1510 = vmatprep.subr.bf16.mxu0 %v1495
  %1511 = vmatpush1.bf16.msra.mxu0 %v1494
  %1512 = vmatprep.subr.bf16.mxu0 %v1499
  %1513 = vmatpush1.bf16.msra.mxu0 %v1498
  %1514 = vmatprep.subr.bf16.mxu0 0
  %1515 = vmatpush1.bf16.msra.mxu0 0
  %1516 = vmatprep.subr.bf16.mxu0 0
  %1517 = vmatpush1.bf16.msra.mxu0 0
  %1518 = vmatprep.subr.bf16.mxu0 0
  %1519 = vmatpush1.bf16.msra.mxu0 0
  %1520 = vmatprep.subr.bf16.mxu0 0
  %1521 = vmatpush1.bf16.msra.mxu0 0
  %1522 = vmatprep.subr.bf16.mxu0 0
  %1523 = vmatpush1.bf16.msra.mxu0 0
  %1524 = vmatprep.subr.bf16.mxu0 0
  %1525 = vmatpush1.bf16.msra.mxu0 0
  %1526 = vmatprep.subr.bf16.mxu0 0
  %1527 = vmatpush1.bf16.msra.mxu0 0
  %1528 = vmatprep.subr.bf16.mxu0 0
  %1529 = vmatpush1.bf16.msra.mxu0 0
  %1530 = vmatprep.subr.bf16.mxu0 0
  %1531 = vmatpush1.bf16.msra.mxu0 0
  %1532 = vmatprep.subr.bf16.mxu0 0
  %1533 = vmatpush1.bf16.msra.mxu0 0
  %1534 = vmatprep.subr.bf16.mxu0 0
  %1535 = vmatpush1.bf16.msra.mxu0 0
  %1536 = vmatprep.subr.bf16.mxu0 0
  %1537 = vmatpush1.bf16.msra.mxu0 0
  %1538 = vmatprep.subr.bf16.mxu0 0
  %1539 = vmatpush1.bf16.msra.mxu0 0
  %1540 = vmatprep.subr.bf16.mxu0 0
  %1541 = vmatpush1.bf16.msra.mxu0 0
  %1542 = vmatprep.mubr.bf16.mxu0 0
  %1543 = vmatmul.mubr.bf16.gmra.mrb[0].mxu0 %v1276
  %v1544 = vpop.f32.mrb[0].mxu0
  %v1545 = vadd.f32 %v1453, %v1544
  %v1546 = vpop.f32.mrb[0].mxu0
  %v1547 = vadd.f32 %v1457, %v1546
  %v1548 = vpop.f32.mrb[0].mxu0
  %v1549 = vadd.f32 %v1453, %v1548
  %v1550 = vpop.f32.mrb[0].mxu0
  %v1551 = vadd.f32 %v1457, %v1550
  %1552 = vdwg.mxu0
  %1553 = vmatprep.subr.bf16.mxu0 %v1497
  %1554 = vmatpush1.bf16.msra.mxu0 %v1496
  %1555 = vmatprep.subr.bf16.mxu0 %v1501
  %1556 = vmatpush1.bf16.msra.mxu0 %v1500
  %1557 = vmatprep.subr.bf16.mxu0 0
  %1558 = vmatpush1.bf16.msra.mxu0 0
  %1559 = vmatprep.subr.bf16.mxu0 0
  %1560 = vmatpush1.bf16.msra.mxu0 0
  %1561 = vmatprep.subr.bf16.mxu0 0
  %1562 = vmatpush1.bf16.msra.mxu0 0
  %1563 = vmatprep.subr.bf16.mxu0 0
  %1564 = vmatpush1.bf16.msra.mxu0 0
  %1565 = vmatprep.subr.bf16.mxu0 0
  %1566 = vmatpush1.bf16.msra.mxu0 0
  %1567 = vmatprep.subr.bf16.mxu0 0
  %1568 = vmatpush1.bf16.msra.mxu0 0
  %1569 = vmatprep.subr.bf16.mxu0 0
  %1570 = vmatpush1.bf16.msra.mxu0 0
  %1571 = vmatprep.subr.bf16.mxu0 0
  %1572 = vmatpush1.bf16.msra.mxu0 0
  %1573 = vmatprep.subr.bf16.mxu0 0
  %1574 = vmatpush1.bf16.msra.mxu0 0
  %1575 = vmatprep.subr.bf16.mxu0 0
  %1576 = vmatpush1.bf16.msra.mxu0 0
  %1577 = vmatprep.subr.bf16.mxu0 0
  %1578 = vmatpush1.bf16.msra.mxu0 0
  %1579 = vmatprep.subr.bf16.mxu0 0
  %1580 = vmatpush1.bf16.msra.mxu0 0
  %1581 = vmatprep.subr.bf16.mxu0 0
  %1582 = vmatpush1.bf16.msra.mxu0 0
  %1583 = vmatprep.subr.bf16.mxu0 0
  %1584 = vmatpush1.bf16.msra.mxu0 0
  %1585 = vmatprep.mubr.bf16.mxu0 0
  %1586 = vmatmul.mubr.bf16.gmra.mrb[0].mxu0 %v1276
  %v1587 = vpop.f32.mrb[0].mxu0
  %v1588 = vadd.f32 %v1461, %v1587
  %v1589 = vpop.f32.mrb[0].mxu0
  %v1590 = vadd.f32 %v1465, %v1589
  %v1591 = vpop.f32.mrb[0].mxu0
  %v1592 = vadd.f32 %v1461, %v1591
  %v1593 = vpop.f32.mrb[0].mxu0
  %v1594 = vadd.f32 %v1465, %v1593
  %1595 = vdwg.mxu0
  %v1596 = vmax.f32 %v1545, 0.0
  %v1597 = vmax.f32 %v1547, 0.0
  %v1598 = vmax.f32 %v1588, 0.0
  %v1599 = vmax.f32 %v1590, 0.0
  %v1600 = vmax.f32 %v1549, 0.0
  %v1601 = vmax.f32 %v1551, 0.0
  %v1602 = vmax.f32 %v1592, 0.0
  %v1603 = vmax.f32 %v1594, 0.0
  %v1604 = vpack.c.bf16 %v1600, %v1596
  %v1605 = vpack.c.bf16 %v1601, %v1597
  %v1606 = vpack.c.bf16 %v1602, %v1598
  %v1607 = vpack.c.bf16 %v1603, %v1599
  %v1608 = vld [vmem:[%s16 + $0x100] sm:$0xf]
  %v1609 = vld [vmem:[%s16 + $0x104] sm:$0xf]
  %v1610 = vld [vmem:[%s16 + $0x108] sm:$0xf]
  %v1611 = vld [vmem:[%s16 + $0x10c] sm:$0xf]
  %v1612 = vld [vmem:[%s16 + $0x110] sm:$0xf]
  %v1613 = vld [vmem:[%s16 + $0x114] sm:$0xf]
  %v1614 = vld [vmem:[%s16 + $0x118] sm:$0xf]
  %v1615 = vld [vmem:[%s16 + $0x11c] sm:$0xf]
  %v1616 = vld [vmem:[%s16 + $0x120] sm:$0xf]
  %v1617 = vld [vmem:[%s16 + $0x124] sm:$0xf]
  %v1618 = vld [vmem:[%s16 + $0x128] sm:$0xf]
  %v1619 = vld [vmem:[%s16 + $0x12c] sm:$0xf]
  %v1620 = vld [vmem:[%s16 + $0x130] sm:$0xf]
  %v1621 = vld [vmem:[%s16 + $0x134] sm:$0xf]
  %v1622 = vld [vmem:[%s16 + $0x138] sm:$0xf]
  %v1623 = vld [vmem:[%s16 + $0x13c] sm:$0xf]
  %v1624 = vld [vmem:[%s16 + $0x140] sm:$0xf]
  %v1625 = vld [vmem:[%s16 + $0x144] sm:$0xf]
  %v1626 = vld [vmem:[%s16 + $0x148] sm:$0xf]
  %v1627 = vld [vmem:[%s16 + $0x14c] sm:$0xf]
  %v1628 = vld [vmem:[%s16 + $0x150] sm:$0xf]
  %v1629 = vld [vmem:[%s16 + $0x154] sm:$0xf]
  %v1630 = vld [vmem:[%s16 + $0x158] sm:$0xf]
  %v1631 = vld [vmem:[%s16 + $0x15c] sm:$0xf]
  %v1632 = vld [vmem:[%s16 + $0x160] sm:$0xf]
  %v1633 = vld [vmem:[%s16 + $0x164] sm:$0xf]
  %v1634 = vld [vmem:[%s16 + $0x168] sm:$0xf]
  %v1635 = vld [vmem:[%s16 + $0x16c] sm:$0xf]
  %v1636 = vld [vmem:[%s16 + $0x170] sm:$0xf]
  %v1637 = vld [vmem:[%s16 + $0x174] sm:$0xf]
  %v1638 = vld [vmem:[%s16 + $0x178] sm:$0xf]
  %v1639 = vld [vmem:[%s16 + $0x17c] sm:$0xf]
  %v1640 = vld [vmem:[%s16 + $0x180] sm:$0xf]
  %v1641 = vld [vmem:[%s16 + $0x184] sm:$0xf]
  %v1642 = vld [vmem:[%s16 + $0x188] sm:$0xf]
  %v1643 = vld [vmem:[%s16 + $0x18c] sm:$0xf]
  %v1644 = vld [vmem:[%s16 + $0x190] sm:$0xf]
  %v1645 = vld [vmem:[%s16 + $0x194] sm:$0xf]
  %v1646 = vld [vmem:[%s16 + $0x198] sm:$0xf]
  %v1647 = vld [vmem:[%s16 + $0x19c] sm:$0xf]
  %v1648 = vld [vmem:[%s16 + $0x1a0] sm:$0xf]
  %v1649 = vld [vmem:[%s16 + $0x1a4] sm:$0xf]
  %v1650 = vld [vmem:[%s16 + $0x1a8] sm:$0xf]
  %v1651 = vld [vmem:[%s16 + $0x1ac] sm:$0xf]
  %v1652 = vld [vmem:[%s16 + $0x1b0] sm:$0xf]
  %v1653 = vld [vmem:[%s16 + $0x1b4] sm:$0xf]
  %v1654 = vld [vmem:[%s16 + $0x1b8] sm:$0xf]
  %v1655 = vld [vmem:[%s16 + $0x1bc] sm:$0xf]
  %v1656 = vld [vmem:[%s16 + $0x1c0] sm:$0xf]
  %v1657 = vld [vmem:[%s16 + $0x1c4] sm:$0xf]
  %v1658 = vld [vmem:[%s16 + $0x1c8] sm:$0xf]
  %v1659 = vld [vmem:[%s16 + $0x1cc] sm:$0xf]
  %v1660 = vld [vmem:[%s16 + $0x1d0] sm:$0xf]
  %v1661 = vld [vmem:[%s16 + $0x1d4] sm:$0xf]
  %v1662 = vld [vmem:[%s16 + $0x1d8] sm:$0xf]
  %v1663 = vld [vmem:[%s16 + $0x1dc] sm:$0xf]
  %v1664 = vld [vmem:[%s16 + $0x1e0] sm:$0xf]
  %v1665 = vld [vmem:[%s16 + $0x1e4] sm:$0xf]
  %v1666 = vld [vmem:[%s16 + $0x1e8] sm:$0xf]
  %v1667 = vld [vmem:[%s16 + $0x1ec] sm:$0xf]
  %v1668 = vld [vmem:[%s16 + $0x1f0] sm:$0xf]
  %v1669 = vld [vmem:[%s16 + $0x1f4] sm:$0xf]
  %v1670 = vld [vmem:[%s16 + $0x1f8] sm:$0xf]
  %v1671 = vld [vmem:[%s16 + $0x1fc] sm:$0xf]
  %v1736 = vunpack.c.l.b16 %v1608
  %v1737 = vunpack.c.l.b16 %v1609
  %v1738 = vunpack.c.l.b16 %v1610
  %v1739 = vunpack.c.l.b16 %v1611
  %v1740 = vunpack.c.l.b16 %v1612
  %v1741 = vunpack.c.l.b16 %v1613
  %v1742 = vunpack.c.l.b16 %v1614
  %v1743 = vunpack.c.l.b16 %v1615
  %v1744 = vunpack.c.l.b16 %v1616
  %v1745 = vunpack.c.l.b16 %v1617
  %v1746 = vunpack.c.l.b16 %v1618
  %v1747 = vunpack.c.l.b16 %v1619
  %v1748 = vunpack.c.l.b16 %v1620
  %v1749 = vunpack.c.l.b16 %v1621
  %v1750 = vunpack.c.l.b16 %v1622
  %v1751 = vunpack.c.l.b16 %v1623
  %v1752 = vunpack.c.l.b16 %v1624
  %v1753 = vunpack.c.l.b16 %v1625
  %v1754 = vunpack.c.l.b16 %v1626
  %v1755 = vunpack.c.l.b16 %v1627
  %v1756 = vunpack.c.l.b16 %v1628
  %v1757 = vunpack.c.l.b16 %v1629
  %v1758 = vunpack.c.l.b16 %v1630
  %v1759 = vunpack.c.l.b16 %v1631
  %v1760 = vunpack.c.l.b16 %v1632
  %v1761 = vunpack.c.l.b16 %v1633
  %v1762 = vunpack.c.l.b16 %v1634
  %v1763 = vunpack.c.l.b16 %v1635
  %v1764 = vunpack.c.l.b16 %v1636
  %v1765 = vunpack.c.l.b16 %v1637
  %v1766 = vunpack.c.l.b16 %v1638
  %v1767 = vunpack.c.l.b16 %v1639
  %v1768 = vunpack.c.l.b16 %v1640
  %v1769 = vunpack.c.l.b16 %v1641
  %v1770 = vunpack.c.l.b16 %v1642
  %v1771 = vunpack.c.l.b16 %v1643
  %v1772 = vunpack.c.l.b16 %v1644
  %v1773 = vunpack.c.l.b16 %v1645
  %v1774 = vunpack.c.l.b16 %v1646
  %v1775 = vunpack.c.l.b16 %v1647
  %v1776 = vunpack.c.l.b16 %v1648
  %v1777 = vunpack.c.l.b16 %v1649
  %v1778 = vunpack.c.l.b16 %v1650
  %v1779 = vunpack.c.l.b16 %v1651
  %v1780 = vunpack.c.l.b16 %v1652
  %v1781 = vunpack.c.l.b16 %v1653
  %v1782 = vunpack.c.l.b16 %v1654
  %v1783 = vunpack.c.l.b16 %v1655
  %v1784 = vunpack.c.l.b16 %v1656
  %v1785 = vunpack.c.l.b16 %v1657
  %v1786 = vunpack.c.l.b16 %v1658
  %v1787 = vunpack.c.l.b16 %v1659
  %v1788 = vunpack.c.l.b16 %v1660
  %v1789 = vunpack.c.l.b16 %v1661
  %v1790 = vunpack.c.l.b16 %v1662
  %v1791 = vunpack.c.l.b16 %v1663
  %v1792 = vunpack.c.l.b16 %v1664
  %v1793 = vunpack.c.l.b16 %v1665
  %v1794 = vunpack.c.l.b16 %v1666
  %v1795 = vunpack.c.l.b16 %v1667
  %v1796 = vunpack.c.l.b16 %v1668
  %v1797 = vunpack.c.l.b16 %v1669
  %v1798 = vunpack.c.l.b16 %v1670
  %v1799 = vunpack.c.l.b16 %v1671
  %v1800 = vpack.c.b16 %v1737, %v1736
  %v1801 = vpack.c.b16 %v1739, %v1738
  %v1802 = vpack.c.b16 %v1741, %v1740
  %v1803 = vpack.c.b16 %v1743, %v1742
  %v1804 = vpack.c.b16 %v1745, %v1744
  %v1805 = vpack.c.b16 %v1747, %v1746
  %v1806 = vpack.c.b16 %v1749, %v1748
  %v1807 = vpack.c.b16 %v1751, %v1750
  %v1808 = vpack.c.b16 %v1753, %v1752
  %v1809 = vpack.c.b16 %v1755, %v1754
  %v1810 = vpack.c.b16 %v1757, %v1756
  %v1811 = vpack.c.b16 %v1759, %v1758
  %v1812 = vpack.c.b16 %v1761, %v1760
  %v1813 = vpack.c.b16 %v1763, %v1762
  %v1814 = vpack.c.b16 %v1765, %v1764
  %v1815 = vpack.c.b16 %v1767, %v1766
  %v1816 = vpack.c.b16 %v1769, %v1768
  %v1817 = vpack.c.b16 %v1771, %v1770
  %v1818 = vpack.c.b16 %v1773, %v1772
  %v1819 = vpack.c.b16 %v1775, %v1774
  %v1820 = vpack.c.b16 %v1777, %v1776
  %v1821 = vpack.c.b16 %v1779, %v1778
  %v1822 = vpack.c.b16 %v1781, %v1780
  %v1823 = vpack.c.b16 %v1783, %v1782
  %v1824 = vpack.c.b16 %v1785, %v1784
  %v1825 = vpack.c.b16 %v1787, %v1786
  %v1826 = vpack.c.b16 %v1789, %v1788
  %v1827 = vpack.c.b16 %v1791, %v1790
  %v1828 = vpack.c.b16 %v1793, %v1792
  %v1829 = vpack.c.b16 %v1795, %v1794
  %v1830 = vpack.c.b16 %v1797, %v1796
  %v1831 = vpack.c.b16 %v1799, %v1798
  %1864 = vmatprep.subr.bf16.mxu0 0
  %1865 = vmatpush1.bf16.msra.mxu0 %v1800
  %1866 = vmatprep.subr.bf16.mxu0 0
  %1867 = vmatpush1.bf16.msra.mxu0 %v1801
  %1868 = vmatprep.subr.bf16.mxu0 0
  %1869 = vmatpush1.bf16.msra.mxu0 %v1802
  %1870 = vmatprep.subr.bf16.mxu0 0
  %1871 = vmatpush1.bf16.msra.mxu0 %v1803
  %1872 = vmatprep.subr.bf16.mxu0 0
  %1873 = vmatpush1.bf16.msra.mxu0 %v1804
  %1874 = vmatprep.subr.bf16.mxu0 0
  %1875 = vmatpush1.bf16.msra.mxu0 %v1805
  %1876 = vmatprep.subr.bf16.mxu0 0
  %1877 = vmatpush1.bf16.msra.mxu0 %v1806
  %1878 = vmatprep.subr.bf16.mxu0 0
  %1879 = vmatpush1.bf16.msra.mxu0 %v1807
  %1880 = vmatprep.subr.bf16.mxu0 0
  %1881 = vmatpush1.bf16.msra.mxu0 %v1808
  %1882 = vmatprep.subr.bf16.mxu0 0
  %1883 = vmatpush1.bf16.msra.mxu0 %v1809
  %1884 = vmatprep.subr.bf16.mxu0 0
  %1885 = vmatpush1.bf16.msra.mxu0 %v1810
  %1886 = vmatprep.subr.bf16.mxu0 0
  %1887 = vmatpush1.bf16.msra.mxu0 %v1811
  %1888 = vmatprep.subr.bf16.mxu0 0
  %1889 = vmatpush1.bf16.msra.mxu0 %v1812
  %1890 = vmatprep.subr.bf16.mxu0 0
  %1891 = vmatpush1.bf16.msra.mxu0 %v1813
  %1892 = vmatprep.subr.bf16.mxu0 0
  %1893 = vmatpush1.bf16.msra.mxu0 %v1814
  %1894 = vmatprep.subr.bf16.mxu0 0
  %1895 = vmatpush1.bf16.msra.mxu0 %v1815
  %1896 = vmatprep.mubr.bf16.mxu0 %v1605
  %1897 = vmatmul.mubr.bf16.gmra.mrb[0].mxu0 %v1604
  %v1898 = vpop.f32.mrb[0].mxu0
  %v1899 = vadd.f32 0.0, %v1898
  %v1900 = vpop.f32.mrb[0].mxu0
  %v1901 = vpop.f32.mrb[0].mxu0
  %v1902 = vadd.f32 0.0, %v1901
  %v1903 = vpop.f32.mrb[0].mxu0
  %1904 = vdwg.mxu0
  %1905 = vmatprep.subr.bf16.mxu0 0
  %1906 = vmatpush1.bf16.msra.mxu0 %v1816
  %1907 = vmatprep.subr.bf16.mxu0 0
  %1908 = vmatpush1.bf16.msra.mxu0 %v1817
  %1909 = vmatprep.subr.bf16.mxu0 0
  %1910 = vmatpush1.bf16.msra.mxu0 %v1818
  %1911 = vmatprep.subr.bf16.mxu0 0
  %1912 = vmatpush1.bf16.msra.mxu0 %v1819
  %1913 = vmatprep.subr.bf16.mxu0 0
  %1914 = vmatpush1.bf16.msra.mxu0 %v1820
  %1915 = vmatprep.subr.bf16.mxu0 0
  %1916 = vmatpush1.bf16.msra.mxu0 %v1821
  %1917 = vmatprep.subr.bf16.mxu0 0
  %1918 = vmatpush1.bf16.msra.mxu0 %v1822
  %1919 = vmatprep.subr.bf16.mxu0 0
  %1920 = vmatpush1.bf16.msra.mxu0 %v1823
  %1921 = vmatprep.subr.bf16.mxu0 0
  %1922 = vmatpush1.bf16.msra.mxu0 %v1824
  %1923 = vmatprep.subr.bf16.mxu0 0
  %1924 = vmatpush1.bf16.msra.mxu0 %v1825
  %1925 = vmatprep.subr.bf16.mxu0 0
  %1926 = vmatpush1.bf16.msra.mxu0 %v1826
  %1927 = vmatprep.subr.bf16.mxu0 0
  %1928 = vmatpush1.bf16.msra.mxu0 %v1827
  %1929 = vmatprep.subr.bf16.mxu0 0
  %1930 = vmatpush1.bf16.msra.mxu0 %v1828
  %1931 = vmatprep.subr.bf16.mxu0 0
  %1932 = vmatpush1.bf16.msra.mxu0 %v1829
  %1933 = vmatprep.subr.bf16.mxu0 0
  %1934 = vmatpush1.bf16.msra.mxu0 %v1830
  %1935 = vmatprep.subr.bf16.mxu0 0
  %1936 = vmatpush1.bf16.msra.mxu0 %v1831
  %1937 = vmatprep.mubr.bf16.mxu0 %v1607
  %1938 = vmatmul.mubr.bf16.gmra.mrb[0].mxu0 %v1606
  %v1939 = vpop.f32.mrb[0].mxu0
  %v1940 = vadd.f32 %v1899, %v1939
  %v1941 = vpop.f32.mrb[0].mxu0
  %v1942 = vpop.f32.mrb[0].mxu0
  %v1943 = vadd.f32 %v1902, %v1942
  %v1944 = vpop.f32.mrb[0].mxu0
  %1945 = vdwg.mxu0
  %v2010 = vunpack.c.l.b16 %v1376
  %v2011 = vunpack.c.l.b16 %v1377
  %v2012 = vunpack.c.l.b16 %v1378
  %v2013 = vunpack.c.l.b16 %v1379
  %v2014 = vunpack.c.l.b16 %v1380
  %v2015 = vunpack.c.l.b16 %v1381
  %v2016 = vunpack.c.l.b16 %v1382
  %v2017 = vunpack.c.l.b16 %v1383
  %v2018 = vunpack.c.l.b16 %v1384
  %v2019 = vunpack.c.l.b16 %v1385
  %v2020 = vunpack.c.l.b16 %v1386
  %v2021 = vunpack.c.l.b16 %v1387
  %v2022 = vunpack.c.l.b16 %v1388
  %v2023 = vunpack.c.l.b16 %v1389
  %v2024 = vunpack.c.l.b16 %v1390
  %v2025 = vunpack.c.l.b16 %v1391
  %v2026 = vunpack.c.l.b16 %v1392
  %v2027 = vunpack.c.l.b16 %v1393
  %v2028 = vunpack.c.l.b16 %v1394
  %v2029 = vunpack.c.l.b16 %v1395
  %v2030 = vunpack.c.l.b16 %v1396
  %v2031 = vunpack.c.l.b16 %v1397
  %v2032 = vunpack.c.l.b16 %v1398
  %v2033 = vunpack.c.l.b16 %v1399
  %v2034 = vunpack.c.l.b16 %v1400
  %v2035 = vunpack.c.l.b16 %v1401
  %v2036 = vunpack.c.l.b16 %v1402
  %v2037 = vunpack.c.l.b16 %v1403
  %v2038 = vunpack.c.l.b16 %v1404
  %v2039 = vunpack.c.l.b16 %v1405
  %v2040 = vunpack.c.l.b16 %v1406
  %v2041 = vunpack.c.l.b16 %v1407
  %v2042 = vunpack.c.l.b16 %v1408
  %v2043 = vunpack.c.l.b16 %v1409
  %v2044 = vunpack.c.l.b16 %v1410
  %v2045 = vunpack.c.l.b16 %v1411
  %v2046 = vunpack.c.l.b16 %v1412
  %v2047 = vunpack.c.l.b16 %v1413
  %v2048 = vunpack.c.l.b16 %v1414
  %v2049 = vunpack.c.l.b16 %v1415
  %v2050 = vunpack.c.l.b16 %v1416
  %v2051 = vunpack.c.l.b16 %v1417
  %v2052 = vunpack.c.l.b16 %v1418
  %v2053 = vunpack.c.l.b16 %v1419
  %v2054 = vunpack.c.l.b16 %v1420
  %v2055 = vunpack.c.l.b16 %v1421
  %v2056 = vunpack.c.l.b16 %v1422
  %v2057 = vunpack.c.l.b16 %v1423
  %v2058 = vunpack.c.l.b16 %v1424
  %v2059 = vunpack.c.l.b16 %v1425
  %v2060 = vunpack.c.l.b16 %v1426
  %v2061 = vunpack.c.l.b16 %v1427
  %v2062 = vunpack.c.l.b16 %v1428
  %v2063 = vunpack.c.l.b16 %v1429
  %v2064 = vunpack.c.l.b16 %v1430
  %v2065 = vunpack.c.l.b16 %v1431
  %v2066 = vunpack.c.l.b16 %v1432
  %v2067 = vunpack.c.l.b16 %v1433
  %v2068 = vunpack.c.l.b16 %v1434
  %v2069 = vunpack.c.l.b16 %v1435
  %v2070 = vunpack.c.l.b16 %v1436
  %v2071 = vunpack.c.l.b16 %v1437
  %v2072 = vunpack.c.l.b16 %v1438
  %v2073 = vunpack.c.l.b16 %v1439
  %v2074 = vpack.c.b16 %v2011, %v2010
  %v2075 = vpack.c.b16 %v2013, %v2012
  %v2076 = vpack.c.b16 %v2015, %v2014
  %v2077 = vpack.c.b16 %v2017, %v2016
  %v2078 = vpack.c.b16 %v2019, %v2018
  %v2079 = vpack.c.b16 %v2021, %v2020
  %v2080 = vpack.c.b16 %v2023, %v2022
  %v2081 = vpack.c.b16 %v2025, %v2024
  %v2082 = vpack.c.b16 %v2027, %v2026
  %v2083 = vpack.c.b16 %v2029, %v2028
  %v2084 = vpack.c.b16 %v2031, %v2030
  %v2085 = vpack.c.b16 %v2033, %v2032
  %v2086 = vpack.c.b16 %v2035, %v2034
  %v2087 = vpack.c.b16 %v2037, %v2036
  %v2088 = vpack.c.b16 %v2039, %v2038
  %v2089 = vpack.c.b16 %v2041, %v2040
  %v2090 = vpack.c.b16 %v2043, %v2042
  %v2091 = vpack.c.b16 %v2045, %v2044
  %v2092 = vpack.c.b16 %v2047, %v2046
  %v2093 = vpack.c.b16 %v2049, %v2048
  %v2094 = vpack.c.b16 %v2051, %v2050
  %v2095 = vpack.c.b16 %v2053, %v2052
  %v2096 = vpack.c.b16 %v2055, %v2054
  %v2097 = vpack.c.b16 %v2057, %v2056
  %v2098 = vpack.c.b16 %v2059, %v2058
  %v2099 = vpack.c.b16 %v2061, %v2060
  %v2100 = vpack.c.b16 %v2063, %v2062
  %v2101 = vpack.c.b16 %v2065, %v2064
  %v2102 = vpack.c.b16 %v2067, %v2066
  %v2103 = vpack.c.b16 %v2069, %v2068
  %v2104 = vpack.c.b16 %v2071, %v2070
  %v2105 = vpack.c.b16 %v2073, %v2072
  %2138 = vmatprep.subr.bf16.mxu0 0
  %2139 = vmatpush1.bf16.msra.mxu0 %v2074
  %2140 = vmatprep.subr.bf16.mxu0 0
  %2141 = vmatpush1.bf16.msra.mxu0 %v2075
  %2142 = vmatprep.subr.bf16.mxu0 0
  %2143 = vmatpush1.bf16.msra.mxu0 %v2076
  %2144 = vmatprep.subr.bf16.mxu0 0
  %2145 = vmatpush1.bf16.msra.mxu0 %v2077
  %2146 = vmatprep.subr.bf16.mxu0 0
  %2147 = vmatpush1.bf16.msra.mxu0 %v2078
  %2148 = vmatprep.subr.bf16.mxu0 0
  %2149 = vmatpush1.bf16.msra.mxu0 %v2079
  %2150 = vmatprep.subr.bf16.mxu0 0
  %2151 = vmatpush1.bf16.msra.mxu0 %v2080
  %2152 = vmatprep.subr.bf16.mxu0 0
  %2153 = vmatpush1.bf16.msra.mxu0 %v2081
  %2154 = vmatprep.subr.bf16.mxu0 0
  %2155 = vmatpush1.bf16.msra.mxu0 %v2082
  %2156 = vmatprep.subr.bf16.mxu0 0
  %2157 = vmatpush1.bf16.msra.mxu0 %v2083
  %2158 = vmatprep.subr.bf16.mxu0 0
  %2159 = vmatpush1.bf16.msra.mxu0 %v2084
  %2160 = vmatprep.subr.bf16.mxu0 0
  %2161 = vmatpush1.bf16.msra.mxu0 %v2085
  %2162 = vmatprep.subr.bf16.mxu0 0
  %2163 = vmatpush1.bf16.msra.mxu0 %v2086
  %2164 = vmatprep.subr.bf16.mxu0 0
  %2165 = vmatpush1.bf16.msra.mxu0 %v2087
  %2166 = vmatprep.subr.bf16.mxu0 0
  %2167 = vmatpush1.bf16.msra.mxu0 %v2088
  %2168 = vmatprep.subr.bf16.mxu0 0
  %2169 = vmatpush1.bf16.msra.mxu0 %v2089
  %2170 = vmatprep.mubr.bf16.mxu0 %v1373
  %2171 = vmatmul.mubr.bf16.gmra.mrb[0].mxu0 %v1372
  %v2172 = vpop.f32.mrb[0].mxu0
  %v2173 = vadd.f32 %v1940, %v2172
  %v2174 = vpop.f32.mrb[0].mxu0
  %v2175 = vpop.f32.mrb[0].mxu0
  %v2176 = vadd.f32 %v1943, %v2175
  %v2177 = vpop.f32.mrb[0].mxu0
  %2178 = vdwg.mxu0
  %2179 = vmatprep.subr.bf16.mxu0 0
  %2180 = vmatpush1.bf16.msra.mxu0 %v2090
  %2181 = vmatprep.subr.bf16.mxu0 0
  %2182 = vmatpush1.bf16.msra.mxu0 %v2091
  %2183 = vmatprep.subr.bf16.mxu0 0
  %2184 = vmatpush1.bf16.msra.mxu0 %v2092
  %2185 = vmatprep.subr.bf16.mxu0 0
  %2186 = vmatpush1.bf16.msra.mxu0 %v2093
  %2187 = vmatprep.subr.bf16.mxu0 0
  %2188 = vmatpush1.bf16.msra.mxu0 %v2094
  %2189 = vmatprep.subr.bf16.mxu0 0
  %2190 = vmatpush1.bf16.msra.mxu0 %v2095
  %2191 = vmatprep.subr.bf16.mxu0 0
  %2192 = vmatpush1.bf16.msra.mxu0 %v2096
  %2193 = vmatprep.subr.bf16.mxu0 0
  %2194 = vmatpush1.bf16.msra.mxu0 %v2097
  %2195 = vmatprep.subr.bf16.mxu0 0
  %2196 = vmatpush1.bf16.msra.mxu0 %v2098
  %2197 = vmatprep.subr.bf16.mxu0 0
  %2198 = vmatpush1.bf16.msra.mxu0 %v2099
  %2199 = vmatprep.subr.bf16.mxu0 0
  %2200 = vmatpush1.bf16.msra.mxu0 %v2100
  %2201 = vmatprep.subr.bf16.mxu0 0
  %2202 = vmatpush1.bf16.msra.mxu0 %v2101
  %2203 = vmatprep.subr.bf16.mxu0 0
  %2204 = vmatpush1.bf16.msra.mxu0 %v2102
  %2205 = vmatprep.subr.bf16.mxu0 0
  %2206 = vmatpush1.bf16.msra.mxu0 %v2103
  %2207 = vmatprep.subr.bf16.mxu0 0
  %2208 = vmatpush1.bf16.msra.mxu0 %v2104
  %2209 = vmatprep.subr.bf16.mxu0 0
  %2210 = vmatpush1.bf16.msra.mxu0 %v2105
  %2211 = vmatprep.mubr.bf16.mxu0 %v1375
  %2212 = vmatmul.mubr.bf16.gmra.mrb[0].mxu0 %v1374
  %v2213 = vpop.f32.mrb[0].mxu0
  %v2214 = vadd.f32 %v2173, %v2213
  %v2215 = vpop.f32.mrb[0].mxu0
  %v2216 = vpop.f32.mrb[0].mxu0
  %v2217 = vadd.f32 %v2176, %v2216
  %v2218 = vpop.f32.mrb[0].mxu0
  %2219 = vdwg.mxu0
  %v2220 = vld [vmem:[%s14 + $0x20] sm:$0xff]
  %v2221 = vld [vmem:[%s14 + $0x28] sm:$0xff]
  %v2222 = vld [vmem:[%s14 + $0x60] sm:$0xff]
  %v2223 = vld [vmem:[%s14 + $0x68] sm:$0xff]
  %v2224 = vld [vmem:[%s14 + $0xa0] sm:$0xff]
  %v2225 = vld [vmem:[%s14 + $0xa8] sm:$0xff]
  %v2226 = vld [vmem:[%s14 + $0xe0] sm:$0xff]
  %v2227 = vld [vmem:[%s14 + $0xe8] sm:$0xff]
  %v2228 = vld [vmem:[%s15 + $0x8] sm:$0xf]
  %v2230 = vlaneseq
  %v2231 = vshrl.u32 %v2230, 7
  %v2232 = vsub.s32 0, %v2231
  %v2233 = vrot.slane %v2228, %v2232
  %v2234 = vlaneseq
  %v2235 = vshrl.u32 %v2234, 7
  %v2236 = vsub.s32 1, %v2235
  %v2237 = vrot.slane %v2228, %v2236
  %v2238 = vlaneseq
  %v2239 = vshrl.u32 %v2238, 7
  %v2240 = vsub.s32 2, %v2239
  %v2241 = vrot.slane %v2228, %v2240
  %v2242 = vlaneseq
  %v2243 = vshrl.u32 %v2242, 7
  %v2244 = vsub.s32 3, %v2243
  %v2245 = vrot.slane %v2228, %v2244
  %v2258 = vunpack.c.l.b16 %v2220
  %v2259 = vunpack.c.h.b16 %v2220
  %v2260 = vunpack.c.l.b16 %v2221
  %v2261 = vunpack.c.h.b16 %v2221
  %v2262 = vunpack.c.l.b16 %v2222
  %v2263 = vunpack.c.h.b16 %v2222
  %v2264 = vunpack.c.l.b16 %v2223
  %v2265 = vunpack.c.h.b16 %v2223
  %v2266 = vunpack.c.l.b16 %v2224
  %v2267 = vunpack.c.h.b16 %v2224
  %v2268 = vunpack.c.l.b16 %v2225
  %v2269 = vunpack.c.h.b16 %v2225
  %v2270 = vunpack.c.l.b16 %v2226
  %v2271 = vunpack.c.h.b16 %v2226
  %v2272 = vunpack.c.l.b16 %v2227
  %v2273 = vunpack.c.h.b16 %v2227
  %v2274 = vpack.c.b16 %v2262, %v2258
  %v2275 = vpack.c.b16 %v2263, %v2259
  %v2276 = vpack.c.b16 %v2264, %v2260
  %v2277 = vpack.c.b16 %v2265, %v2261
  %v2278 = vpack.c.b16 %v2270, %v2266
  %v2279 = vpack.c.b16 %v2271, %v2267
  %v2280 = vpack.c.b16 %v2272, %v2268
  %v2281 = vpack.c.b16 %v2273, %v2269
  %2290 = vmatprep.subr.bf16.mxu0 %v2275
  %2291 = vmatpush1.bf16.msra.mxu0 %v2274
  %2292 = vmatprep.subr.bf16.mxu0 %v2279
  %2293 = vmatpush1.bf16.msra.mxu0 %v2278
  %2294 = vmatprep.subr.bf16.mxu0 0
  %2295 = vmatpush1.bf16.msra.mxu0 0
  %2296 = vmatprep.subr.bf16.mxu0 0
  %2297 = vmatpush1.bf16.msra.mxu0 0
  %2298 = vmatprep.subr.bf16.mxu0 0
  %2299 = vmatpush1.bf16.msra.mxu0 0
  %2300 = vmatprep.subr.bf16.mxu0 0
  %2301 = vmatpush1.bf16.msra.mxu0 0
  %2302 = vmatprep.subr.bf16.mxu0 0
  %2303 = vmatpush1.bf16.msra.mxu0 0
  %2304 = vmatprep.subr.bf16.mxu0 0
  %2305 = vmatpush1.bf16.msra.mxu0 0
  %2306 = vmatprep.subr.bf16.mxu0 0
  %2307 = vmatpush1.bf16.msra.mxu0 0
  %2308 = vmatprep.subr.bf16.mxu0 0
  %2309 = vmatpush1.bf16.msra.mxu0 0
  %2310 = vmatprep.subr.bf16.mxu0 0
  %2311 = vmatpush1.bf16.msra.mxu0 0
  %2312 = vmatprep.subr.bf16.mxu0 0
  %2313 = vmatpush1.bf16.msra.mxu0 0
  %2314 = vmatprep.subr.bf16.mxu0 0
  %2315 = vmatpush1.bf16.msra.mxu0 0
  %2316 = vmatprep.subr.bf16.mxu0 0
  %2317 = vmatpush1.bf16.msra.mxu0 0
  %2318 = vmatprep.subr.bf16.mxu0 0
  %2319 = vmatpush1.bf16.msra.mxu0 0
  %2320 = vmatprep.subr.bf16.mxu0 0
  %2321 = vmatpush1.bf16.msra.mxu0 0
  %2322 = vmatprep.mubr.bf16.mxu0 0
  %2323 = vmatmul.mubr.bf16.gmra.mrb[0].mxu0 %v1276
  %v2324 = vpop.f32.mrb[0].mxu0
  %v2325 = vadd.f32 %v2233, %v2324
  %v2326 = vpop.f32.mrb[0].mxu0
  %v2327 = vadd.f32 %v2237, %v2326
  %v2328 = vpop.f32.mrb[0].mxu0
  %v2329 = vadd.f32 %v2233, %v2328
  %v2330 = vpop.f32.mrb[0].mxu0
  %v2331 = vadd.f32 %v2237, %v2330
  %2332 = vdwg.mxu0
  %2333 = vmatprep.subr.bf16.mxu0 %v2277
  %2334 = vmatpush1.bf16.msra.mxu0 %v2276
  %2335 = vmatprep.subr.bf16.mxu0 %v2281
  %2336 = vmatpush1.bf16.msra.mxu0 %v2280
  %2337 = vmatprep.subr.bf16.mxu0 0
  %2338 = vmatpush1.bf16.msra.mxu0 0
  %2339 = vmatprep.subr.bf16.mxu0 0
  %2340 = vmatpush1.bf16.msra.mxu0 0
  %2341 = vmatprep.subr.bf16.mxu0 0
  %2342 = vmatpush1.bf16.msra.mxu0 0
  %2343 = vmatprep.subr.bf16.mxu0 0
  %2344 = vmatpush1.bf16.msra.mxu0 0
  %2345 = vmatprep.subr.bf16.mxu0 0
  %2346 = vmatpush1.bf16.msra.mxu0 0
  %2347 = vmatprep.subr.bf16.mxu0 0
  %2348 = vmatpush1.bf16.msra.mxu0 0
  %2349 = vmatprep.subr.bf16.mxu0 0
  %2350 = vmatpush1.bf16.msra.mxu0 0
  %2351 = vmatprep.subr.bf16.mxu0 0
  %2352 = vmatpush1.bf16.msra.mxu0 0
  %2353 = vmatprep.subr.bf16.mxu0 0
  %2354 = vmatpush1.bf16.msra.mxu0 0
  %2355 = vmatprep.subr.bf16.mxu0 0
  %2356 = vmatpush1.bf16.msra.mxu0 0
  %2357 = vmatprep.subr.bf16.mxu0 0
  %2358 = vmatpush1.bf16.msra.mxu0 0
  %2359 = vmatprep.subr.bf16.mxu0 0
  %2360 = vmatpush1.bf16.msra.mxu0 0
  %2361 = vmatprep.subr.bf16.mxu0 0
  %2362 = vmatpush1.bf16.msra.mxu0 0
  %2363 = vmatprep.subr.bf16.mxu0 0
  %2364 = vmatpush1.bf16.msra.mxu0 0
  %2365 = vmatprep.mubr.bf16.mxu0 0
  %2366 = vmatmul.mubr.bf16.gmra.mrb[0].mxu0 %v1276
  %v2367 = vpop.f32.mrb[0].mxu0
  %v2368 = vadd.f32 %v2241, %v2367
  %v2369 = vpop.f32.mrb[0].mxu0
  %v2370 = vadd.f32 %v2245, %v2369
  %v2371 = vpop.f32.mrb[0].mxu0
  %v2372 = vadd.f32 %v2241, %v2371
  %v2373 = vpop.f32.mrb[0].mxu0
  %v2374 = vadd.f32 %v2245, %v2373
  %2375 = vdwg.mxu0
  %v2376 = vmax.f32 %v2325, 0.0
  %v2377 = vmax.f32 %v2327, 0.0
  %v2378 = vmax.f32 %v2368, 0.0
  %v2379 = vmax.f32 %v2370, 0.0
  %v2380 = vmax.f32 %v2329, 0.0
  %v2381 = vmax.f32 %v2331, 0.0
  %v2382 = vmax.f32 %v2372, 0.0
  %v2383 = vmax.f32 %v2374, 0.0
  %v2384 = vpack.c.bf16 %v2380, %v2376
  %v2385 = vpack.c.bf16 %v2381, %v2377
  %v2386 = vpack.c.bf16 %v2382, %v2378
  %v2387 = vpack.c.bf16 %v2383, %v2379
  %v2388 = vld [vmem:[%s16 + $0x200] sm:$0xf]
  %v2389 = vld [vmem:[%s16 + $0x204] sm:$0xf]
  %v2390 = vld [vmem:[%s16 + $0x208] sm:$0xf]
  %v2391 = vld [vmem:[%s16 + $0x20c] sm:$0xf]
  %v2392 = vld [vmem:[%s16 + $0x210] sm:$0xf]
  %v2393 = vld [vmem:[%s16 + $0x214] sm:$0xf]
  %v2394 = vld [vmem:[%s16 + $0x218] sm:$0xf]
  %v2395 = vld [vmem:[%s16 + $0x21c] sm:$0xf]
  %v2396 = vld [vmem:[%s16 + $0x220] sm:$0xf]
  %v2397 = vld [vmem:[%s16 + $0x224] sm:$0xf]
  %v2398 = vld [vmem:[%s16 + $0x228] sm:$0xf]
  %v2399 = vld [vmem:[%s16 + $0x22c] sm:$0xf]
  %v2400 = vld [vmem:[%s16 + $0x230] sm:$0xf]
  %v2401 = vld [vmem:[%s16 + $0x234] sm:$0xf]
  %v2402 = vld [vmem:[%s16 + $0x238] sm:$0xf]
  %v2403 = vld [vmem:[%s16 + $0x23c] sm:$0xf]
  %v2404 = vld [vmem:[%s16 + $0x240] sm:$0xf]
  %v2405 = vld [vmem:[%s16 + $0x244] sm:$0xf]
  %v2406 = vld [vmem:[%s16 + $0x248] sm:$0xf]
  %v2407 = vld [vmem:[%s16 + $0x24c] sm:$0xf]
  %v2408 = vld [vmem:[%s16 + $0x250] sm:$0xf]
  %v2409 = vld [vmem:[%s16 + $0x254] sm:$0xf]
  %v2410 = vld [vmem:[%s16 + $0x258] sm:$0xf]
  %v2411 = vld [vmem:[%s16 + $0x25c] sm:$0xf]
  %v2412 = vld [vmem:[%s16 + $0x260] sm:$0xf]
  %v2413 = vld [vmem:[%s16 + $0x264] sm:$0xf]
  %v2414 = vld [vmem:[%s16 + $0x268] sm:$0xf]
  %v2415 = vld [vmem:[%s16 + $0x26c] sm:$0xf]
  %v2416 = vld [vmem:[%s16 + $0x270] sm:$0xf]
  %v2417 = vld [vmem:[%s16 + $0x274] sm:$0xf]
  %v2418 = vld [vmem:[%s16 + $0x278] sm:$0xf]
  %v2419 = vld [vmem:[%s16 + $0x27c] sm:$0xf]
  %v2420 = vld [vmem:[%s16 + $0x280] sm:$0xf]
  %v2421 = vld [vmem:[%s16 + $0x284] sm:$0xf]
  %v2422 = vld [vmem:[%s16 + $0x288] sm:$0xf]
  %v2423 = vld [vmem:[%s16 + $0x28c] sm:$0xf]
  %v2424 = vld [vmem:[%s16 + $0x290] sm:$0xf]
  %v2425 = vld [vmem:[%s16 + $0x294] sm:$0xf]
  %v2426 = vld [vmem:[%s16 + $0x298] sm:$0xf]
  %v2427 = vld [vmem:[%s16 + $0x29c] sm:$0xf]
  %v2428 = vld [vmem:[%s16 + $0x2a0] sm:$0xf]
  %v2429 = vld [vmem:[%s16 + $0x2a4] sm:$0xf]
  %v2430 = vld [vmem:[%s16 + $0x2a8] sm:$0xf]
  %v2431 = vld [vmem:[%s16 + $0x2ac] sm:$0xf]
  %v2432 = vld [vmem:[%s16 + $0x2b0] sm:$0xf]
  %v2433 = vld [vmem:[%s16 + $0x2b4] sm:$0xf]
  %v2434 = vld [vmem:[%s16 + $0x2b8] sm:$0xf]
  %v2435 = vld [vmem:[%s16 + $0x2bc] sm:$0xf]
  %v2436 = vld [vmem:[%s16 + $0x2c0] sm:$0xf]
  %v2437 = vld [vmem:[%s16 + $0x2c4] sm:$0xf]
  %v2438 = vld [vmem:[%s16 + $0x2c8] sm:$0xf]
  %v2439 = vld [vmem:[%s16 + $0x2cc] sm:$0xf]
  %v2440 = vld [vmem:[%s16 + $0x2d0] sm:$0xf]
  %v2441 = vld [vmem:[%s16 + $0x2d4] sm:$0xf]
  %v2442 = vld [vmem:[%s16 + $0x2d8] sm:$0xf]
  %v2443 = vld [vmem:[%s16 + $0x2dc] sm:$0xf]
  %v2444 = vld [vmem:[%s16 + $0x2e0] sm:$0xf]
  %v2445 = vld [vmem:[%s16 + $0x2e4] sm:$0xf]
  %v2446 = vld [vmem:[%s16 + $0x2e8] sm:$0xf]
  %v2447 = vld [vmem:[%s16 + $0x2ec] sm:$0xf]
  %v2448 = vld [vmem:[%s16 + $0x2f0] sm:$0xf]
  %v2449 = vld [vmem:[%s16 + $0x2f4] sm:$0xf]
  %v2450 = vld [vmem:[%s16 + $0x2f8] sm:$0xf]
  %v2451 = vld [vmem:[%s16 + $0x2fc] sm:$0xf]
  %v2516 = vunpack.c.l.b16 %v2388
  %v2517 = vunpack.c.l.b16 %v2389
  %v2518 = vunpack.c.l.b16 %v2390
  %v2519 = vunpack.c.l.b16 %v2391
  %v2520 = vunpack.c.l.b16 %v2392
  %v2521 = vunpack.c.l.b16 %v2393
  %v2522 = vunpack.c.l.b16 %v2394
  %v2523 = vunpack.c.l.b16 %v2395
  %v2524 = vunpack.c.l.b16 %v2396
  %v2525 = vunpack.c.l.b16 %v2397
  %v2526 = vunpack.c.l.b16 %v2398
  %v2527 = vunpack.c.l.b16 %v2399
  %v2528 = vunpack.c.l.b16 %v2400
  %v2529 = vunpack.c.l.b16 %v2401
  %v2530 = vunpack.c.l.b16 %v2402
  %v2531 = vunpack.c.l.b16 %v2403
  %v2532 = vunpack.c.l.b16 %v2404
  %v2533 = vunpack.c.l.b16 %v2405
  %v2534 = vunpack.c.l.b16 %v2406
  %v2535 = vunpack.c.l.b16 %v2407
  %v2536 = vunpack.c.l.b16 %v2408
  %v2537 = vunpack.c.l.b16 %v2409
  %v2538 = vunpack.c.l.b16 %v2410
  %v2539 = vunpack.c.l.b16 %v2411
  %v2540 = vunpack.c.l.b16 %v2412
  %v2541 = vunpack.c.l.b16 %v2413
  %v2542 = vunpack.c.l.b16 %v2414
  %v2543 = vunpack.c.l.b16 %v2415
  %v2544 = vunpack.c.l.b16 %v2416
  %v2545 = vunpack.c.l.b16 %v2417
  %v2546 = vunpack.c.l.b16 %v2418
  %v2547 = vunpack.c.l.b16 %v2419
  %v2548 = vunpack.c.l.b16 %v2420
  %v2549 = vunpack.c.l.b16 %v2421
  %v2550 = vunpack.c.l.b16 %v2422
  %v2551 = vunpack.c.l.b16 %v2423
  %v2552 = vunpack.c.l.b16 %v2424
  %v2553 = vunpack.c.l.b16 %v2425
  %v2554 = vunpack.c.l.b16 %v2426
  %v2555 = vunpack.c.l.b16 %v2427
  %v2556 = vunpack.c.l.b16 %v2428
  %v2557 = vunpack.c.l.b16 %v2429
  %v2558 = vunpack.c.l.b16 %v2430
  %v2559 = vunpack.c.l.b16 %v2431
  %v2560 = vunpack.c.l.b16 %v2432
  %v2561 = vunpack.c.l.b16 %v2433
  %v2562 = vunpack.c.l.b16 %v2434
  %v2563 = vunpack.c.l.b16 %v2435
  %v2564 = vunpack.c.l.b16 %v2436
  %v2565 = vunpack.c.l.b16 %v2437
  %v2566 = vunpack.c.l.b16 %v2438
  %v2567 = vunpack.c.l.b16 %v2439
  %v2568 = vunpack.c.l.b16 %v2440
  %v2569 = vunpack.c.l.b16 %v2441
  %v2570 = vunpack.c.l.b16 %v2442
  %v2571 = vunpack.c.l.b16 %v2443
  %v2572 = vunpack.c.l.b16 %v2444
  %v2573 = vunpack.c.l.b16 %v2445
  %v2574 = vunpack.c.l.b16 %v2446
  %v2575 = vunpack.c.l.b16 %v2447
  %v2576 = vunpack.c.l.b16 %v2448
  %v2577 = vunpack.c.l.b16 %v2449
  %v2578 = vunpack.c.l.b16 %v2450
  %v2579 = vunpack.c.l.b16 %v2451
  %v2580 = vpack.c.b16 %v2517, %v2516
  %v2581 = vpack.c.b16 %v2519, %v2518
  %v2582 = vpack.c.b16 %v2521, %v2520
  %v2583 = vpack.c.b16 %v2523, %v2522
  %v2584 = vpack.c.b16 %v2525, %v2524
  %v2585 = vpack.c.b16 %v2527, %v2526
  %v2586 = vpack.c.b16 %v2529, %v2528
  %v2587 = vpack.c.b16 %v2531, %v2530
  %v2588 = vpack.c.b16 %v2533, %v2532
  %v2589 = vpack.c.b16 %v2535, %v2534
  %v2590 = vpack.c.b16 %v2537, %v2536
  %v2591 = vpack.c.b16 %v2539, %v2538
  %v2592 = vpack.c.b16 %v2541, %v2540
  %v2593 = vpack.c.b16 %v2543, %v2542
  %v2594 = vpack.c.b16 %v2545, %v2544
  %v2595 = vpack.c.b16 %v2547, %v2546
  %v2596 = vpack.c.b16 %v2549, %v2548
  %v2597 = vpack.c.b16 %v2551, %v2550
  %v2598 = vpack.c.b16 %v2553, %v2552
  %v2599 = vpack.c.b16 %v2555, %v2554
  %v2600 = vpack.c.b16 %v2557, %v2556
  %v2601 = vpack.c.b16 %v2559, %v2558
  %v2602 = vpack.c.b16 %v2561, %v2560
  %v2603 = vpack.c.b16 %v2563, %v2562
  %v2604 = vpack.c.b16 %v2565, %v2564
  %v2605 = vpack.c.b16 %v2567, %v2566
  %v2606 = vpack.c.b16 %v2569, %v2568
  %v2607 = vpack.c.b16 %v2571, %v2570
  %v2608 = vpack.c.b16 %v2573, %v2572
  %v2609 = vpack.c.b16 %v2575, %v2574
  %v2610 = vpack.c.b16 %v2577, %v2576
  %v2611 = vpack.c.b16 %v2579, %v2578
  %2644 = vmatprep.subr.bf16.mxu0 0
  %2645 = vmatpush1.bf16.msra.mxu0 %v2580
  %2646 = vmatprep.subr.bf16.mxu0 0
  %2647 = vmatpush1.bf16.msra.mxu0 %v2581
  %2648 = vmatprep.subr.bf16.mxu0 0
  %2649 = vmatpush1.bf16.msra.mxu0 %v2582
  %2650 = vmatprep.subr.bf16.mxu0 0
  %2651 = vmatpush1.bf16.msra.mxu0 %v2583
  %2652 = vmatprep.subr.bf16.mxu0 0
  %2653 = vmatpush1.bf16.msra.mxu0 %v2584
  %2654 = vmatprep.subr.bf16.mxu0 0
  %2655 = vmatpush1.bf16.msra.mxu0 %v2585
  %2656 = vmatprep.subr.bf16.mxu0 0
  %2657 = vmatpush1.bf16.msra.mxu0 %v2586
  %2658 = vmatprep.subr.bf16.mxu0 0
  %2659 = vmatpush1.bf16.msra.mxu0 %v2587
  %2660 = vmatprep.subr.bf16.mxu0 0
  %2661 = vmatpush1.bf16.msra.mxu0 %v2588
  %2662 = vmatprep.subr.bf16.mxu0 0
  %2663 = vmatpush1.bf16.msra.mxu0 %v2589
  %2664 = vmatprep.subr.bf16.mxu0 0
  %2665 = vmatpush1.bf16.msra.mxu0 %v2590
  %2666 = vmatprep.subr.bf16.mxu0 0
  %2667 = vmatpush1.bf16.msra.mxu0 %v2591
  %2668 = vmatprep.subr.bf16.mxu0 0
  %2669 = vmatpush1.bf16.msra.mxu0 %v2592
  %2670 = vmatprep.subr.bf16.mxu0 0
  %2671 = vmatpush1.bf16.msra.mxu0 %v2593
  %2672 = vmatprep.subr.bf16.mxu0 0
  %2673 = vmatpush1.bf16.msra.mxu0 %v2594
  %2674 = vmatprep.subr.bf16.mxu0 0
  %2675 = vmatpush1.bf16.msra.mxu0 %v2595
  %2676 = vmatprep.mubr.bf16.mxu0 %v2385
  %2677 = vmatmul.mubr.bf16.gmra.mrb[0].mxu0 %v2384
  %v2678 = vpop.f32.mrb[0].mxu0
  %v2679 = vadd.f32 0.0, %v2678
  %v2680 = vpop.f32.mrb[0].mxu0
  %v2681 = vpop.f32.mrb[0].mxu0
  %v2682 = vadd.f32 0.0, %v2681
  %v2683 = vpop.f32.mrb[0].mxu0
  %2684 = vdwg.mxu0
  %2685 = vmatprep.subr.bf16.mxu0 0
  %2686 = vmatpush1.bf16.msra.mxu0 %v2596
  %2687 = vmatprep.subr.bf16.mxu0 0
  %2688 = vmatpush1.bf16.msra.mxu0 %v2597
  %2689 = vmatprep.subr.bf16.mxu0 0
  %2690 = vmatpush1.bf16.msra.mxu0 %v2598
  %2691 = vmatprep.subr.bf16.mxu0 0
  %2692 = vmatpush1.bf16.msra.mxu0 %v2599
  %2693 = vmatprep.subr.bf16.mxu0 0
  %2694 = vmatpush1.bf16.msra.mxu0 %v2600
  %2695 = vmatprep.subr.bf16.mxu0 0
  %2696 = vmatpush1.bf16.msra.mxu0 %v2601
  %2697 = vmatprep.subr.bf16.mxu0 0
  %2698 = vmatpush1.bf16.msra.mxu0 %v2602
  %2699 = vmatprep.subr.bf16.mxu0 0
  %2700 = vmatpush1.bf16.msra.mxu0 %v2603
  %2701 = vmatprep.subr.bf16.mxu0 0
  %2702 = vmatpush1.bf16.msra.mxu0 %v2604
  %2703 = vmatprep.subr.bf16.mxu0 0
  %2704 = vmatpush1.bf16.msra.mxu0 %v2605
  %2705 = vmatprep.subr.bf16.mxu0 0
  %2706 = vmatpush1.bf16.msra.mxu0 %v2606
  %2707 = vmatprep.subr.bf16.mxu0 0
  %2708 = vmatpush1.bf16.msra.mxu0 %v2607
  %2709 = vmatprep.subr.bf16.mxu0 0
  %2710 = vmatpush1.bf16.msra.mxu0 %v2608
  %2711 = vmatprep.subr.bf16.mxu0 0
  %2712 = vmatpush1.bf16.msra.mxu0 %v2609
  %2713 = vmatprep.subr.bf16.mxu0 0
  %2714 = vmatpush1.bf16.msra.mxu0 %v2610
  %2715 = vmatprep.subr.bf16.mxu0 0
  %2716 = vmatpush1.bf16.msra.mxu0 %v2611
  %2717 = vmatprep.mubr.bf16.mxu0 %v2387
  %2718 = vmatmul.mubr.bf16.gmra.mrb[0].mxu0 %v2386
  %v2719 = vpop.f32.mrb[0].mxu0
  %v2720 = vadd.f32 %v2679, %v2719
  %v2721 = vpop.f32.mrb[0].mxu0
  %v2722 = vpop.f32.mrb[0].mxu0
  %v2723 = vadd.f32 %v2682, %v2722
  %v2724 = vpop.f32.mrb[0].mxu0
  %2725 = vdwg.mxu0
  %v2726 = vadd.f32 %v2214, %v2720
  %v2727 = vadd.f32 %v2217, %v2723
  %v2728 = vld [vmem:[%s14 + $0x30] sm:$0xff]
  %v2729 = vld [vmem:[%s14 + $0x38] sm:$0xff]
  %v2730 = vld [vmem:[%s14 + $0x70] sm:$0xff]
  %v2731 = vld [vmem:[%s14 + $0x78] sm:$0xff]
  %v2732 = vld [vmem:[%s14 + $0xb0] sm:$0xff]
  %v2733 = vld [vmem:[%s14 + $0xb8] sm:$0xff]
  %v2734 = vld [vmem:[%s14 + $0xf0] sm:$0xff]
  %v2735 = vld [vmem:[%s14 + $0xf8] sm:$0xff]
  %v2736 = vld [vmem:[%s15 + $0xc] sm:$0xf]
  %v2738 = vlaneseq
  %v2739 = vshrl.u32 %v2738, 7
  %v2740 = vsub.s32 0, %v2739
  %v2741 = vrot.slane %v2736, %v2740
  %v2742 = vlaneseq
  %v2743 = vshrl.u32 %v2742, 7
  %v2744 = vsub.s32 1, %v2743
  %v2745 = vrot.slane %v2736, %v2744
  %v2746 = vlaneseq
  %v2747 = vshrl.u32 %v2746, 7
  %v2748 = vsub.s32 2, %v2747
  %v2749 = vrot.slane %v2736, %v2748
  %v2750 = vlaneseq
  %v2751 = vshrl.u32 %v2750, 7
  %v2752 = vsub.s32 3, %v2751
  %v2753 = vrot.slane %v2736, %v2752
  %v2766 = vunpack.c.l.b16 %v2728
  %v2767 = vunpack.c.h.b16 %v2728
  %v2768 = vunpack.c.l.b16 %v2729
  %v2769 = vunpack.c.h.b16 %v2729
  %v2770 = vunpack.c.l.b16 %v2730
  %v2771 = vunpack.c.h.b16 %v2730
  %v2772 = vunpack.c.l.b16 %v2731
  %v2773 = vunpack.c.h.b16 %v2731
  %v2774 = vunpack.c.l.b16 %v2732
  %v2775 = vunpack.c.h.b16 %v2732
  %v2776 = vunpack.c.l.b16 %v2733
  %v2777 = vunpack.c.h.b16 %v2733
  %v2778 = vunpack.c.l.b16 %v2734
  %v2779 = vunpack.c.h.b16 %v2734
  %v2780 = vunpack.c.l.b16 %v2735
  %v2781 = vunpack.c.h.b16 %v2735
  %v2782 = vpack.c.b16 %v2770, %v2766
  %v2783 = vpack.c.b16 %v2771, %v2767
  %v2784 = vpack.c.b16 %v2772, %v2768
  %v2785 = vpack.c.b16 %v2773, %v2769
  %v2786 = vpack.c.b16 %v2778, %v2774
  %v2787 = vpack.c.b16 %v2779, %v2775
  %v2788 = vpack.c.b16 %v2780, %v2776
  %v2789 = vpack.c.b16 %v2781, %v2777
  %2798 = vmatprep.subr.bf16.mxu0 %v2783
  %2799 = vmatpush1.bf16.msra.mxu0 %v2782
  %2800 = vmatprep.subr.bf16.mxu0 %v2787
  %2801 = vmatpush1.bf16.msra.mxu0 %v2786
  %2802 = vmatprep.subr.bf16.mxu0 0
  %2803 = vmatpush1.bf16.msra.mxu0 0
  %2804 = vmatprep.subr.bf16.mxu0 0
  %2805 = vmatpush1.bf16.msra.mxu0 0
  %2806 = vmatprep.subr.bf16.mxu0 0
  %2807 = vmatpush1.bf16.msra.mxu0 0
  %2808 = vmatprep.subr.bf16.mxu0 0
  %2809 = vmatpush1.bf16.msra.mxu0 0
  %2810 = vmatprep.subr.bf16.mxu0 0
  %2811 = vmatpush1.bf16.msra.mxu0 0
  %2812 = vmatprep.subr.bf16.mxu0 0
  %2813 = vmatpush1.bf16.msra.mxu0 0
  %2814 = vmatprep.subr.bf16.mxu0 0
  %2815 = vmatpush1.bf16.msra.mxu0 0
  %2816 = vmatprep.subr.bf16.mxu0 0
  %2817 = vmatpush1.bf16.msra.mxu0 0
  %2818 = vmatprep.subr.bf16.mxu0 0
  %2819 = vmatpush1.bf16.msra.mxu0 0
  %2820 = vmatprep.subr.bf16.mxu0 0
  %2821 = vmatpush1.bf16.msra.mxu0 0
  %2822 = vmatprep.subr.bf16.mxu0 0
  %2823 = vmatpush1.bf16.msra.mxu0 0
  %2824 = vmatprep.subr.bf16.mxu0 0
  %2825 = vmatpush1.bf16.msra.mxu0 0
  %2826 = vmatprep.subr.bf16.mxu0 0
  %2827 = vmatpush1.bf16.msra.mxu0 0
  %2828 = vmatprep.subr.bf16.mxu0 0
  %2829 = vmatpush1.bf16.msra.mxu0 0
  %2830 = vmatprep.mubr.bf16.mxu0 0
  %2831 = vmatmul.mubr.bf16.gmra.mrb[0].mxu0 %v1276
  %v2832 = vpop.f32.mrb[0].mxu0
  %v2833 = vadd.f32 %v2741, %v2832
  %v2834 = vpop.f32.mrb[0].mxu0
  %v2835 = vadd.f32 %v2745, %v2834
  %v2836 = vpop.f32.mrb[0].mxu0
  %v2837 = vadd.f32 %v2741, %v2836
  %v2838 = vpop.f32.mrb[0].mxu0
  %v2839 = vadd.f32 %v2745, %v2838
  %2840 = vdwg.mxu0
  %2841 = vmatprep.subr.bf16.mxu0 %v2785
  %2842 = vmatpush1.bf16.msra.mxu0 %v2784
  %2843 = vmatprep.subr.bf16.mxu0 %v2789
  %2844 = vmatpush1.bf16.msra.mxu0 %v2788
  %2845 = vmatprep.subr.bf16.mxu0 0
  %2846 = vmatpush1.bf16.msra.mxu0 0
  %2847 = vmatprep.subr.bf16.mxu0 0
  %2848 = vmatpush1.bf16.msra.mxu0 0
  %2849 = vmatprep.subr.bf16.mxu0 0
  %2850 = vmatpush1.bf16.msra.mxu0 0
  %2851 = vmatprep.subr.bf16.mxu0 0
  %2852 = vmatpush1.bf16.msra.mxu0 0
  %2853 = vmatprep.subr.bf16.mxu0 0
  %2854 = vmatpush1.bf16.msra.mxu0 0
  %2855 = vmatprep.subr.bf16.mxu0 0
  %2856 = vmatpush1.bf16.msra.mxu0 0
  %2857 = vmatprep.subr.bf16.mxu0 0
  %2858 = vmatpush1.bf16.msra.mxu0 0
  %2859 = vmatprep.subr.bf16.mxu0 0
  %2860 = vmatpush1.bf16.msra.mxu0 0
  %2861 = vmatprep.subr.bf16.mxu0 0
  %2862 = vmatpush1.bf16.msra.mxu0 0
  %2863 = vmatprep.subr.bf16.mxu0 0
  %2864 = vmatpush1.bf16.msra.mxu0 0
  %2865 = vmatprep.subr.bf16.mxu0 0
  %2866 = vmatpush1.bf16.msra.mxu0 0
  %2867 = vmatprep.subr.bf16.mxu0 0
  %2868 = vmatpush1.bf16.msra.mxu0 0
  %2869 = vmatprep.subr.bf16.mxu0 0
  %2870 = vmatpush1.bf16.msra.mxu0 0
  %2871 = vmatprep.subr.bf16.mxu0 0
  %2872 = vmatpush1.bf16.msra.mxu0 0
  %2873 = vmatprep.mubr.bf16.mxu0 0
  %2874 = vmatmul.mubr.bf16.gmra.mrb[0].mxu0 %v1276
  %v2875 = vpop.f32.mrb[0].mxu0
  %v2876 = vadd.f32 %v2749, %v2875
  %v2877 = vpop.f32.mrb[0].mxu0
  %v2878 = vadd.f32 %v2753, %v2877
  %v2879 = vpop.f32.mrb[0].mxu0
  %v2880 = vadd.f32 %v2749, %v2879
  %v2881 = vpop.f32.mrb[0].mxu0
  %v2882 = vadd.f32 %v2753, %v2881
  %2883 = vdwg.mxu0
  %v2884 = vmax.f32 %v2833, 0.0
  %v2885 = vmax.f32 %v2835, 0.0
  %v2886 = vmax.f32 %v2876, 0.0
  %v2887 = vmax.f32 %v2878, 0.0
  %v2888 = vmax.f32 %v2837, 0.0
  %v2889 = vmax.f32 %v2839, 0.0
  %v2890 = vmax.f32 %v2880, 0.0
  %v2891 = vmax.f32 %v2882, 0.0
  %v2892 = vpack.c.bf16 %v2888, %v2884
  %v2893 = vpack.c.bf16 %v2889, %v2885
  %v2894 = vpack.c.bf16 %v2890, %v2886
  %v2895 = vpack.c.bf16 %v2891, %v2887
  %v2896 = vld [vmem:[%s16 + $0x300] sm:$0xf]
  %v2897 = vld [vmem:[%s16 + $0x304] sm:$0xf]
  %v2898 = vld [vmem:[%s16 + $0x308] sm:$0xf]
  %v2899 = vld [vmem:[%s16 + $0x30c] sm:$0xf]
  %v2900 = vld [vmem:[%s16 + $0x310] sm:$0xf]
  %v2901 = vld [vmem:[%s16 + $0x314] sm:$0xf]
  %v2902 = vld [vmem:[%s16 + $0x318] sm:$0xf]
  %v2903 = vld [vmem:[%s16 + $0x31c] sm:$0xf]
  %v2904 = vld [vmem:[%s16 + $0x320] sm:$0xf]
  %v2905 = vld [vmem:[%s16 + $0x324] sm:$0xf]
  %v2906 = vld [vmem:[%s16 + $0x328] sm:$0xf]
  %v2907 = vld [vmem:[%s16 + $0x32c] sm:$0xf]
  %v2908 = vld [vmem:[%s16 + $0x330] sm:$0xf]
  %v2909 = vld [vmem:[%s16 + $0x334] sm:$0xf]
  %v2910 = vld [vmem:[%s16 + $0x338] sm:$0xf]
  %v2911 = vld [vmem:[%s16 + $0x33c] sm:$0xf]
  %v2912 = vld [vmem:[%s16 + $0x340] sm:$0xf]
  %v2913 = vld [vmem:[%s16 + $0x344] sm:$0xf]
  %v2914 = vld [vmem:[%s16 + $0x348] sm:$0xf]
  %v2915 = vld [vmem:[%s16 + $0x34c] sm:$0xf]
  %v2916 = vld [vmem:[%s16 + $0x350] sm:$0xf]
  %v2917 = vld [vmem:[%s16 + $0x354] sm:$0xf]
  %v2918 = vld [vmem:[%s16 + $0x358] sm:$0xf]
  %v2919 = vld [vmem:[%s16 + $0x35c] sm:$0xf]
  %v2920 = vld [vmem:[%s16 + $0x360] sm:$0xf]
  %v2921 = vld [vmem:[%s16 + $0x364] sm:$0xf]
  %v2922 = vld [vmem:[%s16 + $0x368] sm:$0xf]
  %v2923 = vld [vmem:[%s16 + $0x36c] sm:$0xf]
  %v2924 = vld [vmem:[%s16 + $0x370] sm:$0xf]
  %v2925 = vld [vmem:[%s16 + $0x374] sm:$0xf]
  %v2926 = vld [vmem:[%s16 + $0x378] sm:$0xf]
  %v2927 = vld [vmem:[%s16 + $0x37c] sm:$0xf]
  %v2928 = vld [vmem:[%s16 + $0x380] sm:$0xf]
  %v2929 = vld [vmem:[%s16 + $0x384] sm:$0xf]
  %v2930 = vld [vmem:[%s16 + $0x388] sm:$0xf]
  %v2931 = vld [vmem:[%s16 + $0x38c] sm:$0xf]
  %v2932 = vld [vmem:[%s16 + $0x390] sm:$0xf]
  %v2933 = vld [vmem:[%s16 + $0x394] sm:$0xf]
  %v2934 = vld [vmem:[%s16 + $0x398] sm:$0xf]
  %v2935 = vld [vmem:[%s16 + $0x39c] sm:$0xf]
  %v2936 = vld [vmem:[%s16 + $0x3a0] sm:$0xf]
  %v2937 = vld [vmem:[%s16 + $0x3a4] sm:$0xf]
  %v2938 = vld [vmem:[%s16 + $0x3a8] sm:$0xf]
  %v2939 = vld [vmem:[%s16 + $0x3ac] sm:$0xf]
  %v2940 = vld [vmem:[%s16 + $0x3b0] sm:$0xf]
  %v2941 = vld [vmem:[%s16 + $0x3b4] sm:$0xf]
  %v2942 = vld [vmem:[%s16 + $0x3b8] sm:$0xf]
  %v2943 = vld [vmem:[%s16 + $0x3bc] sm:$0xf]
  %v2944 = vld [vmem:[%s16 + $0x3c0] sm:$0xf]
  %v2945 = vld [vmem:[%s16 + $0x3c4] sm:$0xf]
  %v2946 = vld [vmem:[%s16 + $0x3c8] sm:$0xf]
  %v2947 = vld [vmem:[%s16 + $0x3cc] sm:$0xf]
  %v2948 = vld [vmem:[%s16 + $0x3d0] sm:$0xf]
  %v2949 = vld [vmem:[%s16 + $0x3d4] sm:$0xf]
  %v2950 = vld [vmem:[%s16 + $0x3d8] sm:$0xf]
  %v2951 = vld [vmem:[%s16 + $0x3dc] sm:$0xf]
  %v2952 = vld [vmem:[%s16 + $0x3e0] sm:$0xf]
  %v2953 = vld [vmem:[%s16 + $0x3e4] sm:$0xf]
  %v2954 = vld [vmem:[%s16 + $0x3e8] sm:$0xf]
  %v2955 = vld [vmem:[%s16 + $0x3ec] sm:$0xf]
  %v2956 = vld [vmem:[%s16 + $0x3f0] sm:$0xf]
  %v2957 = vld [vmem:[%s16 + $0x3f4] sm:$0xf]
  %v2958 = vld [vmem:[%s16 + $0x3f8] sm:$0xf]
  %v2959 = vld [vmem:[%s16 + $0x3fc] sm:$0xf]
  %v3024 = vunpack.c.l.b16 %v2896
  %v3025 = vunpack.c.l.b16 %v2897
  %v3026 = vunpack.c.l.b16 %v2898
  %v3027 = vunpack.c.l.b16 %v2899
  %v3028 = vunpack.c.l.b16 %v2900
  %v3029 = vunpack.c.l.b16 %v2901
  %v3030 = vunpack.c.l.b16 %v2902
  %v3031 = vunpack.c.l.b16 %v2903
  %v3032 = vunpack.c.l.b16 %v2904
  %v3033 = vunpack.c.l.b16 %v2905
  %v3034 = vunpack.c.l.b16 %v2906
  %v3035 = vunpack.c.l.b16 %v2907
  %v3036 = vunpack.c.l.b16 %v2908
  %v3037 = vunpack.c.l.b16 %v2909
  %v3038 = vunpack.c.l.b16 %v2910
  %v3039 = vunpack.c.l.b16 %v2911
  %v3040 = vunpack.c.l.b16 %v2912
  %v3041 = vunpack.c.l.b16 %v2913
  %v3042 = vunpack.c.l.b16 %v2914
  %v3043 = vunpack.c.l.b16 %v2915
  %v3044 = vunpack.c.l.b16 %v2916
  %v3045 = vunpack.c.l.b16 %v2917
  %v3046 = vunpack.c.l.b16 %v2918
  %v3047 = vunpack.c.l.b16 %v2919
  %v3048 = vunpack.c.l.b16 %v2920
  %v3049 = vunpack.c.l.b16 %v2921
  %v3050 = vunpack.c.l.b16 %v2922
  %v3051 = vunpack.c.l.b16 %v2923
  %v3052 = vunpack.c.l.b16 %v2924
  %v3053 = vunpack.c.l.b16 %v2925
  %v3054 = vunpack.c.l.b16 %v2926
  %v3055 = vunpack.c.l.b16 %v2927
  %v3056 = vunpack.c.l.b16 %v2928
  %v3057 = vunpack.c.l.b16 %v2929
  %v3058 = vunpack.c.l.b16 %v2930
  %v3059 = vunpack.c.l.b16 %v2931
  %v3060 = vunpack.c.l.b16 %v2932
  %v3061 = vunpack.c.l.b16 %v2933
  %v3062 = vunpack.c.l.b16 %v2934
  %v3063 = vunpack.c.l.b16 %v2935
  %v3064 = vunpack.c.l.b16 %v2936
  %v3065 = vunpack.c.l.b16 %v2937
  %v3066 = vunpack.c.l.b16 %v2938
  %v3067 = vunpack.c.l.b16 %v2939
  %v3068 = vunpack.c.l.b16 %v2940
  %v3069 = vunpack.c.l.b16 %v2941
  %v3070 = vunpack.c.l.b16 %v2942
  %v3071 = vunpack.c.l.b16 %v2943
  %v3072 = vunpack.c.l.b16 %v2944
  %v3073 = vunpack.c.l.b16 %v2945
  %v3074 = vunpack.c.l.b16 %v2946
  %v3075 = vunpack.c.l.b16 %v2947
  %v3076 = vunpack.c.l.b16 %v2948
  %v3077 = vunpack.c.l.b16 %v2949
  %v3078 = vunpack.c.l.b16 %v2950
  %v3079 = vunpack.c.l.b16 %v2951
  %v3080 = vunpack.c.l.b16 %v2952
  %v3081 = vunpack.c.l.b16 %v2953
  %v3082 = vunpack.c.l.b16 %v2954
  %v3083 = vunpack.c.l.b16 %v2955
  %v3084 = vunpack.c.l.b16 %v2956
  %v3085 = vunpack.c.l.b16 %v2957
  %v3086 = vunpack.c.l.b16 %v2958
  %v3087 = vunpack.c.l.b16 %v2959
  %v3088 = vpack.c.b16 %v3025, %v3024
  %v3089 = vpack.c.b16 %v3027, %v3026
  %v3090 = vpack.c.b16 %v3029, %v3028
  %v3091 = vpack.c.b16 %v3031, %v3030
  %v3092 = vpack.c.b16 %v3033, %v3032
  %v3093 = vpack.c.b16 %v3035, %v3034
  %v3094 = vpack.c.b16 %v3037, %v3036
  %v3095 = vpack.c.b16 %v3039, %v3038
  %v3096 = vpack.c.b16 %v3041, %v3040
  %v3097 = vpack.c.b16 %v3043, %v3042
  %v3098 = vpack.c.b16 %v3045, %v3044
  %v3099 = vpack.c.b16 %v3047, %v3046
  %v3100 = vpack.c.b16 %v3049, %v3048
  %v3101 = vpack.c.b16 %v3051, %v3050
  %v3102 = vpack.c.b16 %v3053, %v3052
  %v3103 = vpack.c.b16 %v3055, %v3054
  %v3104 = vpack.c.b16 %v3057, %v3056
  %v3105 = vpack.c.b16 %v3059, %v3058
  %v3106 = vpack.c.b16 %v3061, %v3060
  %v3107 = vpack.c.b16 %v3063, %v3062
  %v3108 = vpack.c.b16 %v3065, %v3064
  %v3109 = vpack.c.b16 %v3067, %v3066
  %v3110 = vpack.c.b16 %v3069, %v3068
  %v3111 = vpack.c.b16 %v3071, %v3070
  %v3112 = vpack.c.b16 %v3073, %v3072
  %v3113 = vpack.c.b16 %v3075, %v3074
  %v3114 = vpack.c.b16 %v3077, %v3076
  %v3115 = vpack.c.b16 %v3079, %v3078
  %v3116 = vpack.c.b16 %v3081, %v3080
  %v3117 = vpack.c.b16 %v3083, %v3082
  %v3118 = vpack.c.b16 %v3085, %v3084
  %v3119 = vpack.c.b16 %v3087, %v3086
  %3152 = vmatprep.subr.bf16.mxu0 0
  %3153 = vmatpush1.bf16.msra.mxu0 %v3088
  %3154 = vmatprep.subr.bf16.mxu0 0
  %3155 = vmatpush1.bf16.msra.mxu0 %v3089
  %3156 = vmatprep.subr.bf16.mxu0 0
  %3157 = vmatpush1.bf16.msra.mxu0 %v3090
  %3158 = vmatprep.subr.bf16.mxu0 0
  %3159 = vmatpush1.bf16.msra.mxu0 %v3091
  %3160 = vmatprep.subr.bf16.mxu0 0
  %3161 = vmatpush1.bf16.msra.mxu0 %v3092
  %3162 = vmatprep.subr.bf16.mxu0 0
  %3163 = vmatpush1.bf16.msra.mxu0 %v3093
  %3164 = vmatprep.subr.bf16.mxu0 0
  %3165 = vmatpush1.bf16.msra.mxu0 %v3094
  %3166 = vmatprep.subr.bf16.mxu0 0
  %3167 = vmatpush1.bf16.msra.mxu0 %v3095
  %3168 = vmatprep.subr.bf16.mxu0 0
  %3169 = vmatpush1.bf16.msra.mxu0 %v3096
  %3170 = vmatprep.subr.bf16.mxu0 0
  %3171 = vmatpush1.bf16.msra.mxu0 %v3097
  %3172 = vmatprep.subr.bf16.mxu0 0
  %3173 = vmatpush1.bf16.msra.mxu0 %v3098
  %3174 = vmatprep.subr.bf16.mxu0 0
  %3175 = vmatpush1.bf16.msra.mxu0 %v3099
  %3176 = vmatprep.subr.bf16.mxu0 0
  %3177 = vmatpush1.bf16.msra.mxu0 %v3100
  %3178 = vmatprep.subr.bf16.mxu0 0
  %3179 = vmatpush1.bf16.msra.mxu0 %v3101
  %3180 = vmatprep.subr.bf16.mxu0 0
  %3181 = vmatpush1.bf16.msra.mxu0 %v3102
  %3182 = vmatprep.subr.bf16.mxu0 0
  %3183 = vmatpush1.bf16.msra.mxu0 %v3103
  %3184 = vmatprep.mubr.bf16.mxu0 %v2893
  %3185 = vmatmul.mubr.bf16.gmra.mrb[0].mxu0 %v2892
  %v3186 = vpop.f32.mrb[0].mxu0
  %v3187 = vadd.f32 0.0, %v3186
  %v3188 = vpop.f32.mrb[0].mxu0
  %v3189 = vpop.f32.mrb[0].mxu0
  %v3190 = vadd.f32 0.0, %v3189
  %v3191 = vpop.f32.mrb[0].mxu0
  %3192 = vdwg.mxu0
  %3193 = vmatprep.subr.bf16.mxu0 0
  %3194 = vmatpush1.bf16.msra.mxu0 %v3104
  %3195 = vmatprep.subr.bf16.mxu0 0
  %3196 = vmatpush1.bf16.msra.mxu0 %v3105
  %3197 = vmatprep.subr.bf16.mxu0 0
  %3198 = vmatpush1.bf16.msra.mxu0 %v3106
  %3199 = vmatprep.subr.bf16.mxu0 0
  %3200 = vmatpush1.bf16.msra.mxu0 %v3107
  %3201 = vmatprep.subr.bf16.mxu0 0
  %3202 = vmatpush1.bf16.msra.mxu0 %v3108
  %3203 = vmatprep.subr.bf16.mxu0 0
  %3204 = vmatpush1.bf16.msra.mxu0 %v3109
  %3205 = vmatprep.subr.bf16.mxu0 0
  %3206 = vmatpush1.bf16.msra.mxu0 %v3110
  %3207 = vmatprep.subr.bf16.mxu0 0
  %3208 = vmatpush1.bf16.msra.mxu0 %v3111
  %3209 = vmatprep.subr.bf16.mxu0 0
  %3210 = vmatpush1.bf16.msra.mxu0 %v3112
  %3211 = vmatprep.subr.bf16.mxu0 0
  %3212 = vmatpush1.bf16.msra.mxu0 %v3113
  %3213 = vmatprep.subr.bf16.mxu0 0
  %3214 = vmatpush1.bf16.msra.mxu0 %v3114
  %3215 = vmatprep.subr.bf16.mxu0 0
  %3216 = vmatpush1.bf16.msra.mxu0 %v3115
  %3217 = vmatprep.subr.bf16.mxu0 0
  %3218 = vmatpush1.bf16.msra.mxu0 %v3116
  %3219 = vmatprep.subr.bf16.mxu0 0
  %3220 = vmatpush1.bf16.msra.mxu0 %v3117
  %3221 = vmatprep.subr.bf16.mxu0 0
  %3222 = vmatpush1.bf16.msra.mxu0 %v3118
  %3223 = vmatprep.subr.bf16.mxu0 0
  %3224 = vmatpush1.bf16.msra.mxu0 %v3119
  %3225 = vmatprep.mubr.bf16.mxu0 %v2895
  %3226 = vmatmul.mubr.bf16.gmra.mrb[0].mxu0 %v2894
  %v3227 = vpop.f32.mrb[0].mxu0
  %v3228 = vadd.f32 %v3187, %v3227
  %v3229 = vpop.f32.mrb[0].mxu0
  %v3230 = vpop.f32.mrb[0].mxu0
  %v3231 = vadd.f32 %v3190, %v3230
  %v3232 = vpop.f32.mrb[0].mxu0
  %3233 = vdwg.mxu0
  %v3234 = vadd.f32 %v2726, %v3228
  %v3235 = vadd.f32 %v2727, %v3231
  %v3236 = vld [vmem:[%s17] sm:$0x1]
  %v3238 = vlaneseq
  %v3239 = vshrl.u32 %v3238, 7
  %v3240 = vsub.s32 0, %v3239
  %v3241 = vrot.slane %v3236, %v3240
  %v3243 = vadd.f32 %v3234, %v3241
  %v3244 = vadd.f32 %v3235, %v3241
  %v3245 = vadd.f32 %v1202, %v3243
  %v3246 = vadd.f32 %v1203, %v3244
  %v3247 = vld [vmem:[%s18 + $0x2] sm:$0x1]
  %v3248 = vld [vmem:[%s19 + $0x2] sm:$0x1]
  %v3249 = vsel %vm120, %v3245, 0.0
  %3250 = vadd.xlane.f32.xlu0 %v3249
  %v3251 = vpop.xlane.xlu0 %3250
  %v3252 = vsel %vm120, %v3246, 0.0
  %3253 = vadd.xlane.f32.xlu0 %v3252
  %v3254 = vpop.xlane.xlu0 %3253
  %v3255 = vmul.f32 %v3251, %v579
  %v3256 = vmul.f32 %v3254, %v579
  %v3257 = vsub.f32 %v3245, %v3255
  %v3258 = vsub.f32 %v3246, %v3256
  %v3259 = vmul.f32 %v3257, %v3257
  %v3260 = vmul.f32 %v3258, %v3258
  %v3261 = vsel %vm120, %v3259, 0.0
  %3262 = vadd.xlane.f32.xlu0 %v3261
  %v3263 = vpop.xlane.xlu0 %3262
  %v3264 = vsel %vm120, %v3260, 0.0
  %3265 = vadd.xlane.f32.xlu0 %v3264
  %v3266 = vpop.xlane.xlu0 %3265
  %v3267 = vmul.f32 %v3263, %v579
  %v3268 = vmul.f32 %v3266, %v579
  %v3269 = vadd.f32 %v3267, 1e-05
  %v3270 = vadd.f32 %v3268, 1e-05
  %v3271 = vrsqrt.pop %v3269
  %v3272 = vrsqrt.pop %v3270
  %v3273 = vmul.f32 %v3257, %v3271
  %v3274 = vmul.f32 %v3258, %v3272
  %v3275 = vlaneseq
  %v3276 = vshrl.u32 %v3275, 7
  %v3277 = vsub.s32 0, %v3276
  %v3278 = vrot.slane %v3247, %v3277
  %v3279 = vmul.f32 %v3273, %v3278
  %v3280 = vmul.f32 %v3274, %v3278
  %v3281 = vlaneseq
  %v3282 = vshrl.u32 %v3281, 7
  %v3283 = vsub.s32 0, %v3282
  %v3284 = vrot.slane %v3248, %v3283
  %v3285 = vadd.f32 %v3279, %v3284
  %v3286 = vadd.f32 %v3280, %v3284
  %v3287 = vpack.c.bf16 %v3286, %v3285
  %s3288 = scalar_lea.vmem %s4, 16
  %v3289 = vld [vmem:[%s3288] sm:$0xf]
  %v3290 = vld [vmem:[%s3288 + $0x4] sm:$0xf]
  %v3291 = vld [vmem:[%s3288 + $0x8] sm:$0xf]
  %v3292 = vld [vmem:[%s3288 + $0xc] sm:$0xf]
  %s3293 = scalar_lea.vmem %s5, 1
  %v3294 = vld [vmem:[%s3293] sm:$0x1]
  %v3296 = vlaneseq
  %v3297 = vshrl.u32 %v3296, 7
  %v3298 = vsub.s32 0, %v3297
  %v3299 = vrot.slane %v3294, %v3298
  %v3305 = vunpack.c.l.b16 %v3289
  %v3306 = vunpack.c.l.b16 %v3290
  %v3307 = vunpack.c.l.b16 %v3291
  %v3308 = vunpack.c.l.b16 %v3292
  %v3309 = vpack.c.b16 %v3306, %v3305
  %v3310 = vpack.c.b16 %v3308, %v3307
  %v3314 = vsel %vm120, %v3287, 0
  %3316 = vmatprep.subr.bf16.mxu0 0
  %3317 = vmatpush1.bf16.msra.mxu0 %v3309
  %3318 = vmatprep.subr.bf16.mxu0 0
  %3319 = vmatpush1.bf16.msra.mxu0 %v3310
  %3320 = vmatprep.subr.bf16.mxu0 0
  %3321 = vmatpush1.bf16.msra.mxu0 0
  %3322 = vmatprep.subr.bf16.mxu0 0
  %3323 = vmatpush1.bf16.msra.mxu0 0
  %3324 = vmatprep.subr.bf16.mxu0 0
  %3325 = vmatpush1.bf16.msra.mxu0 0
  %3326 = vmatprep.subr.bf16.mxu0 0
  %3327 = vmatpush1.bf16.msra.mxu0 0
  %3328 = vmatprep.subr.bf16.mxu0 0
  %3329 = vmatpush1.bf16.msra.mxu0 0
  %3330 = vmatprep.subr.bf16.mxu0 0
  %3331 = vmatpush1.bf16.msra.mxu0 0
  %3332 = vmatprep.subr.bf16.mxu0 0
  %3333 = vmatpush1.bf16.msra.mxu0 0
  %3334 = vmatprep.subr.bf16.mxu0 0
  %3335 = vmatpush1.bf16.msra.mxu0 0
  %3336 = vmatprep.subr.bf16.mxu0 0
  %3337 = vmatpush1.bf16.msra.mxu0 0
  %3338 = vmatprep.subr.bf16.mxu0 0
  %3339 = vmatpush1.bf16.msra.mxu0 0
  %3340 = vmatprep.subr.bf16.mxu0 0
  %3341 = vmatpush1.bf16.msra.mxu0 0
  %3342 = vmatprep.subr.bf16.mxu0 0
  %3343 = vmatpush1.bf16.msra.mxu0 0
  %3344 = vmatprep.subr.bf16.mxu0 0
  %3345 = vmatpush1.bf16.msra.mxu0 0
  %3346 = vmatprep.subr.bf16.mxu0 0
  %3347 = vmatpush1.bf16.msra.mxu0 0
  %3348 = vmatprep.mubr.bf16.mxu0 0
  %3349 = vmatmul.mubr.bf16.gmra.mrb[0].mxu0 %v3314
  %v3350 = vpop.f32.mrb[0].mxu0
  %v3351 = vadd.f32 %v3299, %v3350
  %v3352 = vpop.f32.mrb[0].mxu0
  %v3353 = vpop.f32.mrb[0].mxu0
  %v3354 = vadd.f32 %v3299, %v3353
  %v3355 = vpop.f32.mrb[0].mxu0
  %3356 = vdwg.mxu0
  %s3357 = scalar_lea.vmem %s6, 16
  %v3358 = vld [vmem:[%s3357] sm:$0xf]
  %v3359 = vld [vmem:[%s3357 + $0x4] sm:$0xf]
  %v3360 = vld [vmem:[%s3357 + $0x8] sm:$0xf]
  %v3361 = vld [vmem:[%s3357 + $0xc] sm:$0xf]
  %s3362 = scalar_lea.vmem %s7, 1
  %v3363 = vld [vmem:[%s3362] sm:$0x1]
  %v3364 = vpack.c.bf16 %v3354, %v3351
  %3366 = vrot.lane.b32.xlu0 %v3364, 120
  %v3367 = vpop.permute.xlu0 %3366
  %3368 = vrot.lane.b32.xlu0 %v3364, 112
  %v3369 = vpop.permute.xlu0 %3368
  %3370 = vrot.lane.b32.xlu0 %v3364, 104
  %v3371 = vpop.permute.xlu0 %3370
  %3372 = vrot.lane.b32.xlu0 %v3364, 96
  %v3373 = vpop.permute.xlu0 %3372
  %3374 = vrot.lane.b32.xlu0 %v3367, 96
  %v3375 = vpop.permute.xlu0 %3374
  %3376 = vrot.lane.b32.xlu0 %v3369, 96
  %v3377 = vpop.permute.xlu0 %3376
  %3378 = vrot.lane.b32.xlu0 %v3371, 96
  %v3379 = vpop.permute.xlu0 %3378
  %v3381 = vsel %vm186, %v3364, 0
  %v3384 = vsel %vm186, %v3367, 0
  %v3387 = vsel %vm186, %v3369, 0
  %v3390 = vsel %vm186, %v3371, 0
  %v3393 = vsel %vm186, %v3373, 0
  %v3396 = vsel %vm186, %v3375, 0
  %v3399 = vsel %vm186, %v3377, 0
  %v3402 = vsel %vm186, %v3379, 0
  %3404 = vmatprep.subr.bf16.mxu0 0
  %3405 = vmatpush1.bf16.xpose.msra.mxu0 %v3393
  %3406 = vmatprep.subr.bf16.mxu0 0
  %3407 = vmatpush1.bf16.xpose.msra.mxu0 %v3396
  %3408 = vmatprep.subr.bf16.mxu0 0
  %3409 = vmatpush1.bf16.xpose.msra.mxu0 %v3399
  %3410 = vmatprep.subr.bf16.mxu0 0
  %3411 = vmatpush1.bf16.xpose.msra.mxu0 %v3402
  %3412 = vmatprep.subr.bf16.mxu0 0
  %3413 = vmatpush1.bf16.xpose.msra.mxu0 0
  %3414 = vmatprep.subr.bf16.mxu0 0
  %3415 = vmatpush1.bf16.xpose.msra.mxu0 0
  %3416 = vmatprep.subr.bf16.mxu0 0
  %3417 = vmatpush1.bf16.xpose.msra.mxu0 0
  %3418 = vmatprep.subr.bf16.mxu0 0
  %3419 = vmatpush1.bf16.xpose.msra.mxu0 0
  %3420 = vmatprep.subr.bf16.mxu0 0
  %3421 = vmatpush1.bf16.xpose.msra.mxu0 0
  %3422 = vmatprep.subr.bf16.mxu0 0
  %3423 = vmatpush1.bf16.xpose.msra.mxu0 0
  %3424 = vmatprep.subr.bf16.mxu0 0
  %3425 = vmatpush1.bf16.xpose.msra.mxu0 0
  %3426 = vmatprep.subr.bf16.mxu0 0
  %3427 = vmatpush1.bf16.xpose.msra.mxu0 0
  %3428 = vmatprep.subr.bf16.mxu0 0
  %3429 = vmatpush1.bf16.xpose.msra.mxu0 0
  %3430 = vmatprep.subr.bf16.mxu0 0
  %3431 = vmatpush1.bf16.xpose.msra.mxu0 0
  %3432 = vmatprep.subr.bf16.mxu0 0
  %3433 = vmatpush1.bf16.xpose.msra.mxu0 0
  %3434 = vmatprep.subr.bf16.mxu0 0
  %3435 = vmatpush1.bf16.xpose.msra.mxu0 0
  %3436 = vmatprep.mubr.bf16.mxu0 0
  %3437 = vmatmul.mubr.bf16.gmra.mrb[0].mxu0 %v3381
  %v3438 = vpop.f32.mrb[0].mxu0
  %v3439 = vadd.f32 0.0, %v3438
  %v3440 = vpop.f32.mrb[0].mxu0
  %v3441 = vpop.f32.mrb[0].mxu0
  %v3442 = vadd.f32 0.0, %v3441
  %v3443 = vpop.f32.mrb[0].mxu0
  %3444 = vmatprep.mubr.bf16.mxu0 0
  %3445 = vmatmul.mubr.bf16.gmra.mrb[0].mxu0 %v3384
  %v3446 = vpop.f32.mrb[0].mxu0
  %v3447 = vadd.f32 0.0, %v3446
  %v3448 = vpop.f32.mrb[0].mxu0
  %v3449 = vpop.f32.mrb[0].mxu0
  %v3450 = vadd.f32 0.0, %v3449
  %v3451 = vpop.f32.mrb[0].mxu0
  %3452 = vmatprep.mubr.bf16.mxu0 0
  %3453 = vmatmul.mubr.bf16.gmra.mrb[0].mxu0 %v3387
  %v3454 = vpop.f32.mrb[0].mxu0
  %v3455 = vadd.f32 0.0, %v3454
  %v3456 = vpop.f32.mrb[0].mxu0
  %v3457 = vpop.f32.mrb[0].mxu0
  %v3458 = vadd.f32 0.0, %v3457
  %v3459 = vpop.f32.mrb[0].mxu0
  %3460 = vmatprep.mubr.bf16.mxu0 0
  %3461 = vmatmul.mubr.bf16.gmra.mrb[0].mxu0 %v3390
  %v3462 = vpop.f32.mrb[0].mxu0
  %v3463 = vadd.f32 0.0, %v3462
  %v3464 = vpop.f32.mrb[0].mxu0
  %v3465 = vpop.f32.mrb[0].mxu0
  %v3466 = vadd.f32 0.0, %v3465
  %v3467 = vpop.f32.mrb[0].mxu0
  %3468 = vdwg.mxu0
  %v3469 = vmul.f32 %v3439, 0.35355338
  %v3470 = vmul.f32 %v3442, 0.35355338
  %v3471 = vmul.f32 %v3447, 0.35355338
  %v3472 = vmul.f32 %v3450, 0.35355338
  %v3473 = vmul.f32 %v3455, 0.35355338
  %v3474 = vmul.f32 %v3458, 0.35355338
  %v3475 = vmul.f32 %v3463, 0.35355338
  %v3476 = vmul.f32 %v3466, 0.35355338
  %v3477 = vadd.f32 %v3469, %v72
  %v3478 = vadd.f32 %v3470, %v73
  %v3479 = vadd.f32 %v3471, %v74
  %v3480 = vadd.f32 %v3472, %v75
  %v3481 = vadd.f32 %v3473, %v76
  %v3482 = vadd.f32 %v3474, %v77
  %v3483 = vadd.f32 %v3475, %v78
  %v3484 = vadd.f32 %v3476, %v79
  %v3485 = vsel %vm292, %v3477, -inf
  %3486 = vmax.xlane.f32.xlu0 %v3485
  %v3487 = vpop.xlane.xlu0 %3486
  %v3488 = vsel %vm292, %v3478, -inf
  %3489 = vmax.xlane.f32.xlu0 %v3488
  %v3490 = vpop.xlane.xlu0 %3489
  %v3491 = vsel %vm292, %v3479, -inf
  %3492 = vmax.xlane.f32.xlu0 %v3491
  %v3493 = vpop.xlane.xlu0 %3492
  %v3494 = vsel %vm292, %v3480, -inf
  %3495 = vmax.xlane.f32.xlu0 %v3494
  %v3496 = vpop.xlane.xlu0 %3495
  %v3497 = vsel %vm292, %v3481, -inf
  %3498 = vmax.xlane.f32.xlu0 %v3497
  %v3499 = vpop.xlane.xlu0 %3498
  %v3500 = vsel %vm292, %v3482, -inf
  %3501 = vmax.xlane.f32.xlu0 %v3500
  %v3502 = vpop.xlane.xlu0 %3501
  %v3503 = vsel %vm292, %v3483, -inf
  %3504 = vmax.xlane.f32.xlu0 %v3503
  %v3505 = vpop.xlane.xlu0 %3504
  %v3506 = vsel %vm292, %v3484, -inf
  %3507 = vmax.xlane.f32.xlu0 %v3506
  %v3508 = vpop.xlane.xlu0 %3507
  %v3509 = vsub.f32 %v3477, %v3487
  %v3510 = vsub.f32 %v3478, %v3490
  %v3511 = vsub.f32 %v3479, %v3493
  %v3512 = vsub.f32 %v3480, %v3496
  %v3513 = vsub.f32 %v3481, %v3499
  %v3514 = vsub.f32 %v3482, %v3502
  %v3515 = vsub.f32 %v3483, %v3505
  %v3516 = vsub.f32 %v3484, %v3508
  %v3517 = vmul.f32 %v3509, 1.442695
  %v3518 = vpow.pop %v3517
  %v3519 = vmul.f32 %v3510, 1.442695
  %v3520 = vpow.pop %v3519
  %v3521 = vmul.f32 %v3511, 1.442695
  %v3522 = vpow.pop %v3521
  %v3523 = vmul.f32 %v3512, 1.442695
  %v3524 = vpow.pop %v3523
  %v3525 = vmul.f32 %v3513, 1.442695
  %v3526 = vpow.pop %v3525
  %v3527 = vmul.f32 %v3514, 1.442695
  %v3528 = vpow.pop %v3527
  %v3529 = vmul.f32 %v3515, 1.442695
  %v3530 = vpow.pop %v3529
  %v3531 = vmul.f32 %v3516, 1.442695
  %v3532 = vpow.pop %v3531
  %v3533 = vsel %vm292, %v3518, 0.0
  %3534 = vadd.xlane.f32.xlu0 %v3533
  %v3535 = vpop.xlane.xlu0 %3534
  %v3536 = vsel %vm292, %v3520, 0.0
  %3537 = vadd.xlane.f32.xlu0 %v3536
  %v3538 = vpop.xlane.xlu0 %3537
  %v3539 = vsel %vm292, %v3522, 0.0
  %3540 = vadd.xlane.f32.xlu0 %v3539
  %v3541 = vpop.xlane.xlu0 %3540
  %v3542 = vsel %vm292, %v3524, 0.0
  %3543 = vadd.xlane.f32.xlu0 %v3542
  %v3544 = vpop.xlane.xlu0 %3543
  %v3545 = vsel %vm292, %v3526, 0.0
  %3546 = vadd.xlane.f32.xlu0 %v3545
  %v3547 = vpop.xlane.xlu0 %3546
  %v3548 = vsel %vm292, %v3528, 0.0
  %3549 = vadd.xlane.f32.xlu0 %v3548
  %v3550 = vpop.xlane.xlu0 %3549
  %v3551 = vsel %vm292, %v3530, 0.0
  %3552 = vadd.xlane.f32.xlu0 %v3551
  %v3553 = vpop.xlane.xlu0 %3552
  %v3554 = vsel %vm292, %v3532, 0.0
  %3555 = vadd.xlane.f32.xlu0 %v3554
  %v3556 = vpop.xlane.xlu0 %3555
  %v3557 = vrcp.pop %v3535
  %v3558 = vrcp.pop %v3538
  %v3559 = vrcp.pop %v3541
  %v3560 = vrcp.pop %v3544
  %v3561 = vrcp.pop %v3547
  %v3562 = vrcp.pop %v3550
  %v3563 = vrcp.pop %v3553
  %v3564 = vrcp.pop %v3556
  %v3565 = vmul.f32 %v3518, %v3557
  %v3566 = vmul.f32 %v3520, %v3558
  %v3567 = vmul.f32 %v3522, %v3559
  %v3568 = vmul.f32 %v3524, %v3560
  %v3569 = vmul.f32 %v3526, %v3561
  %v3570 = vmul.f32 %v3528, %v3562
  %v3571 = vmul.f32 %v3530, %v3563
  %v3572 = vmul.f32 %v3532, %v3564
  %v3573 = vpack.c.bf16 %v3566, %v3565
  %v3574 = vpack.c.bf16 %v3568, %v3567
  %v3575 = vpack.c.bf16 %v3570, %v3569
  %v3576 = vpack.c.bf16 %v3572, %v3571
  %3577 = vrot.lane.b32.xlu0 %v3364, 64
  %v3578 = vpop.permute.xlu0 %3577
  %3579 = vrot.lane.b32.xlu0 %v3367, 64
  %v3580 = vpop.permute.xlu0 %3579
  %3581 = vrot.lane.b32.xlu0 %v3369, 64
  %v3582 = vpop.permute.xlu0 %3581
  %3583 = vrot.lane.b32.xlu0 %v3371, 64
  %v3584 = vpop.permute.xlu0 %3583
  %v3590 = vsel %vm292, %v3573, 0
  %v3593 = vsel %vm292, %v3574, 0
  %v3596 = vsel %vm292, %v3575, 0
  %v3599 = vsel %vm292, %v3576, 0
  %3601 = vmatprep.subr.bf16.mxu0 0
  %3602 = vmatpush1.bf16.msra.mxu0 %v3578
  %3603 = vmatprep.subr.bf16.mxu0 0
  %3604 = vmatpush1.bf16.msra.mxu0 %v3580
  %3605 = vmatprep.subr.bf16.mxu0 0
  %3606 = vmatpush1.bf16.msra.mxu0 %v3582
  %3607 = vmatprep.subr.bf16.mxu0 0
  %3608 = vmatpush1.bf16.msra.mxu0 %v3584
  %3609 = vmatprep.subr.bf16.mxu0 0
  %3610 = vmatpush1.bf16.msra.mxu0 0
  %3611 = vmatprep.subr.bf16.mxu0 0
  %3612 = vmatpush1.bf16.msra.mxu0 0
  %3613 = vmatprep.subr.bf16.mxu0 0
  %3614 = vmatpush1.bf16.msra.mxu0 0
  %3615 = vmatprep.subr.bf16.mxu0 0
  %3616 = vmatpush1.bf16.msra.mxu0 0
  %3617 = vmatprep.subr.bf16.mxu0 0
  %3618 = vmatpush1.bf16.msra.mxu0 0
  %3619 = vmatprep.subr.bf16.mxu0 0
  %3620 = vmatpush1.bf16.msra.mxu0 0
  %3621 = vmatprep.subr.bf16.mxu0 0
  %3622 = vmatpush1.bf16.msra.mxu0 0
  %3623 = vmatprep.subr.bf16.mxu0 0
  %3624 = vmatpush1.bf16.msra.mxu0 0
  %3625 = vmatprep.subr.bf16.mxu0 0
  %3626 = vmatpush1.bf16.msra.mxu0 0
  %3627 = vmatprep.subr.bf16.mxu0 0
  %3628 = vmatpush1.bf16.msra.mxu0 0
  %3629 = vmatprep.subr.bf16.mxu0 0
  %3630 = vmatpush1.bf16.msra.mxu0 0
  %3631 = vmatprep.subr.bf16.mxu0 0
  %3632 = vmatpush1.bf16.msra.mxu0 0
  %3633 = vmatprep.mubr.bf16.mxu0 0
  %3634 = vmatmul.mubr.bf16.gmra.mrb[0].mxu0 %v3590
  %v3635 = vpop.f32.mrb[0].mxu0
  %v3636 = vadd.f32 0.0, %v3635
  %v3637 = vpop.f32.mrb[0].mxu0
  %v3638 = vpop.f32.mrb[0].mxu0
  %v3639 = vadd.f32 0.0, %v3638
  %v3640 = vpop.f32.mrb[0].mxu0
  %3641 = vmatprep.mubr.bf16.mxu0 0
  %3642 = vmatmul.mubr.bf16.gmra.mrb[0].mxu0 %v3593
  %v3643 = vpop.f32.mrb[0].mxu0
  %v3644 = vadd.f32 0.0, %v3643
  %v3645 = vpop.f32.mrb[0].mxu0
  %v3646 = vpop.f32.mrb[0].mxu0
  %v3647 = vadd.f32 0.0, %v3646
  %v3648 = vpop.f32.mrb[0].mxu0
  %3649 = vmatprep.mubr.bf16.mxu0 0
  %3650 = vmatmul.mubr.bf16.gmra.mrb[0].mxu0 %v3596
  %v3651 = vpop.f32.mrb[0].mxu0
  %v3652 = vadd.f32 0.0, %v3651
  %v3653 = vpop.f32.mrb[0].mxu0
  %v3654 = vpop.f32.mrb[0].mxu0
  %v3655 = vadd.f32 0.0, %v3654
  %v3656 = vpop.f32.mrb[0].mxu0
  %3657 = vmatprep.mubr.bf16.mxu0 0
  %3658 = vmatmul.mubr.bf16.gmra.mrb[0].mxu0 %v3599
  %v3659 = vpop.f32.mrb[0].mxu0
  %v3660 = vadd.f32 0.0, %v3659
  %v3661 = vpop.f32.mrb[0].mxu0
  %v3662 = vpop.f32.mrb[0].mxu0
  %v3663 = vadd.f32 0.0, %v3662
  %v3664 = vpop.f32.mrb[0].mxu0
  %3665 = vdwg.mxu0
  %3668 = vrot.lane.b32.xlu0 %v3644, 8
  %v3669 = vpop.permute.xlu0 %3668
  %3670 = vrot.lane.b32.xlu0 %v3647, 8
  %v3671 = vpop.permute.xlu0 %3670
  %3676 = vrot.lane.b32.xlu0 %v3652, 16
  %v3677 = vpop.permute.xlu0 %3676
  %3678 = vrot.lane.b32.xlu0 %v3655, 16
  %v3679 = vpop.permute.xlu0 %3678
  %3684 = vrot.lane.b32.xlu0 %v3660, 24
  %v3685 = vpop.permute.xlu0 %3684
  %3686 = vrot.lane.b32.xlu0 %v3663, 24
  %v3687 = vpop.permute.xlu0 %3686
  %v3690 = vsel %vm186, %v3636, %v3669
  %v3691 = vsel %vm186, %v3639, %v3671
  %v3692 = vsel %vm500, %v3690, %v3677
  %v3693 = vsel %vm500, %v3691, %v3679
  %v3694 = vsel %vm503, %v3692, %v3685
  %v3695 = vsel %vm503, %v3693, %v3687
  %v3696 = vpack.c.bf16 %v3695, %v3694
  %v3698 = vlaneseq
  %v3699 = vshrl.u32 %v3698, 7
  %v3700 = vsub.s32 0, %v3699
  %v3701 = vrot.slane %v3363, %v3700
  %v3707 = vunpack.c.l.b16 %v3358
  %v3708 = vunpack.c.l.b16 %v3359
  %v3709 = vunpack.c.l.b16 %v3360
  %v3710 = vunpack.c.l.b16 %v3361
  %v3711 = vpack.c.b16 %v3708, %v3707
  %v3712 = vpack.c.b16 %v3710, %v3709
  %v3716 = vsel %vm120, %v3696, 0
  %3718 = vmatprep.subr.bf16.mxu0 0
  %3719 = vmatpush1.bf16.msra.mxu0 %v3711
  %3720 = vmatprep.subr.bf16.mxu0 0
  %3721 = vmatpush1.bf16.msra.mxu0 %v3712
  %3722 = vmatprep.subr.bf16.mxu0 0
  %3723 = vmatpush1.bf16.msra.mxu0 0
  %3724 = vmatprep.subr.bf16.mxu0 0
  %3725 = vmatpush1.bf16.msra.mxu0 0
  %3726 = vmatprep.subr.bf16.mxu0 0
  %3727 = vmatpush1.bf16.msra.mxu0 0
  %3728 = vmatprep.subr.bf16.mxu0 0
  %3729 = vmatpush1.bf16.msra.mxu0 0
  %3730 = vmatprep.subr.bf16.mxu0 0
  %3731 = vmatpush1.bf16.msra.mxu0 0
  %3732 = vmatprep.subr.bf16.mxu0 0
  %3733 = vmatpush1.bf16.msra.mxu0 0
  %3734 = vmatprep.subr.bf16.mxu0 0
  %3735 = vmatpush1.bf16.msra.mxu0 0
  %3736 = vmatprep.subr.bf16.mxu0 0
  %3737 = vmatpush1.bf16.msra.mxu0 0
  %3738 = vmatprep.subr.bf16.mxu0 0
  %3739 = vmatpush1.bf16.msra.mxu0 0
  %3740 = vmatprep.subr.bf16.mxu0 0
  %3741 = vmatpush1.bf16.msra.mxu0 0
  %3742 = vmatprep.subr.bf16.mxu0 0
  %3743 = vmatpush1.bf16.msra.mxu0 0
  %3744 = vmatprep.subr.bf16.mxu0 0
  %3745 = vmatpush1.bf16.msra.mxu0 0
  %3746 = vmatprep.subr.bf16.mxu0 0
  %3747 = vmatpush1.bf16.msra.mxu0 0
  %3748 = vmatprep.subr.bf16.mxu0 0
  %3749 = vmatpush1.bf16.msra.mxu0 0
  %3750 = vmatprep.mubr.bf16.mxu0 0
  %3751 = vmatmul.mubr.bf16.gmra.mrb[0].mxu0 %v3716
  %v3752 = vpop.f32.mrb[0].mxu0
  %v3753 = vadd.f32 %v3701, %v3752
  %v3754 = vpop.f32.mrb[0].mxu0
  %v3755 = vpop.f32.mrb[0].mxu0
  %v3756 = vadd.f32 %v3701, %v3755
  %v3757 = vpop.f32.mrb[0].mxu0
  %3758 = vdwg.mxu0
  %v3759 = vadd.f32 %v3285, %v3753
  %v3760 = vadd.f32 %v3286, %v3756
  %s3761 = scalar_lea.vmem %s18, 4
  %v3762 = vld [vmem:[%s3761] sm:$0x1]
  %s3763 = scalar_lea.vmem %s19, 4
  %v3764 = vld [vmem:[%s3763] sm:$0x1]
  %v3765 = vsel %vm120, %v3759, 0.0
  %3766 = vadd.xlane.f32.xlu0 %v3765
  %v3767 = vpop.xlane.xlu0 %3766
  %v3768 = vsel %vm120, %v3760, 0.0
  %3769 = vadd.xlane.f32.xlu0 %v3768
  %v3770 = vpop.xlane.xlu0 %3769
  %v3771 = vmul.f32 %v3767, %v579
  %v3772 = vmul.f32 %v3770, %v579
  %v3773 = vsub.f32 %v3759, %v3771
  %v3774 = vsub.f32 %v3760, %v3772
  %v3775 = vmul.f32 %v3773, %v3773
  %v3776 = vmul.f32 %v3774, %v3774
  %v3777 = vsel %vm120, %v3775, 0.0
  %3778 = vadd.xlane.f32.xlu0 %v3777
  %v3779 = vpop.xlane.xlu0 %3778
  %v3780 = vsel %vm120, %v3776, 0.0
  %3781 = vadd.xlane.f32.xlu0 %v3780
  %v3782 = vpop.xlane.xlu0 %3781
  %v3783 = vmul.f32 %v3779, %v579
  %v3784 = vmul.f32 %v3782, %v579
  %v3785 = vadd.f32 %v3783, 1e-05
  %v3786 = vadd.f32 %v3784, 1e-05
  %v3787 = vrsqrt.pop %v3785
  %v3788 = vrsqrt.pop %v3786
  %v3789 = vmul.f32 %v3773, %v3787
  %v3790 = vmul.f32 %v3774, %v3788
  %v3791 = vlaneseq
  %v3792 = vshrl.u32 %v3791, 7
  %v3793 = vsub.s32 0, %v3792
  %v3794 = vrot.slane %v3762, %v3793
  %v3795 = vmul.f32 %v3789, %v3794
  %v3796 = vmul.f32 %v3790, %v3794
  %v3797 = vlaneseq
  %v3798 = vshrl.u32 %v3797, 7
  %v3799 = vsub.s32 0, %v3798
  %v3800 = vrot.slane %v3764, %v3799
  %v3801 = vadd.f32 %v3795, %v3800
  %v3802 = vadd.f32 %v3796, %v3800
  %v3803 = vpack.c.bf16 %v3802, %v3801
  %s3804 = scalar_lea.vmem %s8, 16
  %v3805 = vld [vmem:[%s3804] sm:$0xf]
  %v3806 = vld [vmem:[%s3804 + $0x4] sm:$0xf]
  %v3807 = vld [vmem:[%s3804 + $0x8] sm:$0xf]
  %v3808 = vld [vmem:[%s3804 + $0xc] sm:$0xf]
  %s3809 = scalar_lea.vmem %s9, 1
  %v3810 = vld [vmem:[%s3809] sm:$0x1]
  %v3812 = vlaneseq
  %v3813 = vshrl.u32 %v3812, 7
  %v3814 = vsub.s32 0, %v3813
  %v3815 = vrot.slane %v3810, %v3814
  %v3821 = vunpack.c.l.b16 %v3805
  %v3822 = vunpack.c.l.b16 %v3806
  %v3823 = vunpack.c.l.b16 %v3807
  %v3824 = vunpack.c.l.b16 %v3808
  %v3825 = vpack.c.b16 %v3822, %v3821
  %v3826 = vpack.c.b16 %v3824, %v3823
  %v3830 = vsel %vm120, %v3803, 0
  %3832 = vmatprep.subr.bf16.mxu0 0
  %3833 = vmatpush1.bf16.msra.mxu0 %v3825
  %3834 = vmatprep.subr.bf16.mxu0 0
  %3835 = vmatpush1.bf16.msra.mxu0 %v3826
  %3836 = vmatprep.subr.bf16.mxu0 0
  %3837 = vmatpush1.bf16.msra.mxu0 0
  %3838 = vmatprep.subr.bf16.mxu0 0
  %3839 = vmatpush1.bf16.msra.mxu0 0
  %3840 = vmatprep.subr.bf16.mxu0 0
  %3841 = vmatpush1.bf16.msra.mxu0 0
  %3842 = vmatprep.subr.bf16.mxu0 0
  %3843 = vmatpush1.bf16.msra.mxu0 0
  %3844 = vmatprep.subr.bf16.mxu0 0
  %3845 = vmatpush1.bf16.msra.mxu0 0
  %3846 = vmatprep.subr.bf16.mxu0 0
  %3847 = vmatpush1.bf16.msra.mxu0 0
  %3848 = vmatprep.subr.bf16.mxu0 0
  %3849 = vmatpush1.bf16.msra.mxu0 0
  %3850 = vmatprep.subr.bf16.mxu0 0
  %3851 = vmatpush1.bf16.msra.mxu0 0
  %3852 = vmatprep.subr.bf16.mxu0 0
  %3853 = vmatpush1.bf16.msra.mxu0 0
  %3854 = vmatprep.subr.bf16.mxu0 0
  %3855 = vmatpush1.bf16.msra.mxu0 0
  %3856 = vmatprep.subr.bf16.mxu0 0
  %3857 = vmatpush1.bf16.msra.mxu0 0
  %3858 = vmatprep.subr.bf16.mxu0 0
  %3859 = vmatpush1.bf16.msra.mxu0 0
  %3860 = vmatprep.subr.bf16.mxu0 0
  %3861 = vmatpush1.bf16.msra.mxu0 0
  %3862 = vmatprep.subr.bf16.mxu0 0
  %3863 = vmatpush1.bf16.msra.mxu0 0
  %3864 = vmatprep.mubr.bf16.mxu0 0
  %3865 = vmatmul.mubr.bf16.gmra.mrb[0].mxu0 %v3830
  %v3866 = vpop.f32.mrb[0].mxu0
  %v3867 = vadd.f32 %v3815, %v3866
  %v3868 = vpop.f32.mrb[0].mxu0
  %v3869 = vpop.f32.mrb[0].mxu0
  %v3870 = vadd.f32 %v3815, %v3869
  %v3871 = vpop.f32.mrb[0].mxu0
  %3872 = vdwg.mxu0
  %s3873 = scalar_lea.vmem %s10, 16
  %v3874 = vld [vmem:[%s3873] sm:$0xf]
  %v3875 = vld [vmem:[%s3873 + $0x4] sm:$0xf]
  %v3876 = vld [vmem:[%s3873 + $0x8] sm:$0xf]
  %v3877 = vld [vmem:[%s3873 + $0xc] sm:$0xf]
  %s3878 = scalar_lea.vmem %s11, 1
  %v3879 = vld [vmem:[%s3878] sm:$0x1]
  %v3881 = vlaneseq
  %v3882 = vshrl.u32 %v3881, 7
  %v3883 = vsub.s32 0, %v3882
  %v3884 = vrot.slane %v3879, %v3883
  %v3890 = vunpack.c.l.b16 %v3874
  %v3891 = vunpack.c.l.b16 %v3875
  %v3892 = vunpack.c.l.b16 %v3876
  %v3893 = vunpack.c.l.b16 %v3877
  %v3894 = vpack.c.b16 %v3891, %v3890
  %v3895 = vpack.c.b16 %v3893, %v3892
  %3898 = vmatprep.subr.bf16.mxu0 0
  %3899 = vmatpush1.bf16.msra.mxu0 %v3894
  %3900 = vmatprep.subr.bf16.mxu0 0
  %3901 = vmatpush1.bf16.msra.mxu0 %v3895
  %3902 = vmatprep.subr.bf16.mxu0 0
  %3903 = vmatpush1.bf16.msra.mxu0 0
  %3904 = vmatprep.subr.bf16.mxu0 0
  %3905 = vmatpush1.bf16.msra.mxu0 0
  %3906 = vmatprep.subr.bf16.mxu0 0
  %3907 = vmatpush1.bf16.msra.mxu0 0
  %3908 = vmatprep.subr.bf16.mxu0 0
  %3909 = vmatpush1.bf16.msra.mxu0 0
  %3910 = vmatprep.subr.bf16.mxu0 0
  %3911 = vmatpush1.bf16.msra.mxu0 0
  %3912 = vmatprep.subr.bf16.mxu0 0
  %3913 = vmatpush1.bf16.msra.mxu0 0
  %3914 = vmatprep.subr.bf16.mxu0 0
  %3915 = vmatpush1.bf16.msra.mxu0 0
  %3916 = vmatprep.subr.bf16.mxu0 0
  %3917 = vmatpush1.bf16.msra.mxu0 0
  %3918 = vmatprep.subr.bf16.mxu0 0
  %3919 = vmatpush1.bf16.msra.mxu0 0
  %3920 = vmatprep.subr.bf16.mxu0 0
  %3921 = vmatpush1.bf16.msra.mxu0 0
  %3922 = vmatprep.subr.bf16.mxu0 0
  %3923 = vmatpush1.bf16.msra.mxu0 0
  %3924 = vmatprep.subr.bf16.mxu0 0
  %3925 = vmatpush1.bf16.msra.mxu0 0
  %3926 = vmatprep.subr.bf16.mxu0 0
  %3927 = vmatpush1.bf16.msra.mxu0 0
  %3928 = vmatprep.subr.bf16.mxu0 0
  %3929 = vmatpush1.bf16.msra.mxu0 0
  %3930 = vmatprep.mubr.bf16.mxu0 0
  %3931 = vmatmul.mubr.bf16.gmra.mrb[0].mxu0 %v704
  %v3932 = vpop.f32.mrb[0].mxu0
  %v3933 = vadd.f32 %v3884, %v3932
  %v3934 = vpop.f32.mrb[0].mxu0
  %v3935 = vpop.f32.mrb[0].mxu0
  %v3936 = vadd.f32 %v3884, %v3935
  %v3937 = vpop.f32.mrb[0].mxu0
  %3938 = vmatprep.mubr.bf16.mxu0 0
  %3939 = vmatmul.mubr.bf16.gmra.mrb[0].mxu0 %v707
  %v3940 = vpop.f32.mrb[0].mxu0
  %v3941 = vadd.f32 %v3884, %v3940
  %v3942 = vpop.f32.mrb[0].mxu0
  %v3943 = vpop.f32.mrb[0].mxu0
  %v3944 = vadd.f32 %v3884, %v3943
  %v3945 = vpop.f32.mrb[0].mxu0
  %3946 = vdwg.mxu0
  %s3947 = scalar_lea.vmem %s12, 16
  %v3948 = vld [vmem:[%s3947] sm:$0xf]
  %v3949 = vld [vmem:[%s3947 + $0x4] sm:$0xf]
  %v3950 = vld [vmem:[%s3947 + $0x8] sm:$0xf]
  %v3951 = vld [vmem:[%s3947 + $0xc] sm:$0xf]
  %s3952 = scalar_lea.vmem %s13, 1
  %v3953 = vld [vmem:[%s3952] sm:$0x1]
  %v3954 = vpack.c.bf16 %v3870, %v3867
  %v3955 = vpack.c.bf16 %v3936, %v3933
  %v3956 = vpack.c.bf16 %v3944, %v3941
  %3958 = vrot.lane.b32.xlu0 %v3954, 120
  %v3959 = vpop.permute.xlu0 %3958
  %3960 = vrot.lane.b32.xlu0 %v3954, 112
  %v3961 = vpop.permute.xlu0 %3960
  %3962 = vrot.lane.b32.xlu0 %v3954, 104
  %v3963 = vpop.permute.xlu0 %3962
  %3966 = vrot.lane.b32.xlu0 %v3955, 120
  %v3967 = vpop.permute.xlu0 %3966
  %3968 = vrot.lane.b32.xlu0 %v3956, 120
  %v3969 = vpop.permute.xlu0 %3968
  %3970 = vrot.lane.b32.xlu0 %v3955, 112
  %v3971 = vpop.permute.xlu0 %3970
  %3972 = vrot.lane.b32.xlu0 %v3956, 112
  %v3973 = vpop.permute.xlu0 %3972
  %3974 = vrot.lane.b32.xlu0 %v3955, 104
  %v3975 = vpop.permute.xlu0 %3974
  %3976 = vrot.lane.b32.xlu0 %v3956, 104
  %v3977 = vpop.permute.xlu0 %3976
  %v3979 = vsel %vm186, %v3954, 0
  %v3982 = vsel %vm186, %v3959, 0
  %v3985 = vsel %vm186, %v3961, 0
  %v3988 = vsel %vm186, %v3963, 0
  %v3991 = vsel %vm186, %v3955, 0
  %v3994 = vsel %vm186, %v3956, 0
  %v3997 = vsel %vm186, %v3967, 0
  %v4000 = vsel %vm186, %v3969, 0
  %v4003 = vsel %vm186, %v3971, 0
  %v4006 = vsel %vm186, %v3973, 0
  %v4009 = vsel %vm186, %v3975, 0
  %v4012 = vsel %vm186, %v3977, 0
  %4014 = vmatprep.subr.bf16.mxu0 0
  %4015 = vmatpush1.bf16.xpose.msra.mxu0 %v3991
  %4016 = vmatprep.subr.bf16.mxu0 0
  %4017 = vmatpush1.bf16.xpose.msra.mxu0 %v3994
  %4018 = vmatprep.subr.bf16.mxu0 0
  %4019 = vmatpush1.bf16.xpose.msra.mxu0 %v3997
  %4020 = vmatprep.subr.bf16.mxu0 0
  %4021 = vmatpush1.bf16.xpose.msra.mxu0 %v4000
  %4022 = vmatprep.subr.bf16.mxu0 0
  %4023 = vmatpush1.bf16.xpose.msra.mxu0 %v4003
  %4024 = vmatprep.subr.bf16.mxu0 0
  %4025 = vmatpush1.bf16.xpose.msra.mxu0 %v4006
  %4026 = vmatprep.subr.bf16.mxu0 0
  %4027 = vmatpush1.bf16.xpose.msra.mxu0 %v4009
  %4028 = vmatprep.subr.bf16.mxu0 0
  %4029 = vmatpush1.bf16.xpose.msra.mxu0 %v4012
  %4030 = vmatprep.subr.bf16.mxu0 0
  %4031 = vmatpush1.bf16.xpose.msra.mxu0 0
  %4032 = vmatprep.subr.bf16.mxu0 0
  %4033 = vmatpush1.bf16.xpose.msra.mxu0 0
  %4034 = vmatprep.subr.bf16.mxu0 0
  %4035 = vmatpush1.bf16.xpose.msra.mxu0 0
  %4036 = vmatprep.subr.bf16.mxu0 0
  %4037 = vmatpush1.bf16.xpose.msra.mxu0 0
  %4038 = vmatprep.subr.bf16.mxu0 0
  %4039 = vmatpush1.bf16.xpose.msra.mxu0 0
  %4040 = vmatprep.subr.bf16.mxu0 0
  %4041 = vmatpush1.bf16.xpose.msra.mxu0 0
  %4042 = vmatprep.subr.bf16.mxu0 0
  %4043 = vmatpush1.bf16.xpose.msra.mxu0 0
  %4044 = vmatprep.subr.bf16.mxu0 0
  %4045 = vmatpush1.bf16.xpose.msra.mxu0 0
  %4046 = vmatprep.mubr.bf16.mxu0 0
  %4047 = vmatmul.mubr.bf16.gmra.mrb[0].mxu0 %v3979
  %v4048 = vpop.f32.mrb[0].mxu0
  %v4049 = vadd.f32 0.0, %v4048
  %v4050 = vpop.f32.mrb[0].mxu0
  %v4051 = vpop.f32.mrb[0].mxu0
  %v4052 = vadd.f32 0.0, %v4051
  %v4053 = vpop.f32.mrb[0].mxu0
  %4054 = vmatprep.mubr.bf16.mxu0 0
  %4055 = vmatmul.mubr.bf16.gmra.mrb[0].mxu0 %v3982
  %v4056 = vpop.f32.mrb[0].mxu0
  %v4057 = vadd.f32 0.0, %v4056
  %v4058 = vpop.f32.mrb[0].mxu0
  %v4059 = vpop.f32.mrb[0].mxu0
  %v4060 = vadd.f32 0.0, %v4059
  %v4061 = vpop.f32.mrb[0].mxu0
  %4062 = vmatprep.mubr.bf16.mxu0 0
  %4063 = vmatmul.mubr.bf16.gmra.mrb[0].mxu0 %v3985
  %v4064 = vpop.f32.mrb[0].mxu0
  %v4065 = vadd.f32 0.0, %v4064
  %v4066 = vpop.f32.mrb[0].mxu0
  %v4067 = vpop.f32.mrb[0].mxu0
  %v4068 = vadd.f32 0.0, %v4067
  %v4069 = vpop.f32.mrb[0].mxu0
  %4070 = vmatprep.mubr.bf16.mxu0 0
  %4071 = vmatmul.mubr.bf16.gmra.mrb[0].mxu0 %v3988
  %v4072 = vpop.f32.mrb[0].mxu0
  %v4073 = vadd.f32 0.0, %v4072
  %v4074 = vpop.f32.mrb[0].mxu0
  %v4075 = vpop.f32.mrb[0].mxu0
  %v4076 = vadd.f32 0.0, %v4075
  %v4077 = vpop.f32.mrb[0].mxu0
  %4078 = vdwg.mxu0
  %v4079 = vmul.f32 %v4049, 0.35355338
  %v4080 = vmul.f32 %v4052, 0.35355338
  %v4081 = vmul.f32 %v4057, 0.35355338
  %v4082 = vmul.f32 %v4060, 0.35355338
  %v4083 = vmul.f32 %v4065, 0.35355338
  %v4084 = vmul.f32 %v4068, 0.35355338
  %v4085 = vmul.f32 %v4073, 0.35355338
  %v4086 = vmul.f32 %v4076, 0.35355338
  %v4087 = vadd.f32 %v4079, %v80
  %v4088 = vadd.f32 %v4080, %v81
  %v4089 = vadd.f32 %v4081, %v82
  %v4090 = vadd.f32 %v4082, %v83
  %v4091 = vadd.f32 %v4083, %v84
  %v4092 = vadd.f32 %v4084, %v85
  %v4093 = vadd.f32 %v4085, %v86
  %v4094 = vadd.f32 %v4086, %v87
  %4095 = vmax.xlane.f32.xlu0 %v4087
  %v4096 = vpop.xlane.xlu0 %4095
  %4097 = vmax.xlane.f32.xlu0 %v4088
  %v4098 = vpop.xlane.xlu0 %4097
  %4099 = vmax.xlane.f32.xlu0 %v4089
  %v4100 = vpop.xlane.xlu0 %4099
  %4101 = vmax.xlane.f32.xlu0 %v4090
  %v4102 = vpop.xlane.xlu0 %4101
  %4103 = vmax.xlane.f32.xlu0 %v4091
  %v4104 = vpop.xlane.xlu0 %4103
  %4105 = vmax.xlane.f32.xlu0 %v4092
  %v4106 = vpop.xlane.xlu0 %4105
  %4107 = vmax.xlane.f32.xlu0 %v4093
  %v4108 = vpop.xlane.xlu0 %4107
  %4109 = vmax.xlane.f32.xlu0 %v4094
  %v4110 = vpop.xlane.xlu0 %4109
  %v4111 = vsub.f32 %v4087, %v4096
  %v4112 = vsub.f32 %v4088, %v4098
  %v4113 = vsub.f32 %v4089, %v4100
  %v4114 = vsub.f32 %v4090, %v4102
  %v4115 = vsub.f32 %v4091, %v4104
  %v4116 = vsub.f32 %v4092, %v4106
  %v4117 = vsub.f32 %v4093, %v4108
  %v4118 = vsub.f32 %v4094, %v4110
  %v4119 = vmul.f32 %v4111, 1.442695
  %v4120 = vpow.pop %v4119
  %v4121 = vmul.f32 %v4112, 1.442695
  %v4122 = vpow.pop %v4121
  %v4123 = vmul.f32 %v4113, 1.442695
  %v4124 = vpow.pop %v4123
  %v4125 = vmul.f32 %v4114, 1.442695
  %v4126 = vpow.pop %v4125
  %v4127 = vmul.f32 %v4115, 1.442695
  %v4128 = vpow.pop %v4127
  %v4129 = vmul.f32 %v4116, 1.442695
  %v4130 = vpow.pop %v4129
  %v4131 = vmul.f32 %v4117, 1.442695
  %v4132 = vpow.pop %v4131
  %v4133 = vmul.f32 %v4118, 1.442695
  %v4134 = vpow.pop %v4133
  %4135 = vadd.xlane.f32.xlu0 %v4120
  %v4136 = vpop.xlane.xlu0 %4135
  %4137 = vadd.xlane.f32.xlu0 %v4122
  %v4138 = vpop.xlane.xlu0 %4137
  %4139 = vadd.xlane.f32.xlu0 %v4124
  %v4140 = vpop.xlane.xlu0 %4139
  %4141 = vadd.xlane.f32.xlu0 %v4126
  %v4142 = vpop.xlane.xlu0 %4141
  %4143 = vadd.xlane.f32.xlu0 %v4128
  %v4144 = vpop.xlane.xlu0 %4143
  %4145 = vadd.xlane.f32.xlu0 %v4130
  %v4146 = vpop.xlane.xlu0 %4145
  %4147 = vadd.xlane.f32.xlu0 %v4132
  %v4148 = vpop.xlane.xlu0 %4147
  %4149 = vadd.xlane.f32.xlu0 %v4134
  %v4150 = vpop.xlane.xlu0 %4149
  %v4151 = vrcp.pop %v4136
  %v4152 = vrcp.pop %v4138
  %v4153 = vrcp.pop %v4140
  %v4154 = vrcp.pop %v4142
  %v4155 = vrcp.pop %v4144
  %v4156 = vrcp.pop %v4146
  %v4157 = vrcp.pop %v4148
  %v4158 = vrcp.pop %v4150
  %v4159 = vmul.f32 %v4120, %v4151
  %v4160 = vmul.f32 %v4122, %v4152
  %v4161 = vmul.f32 %v4124, %v4153
  %v4162 = vmul.f32 %v4126, %v4154
  %v4163 = vmul.f32 %v4128, %v4155
  %v4164 = vmul.f32 %v4130, %v4156
  %v4165 = vmul.f32 %v4132, %v4157
  %v4166 = vmul.f32 %v4134, %v4158
  %v4167 = vpack.c.bf16 %v4160, %v4159
  %v4168 = vpack.c.bf16 %v4162, %v4161
  %v4169 = vpack.c.bf16 %v4164, %v4163
  %v4170 = vpack.c.bf16 %v4166, %v4165
  %4171 = vrot.lane.b32.xlu0 %v3955, 96
  %v4172 = vpop.permute.xlu0 %4171
  %4173 = vrot.lane.b32.xlu0 %v3956, 96
  %v4174 = vpop.permute.xlu0 %4173
  %4175 = vrot.lane.b32.xlu0 %v3967, 96
  %v4176 = vpop.permute.xlu0 %4175
  %4177 = vrot.lane.b32.xlu0 %v3969, 96
  %v4178 = vpop.permute.xlu0 %4177
  %4179 = vrot.lane.b32.xlu0 %v3971, 96
  %v4180 = vpop.permute.xlu0 %4179
  %4181 = vrot.lane.b32.xlu0 %v3973, 96
  %v4182 = vpop.permute.xlu0 %4181
  %4183 = vrot.lane.b32.xlu0 %v3975, 96
  %v4184 = vpop.permute.xlu0 %4183
  %4185 = vrot.lane.b32.xlu0 %v3977, 96
  %v4186 = vpop.permute.xlu0 %4185
  %4195 = vmatprep.subr.bf16.mxu0 0
  %4196 = vmatpush1.bf16.msra.mxu0 %v4172
  %4197 = vmatprep.subr.bf16.mxu0 0
  %4198 = vmatpush1.bf16.msra.mxu0 %v4174
  %4199 = vmatprep.subr.bf16.mxu0 0
  %4200 = vmatpush1.bf16.msra.mxu0 %v4176
  %4201 = vmatprep.subr.bf16.mxu0 0
  %4202 = vmatpush1.bf16.msra.mxu0 %v4178
  %4203 = vmatprep.subr.bf16.mxu0 0
  %4204 = vmatpush1.bf16.msra.mxu0 %v4180
  %4205 = vmatprep.subr.bf16.mxu0 0
  %4206 = vmatpush1.bf16.msra.mxu0 %v4182
  %4207 = vmatprep.subr.bf16.mxu0 0
  %4208 = vmatpush1.bf16.msra.mxu0 %v4184
  %4209 = vmatprep.subr.bf16.mxu0 0
  %4210 = vmatpush1.bf16.msra.mxu0 %v4186
  %4211 = vmatprep.subr.bf16.mxu0 0
  %4212 = vmatpush1.bf16.msra.mxu0 0
  %4213 = vmatprep.subr.bf16.mxu0 0
  %4214 = vmatpush1.bf16.msra.mxu0 0
  %4215 = vmatprep.subr.bf16.mxu0 0
  %4216 = vmatpush1.bf16.msra.mxu0 0
  %4217 = vmatprep.subr.bf16.mxu0 0
  %4218 = vmatpush1.bf16.msra.mxu0 0
  %4219 = vmatprep.subr.bf16.mxu0 0
  %4220 = vmatpush1.bf16.msra.mxu0 0
  %4221 = vmatprep.subr.bf16.mxu0 0
  %4222 = vmatpush1.bf16.msra.mxu0 0
  %4223 = vmatprep.subr.bf16.mxu0 0
  %4224 = vmatpush1.bf16.msra.mxu0 0
  %4225 = vmatprep.subr.bf16.mxu0 0
  %4226 = vmatpush1.bf16.msra.mxu0 0
  %4227 = vmatprep.mubr.bf16.mxu0 0
  %4228 = vmatmul.mubr.bf16.gmra.mrb[0].mxu0 %v4167
  %v4229 = vpop.f32.mrb[0].mxu0
  %v4230 = vadd.f32 0.0, %v4229
  %v4231 = vpop.f32.mrb[0].mxu0
  %v4232 = vpop.f32.mrb[0].mxu0
  %v4233 = vadd.f32 0.0, %v4232
  %v4234 = vpop.f32.mrb[0].mxu0
  %4235 = vmatprep.mubr.bf16.mxu0 0
  %4236 = vmatmul.mubr.bf16.gmra.mrb[0].mxu0 %v4168
  %v4237 = vpop.f32.mrb[0].mxu0
  %v4238 = vadd.f32 0.0, %v4237
  %v4239 = vpop.f32.mrb[0].mxu0
  %v4240 = vpop.f32.mrb[0].mxu0
  %v4241 = vadd.f32 0.0, %v4240
  %v4242 = vpop.f32.mrb[0].mxu0
  %4243 = vmatprep.mubr.bf16.mxu0 0
  %4244 = vmatmul.mubr.bf16.gmra.mrb[0].mxu0 %v4169
  %v4245 = vpop.f32.mrb[0].mxu0
  %v4246 = vadd.f32 0.0, %v4245
  %v4247 = vpop.f32.mrb[0].mxu0
  %v4248 = vpop.f32.mrb[0].mxu0
  %v4249 = vadd.f32 0.0, %v4248
  %v4250 = vpop.f32.mrb[0].mxu0
  %4251 = vmatprep.mubr.bf16.mxu0 0
  %4252 = vmatmul.mubr.bf16.gmra.mrb[0].mxu0 %v4170
  %v4253 = vpop.f32.mrb[0].mxu0
  %v4254 = vadd.f32 0.0, %v4253
  %v4255 = vpop.f32.mrb[0].mxu0
  %v4256 = vpop.f32.mrb[0].mxu0
  %v4257 = vadd.f32 0.0, %v4256
  %v4258 = vpop.f32.mrb[0].mxu0
  %4259 = vdwg.mxu0
  %4262 = vrot.lane.b32.xlu0 %v4238, 8
  %v4263 = vpop.permute.xlu0 %4262
  %4264 = vrot.lane.b32.xlu0 %v4241, 8
  %v4265 = vpop.permute.xlu0 %4264
  %4270 = vrot.lane.b32.xlu0 %v4246, 16
  %v4271 = vpop.permute.xlu0 %4270
  %4272 = vrot.lane.b32.xlu0 %v4249, 16
  %v4273 = vpop.permute.xlu0 %4272
  %4278 = vrot.lane.b32.xlu0 %v4254, 24
  %v4279 = vpop.permute.xlu0 %4278
  %4280 = vrot.lane.b32.xlu0 %v4257, 24
  %v4281 = vpop.permute.xlu0 %4280
  %v4284 = vsel %vm186, %v4230, %v4263
  %v4285 = vsel %vm186, %v4233, %v4265
  %v4286 = vsel %vm500, %v4284, %v4271
  %v4287 = vsel %vm500, %v4285, %v4273
  %v4288 = vsel %vm503, %v4286, %v4279
  %v4289 = vsel %vm503, %v4287, %v4281
  %v4290 = vpack.c.bf16 %v4289, %v4288
  %v4292 = vlaneseq
  %v4293 = vshrl.u32 %v4292, 7
  %v4294 = vsub.s32 0, %v4293
  %v4295 = vrot.slane %v3953, %v4294
  %v4301 = vunpack.c.l.b16 %v3948
  %v4302 = vunpack.c.l.b16 %v3949
  %v4303 = vunpack.c.l.b16 %v3950
  %v4304 = vunpack.c.l.b16 %v3951
  %v4305 = vpack.c.b16 %v4302, %v4301
  %v4306 = vpack.c.b16 %v4304, %v4303
  %v4310 = vsel %vm120, %v4290, 0
  %4312 = vmatprep.subr.bf16.mxu0 0
  %4313 = vmatpush1.bf16.msra.mxu0 %v4305
  %4314 = vmatprep.subr.bf16.mxu0 0
  %4315 = vmatpush1.bf16.msra.mxu0 %v4306
  %4316 = vmatprep.subr.bf16.mxu0 0
  %4317 = vmatpush1.bf16.msra.mxu0 0
  %4318 = vmatprep.subr.bf16.mxu0 0
  %4319 = vmatpush1.bf16.msra.mxu0 0
  %4320 = vmatprep.subr.bf16.mxu0 0
  %4321 = vmatpush1.bf16.msra.mxu0 0
  %4322 = vmatprep.subr.bf16.mxu0 0
  %4323 = vmatpush1.bf16.msra.mxu0 0
  %4324 = vmatprep.subr.bf16.mxu0 0
  %4325 = vmatpush1.bf16.msra.mxu0 0
  %4326 = vmatprep.subr.bf16.mxu0 0
  %4327 = vmatpush1.bf16.msra.mxu0 0
  %4328 = vmatprep.subr.bf16.mxu0 0
  %4329 = vmatpush1.bf16.msra.mxu0 0
  %4330 = vmatprep.subr.bf16.mxu0 0
  %4331 = vmatpush1.bf16.msra.mxu0 0
  %4332 = vmatprep.subr.bf16.mxu0 0
  %4333 = vmatpush1.bf16.msra.mxu0 0
  %4334 = vmatprep.subr.bf16.mxu0 0
  %4335 = vmatpush1.bf16.msra.mxu0 0
  %4336 = vmatprep.subr.bf16.mxu0 0
  %4337 = vmatpush1.bf16.msra.mxu0 0
  %4338 = vmatprep.subr.bf16.mxu0 0
  %4339 = vmatpush1.bf16.msra.mxu0 0
  %4340 = vmatprep.subr.bf16.mxu0 0
  %4341 = vmatpush1.bf16.msra.mxu0 0
  %4342 = vmatprep.subr.bf16.mxu0 0
  %4343 = vmatpush1.bf16.msra.mxu0 0
  %4344 = vmatprep.mubr.bf16.mxu0 0
  %4345 = vmatmul.mubr.bf16.gmra.mrb[0].mxu0 %v4310
  %v4346 = vpop.f32.mrb[0].mxu0
  %v4347 = vadd.f32 %v4295, %v4346
  %v4348 = vpop.f32.mrb[0].mxu0
  %v4349 = vpop.f32.mrb[0].mxu0
  %v4350 = vadd.f32 %v4295, %v4349
  %v4351 = vpop.f32.mrb[0].mxu0
  %4352 = vdwg.mxu0
  %v4353 = vadd.f32 %v3801, %v4347
  %v4354 = vadd.f32 %v3802, %v4350
  %v4355 = vld [vmem:[%s3761 + $0x1] sm:$0x1]
  %v4356 = vld [vmem:[%s3763 + $0x1] sm:$0x1]
  %v4357 = vsel %vm120, %v4353, 0.0
  %4358 = vadd.xlane.f32.xlu0 %v4357
  %v4359 = vpop.xlane.xlu0 %4358
  %v4360 = vsel %vm120, %v4354, 0.0
  %4361 = vadd.xlane.f32.xlu0 %v4360
  %v4362 = vpop.xlane.xlu0 %4361
  %v4363 = vmul.f32 %v4359, %v579
  %v4364 = vmul.f32 %v4362, %v579
  %v4365 = vsub.f32 %v4353, %v4363
  %v4366 = vsub.f32 %v4354, %v4364
  %v4367 = vmul.f32 %v4365, %v4365
  %v4368 = vmul.f32 %v4366, %v4366
  %v4369 = vsel %vm120, %v4367, 0.0
  %4370 = vadd.xlane.f32.xlu0 %v4369
  %v4371 = vpop.xlane.xlu0 %4370
  %v4372 = vsel %vm120, %v4368, 0.0
  %4373 = vadd.xlane.f32.xlu0 %v4372
  %v4374 = vpop.xlane.xlu0 %4373
  %v4375 = vmul.f32 %v4371, %v579
  %v4376 = vmul.f32 %v4374, %v579
  %v4377 = vadd.f32 %v4375, 1e-05
  %v4378 = vadd.f32 %v4376, 1e-05
  %v4379 = vrsqrt.pop %v4377
  %v4380 = vrsqrt.pop %v4378
  %v4381 = vmul.f32 %v4365, %v4379
  %v4382 = vmul.f32 %v4366, %v4380
  %v4383 = vlaneseq
  %v4384 = vshrl.u32 %v4383, 7
  %v4385 = vsub.s32 0, %v4384
  %v4386 = vrot.slane %v4355, %v4385
  %v4387 = vmul.f32 %v4381, %v4386
  %v4388 = vmul.f32 %v4382, %v4386
  %v4389 = vlaneseq
  %v4390 = vshrl.u32 %v4389, 7
  %v4391 = vsub.s32 0, %v4390
  %v4392 = vrot.slane %v4356, %v4391
  %v4393 = vadd.f32 %v4387, %v4392
  %v4394 = vadd.f32 %v4388, %v4392
  %v4395 = vpack.c.bf16 %v4394, %v4393
  %s4396 = scalar_lea.vmem %s14, 256
  %v4397 = vld [vmem:[%s4396] sm:$0xff]
  %v4398 = vld [vmem:[%s4396 + $0x8] sm:$0xff]
  %v4399 = vld [vmem:[%s4396 + $0x40] sm:$0xff]
  %v4400 = vld [vmem:[%s4396 + $0x48] sm:$0xff]
  %v4401 = vld [vmem:[%s4396 + $0x80] sm:$0xff]
  %v4402 = vld [vmem:[%s4396 + $0x88] sm:$0xff]
  %v4403 = vld [vmem:[%s4396 + $0xc0] sm:$0xff]
  %v4404 = vld [vmem:[%s4396 + $0xc8] sm:$0xff]
  %s4405 = scalar_lea.vmem %s15, 16
  %v4406 = vld [vmem:[%s4405] sm:$0xf]
  %v4408 = vlaneseq
  %v4409 = vshrl.u32 %v4408, 7
  %v4410 = vsub.s32 0, %v4409
  %v4411 = vrot.slane %v4406, %v4410
  %v4412 = vlaneseq
  %v4413 = vshrl.u32 %v4412, 7
  %v4414 = vsub.s32 1, %v4413
  %v4415 = vrot.slane %v4406, %v4414
  %v4416 = vlaneseq
  %v4417 = vshrl.u32 %v4416, 7
  %v4418 = vsub.s32 2, %v4417
  %v4419 = vrot.slane %v4406, %v4418
  %v4420 = vlaneseq
  %v4421 = vshrl.u32 %v4420, 7
  %v4422 = vsub.s32 3, %v4421
  %v4423 = vrot.slane %v4406, %v4422
  %v4436 = vunpack.c.l.b16 %v4397
  %v4437 = vunpack.c.h.b16 %v4397
  %v4438 = vunpack.c.l.b16 %v4398
  %v4439 = vunpack.c.h.b16 %v4398
  %v4440 = vunpack.c.l.b16 %v4399
  %v4441 = vunpack.c.h.b16 %v4399
  %v4442 = vunpack.c.l.b16 %v4400
  %v4443 = vunpack.c.h.b16 %v4400
  %v4444 = vunpack.c.l.b16 %v4401
  %v4445 = vunpack.c.h.b16 %v4401
  %v4446 = vunpack.c.l.b16 %v4402
  %v4447 = vunpack.c.h.b16 %v4402
  %v4448 = vunpack.c.l.b16 %v4403
  %v4449 = vunpack.c.h.b16 %v4403
  %v4450 = vunpack.c.l.b16 %v4404
  %v4451 = vunpack.c.h.b16 %v4404
  %v4452 = vpack.c.b16 %v4440, %v4436
  %v4453 = vpack.c.b16 %v4441, %v4437
  %v4454 = vpack.c.b16 %v4442, %v4438
  %v4455 = vpack.c.b16 %v4443, %v4439
  %v4456 = vpack.c.b16 %v4448, %v4444
  %v4457 = vpack.c.b16 %v4449, %v4445
  %v4458 = vpack.c.b16 %v4450, %v4446
  %v4459 = vpack.c.b16 %v4451, %v4447
  %v4469 = vsel %vm120, %v4395, 0
  %4471 = vmatprep.subr.bf16.mxu0 %v4453
  %4472 = vmatpush1.bf16.msra.mxu0 %v4452
  %4473 = vmatprep.subr.bf16.mxu0 %v4457
  %4474 = vmatpush1.bf16.msra.mxu0 %v4456
  %4475 = vmatprep.subr.bf16.mxu0 0
  %4476 = vmatpush1.bf16.msra.mxu0 0
  %4477 = vmatprep.subr.bf16.mxu0 0
  %4478 = vmatpush1.bf16.msra.mxu0 0
  %4479 = vmatprep.subr.bf16.mxu0 0
  %4480 = vmatpush1.bf16.msra.mxu0 0
  %4481 = vmatprep.subr.bf16.mxu0 0
  %4482 = vmatpush1.bf16.msra.mxu0 0
  %4483 = vmatprep.subr.bf16.mxu0 0
  %4484 = vmatpush1.bf16.msra.mxu0 0
  %4485 = vmatprep.subr.bf16.mxu0 0
  %4486 = vmatpush1.bf16.msra.mxu0 0
  %4487 = vmatprep.subr.bf16.mxu0 0
  %4488 = vmatpush1.bf16.msra.mxu0 0
  %4489 = vmatprep.subr.bf16.mxu0 0
  %4490 = vmatpush1.bf16.msra.mxu0 0
  %4491 = vmatprep.subr.bf16.mxu0 0
  %4492 = vmatpush1.bf16.msra.mxu0 0
  %4493 = vmatprep.subr.bf16.mxu0 0
  %4494 = vmatpush1.bf16.msra.mxu0 0
  %4495 = vmatprep.subr.bf16.mxu0 0
  %4496 = vmatpush1.bf16.msra.mxu0 0
  %4497 = vmatprep.subr.bf16.mxu0 0
  %4498 = vmatpush1.bf16.msra.mxu0 0
  %4499 = vmatprep.subr.bf16.mxu0 0
  %4500 = vmatpush1.bf16.msra.mxu0 0
  %4501 = vmatprep.subr.bf16.mxu0 0
  %4502 = vmatpush1.bf16.msra.mxu0 0
  %4503 = vmatprep.mubr.bf16.mxu0 0
  %4504 = vmatmul.mubr.bf16.gmra.mrb[0].mxu0 %v4469
  %v4505 = vpop.f32.mrb[0].mxu0
  %v4506 = vadd.f32 %v4411, %v4505
  %v4507 = vpop.f32.mrb[0].mxu0
  %v4508 = vadd.f32 %v4415, %v4507
  %v4509 = vpop.f32.mrb[0].mxu0
  %v4510 = vadd.f32 %v4411, %v4509
  %v4511 = vpop.f32.mrb[0].mxu0
  %v4512 = vadd.f32 %v4415, %v4511
  %4513 = vdwg.mxu0
  %4514 = vmatprep.subr.bf16.mxu0 %v4455
  %4515 = vmatpush1.bf16.msra.mxu0 %v4454
  %4516 = vmatprep.subr.bf16.mxu0 %v4459
  %4517 = vmatpush1.bf16.msra.mxu0 %v4458
  %4518 = vmatprep.subr.bf16.mxu0 0
  %4519 = vmatpush1.bf16.msra.mxu0 0
  %4520 = vmatprep.subr.bf16.mxu0 0
  %4521 = vmatpush1.bf16.msra.mxu0 0
  %4522 = vmatprep.subr.bf16.mxu0 0
  %4523 = vmatpush1.bf16.msra.mxu0 0
  %4524 = vmatprep.subr.bf16.mxu0 0
  %4525 = vmatpush1.bf16.msra.mxu0 0
  %4526 = vmatprep.subr.bf16.mxu0 0
  %4527 = vmatpush1.bf16.msra.mxu0 0
  %4528 = vmatprep.subr.bf16.mxu0 0
  %4529 = vmatpush1.bf16.msra.mxu0 0
  %4530 = vmatprep.subr.bf16.mxu0 0
  %4531 = vmatpush1.bf16.msra.mxu0 0
  %4532 = vmatprep.subr.bf16.mxu0 0
  %4533 = vmatpush1.bf16.msra.mxu0 0
  %4534 = vmatprep.subr.bf16.mxu0 0
  %4535 = vmatpush1.bf16.msra.mxu0 0
  %4536 = vmatprep.subr.bf16.mxu0 0
  %4537 = vmatpush1.bf16.msra.mxu0 0
  %4538 = vmatprep.subr.bf16.mxu0 0
  %4539 = vmatpush1.bf16.msra.mxu0 0
  %4540 = vmatprep.subr.bf16.mxu0 0
  %4541 = vmatpush1.bf16.msra.mxu0 0
  %4542 = vmatprep.subr.bf16.mxu0 0
  %4543 = vmatpush1.bf16.msra.mxu0 0
  %4544 = vmatprep.subr.bf16.mxu0 0
  %4545 = vmatpush1.bf16.msra.mxu0 0
  %4546 = vmatprep.mubr.bf16.mxu0 0
  %4547 = vmatmul.mubr.bf16.gmra.mrb[0].mxu0 %v4469
  %v4548 = vpop.f32.mrb[0].mxu0
  %v4549 = vadd.f32 %v4419, %v4548
  %v4550 = vpop.f32.mrb[0].mxu0
  %v4551 = vadd.f32 %v4423, %v4550
  %v4552 = vpop.f32.mrb[0].mxu0
  %v4553 = vadd.f32 %v4419, %v4552
  %v4554 = vpop.f32.mrb[0].mxu0
  %v4555 = vadd.f32 %v4423, %v4554
  %4556 = vdwg.mxu0
  %v4557 = vmax.f32 %v4506, 0.0
  %v4558 = vmax.f32 %v4508, 0.0
  %v4559 = vmax.f32 %v4549, 0.0
  %v4560 = vmax.f32 %v4551, 0.0
  %v4561 = vmax.f32 %v4510, 0.0
  %v4562 = vmax.f32 %v4512, 0.0
  %v4563 = vmax.f32 %v4553, 0.0
  %v4564 = vmax.f32 %v4555, 0.0
  %v4565 = vpack.c.bf16 %v4561, %v4557
  %v4566 = vpack.c.bf16 %v4562, %v4558
  %v4567 = vpack.c.bf16 %v4563, %v4559
  %v4568 = vpack.c.bf16 %v4564, %v4560
  %s4569 = scalar_lea.vmem %s16, 1024
  %v4570 = vld [vmem:[%s4569] sm:$0xf]
  %v4571 = vld [vmem:[%s4569 + $0x4] sm:$0xf]
  %v4572 = vld [vmem:[%s4569 + $0x8] sm:$0xf]
  %v4573 = vld [vmem:[%s4569 + $0xc] sm:$0xf]
  %v4574 = vld [vmem:[%s4569 + $0x10] sm:$0xf]
  %v4575 = vld [vmem:[%s4569 + $0x14] sm:$0xf]
  %v4576 = vld [vmem:[%s4569 + $0x18] sm:$0xf]
  %v4577 = vld [vmem:[%s4569 + $0x1c] sm:$0xf]
  %v4578 = vld [vmem:[%s4569 + $0x20] sm:$0xf]
  %v4579 = vld [vmem:[%s4569 + $0x24] sm:$0xf]
  %v4580 = vld [vmem:[%s4569 + $0x28] sm:$0xf]
  %v4581 = vld [vmem:[%s4569 + $0x2c] sm:$0xf]
  %v4582 = vld [vmem:[%s4569 + $0x30] sm:$0xf]
  %v4583 = vld [vmem:[%s4569 + $0x34] sm:$0xf]
  %v4584 = vld [vmem:[%s4569 + $0x38] sm:$0xf]
  %v4585 = vld [vmem:[%s4569 + $0x3c] sm:$0xf]
  %v4586 = vld [vmem:[%s4569 + $0x40] sm:$0xf]
  %v4587 = vld [vmem:[%s4569 + $0x44] sm:$0xf]
  %v4588 = vld [vmem:[%s4569 + $0x48] sm:$0xf]
  %v4589 = vld [vmem:[%s4569 + $0x4c] sm:$0xf]
  %v4590 = vld [vmem:[%s4569 + $0x50] sm:$0xf]
  %v4591 = vld [vmem:[%s4569 + $0x54] sm:$0xf]
  %v4592 = vld [vmem:[%s4569 + $0x58] sm:$0xf]
  %v4593 = vld [vmem:[%s4569 + $0x5c] sm:$0xf]
  %v4594 = vld [vmem:[%s4569 + $0x60] sm:$0xf]
  %v4595 = vld [vmem:[%s4569 + $0x64] sm:$0xf]
  %v4596 = vld [vmem:[%s4569 + $0x68] sm:$0xf]
  %v4597 = vld [vmem:[%s4569 + $0x6c] sm:$0xf]
  %v4598 = vld [vmem:[%s4569 + $0x70] sm:$0xf]
  %v4599 = vld [vmem:[%s4569 + $0x74] sm:$0xf]
  %v4600 = vld [vmem:[%s4569 + $0x78] sm:$0xf]
  %v4601 = vld [vmem:[%s4569 + $0x7c] sm:$0xf]
  %v4602 = vld [vmem:[%s4569 + $0x80] sm:$0xf]
  %v4603 = vld [vmem:[%s4569 + $0x84] sm:$0xf]
  %v4604 = vld [vmem:[%s4569 + $0x88] sm:$0xf]
  %v4605 = vld [vmem:[%s4569 + $0x8c] sm:$0xf]
  %v4606 = vld [vmem:[%s4569 + $0x90] sm:$0xf]
  %v4607 = vld [vmem:[%s4569 + $0x94] sm:$0xf]
  %v4608 = vld [vmem:[%s4569 + $0x98] sm:$0xf]
  %v4609 = vld [vmem:[%s4569 + $0x9c] sm:$0xf]
  %v4610 = vld [vmem:[%s4569 + $0xa0] sm:$0xf]
  %v4611 = vld [vmem:[%s4569 + $0xa4] sm:$0xf]
  %v4612 = vld [vmem:[%s4569 + $0xa8] sm:$0xf]
  %v4613 = vld [vmem:[%s4569 + $0xac] sm:$0xf]
  %v4614 = vld [vmem:[%s4569 + $0xb0] sm:$0xf]
  %v4615 = vld [vmem:[%s4569 + $0xb4] sm:$0xf]
  %v4616 = vld [vmem:[%s4569 + $0xb8] sm:$0xf]
  %v4617 = vld [vmem:[%s4569 + $0xbc] sm:$0xf]
  %v4618 = vld [vmem:[%s4569 + $0xc0] sm:$0xf]
  %v4619 = vld [vmem:[%s4569 + $0xc4] sm:$0xf]
  %v4620 = vld [vmem:[%s4569 + $0xc8] sm:$0xf]
  %v4621 = vld [vmem:[%s4569 + $0xcc] sm:$0xf]
  %v4622 = vld [vmem:[%s4569 + $0xd0] sm:$0xf]
  %v4623 = vld [vmem:[%s4569 + $0xd4] sm:$0xf]
  %v4624 = vld [vmem:[%s4569 + $0xd8] sm:$0xf]
  %v4625 = vld [vmem:[%s4569 + $0xdc] sm:$0xf]
  %v4626 = vld [vmem:[%s4569 + $0xe0] sm:$0xf]
  %v4627 = vld [vmem:[%s4569 + $0xe4] sm:$0xf]
  %v4628 = vld [vmem:[%s4569 + $0xe8] sm:$0xf]
  %v4629 = vld [vmem:[%s4569 + $0xec] sm:$0xf]
  %v4630 = vld [vmem:[%s4569 + $0xf0] sm:$0xf]
  %v4631 = vld [vmem:[%s4569 + $0xf4] sm:$0xf]
  %v4632 = vld [vmem:[%s4569 + $0xf8] sm:$0xf]
  %v4633 = vld [vmem:[%s4569 + $0xfc] sm:$0xf]
  %v4634 = vld [vmem:[%s4396 + $0x10] sm:$0xff]
  %v4635 = vld [vmem:[%s4396 + $0x18] sm:$0xff]
  %v4636 = vld [vmem:[%s4396 + $0x50] sm:$0xff]
  %v4637 = vld [vmem:[%s4396 + $0x58] sm:$0xff]
  %v4638 = vld [vmem:[%s4396 + $0x90] sm:$0xff]
  %v4639 = vld [vmem:[%s4396 + $0x98] sm:$0xff]
  %v4640 = vld [vmem:[%s4396 + $0xd0] sm:$0xff]
  %v4641 = vld [vmem:[%s4396 + $0xd8] sm:$0xff]
  %v4642 = vld [vmem:[%s4405 + $0x4] sm:$0xf]
  %v4644 = vlaneseq
  %v4645 = vshrl.u32 %v4644, 7
  %v4646 = vsub.s32 0, %v4645
  %v4647 = vrot.slane %v4642, %v4646
  %v4648 = vlaneseq
  %v4649 = vshrl.u32 %v4648, 7
  %v4650 = vsub.s32 1, %v4649
  %v4651 = vrot.slane %v4642, %v4650
  %v4652 = vlaneseq
  %v4653 = vshrl.u32 %v4652, 7
  %v4654 = vsub.s32 2, %v4653
  %v4655 = vrot.slane %v4642, %v4654
  %v4656 = vlaneseq
  %v4657 = vshrl.u32 %v4656, 7
  %v4658 = vsub.s32 3, %v4657
  %v4659 = vrot.slane %v4642, %v4658
  %v4672 = vunpack.c.l.b16 %v4634
  %v4673 = vunpack.c.h.b16 %v4634
  %v4674 = vunpack.c.l.b16 %v4635
  %v4675 = vunpack.c.h.b16 %v4635
  %v4676 = vunpack.c.l.b16 %v4636
  %v4677 = vunpack.c.h.b16 %v4636
  %v4678 = vunpack.c.l.b16 %v4637
  %v4679 = vunpack.c.h.b16 %v4637
  %v4680 = vunpack.c.l.b16 %v4638
  %v4681 = vunpack.c.h.b16 %v4638
  %v4682 = vunpack.c.l.b16 %v4639
  %v4683 = vunpack.c.h.b16 %v4639
  %v4684 = vunpack.c.l.b16 %v4640
  %v4685 = vunpack.c.h.b16 %v4640
  %v4686 = vunpack.c.l.b16 %v4641
  %v4687 = vunpack.c.h.b16 %v4641
  %v4688 = vpack.c.b16 %v4676, %v4672
  %v4689 = vpack.c.b16 %v4677, %v4673
  %v4690 = vpack.c.b16 %v4678, %v4674
  %v4691 = vpack.c.b16 %v4679, %v4675
  %v4692 = vpack.c.b16 %v4684, %v4680
  %v4693 = vpack.c.b16 %v4685, %v4681
  %v4694 = vpack.c.b16 %v4686, %v4682
  %v4695 = vpack.c.b16 %v4687, %v4683
  %4704 = vmatprep.subr.bf16.mxu0 %v4689
  %4705 = vmatpush1.bf16.msra.mxu0 %v4688
  %4706 = vmatprep.subr.bf16.mxu0 %v4693
  %4707 = vmatpush1.bf16.msra.mxu0 %v4692
  %4708 = vmatprep.subr.bf16.mxu0 0
  %4709 = vmatpush1.bf16.msra.mxu0 0
  %4710 = vmatprep.subr.bf16.mxu0 0
  %4711 = vmatpush1.bf16.msra.mxu0 0
  %4712 = vmatprep.subr.bf16.mxu0 0
  %4713 = vmatpush1.bf16.msra.mxu0 0
  %4714 = vmatprep.subr.bf16.mxu0 0
  %4715 = vmatpush1.bf16.msra.mxu0 0
  %4716 = vmatprep.subr.bf16.mxu0 0
  %4717 = vmatpush1.bf16.msra.mxu0 0
  %4718 = vmatprep.subr.bf16.mxu0 0
  %4719 = vmatpush1.bf16.msra.mxu0 0
  %4720 = vmatprep.subr.bf16.mxu0 0
  %4721 = vmatpush1.bf16.msra.mxu0 0
  %4722 = vmatprep.subr.bf16.mxu0 0
  %4723 = vmatpush1.bf16.msra.mxu0 0
  %4724 = vmatprep.subr.bf16.mxu0 0
  %4725 = vmatpush1.bf16.msra.mxu0 0
  %4726 = vmatprep.subr.bf16.mxu0 0
  %4727 = vmatpush1.bf16.msra.mxu0 0
  %4728 = vmatprep.subr.bf16.mxu0 0
  %4729 = vmatpush1.bf16.msra.mxu0 0
  %4730 = vmatprep.subr.bf16.mxu0 0
  %4731 = vmatpush1.bf16.msra.mxu0 0
  %4732 = vmatprep.subr.bf16.mxu0 0
  %4733 = vmatpush1.bf16.msra.mxu0 0
  %4734 = vmatprep.subr.bf16.mxu0 0
  %4735 = vmatpush1.bf16.msra.mxu0 0
  %4736 = vmatprep.mubr.bf16.mxu0 0
  %4737 = vmatmul.mubr.bf16.gmra.mrb[0].mxu0 %v4469
  %v4738 = vpop.f32.mrb[0].mxu0
  %v4739 = vadd.f32 %v4647, %v4738
  %v4740 = vpop.f32.mrb[0].mxu0
  %v4741 = vadd.f32 %v4651, %v4740
  %v4742 = vpop.f32.mrb[0].mxu0
  %v4743 = vadd.f32 %v4647, %v4742
  %v4744 = vpop.f32.mrb[0].mxu0
  %v4745 = vadd.f32 %v4651, %v4744
  %4746 = vdwg.mxu0
  %4747 = vmatprep.subr.bf16.mxu0 %v4691
  %4748 = vmatpush1.bf16.msra.mxu0 %v4690
  %4749 = vmatprep.subr.bf16.mxu0 %v4695
  %4750 = vmatpush1.bf16.msra.mxu0 %v4694
  %4751 = vmatprep.subr.bf16.mxu0 0
  %4752 = vmatpush1.bf16.msra.mxu0 0
  %4753 = vmatprep.subr.bf16.mxu0 0
  %4754 = vmatpush1.bf16.msra.mxu0 0
  %4755 = vmatprep.subr.bf16.mxu0 0
  %4756 = vmatpush1.bf16.msra.mxu0 0
  %4757 = vmatprep.subr.bf16.mxu0 0
  %4758 = vmatpush1.bf16.msra.mxu0 0
  %4759 = vmatprep.subr.bf16.mxu0 0
  %4760 = vmatpush1.bf16.msra.mxu0 0
  %4761 = vmatprep.subr.bf16.mxu0 0
  %4762 = vmatpush1.bf16.msra.mxu0 0
  %4763 = vmatprep.subr.bf16.mxu0 0
  %4764 = vmatpush1.bf16.msra.mxu0 0
  %4765 = vmatprep.subr.bf16.mxu0 0
  %4766 = vmatpush1.bf16.msra.mxu0 0
  %4767 = vmatprep.subr.bf16.mxu0 0
  %4768 = vmatpush1.bf16.msra.mxu0 0
  %4769 = vmatprep.subr.bf16.mxu0 0
  %4770 = vmatpush1.bf16.msra.mxu0 0
  %4771 = vmatprep.subr.bf16.mxu0 0
  %4772 = vmatpush1.bf16.msra.mxu0 0
  %4773 = vmatprep.subr.bf16.mxu0 0
  %4774 = vmatpush1.bf16.msra.mxu0 0
  %4775 = vmatprep.subr.bf16.mxu0 0
  %4776 = vmatpush1.bf16.msra.mxu0 0
  %4777 = vmatprep.subr.bf16.mxu0 0
  %4778 = vmatpush1.bf16.msra.mxu0 0
  %4779 = vmatprep.mubr.bf16.mxu0 0
  %4780 = vmatmul.mubr.bf16.gmra.mrb[0].mxu0 %v4469
  %v4781 = vpop.f32.mrb[0].mxu0
  %v4782 = vadd.f32 %v4655, %v4781
  %v4783 = vpop.f32.mrb[0].mxu0
  %v4784 = vadd.f32 %v4659, %v4783
  %v4785 = vpop.f32.mrb[0].mxu0
  %v4786 = vadd.f32 %v4655, %v4785
  %v4787 = vpop.f32.mrb[0].mxu0
  %v4788 = vadd.f32 %v4659, %v4787
  %4789 = vdwg.mxu0
  %v4790 = vmax.f32 %v4739, 0.0
  %v4791 = vmax.f32 %v4741, 0.0
  %v4792 = vmax.f32 %v4782, 0.0
  %v4793 = vmax.f32 %v4784, 0.0
  %v4794 = vmax.f32 %v4743, 0.0
  %v4795 = vmax.f32 %v4745, 0.0
  %v4796 = vmax.f32 %v4786, 0.0
  %v4797 = vmax.f32 %v4788, 0.0
  %v4798 = vpack.c.bf16 %v4794, %v4790
  %v4799 = vpack.c.bf16 %v4795, %v4791
  %v4800 = vpack.c.bf16 %v4796, %v4792
  %v4801 = vpack.c.bf16 %v4797, %v4793
  %v4802 = vld [vmem:[%s4569 + $0x100] sm:$0xf]
  %v4803 = vld [vmem:[%s4569 + $0x104] sm:$0xf]
  %v4804 = vld [vmem:[%s4569 + $0x108] sm:$0xf]
  %v4805 = vld [vmem:[%s4569 + $0x10c] sm:$0xf]
  %v4806 = vld [vmem:[%s4569 + $0x110] sm:$0xf]
  %v4807 = vld [vmem:[%s4569 + $0x114] sm:$0xf]
  %v4808 = vld [vmem:[%s4569 + $0x118] sm:$0xf]
  %v4809 = vld [vmem:[%s4569 + $0x11c] sm:$0xf]
  %v4810 = vld [vmem:[%s4569 + $0x120] sm:$0xf]
  %v4811 = vld [vmem:[%s4569 + $0x124] sm:$0xf]
  %v4812 = vld [vmem:[%s4569 + $0x128] sm:$0xf]
  %v4813 = vld [vmem:[%s4569 + $0x12c] sm:$0xf]
  %v4814 = vld [vmem:[%s4569 + $0x130] sm:$0xf]
  %v4815 = vld [vmem:[%s4569 + $0x134] sm:$0xf]
  %v4816 = vld [vmem:[%s4569 + $0x138] sm:$0xf]
  %v4817 = vld [vmem:[%s4569 + $0x13c] sm:$0xf]
  %v4818 = vld [vmem:[%s4569 + $0x140] sm:$0xf]
  %v4819 = vld [vmem:[%s4569 + $0x144] sm:$0xf]
  %v4820 = vld [vmem:[%s4569 + $0x148] sm:$0xf]
  %v4821 = vld [vmem:[%s4569 + $0x14c] sm:$0xf]
  %v4822 = vld [vmem:[%s4569 + $0x150] sm:$0xf]
  %v4823 = vld [vmem:[%s4569 + $0x154] sm:$0xf]
  %v4824 = vld [vmem:[%s4569 + $0x158] sm:$0xf]
  %v4825 = vld [vmem:[%s4569 + $0x15c] sm:$0xf]
  %v4826 = vld [vmem:[%s4569 + $0x160] sm:$0xf]
  %v4827 = vld [vmem:[%s4569 + $0x164] sm:$0xf]
  %v4828 = vld [vmem:[%s4569 + $0x168] sm:$0xf]
  %v4829 = vld [vmem:[%s4569 + $0x16c] sm:$0xf]
  %v4830 = vld [vmem:[%s4569 + $0x170] sm:$0xf]
  %v4831 = vld [vmem:[%s4569 + $0x174] sm:$0xf]
  %v4832 = vld [vmem:[%s4569 + $0x178] sm:$0xf]
  %v4833 = vld [vmem:[%s4569 + $0x17c] sm:$0xf]
  %v4834 = vld [vmem:[%s4569 + $0x180] sm:$0xf]
  %v4835 = vld [vmem:[%s4569 + $0x184] sm:$0xf]
  %v4836 = vld [vmem:[%s4569 + $0x188] sm:$0xf]
  %v4837 = vld [vmem:[%s4569 + $0x18c] sm:$0xf]
  %v4838 = vld [vmem:[%s4569 + $0x190] sm:$0xf]
  %v4839 = vld [vmem:[%s4569 + $0x194] sm:$0xf]
  %v4840 = vld [vmem:[%s4569 + $0x198] sm:$0xf]
  %v4841 = vld [vmem:[%s4569 + $0x19c] sm:$0xf]
  %v4842 = vld [vmem:[%s4569 + $0x1a0] sm:$0xf]
  %v4843 = vld [vmem:[%s4569 + $0x1a4] sm:$0xf]
  %v4844 = vld [vmem:[%s4569 + $0x1a8] sm:$0xf]
  %v4845 = vld [vmem:[%s4569 + $0x1ac] sm:$0xf]
  %v4846 = vld [vmem:[%s4569 + $0x1b0] sm:$0xf]
  %v4847 = vld [vmem:[%s4569 + $0x1b4] sm:$0xf]
  %v4848 = vld [vmem:[%s4569 + $0x1b8] sm:$0xf]
  %v4849 = vld [vmem:[%s4569 + $0x1bc] sm:$0xf]
  %v4850 = vld [vmem:[%s4569 + $0x1c0] sm:$0xf]
  %v4851 = vld [vmem:[%s4569 + $0x1c4] sm:$0xf]
  %v4852 = vld [vmem:[%s4569 + $0x1c8] sm:$0xf]
  %v4853 = vld [vmem:[%s4569 + $0x1cc] sm:$0xf]
  %v4854 = vld [vmem:[%s4569 + $0x1d0] sm:$0xf]
  %v4855 = vld [vmem:[%s4569 + $0x1d4] sm:$0xf]
  %v4856 = vld [vmem:[%s4569 + $0x1d8] sm:$0xf]
  %v4857 = vld [vmem:[%s4569 + $0x1dc] sm:$0xf]
  %v4858 = vld [vmem:[%s4569 + $0x1e0] sm:$0xf]
  %v4859 = vld [vmem:[%s4569 + $0x1e4] sm:$0xf]
  %v4860 = vld [vmem:[%s4569 + $0x1e8] sm:$0xf]
  %v4861 = vld [vmem:[%s4569 + $0x1ec] sm:$0xf]
  %v4862 = vld [vmem:[%s4569 + $0x1f0] sm:$0xf]
  %v4863 = vld [vmem:[%s4569 + $0x1f4] sm:$0xf]
  %v4864 = vld [vmem:[%s4569 + $0x1f8] sm:$0xf]
  %v4865 = vld [vmem:[%s4569 + $0x1fc] sm:$0xf]
  %v4930 = vunpack.c.l.b16 %v4802
  %v4931 = vunpack.c.l.b16 %v4803
  %v4932 = vunpack.c.l.b16 %v4804
  %v4933 = vunpack.c.l.b16 %v4805
  %v4934 = vunpack.c.l.b16 %v4806
  %v4935 = vunpack.c.l.b16 %v4807
  %v4936 = vunpack.c.l.b16 %v4808
  %v4937 = vunpack.c.l.b16 %v4809
  %v4938 = vunpack.c.l.b16 %v4810
  %v4939 = vunpack.c.l.b16 %v4811
  %v4940 = vunpack.c.l.b16 %v4812
  %v4941 = vunpack.c.l.b16 %v4813
  %v4942 = vunpack.c.l.b16 %v4814
  %v4943 = vunpack.c.l.b16 %v4815
  %v4944 = vunpack.c.l.b16 %v4816
  %v4945 = vunpack.c.l.b16 %v4817
  %v4946 = vunpack.c.l.b16 %v4818
  %v4947 = vunpack.c.l.b16 %v4819
  %v4948 = vunpack.c.l.b16 %v4820
  %v4949 = vunpack.c.l.b16 %v4821
  %v4950 = vunpack.c.l.b16 %v4822
  %v4951 = vunpack.c.l.b16 %v4823
  %v4952 = vunpack.c.l.b16 %v4824
  %v4953 = vunpack.c.l.b16 %v4825
  %v4954 = vunpack.c.l.b16 %v4826
  %v4955 = vunpack.c.l.b16 %v4827
  %v4956 = vunpack.c.l.b16 %v4828
  %v4957 = vunpack.c.l.b16 %v4829
  %v4958 = vunpack.c.l.b16 %v4830
  %v4959 = vunpack.c.l.b16 %v4831
  %v4960 = vunpack.c.l.b16 %v4832
  %v4961 = vunpack.c.l.b16 %v4833
  %v4962 = vunpack.c.l.b16 %v4834
  %v4963 = vunpack.c.l.b16 %v4835
  %v4964 = vunpack.c.l.b16 %v4836
  %v4965 = vunpack.c.l.b16 %v4837
  %v4966 = vunpack.c.l.b16 %v4838
  %v4967 = vunpack.c.l.b16 %v4839
  %v4968 = vunpack.c.l.b16 %v4840
  %v4969 = vunpack.c.l.b16 %v4841
  %v4970 = vunpack.c.l.b16 %v4842
  %v4971 = vunpack.c.l.b16 %v4843
  %v4972 = vunpack.c.l.b16 %v4844
  %v4973 = vunpack.c.l.b16 %v4845
  %v4974 = vunpack.c.l.b16 %v4846
  %v4975 = vunpack.c.l.b16 %v4847
  %v4976 = vunpack.c.l.b16 %v4848
  %v4977 = vunpack.c.l.b16 %v4849
  %v4978 = vunpack.c.l.b16 %v4850
  %v4979 = vunpack.c.l.b16 %v4851
  %v4980 = vunpack.c.l.b16 %v4852
  %v4981 = vunpack.c.l.b16 %v4853
  %v4982 = vunpack.c.l.b16 %v4854
  %v4983 = vunpack.c.l.b16 %v4855
  %v4984 = vunpack.c.l.b16 %v4856
  %v4985 = vunpack.c.l.b16 %v4857
  %v4986 = vunpack.c.l.b16 %v4858
  %v4987 = vunpack.c.l.b16 %v4859
  %v4988 = vunpack.c.l.b16 %v4860
  %v4989 = vunpack.c.l.b16 %v4861
  %v4990 = vunpack.c.l.b16 %v4862
  %v4991 = vunpack.c.l.b16 %v4863
  %v4992 = vunpack.c.l.b16 %v4864
  %v4993 = vunpack.c.l.b16 %v4865
  %v4994 = vpack.c.b16 %v4931, %v4930
  %v4995 = vpack.c.b16 %v4933, %v4932
  %v4996 = vpack.c.b16 %v4935, %v4934
  %v4997 = vpack.c.b16 %v4937, %v4936
  %v4998 = vpack.c.b16 %v4939, %v4938
  %v4999 = vpack.c.b16 %v4941, %v4940
  %v5000 = vpack.c.b16 %v4943, %v4942
  %v5001 = vpack.c.b16 %v4945, %v4944
  %v5002 = vpack.c.b16 %v4947, %v4946
  %v5003 = vpack.c.b16 %v4949, %v4948
  %v5004 = vpack.c.b16 %v4951, %v4950
  %v5005 = vpack.c.b16 %v4953, %v4952
  %v5006 = vpack.c.b16 %v4955, %v4954
  %v5007 = vpack.c.b16 %v4957, %v4956
  %v5008 = vpack.c.b16 %v4959, %v4958
  %v5009 = vpack.c.b16 %v4961, %v4960
  %v5010 = vpack.c.b16 %v4963, %v4962
  %v5011 = vpack.c.b16 %v4965, %v4964
  %v5012 = vpack.c.b16 %v4967, %v4966
  %v5013 = vpack.c.b16 %v4969, %v4968
  %v5014 = vpack.c.b16 %v4971, %v4970
  %v5015 = vpack.c.b16 %v4973, %v4972
  %v5016 = vpack.c.b16 %v4975, %v4974
  %v5017 = vpack.c.b16 %v4977, %v4976
  %v5018 = vpack.c.b16 %v4979, %v4978
  %v5019 = vpack.c.b16 %v4981, %v4980
  %v5020 = vpack.c.b16 %v4983, %v4982
  %v5021 = vpack.c.b16 %v4985, %v4984
  %v5022 = vpack.c.b16 %v4987, %v4986
  %v5023 = vpack.c.b16 %v4989, %v4988
  %v5024 = vpack.c.b16 %v4991, %v4990
  %v5025 = vpack.c.b16 %v4993, %v4992
  %5058 = vmatprep.subr.bf16.mxu0 0
  %5059 = vmatpush1.bf16.msra.mxu0 %v4994
  %5060 = vmatprep.subr.bf16.mxu0 0
  %5061 = vmatpush1.bf16.msra.mxu0 %v4995
  %5062 = vmatprep.subr.bf16.mxu0 0
  %5063 = vmatpush1.bf16.msra.mxu0 %v4996
  %5064 = vmatprep.subr.bf16.mxu0 0
  %5065 = vmatpush1.bf16.msra.mxu0 %v4997
  %5066 = vmatprep.subr.bf16.mxu0 0
  %5067 = vmatpush1.bf16.msra.mxu0 %v4998
  %5068 = vmatprep.subr.bf16.mxu0 0
  %5069 = vmatpush1.bf16.msra.mxu0 %v4999
  %5070 = vmatprep.subr.bf16.mxu0 0
  %5071 = vmatpush1.bf16.msra.mxu0 %v5000
  %5072 = vmatprep.subr.bf16.mxu0 0
  %5073 = vmatpush1.bf16.msra.mxu0 %v5001
  %5074 = vmatprep.subr.bf16.mxu0 0
  %5075 = vmatpush1.bf16.msra.mxu0 %v5002
  %5076 = vmatprep.subr.bf16.mxu0 0
  %5077 = vmatpush1.bf16.msra.mxu0 %v5003
  %5078 = vmatprep.subr.bf16.mxu0 0
  %5079 = vmatpush1.bf16.msra.mxu0 %v5004
  %5080 = vmatprep.subr.bf16.mxu0 0
  %5081 = vmatpush1.bf16.msra.mxu0 %v5005
  %5082 = vmatprep.subr.bf16.mxu0 0
  %5083 = vmatpush1.bf16.msra.mxu0 %v5006
  %5084 = vmatprep.subr.bf16.mxu0 0
  %5085 = vmatpush1.bf16.msra.mxu0 %v5007
  %5086 = vmatprep.subr.bf16.mxu0 0
  %5087 = vmatpush1.bf16.msra.mxu0 %v5008
  %5088 = vmatprep.subr.bf16.mxu0 0
  %5089 = vmatpush1.bf16.msra.mxu0 %v5009
  %5090 = vmatprep.mubr.bf16.mxu0 %v4799
  %5091 = vmatmul.mubr.bf16.gmra.mrb[0].mxu0 %v4798
  %v5092 = vpop.f32.mrb[0].mxu0
  %v5093 = vadd.f32 0.0, %v5092
  %v5094 = vpop.f32.mrb[0].mxu0
  %v5095 = vpop.f32.mrb[0].mxu0
  %v5096 = vadd.f32 0.0, %v5095
  %v5097 = vpop.f32.mrb[0].mxu0
  %5098 = vdwg.mxu0
  %5099 = vmatprep.subr.bf16.mxu0 0
  %5100 = vmatpush1.bf16.msra.mxu0 %v5010
  %5101 = vmatprep.subr.bf16.mxu0 0
  %5102 = vmatpush1.bf16.msra.mxu0 %v5011
  %5103 = vmatprep.subr.bf16.mxu0 0
  %5104 = vmatpush1.bf16.msra.mxu0 %v5012
  %5105 = vmatprep.subr.bf16.mxu0 0
  %5106 = vmatpush1.bf16.msra.mxu0 %v5013
  %5107 = vmatprep.subr.bf16.mxu0 0
  %5108 = vmatpush1.bf16.msra.mxu0 %v5014
  %5109 = vmatprep.subr.bf16.mxu0 0
  %5110 = vmatpush1.bf16.msra.mxu0 %v5015
  %5111 = vmatprep.subr.bf16.mxu0 0
  %5112 = vmatpush1.bf16.msra.mxu0 %v5016
  %5113 = vmatprep.subr.bf16.mxu0 0
  %5114 = vmatpush1.bf16.msra.mxu0 %v5017
  %5115 = vmatprep.subr.bf16.mxu0 0
  %5116 = vmatpush1.bf16.msra.mxu0 %v5018
  %5117 = vmatprep.subr.bf16.mxu0 0
  %5118 = vmatpush1.bf16.msra.mxu0 %v5019
  %5119 = vmatprep.subr.bf16.mxu0 0
  %5120 = vmatpush1.bf16.msra.mxu0 %v5020
  %5121 = vmatprep.subr.bf16.mxu0 0
  %5122 = vmatpush1.bf16.msra.mxu0 %v5021
  %5123 = vmatprep.subr.bf16.mxu0 0
  %5124 = vmatpush1.bf16.msra.mxu0 %v5022
  %5125 = vmatprep.subr.bf16.mxu0 0
  %5126 = vmatpush1.bf16.msra.mxu0 %v5023
  %5127 = vmatprep.subr.bf16.mxu0 0
  %5128 = vmatpush1.bf16.msra.mxu0 %v5024
  %5129 = vmatprep.subr.bf16.mxu0 0
  %5130 = vmatpush1.bf16.msra.mxu0 %v5025
  %5131 = vmatprep.mubr.bf16.mxu0 %v4801
  %5132 = vmatmul.mubr.bf16.gmra.mrb[0].mxu0 %v4800
  %v5133 = vpop.f32.mrb[0].mxu0
  %v5134 = vadd.f32 %v5093, %v5133
  %v5135 = vpop.f32.mrb[0].mxu0
  %v5136 = vpop.f32.mrb[0].mxu0
  %v5137 = vadd.f32 %v5096, %v5136
  %v5138 = vpop.f32.mrb[0].mxu0
  %5139 = vdwg.mxu0
  %v5204 = vunpack.c.l.b16 %v4570
  %v5205 = vunpack.c.l.b16 %v4571
  %v5206 = vunpack.c.l.b16 %v4572
  %v5207 = vunpack.c.l.b16 %v4573
  %v5208 = vunpack.c.l.b16 %v4574
  %v5209 = vunpack.c.l.b16 %v4575
  %v5210 = vunpack.c.l.b16 %v4576
  %v5211 = vunpack.c.l.b16 %v4577
  %v5212 = vunpack.c.l.b16 %v4578
  %v5213 = vunpack.c.l.b16 %v4579
  %v5214 = vunpack.c.l.b16 %v4580
  %v5215 = vunpack.c.l.b16 %v4581
  %v5216 = vunpack.c.l.b16 %v4582
  %v5217 = vunpack.c.l.b16 %v4583
  %v5218 = vunpack.c.l.b16 %v4584
  %v5219 = vunpack.c.l.b16 %v4585
  %v5220 = vunpack.c.l.b16 %v4586
  %v5221 = vunpack.c.l.b16 %v4587
  %v5222 = vunpack.c.l.b16 %v4588
  %v5223 = vunpack.c.l.b16 %v4589
  %v5224 = vunpack.c.l.b16 %v4590
  %v5225 = vunpack.c.l.b16 %v4591
  %v5226 = vunpack.c.l.b16 %v4592
  %v5227 = vunpack.c.l.b16 %v4593
  %v5228 = vunpack.c.l.b16 %v4594
  %v5229 = vunpack.c.l.b16 %v4595
  %v5230 = vunpack.c.l.b16 %v4596
  %v5231 = vunpack.c.l.b16 %v4597
  %v5232 = vunpack.c.l.b16 %v4598
  %v5233 = vunpack.c.l.b16 %v4599
  %v5234 = vunpack.c.l.b16 %v4600
  %v5235 = vunpack.c.l.b16 %v4601
  %v5236 = vunpack.c.l.b16 %v4602
  %v5237 = vunpack.c.l.b16 %v4603
  %v5238 = vunpack.c.l.b16 %v4604
  %v5239 = vunpack.c.l.b16 %v4605
  %v5240 = vunpack.c.l.b16 %v4606
  %v5241 = vunpack.c.l.b16 %v4607
  %v5242 = vunpack.c.l.b16 %v4608
  %v5243 = vunpack.c.l.b16 %v4609
  %v5244 = vunpack.c.l.b16 %v4610
  %v5245 = vunpack.c.l.b16 %v4611
  %v5246 = vunpack.c.l.b16 %v4612
  %v5247 = vunpack.c.l.b16 %v4613
  %v5248 = vunpack.c.l.b16 %v4614
  %v5249 = vunpack.c.l.b16 %v4615
  %v5250 = vunpack.c.l.b16 %v4616
  %v5251 = vunpack.c.l.b16 %v4617
  %v5252 = vunpack.c.l.b16 %v4618
  %v5253 = vunpack.c.l.b16 %v4619
  %v5254 = vunpack.c.l.b16 %v4620
  %v5255 = vunpack.c.l.b16 %v4621
  %v5256 = vunpack.c.l.b16 %v4622
  %v5257 = vunpack.c.l.b16 %v4623
  %v5258 = vunpack.c.l.b16 %v4624
  %v5259 = vunpack.c.l.b16 %v4625
  %v5260 = vunpack.c.l.b16 %v4626
  %v5261 = vunpack.c.l.b16 %v4627
  %v5262 = vunpack.c.l.b16 %v4628
  %v5263 = vunpack.c.l.b16 %v4629
  %v5264 = vunpack.c.l.b16 %v4630
  %v5265 = vunpack.c.l.b16 %v4631
  %v5266 = vunpack.c.l.b16 %v4632
  %v5267 = vunpack.c.l.b16 %v4633
  %v5268 = vpack.c.b16 %v5205, %v5204
  %v5269 = vpack.c.b16 %v5207, %v5206
  %v5270 = vpack.c.b16 %v5209, %v5208
  %v5271 = vpack.c.b16 %v5211, %v5210
  %v5272 = vpack.c.b16 %v5213, %v5212
  %v5273 = vpack.c.b16 %v5215, %v5214
  %v5274 = vpack.c.b16 %v5217, %v5216
  %v5275 = vpack.c.b16 %v5219, %v5218
  %v5276 = vpack.c.b16 %v5221, %v5220
  %v5277 = vpack.c.b16 %v5223, %v5222
  %v5278 = vpack.c.b16 %v5225, %v5224
  %v5279 = vpack.c.b16 %v5227, %v5226
  %v5280 = vpack.c.b16 %v5229, %v5228
  %v5281 = vpack.c.b16 %v5231, %v5230
  %v5282 = vpack.c.b16 %v5233, %v5232
  %v5283 = vpack.c.b16 %v5235, %v5234
  %v5284 = vpack.c.b16 %v5237, %v5236
  %v5285 = vpack.c.b16 %v5239, %v5238
  %v5286 = vpack.c.b16 %v5241, %v5240
  %v5287 = vpack.c.b16 %v5243, %v5242
  %v5288 = vpack.c.b16 %v5245, %v5244
  %v5289 = vpack.c.b16 %v5247, %v5246
  %v5290 = vpack.c.b16 %v5249, %v5248
  %v5291 = vpack.c.b16 %v5251, %v5250
  %v5292 = vpack.c.b16 %v5253, %v5252
  %v5293 = vpack.c.b16 %v5255, %v5254
  %v5294 = vpack.c.b16 %v5257, %v5256
  %v5295 = vpack.c.b16 %v5259, %v5258
  %v5296 = vpack.c.b16 %v5261, %v5260
  %v5297 = vpack.c.b16 %v5263, %v5262
  %v5298 = vpack.c.b16 %v5265, %v5264
  %v5299 = vpack.c.b16 %v5267, %v5266
  %5332 = vmatprep.subr.bf16.mxu0 0
  %5333 = vmatpush1.bf16.msra.mxu0 %v5268
  %5334 = vmatprep.subr.bf16.mxu0 0
  %5335 = vmatpush1.bf16.msra.mxu0 %v5269
  %5336 = vmatprep.subr.bf16.mxu0 0
  %5337 = vmatpush1.bf16.msra.mxu0 %v5270
  %5338 = vmatprep.subr.bf16.mxu0 0
  %5339 = vmatpush1.bf16.msra.mxu0 %v5271
  %5340 = vmatprep.subr.bf16.mxu0 0
  %5341 = vmatpush1.bf16.msra.mxu0 %v5272
  %5342 = vmatprep.subr.bf16.mxu0 0
  %5343 = vmatpush1.bf16.msra.mxu0 %v5273
  %5344 = vmatprep.subr.bf16.mxu0 0
  %5345 = vmatpush1.bf16.msra.mxu0 %v5274
  %5346 = vmatprep.subr.bf16.mxu0 0
  %5347 = vmatpush1.bf16.msra.mxu0 %v5275
  %5348 = vmatprep.subr.bf16.mxu0 0
  %5349 = vmatpush1.bf16.msra.mxu0 %v5276
  %5350 = vmatprep.subr.bf16.mxu0 0
  %5351 = vmatpush1.bf16.msra.mxu0 %v5277
  %5352 = vmatprep.subr.bf16.mxu0 0
  %5353 = vmatpush1.bf16.msra.mxu0 %v5278
  %5354 = vmatprep.subr.bf16.mxu0 0
  %5355 = vmatpush1.bf16.msra.mxu0 %v5279
  %5356 = vmatprep.subr.bf16.mxu0 0
  %5357 = vmatpush1.bf16.msra.mxu0 %v5280
  %5358 = vmatprep.subr.bf16.mxu0 0
  %5359 = vmatpush1.bf16.msra.mxu0 %v5281
  %5360 = vmatprep.subr.bf16.mxu0 0
  %5361 = vmatpush1.bf16.msra.mxu0 %v5282
  %5362 = vmatprep.subr.bf16.mxu0 0
  %5363 = vmatpush1.bf16.msra.mxu0 %v5283
  %5364 = vmatprep.mubr.bf16.mxu0 %v4566
  %5365 = vmatmul.mubr.bf16.gmra.mrb[0].mxu0 %v4565
  %v5366 = vpop.f32.mrb[0].mxu0
  %v5367 = vadd.f32 %v5134, %v5366
  %v5368 = vpop.f32.mrb[0].mxu0
  %v5369 = vpop.f32.mrb[0].mxu0
  %v5370 = vadd.f32 %v5137, %v5369
  %v5371 = vpop.f32.mrb[0].mxu0
  %5372 = vdwg.mxu0
  %5373 = vmatprep.subr.bf16.mxu0 0
  %5374 = vmatpush1.bf16.msra.mxu0 %v5284
  %5375 = vmatprep.subr.bf16.mxu0 0
  %5376 = vmatpush1.bf16.msra.mxu0 %v5285
  %5377 = vmatprep.subr.bf16.mxu0 0
  %5378 = vmatpush1.bf16.msra.mxu0 %v5286
  %5379 = vmatprep.subr.bf16.mxu0 0
  %5380 = vmatpush1.bf16.msra.mxu0 %v5287
  %5381 = vmatprep.subr.bf16.mxu0 0
  %5382 = vmatpush1.bf16.msra.mxu0 %v5288
  %5383 = vmatprep.subr.bf16.mxu0 0
  %5384 = vmatpush1.bf16.msra.mxu0 %v5289
  %5385 = vmatprep.subr.bf16.mxu0 0
  %5386 = vmatpush1.bf16.msra.mxu0 %v5290
  %5387 = vmatprep.subr.bf16.mxu0 0
  %5388 = vmatpush1.bf16.msra.mxu0 %v5291
  %5389 = vmatprep.subr.bf16.mxu0 0
  %5390 = vmatpush1.bf16.msra.mxu0 %v5292
  %5391 = vmatprep.subr.bf16.mxu0 0
  %5392 = vmatpush1.bf16.msra.mxu0 %v5293
  %5393 = vmatprep.subr.bf16.mxu0 0
  %5394 = vmatpush1.bf16.msra.mxu0 %v5294
  %5395 = vmatprep.subr.bf16.mxu0 0
  %5396 = vmatpush1.bf16.msra.mxu0 %v5295
  %5397 = vmatprep.subr.bf16.mxu0 0
  %5398 = vmatpush1.bf16.msra.mxu0 %v5296
  %5399 = vmatprep.subr.bf16.mxu0 0
  %5400 = vmatpush1.bf16.msra.mxu0 %v5297
  %5401 = vmatprep.subr.bf16.mxu0 0
  %5402 = vmatpush1.bf16.msra.mxu0 %v5298
  %5403 = vmatprep.subr.bf16.mxu0 0
  %5404 = vmatpush1.bf16.msra.mxu0 %v5299
  %5405 = vmatprep.mubr.bf16.mxu0 %v4568
  %5406 = vmatmul.mubr.bf16.gmra.mrb[0].mxu0 %v4567
  %v5407 = vpop.f32.mrb[0].mxu0
  %v5408 = vadd.f32 %v5367, %v5407
  %v5409 = vpop.f32.mrb[0].mxu0
  %v5410 = vpop.f32.mrb[0].mxu0
  %v5411 = vadd.f32 %v5370, %v5410
  %v5412 = vpop.f32.mrb[0].mxu0
  %5413 = vdwg.mxu0
  %v5414 = vld [vmem:[%s4396 + $0x20] sm:$0xff]
  %v5415 = vld [vmem:[%s4396 + $0x28] sm:$0xff]
  %v5416 = vld [vmem:[%s4396 + $0x60] sm:$0xff]
  %v5417 = vld [vmem:[%s4396 + $0x68] sm:$0xff]
  %v5418 = vld [vmem:[%s4396 + $0xa0] sm:$0xff]
  %v5419 = vld [vmem:[%s4396 + $0xa8] sm:$0xff]
  %v5420 = vld [vmem:[%s4396 + $0xe0] sm:$0xff]
  %v5421 = vld [vmem:[%s4396 + $0xe8] sm:$0xff]
  %v5422 = vld [vmem:[%s4405 + $0x8] sm:$0xf]
  %v5424 = vlaneseq
  %v5425 = vshrl.u32 %v5424, 7
  %v5426 = vsub.s32 0, %v5425
  %v5427 = vrot.slane %v5422, %v5426
  %v5428 = vlaneseq
  %v5429 = vshrl.u32 %v5428, 7
  %v5430 = vsub.s32 1, %v5429
  %v5431 = vrot.slane %v5422, %v5430
  %v5432 = vlaneseq
  %v5433 = vshrl.u32 %v5432, 7
  %v5434 = vsub.s32 2, %v5433
  %v5435 = vrot.slane %v5422, %v5434
  %v5436 = vlaneseq
  %v5437 = vshrl.u32 %v5436, 7
  %v5438 = vsub.s32 3, %v5437
  %v5439 = vrot.slane %v5422, %v5438
  %v5452 = vunpack.c.l.b16 %v5414
  %v5453 = vunpack.c.h.b16 %v5414
  %v5454 = vunpack.c.l.b16 %v5415
  %v5455 = vunpack.c.h.b16 %v5415
  %v5456 = vunpack.c.l.b16 %v5416
  %v5457 = vunpack.c.h.b16 %v5416
  %v5458 = vunpack.c.l.b16 %v5417
  %v5459 = vunpack.c.h.b16 %v5417
  %v5460 = vunpack.c.l.b16 %v5418
  %v5461 = vunpack.c.h.b16 %v5418
  %v5462 = vunpack.c.l.b16 %v5419
  %v5463 = vunpack.c.h.b16 %v5419
  %v5464 = vunpack.c.l.b16 %v5420
  %v5465 = vunpack.c.h.b16 %v5420
  %v5466 = vunpack.c.l.b16 %v5421
  %v5467 = vunpack.c.h.b16 %v5421
  %v5468 = vpack.c.b16 %v5456, %v5452
  %v5469 = vpack.c.b16 %v5457, %v5453
  %v5470 = vpack.c.b16 %v5458, %v5454
  %v5471 = vpack.c.b16 %v5459, %v5455
  %v5472 = vpack.c.b16 %v5464, %v5460
  %v5473 = vpack.c.b16 %v5465, %v5461
  %v5474 = vpack.c.b16 %v5466, %v5462
  %v5475 = vpack.c.b16 %v5467, %v5463
  %5484 = vmatprep.subr.bf16.mxu0 %v5469
  %5485 = vmatpush1.bf16.msra.mxu0 %v5468
  %5486 = vmatprep.subr.bf16.mxu0 %v5473
  %5487 = vmatpush1.bf16.msra.mxu0 %v5472
  %5488 = vmatprep.subr.bf16.mxu0 0
  %5489 = vmatpush1.bf16.msra.mxu0 0
  %5490 = vmatprep.subr.bf16.mxu0 0
  %5491 = vmatpush1.bf16.msra.mxu0 0
  %5492 = vmatprep.subr.bf16.mxu0 0
  %5493 = vmatpush1.bf16.msra.mxu0 0
  %5494 = vmatprep.subr.bf16.mxu0 0
  %5495 = vmatpush1.bf16.msra.mxu0 0
  %5496 = vmatprep.subr.bf16.mxu0 0
  %5497 = vmatpush1.bf16.msra.mxu0 0
  %5498 = vmatprep.subr.bf16.mxu0 0
  %5499 = vmatpush1.bf16.msra.mxu0 0
  %5500 = vmatprep.subr.bf16.mxu0 0
  %5501 = vmatpush1.bf16.msra.mxu0 0
  %5502 = vmatprep.subr.bf16.mxu0 0
  %5503 = vmatpush1.bf16.msra.mxu0 0
  %5504 = vmatprep.subr.bf16.mxu0 0
  %5505 = vmatpush1.bf16.msra.mxu0 0
  %5506 = vmatprep.subr.bf16.mxu0 0
  %5507 = vmatpush1.bf16.msra.mxu0 0
  %5508 = vmatprep.subr.bf16.mxu0 0
  %5509 = vmatpush1.bf16.msra.mxu0 0
  %5510 = vmatprep.subr.bf16.mxu0 0
  %5511 = vmatpush1.bf16.msra.mxu0 0
  %5512 = vmatprep.subr.bf16.mxu0 0
  %5513 = vmatpush1.bf16.msra.mxu0 0
  %5514 = vmatprep.subr.bf16.mxu0 0
  %5515 = vmatpush1.bf16.msra.mxu0 0
  %5516 = vmatprep.mubr.bf16.mxu0 0
  %5517 = vmatmul.mubr.bf16.gmra.mrb[0].mxu0 %v4469
  %v5518 = vpop.f32.mrb[0].mxu0
  %v5519 = vadd.f32 %v5427, %v5518
  %v5520 = vpop.f32.mrb[0].mxu0
  %v5521 = vadd.f32 %v5431, %v5520
  %v5522 = vpop.f32.mrb[0].mxu0
  %v5523 = vadd.f32 %v5427, %v5522
  %v5524 = vpop.f32.mrb[0].mxu0
  %v5525 = vadd.f32 %v5431, %v5524
  %5526 = vdwg.mxu0
  %5527 = vmatprep.subr.bf16.mxu0 %v5471
  %5528 = vmatpush1.bf16.msra.mxu0 %v5470
  %5529 = vmatprep.subr.bf16.mxu0 %v5475
  %5530 = vmatpush1.bf16.msra.mxu0 %v5474
  %5531 = vmatprep.subr.bf16.mxu0 0
  %5532 = vmatpush1.bf16.msra.mxu0 0
  %5533 = vmatprep.subr.bf16.mxu0 0
  %5534 = vmatpush1.bf16.msra.mxu0 0
  %5535 = vmatprep.subr.bf16.mxu0 0
  %5536 = vmatpush1.bf16.msra.mxu0 0
  %5537 = vmatprep.subr.bf16.mxu0 0
  %5538 = vmatpush1.bf16.msra.mxu0 0
  %5539 = vmatprep.subr.bf16.mxu0 0
  %5540 = vmatpush1.bf16.msra.mxu0 0
  %5541 = vmatprep.subr.bf16.mxu0 0
  %5542 = vmatpush1.bf16.msra.mxu0 0
  %5543 = vmatprep.subr.bf16.mxu0 0
  %5544 = vmatpush1.bf16.msra.mxu0 0
  %5545 = vmatprep.subr.bf16.mxu0 0
  %5546 = vmatpush1.bf16.msra.mxu0 0
  %5547 = vmatprep.subr.bf16.mxu0 0
  %5548 = vmatpush1.bf16.msra.mxu0 0
  %5549 = vmatprep.subr.bf16.mxu0 0
  %5550 = vmatpush1.bf16.msra.mxu0 0
  %5551 = vmatprep.subr.bf16.mxu0 0
  %5552 = vmatpush1.bf16.msra.mxu0 0
  %5553 = vmatprep.subr.bf16.mxu0 0
  %5554 = vmatpush1.bf16.msra.mxu0 0
  %5555 = vmatprep.subr.bf16.mxu0 0
  %5556 = vmatpush1.bf16.msra.mxu0 0
  %5557 = vmatprep.subr.bf16.mxu0 0
  %5558 = vmatpush1.bf16.msra.mxu0 0
  %5559 = vmatprep.mubr.bf16.mxu0 0
  %5560 = vmatmul.mubr.bf16.gmra.mrb[0].mxu0 %v4469
  %v5561 = vpop.f32.mrb[0].mxu0
  %v5562 = vadd.f32 %v5435, %v5561
  %v5563 = vpop.f32.mrb[0].mxu0
  %v5564 = vadd.f32 %v5439, %v5563
  %v5565 = vpop.f32.mrb[0].mxu0
  %v5566 = vadd.f32 %v5435, %v5565
  %v5567 = vpop.f32.mrb[0].mxu0
  %v5568 = vadd.f32 %v5439, %v5567
  %5569 = vdwg.mxu0
  %v5570 = vmax.f32 %v5519, 0.0
  %v5571 = vmax.f32 %v5521, 0.0
  %v5572 = vmax.f32 %v5562, 0.0
  %v5573 = vmax.f32 %v5564, 0.0
  %v5574 = vmax.f32 %v5523, 0.0
  %v5575 = vmax.f32 %v5525, 0.0
  %v5576 = vmax.f32 %v5566, 0.0
  %v5577 = vmax.f32 %v5568, 0.0
  %v5578 = vpack.c.bf16 %v5574, %v5570
  %v5579 = vpack.c.bf16 %v5575, %v5571
  %v5580 = vpack.c.bf16 %v5576, %v5572
  %v5581 = vpack.c.bf16 %v5577, %v5573
  %v5582 = vld [vmem:[%s4569 + $0x200] sm:$0xf]
  %v5583 = vld [vmem:[%s4569 + $0x204] sm:$0xf]
  %v5584 = vld [vmem:[%s4569 + $0x208] sm:$0xf]
  %v5585 = vld [vmem:[%s4569 + $0x20c] sm:$0xf]
  %v5586 = vld [vmem:[%s4569 + $0x210] sm:$0xf]
  %v5587 = vld [vmem:[%s4569 + $0x214] sm:$0xf]
  %v5588 = vld [vmem:[%s4569 + $0x218] sm:$0xf]
  %v5589 = vld [vmem:[%s4569 + $0x21c] sm:$0xf]
  %v5590 = vld [vmem:[%s4569 + $0x220] sm:$0xf]
  %v5591 = vld [vmem:[%s4569 + $0x224] sm:$0xf]
  %v5592 = vld [vmem:[%s4569 + $0x228] sm:$0xf]
  %v5593 = vld [vmem:[%s4569 + $0x22c] sm:$0xf]
  %v5594 = vld [vmem:[%s4569 + $0x230] sm:$0xf]
  %v5595 = vld [vmem:[%s4569 + $0x234] sm:$0xf]
  %v5596 = vld [vmem:[%s4569 + $0x238] sm:$0xf]
  %v5597 = vld [vmem:[%s4569 + $0x23c] sm:$0xf]
  %v5598 = vld [vmem:[%s4569 + $0x240] sm:$0xf]
  %v5599 = vld [vmem:[%s4569 + $0x244] sm:$0xf]
  %v5600 = vld [vmem:[%s4569 + $0x248] sm:$0xf]
  %v5601 = vld [vmem:[%s4569 + $0x24c] sm:$0xf]
  %v5602 = vld [vmem:[%s4569 + $0x250] sm:$0xf]
  %v5603 = vld [vmem:[%s4569 + $0x254] sm:$0xf]
  %v5604 = vld [vmem:[%s4569 + $0x258] sm:$0xf]
  %v5605 = vld [vmem:[%s4569 + $0x25c] sm:$0xf]
  %v5606 = vld [vmem:[%s4569 + $0x260] sm:$0xf]
  %v5607 = vld [vmem:[%s4569 + $0x264] sm:$0xf]
  %v5608 = vld [vmem:[%s4569 + $0x268] sm:$0xf]
  %v5609 = vld [vmem:[%s4569 + $0x26c] sm:$0xf]
  %v5610 = vld [vmem:[%s4569 + $0x270] sm:$0xf]
  %v5611 = vld [vmem:[%s4569 + $0x274] sm:$0xf]
  %v5612 = vld [vmem:[%s4569 + $0x278] sm:$0xf]
  %v5613 = vld [vmem:[%s4569 + $0x27c] sm:$0xf]
  %v5614 = vld [vmem:[%s4569 + $0x280] sm:$0xf]
  %v5615 = vld [vmem:[%s4569 + $0x284] sm:$0xf]
  %v5616 = vld [vmem:[%s4569 + $0x288] sm:$0xf]
  %v5617 = vld [vmem:[%s4569 + $0x28c] sm:$0xf]
  %v5618 = vld [vmem:[%s4569 + $0x290] sm:$0xf]
  %v5619 = vld [vmem:[%s4569 + $0x294] sm:$0xf]
  %v5620 = vld [vmem:[%s4569 + $0x298] sm:$0xf]
  %v5621 = vld [vmem:[%s4569 + $0x29c] sm:$0xf]
  %v5622 = vld [vmem:[%s4569 + $0x2a0] sm:$0xf]
  %v5623 = vld [vmem:[%s4569 + $0x2a4] sm:$0xf]
  %v5624 = vld [vmem:[%s4569 + $0x2a8] sm:$0xf]
  %v5625 = vld [vmem:[%s4569 + $0x2ac] sm:$0xf]
  %v5626 = vld [vmem:[%s4569 + $0x2b0] sm:$0xf]
  %v5627 = vld [vmem:[%s4569 + $0x2b4] sm:$0xf]
  %v5628 = vld [vmem:[%s4569 + $0x2b8] sm:$0xf]
  %v5629 = vld [vmem:[%s4569 + $0x2bc] sm:$0xf]
  %v5630 = vld [vmem:[%s4569 + $0x2c0] sm:$0xf]
  %v5631 = vld [vmem:[%s4569 + $0x2c4] sm:$0xf]
  %v5632 = vld [vmem:[%s4569 + $0x2c8] sm:$0xf]
  %v5633 = vld [vmem:[%s4569 + $0x2cc] sm:$0xf]
  %v5634 = vld [vmem:[%s4569 + $0x2d0] sm:$0xf]
  %v5635 = vld [vmem:[%s4569 + $0x2d4] sm:$0xf]
  %v5636 = vld [vmem:[%s4569 + $0x2d8] sm:$0xf]
  %v5637 = vld [vmem:[%s4569 + $0x2dc] sm:$0xf]
  %v5638 = vld [vmem:[%s4569 + $0x2e0] sm:$0xf]
  %v5639 = vld [vmem:[%s4569 + $0x2e4] sm:$0xf]
  %v5640 = vld [vmem:[%s4569 + $0x2e8] sm:$0xf]
  %v5641 = vld [vmem:[%s4569 + $0x2ec] sm:$0xf]
  %v5642 = vld [vmem:[%s4569 + $0x2f0] sm:$0xf]
  %v5643 = vld [vmem:[%s4569 + $0x2f4] sm:$0xf]
  %v5644 = vld [vmem:[%s4569 + $0x2f8] sm:$0xf]
  %v5645 = vld [vmem:[%s4569 + $0x2fc] sm:$0xf]
  %v5710 = vunpack.c.l.b16 %v5582
  %v5711 = vunpack.c.l.b16 %v5583
  %v5712 = vunpack.c.l.b16 %v5584
  %v5713 = vunpack.c.l.b16 %v5585
  %v5714 = vunpack.c.l.b16 %v5586
  %v5715 = vunpack.c.l.b16 %v5587
  %v5716 = vunpack.c.l.b16 %v5588
  %v5717 = vunpack.c.l.b16 %v5589
  %v5718 = vunpack.c.l.b16 %v5590
  %v5719 = vunpack.c.l.b16 %v5591
  %v5720 = vunpack.c.l.b16 %v5592
  %v5721 = vunpack.c.l.b16 %v5593
  %v5722 = vunpack.c.l.b16 %v5594
  %v5723 = vunpack.c.l.b16 %v5595
  %v5724 = vunpack.c.l.b16 %v5596
  %v5725 = vunpack.c.l.b16 %v5597
  %v5726 = vunpack.c.l.b16 %v5598
  %v5727 = vunpack.c.l.b16 %v5599
  %v5728 = vunpack.c.l.b16 %v5600
  %v5729 = vunpack.c.l.b16 %v5601
  %v5730 = vunpack.c.l.b16 %v5602
  %v5731 = vunpack.c.l.b16 %v5603
  %v5732 = vunpack.c.l.b16 %v5604
  %v5733 = vunpack.c.l.b16 %v5605
  %v5734 = vunpack.c.l.b16 %v5606
  %v5735 = vunpack.c.l.b16 %v5607
  %v5736 = vunpack.c.l.b16 %v5608
  %v5737 = vunpack.c.l.b16 %v5609
  %v5738 = vunpack.c.l.b16 %v5610
  %v5739 = vunpack.c.l.b16 %v5611
  %v5740 = vunpack.c.l.b16 %v5612
  %v5741 = vunpack.c.l.b16 %v5613
  %v5742 = vunpack.c.l.b16 %v5614
  %v5743 = vunpack.c.l.b16 %v5615
  %v5744 = vunpack.c.l.b16 %v5616
  %v5745 = vunpack.c.l.b16 %v5617
  %v5746 = vunpack.c.l.b16 %v5618
  %v5747 = vunpack.c.l.b16 %v5619
  %v5748 = vunpack.c.l.b16 %v5620
  %v5749 = vunpack.c.l.b16 %v5621
  %v5750 = vunpack.c.l.b16 %v5622
  %v5751 = vunpack.c.l.b16 %v5623
  %v5752 = vunpack.c.l.b16 %v5624
  %v5753 = vunpack.c.l.b16 %v5625
  %v5754 = vunpack.c.l.b16 %v5626
  %v5755 = vunpack.c.l.b16 %v5627
  %v5756 = vunpack.c.l.b16 %v5628
  %v5757 = vunpack.c.l.b16 %v5629
  %v5758 = vunpack.c.l.b16 %v5630
  %v5759 = vunpack.c.l.b16 %v5631
  %v5760 = vunpack.c.l.b16 %v5632
  %v5761 = vunpack.c.l.b16 %v5633
  %v5762 = vunpack.c.l.b16 %v5634
  %v5763 = vunpack.c.l.b16 %v5635
  %v5764 = vunpack.c.l.b16 %v5636
  %v5765 = vunpack.c.l.b16 %v5637
  %v5766 = vunpack.c.l.b16 %v5638
  %v5767 = vunpack.c.l.b16 %v5639
  %v5768 = vunpack.c.l.b16 %v5640
  %v5769 = vunpack.c.l.b16 %v5641
  %v5770 = vunpack.c.l.b16 %v5642
  %v5771 = vunpack.c.l.b16 %v5643
  %v5772 = vunpack.c.l.b16 %v5644
  %v5773 = vunpack.c.l.b16 %v5645
  %v5774 = vpack.c.b16 %v5711, %v5710
  %v5775 = vpack.c.b16 %v5713, %v5712
  %v5776 = vpack.c.b16 %v5715, %v5714
  %v5777 = vpack.c.b16 %v5717, %v5716
  %v5778 = vpack.c.b16 %v5719, %v5718
  %v5779 = vpack.c.b16 %v5721, %v5720
  %v5780 = vpack.c.b16 %v5723, %v5722
  %v5781 = vpack.c.b16 %v5725, %v5724
  %v5782 = vpack.c.b16 %v5727, %v5726
  %v5783 = vpack.c.b16 %v5729, %v5728
  %v5784 = vpack.c.b16 %v5731, %v5730
  %v5785 = vpack.c.b16 %v5733, %v5732
  %v5786 = vpack.c.b16 %v5735, %v5734
  %v5787 = vpack.c.b16 %v5737, %v5736
  %v5788 = vpack.c.b16 %v5739, %v5738
  %v5789 = vpack.c.b16 %v5741, %v5740
  %v5790 = vpack.c.b16 %v5743, %v5742
  %v5791 = vpack.c.b16 %v5745, %v5744
  %v5792 = vpack.c.b16 %v5747, %v5746
  %v5793 = vpack.c.b16 %v5749, %v5748
  %v5794 = vpack.c.b16 %v5751, %v5750
  %v5795 = vpack.c.b16 %v5753, %v5752
  %v5796 = vpack.c.b16 %v5755, %v5754
  %v5797 = vpack.c.b16 %v5757, %v5756
  %v5798 = vpack.c.b16 %v5759, %v5758
  %v5799 = vpack.c.b16 %v5761, %v5760
  %v5800 = vpack.c.b16 %v5763, %v5762
  %v5801 = vpack.c.b16 %v5765, %v5764
  %v5802 = vpack.c.b16 %v5767, %v5766
  %v5803 = vpack.c.b16 %v5769, %v5768
  %v5804 = vpack.c.b16 %v5771, %v5770
  %v5805 = vpack.c.b16 %v5773, %v5772
  %5838 = vmatprep.subr.bf16.mxu0 0
  %5839 = vmatpush1.bf16.msra.mxu0 %v5774
  %5840 = vmatprep.subr.bf16.mxu0 0
  %5841 = vmatpush1.bf16.msra.mxu0 %v5775
  %5842 = vmatprep.subr.bf16.mxu0 0
  %5843 = vmatpush1.bf16.msra.mxu0 %v5776
  %5844 = vmatprep.subr.bf16.mxu0 0
  %5845 = vmatpush1.bf16.msra.mxu0 %v5777
  %5846 = vmatprep.subr.bf16.mxu0 0
  %5847 = vmatpush1.bf16.msra.mxu0 %v5778
  %5848 = vmatprep.subr.bf16.mxu0 0
  %5849 = vmatpush1.bf16.msra.mxu0 %v5779
  %5850 = vmatprep.subr.bf16.mxu0 0
  %5851 = vmatpush1.bf16.msra.mxu0 %v5780
  %5852 = vmatprep.subr.bf16.mxu0 0
  %5853 = vmatpush1.bf16.msra.mxu0 %v5781
  %5854 = vmatprep.subr.bf16.mxu0 0
  %5855 = vmatpush1.bf16.msra.mxu0 %v5782
  %5856 = vmatprep.subr.bf16.mxu0 0
  %5857 = vmatpush1.bf16.msra.mxu0 %v5783
  %5858 = vmatprep.subr.bf16.mxu0 0
  %5859 = vmatpush1.bf16.msra.mxu0 %v5784
  %5860 = vmatprep.subr.bf16.mxu0 0
  %5861 = vmatpush1.bf16.msra.mxu0 %v5785
  %5862 = vmatprep.subr.bf16.mxu0 0
  %5863 = vmatpush1.bf16.msra.mxu0 %v5786
  %5864 = vmatprep.subr.bf16.mxu0 0
  %5865 = vmatpush1.bf16.msra.mxu0 %v5787
  %5866 = vmatprep.subr.bf16.mxu0 0
  %5867 = vmatpush1.bf16.msra.mxu0 %v5788
  %5868 = vmatprep.subr.bf16.mxu0 0
  %5869 = vmatpush1.bf16.msra.mxu0 %v5789
  %5870 = vmatprep.mubr.bf16.mxu0 %v5579
  %5871 = vmatmul.mubr.bf16.gmra.mrb[0].mxu0 %v5578
  %v5872 = vpop.f32.mrb[0].mxu0
  %v5873 = vadd.f32 0.0, %v5872
  %v5874 = vpop.f32.mrb[0].mxu0
  %v5875 = vpop.f32.mrb[0].mxu0
  %v5876 = vadd.f32 0.0, %v5875
  %v5877 = vpop.f32.mrb[0].mxu0
  %5878 = vdwg.mxu0
  %5879 = vmatprep.subr.bf16.mxu0 0
  %5880 = vmatpush1.bf16.msra.mxu0 %v5790
  %5881 = vmatprep.subr.bf16.mxu0 0
  %5882 = vmatpush1.bf16.msra.mxu0 %v5791
  %5883 = vmatprep.subr.bf16.mxu0 0
  %5884 = vmatpush1.bf16.msra.mxu0 %v5792
  %5885 = vmatprep.subr.bf16.mxu0 0
  %5886 = vmatpush1.bf16.msra.mxu0 %v5793
  %5887 = vmatprep.subr.bf16.mxu0 0
  %5888 = vmatpush1.bf16.msra.mxu0 %v5794
  %5889 = vmatprep.subr.bf16.mxu0 0
  %5890 = vmatpush1.bf16.msra.mxu0 %v5795
  %5891 = vmatprep.subr.bf16.mxu0 0
  %5892 = vmatpush1.bf16.msra.mxu0 %v5796
  %5893 = vmatprep.subr.bf16.mxu0 0
  %5894 = vmatpush1.bf16.msra.mxu0 %v5797
  %5895 = vmatprep.subr.bf16.mxu0 0
  %5896 = vmatpush1.bf16.msra.mxu0 %v5798
  %5897 = vmatprep.subr.bf16.mxu0 0
  %5898 = vmatpush1.bf16.msra.mxu0 %v5799
  %5899 = vmatprep.subr.bf16.mxu0 0
  %5900 = vmatpush1.bf16.msra.mxu0 %v5800
  %5901 = vmatprep.subr.bf16.mxu0 0
  %5902 = vmatpush1.bf16.msra.mxu0 %v5801
  %5903 = vmatprep.subr.bf16.mxu0 0
  %5904 = vmatpush1.bf16.msra.mxu0 %v5802
  %5905 = vmatprep.subr.bf16.mxu0 0
  %5906 = vmatpush1.bf16.msra.mxu0 %v5803
  %5907 = vmatprep.subr.bf16.mxu0 0
  %5908 = vmatpush1.bf16.msra.mxu0 %v5804
  %5909 = vmatprep.subr.bf16.mxu0 0
  %5910 = vmatpush1.bf16.msra.mxu0 %v5805
  %5911 = vmatprep.mubr.bf16.mxu0 %v5581
  %5912 = vmatmul.mubr.bf16.gmra.mrb[0].mxu0 %v5580
  %v5913 = vpop.f32.mrb[0].mxu0
  %v5914 = vadd.f32 %v5873, %v5913
  %v5915 = vpop.f32.mrb[0].mxu0
  %v5916 = vpop.f32.mrb[0].mxu0
  %v5917 = vadd.f32 %v5876, %v5916
  %v5918 = vpop.f32.mrb[0].mxu0
  %5919 = vdwg.mxu0
  %v5920 = vadd.f32 %v5408, %v5914
  %v5921 = vadd.f32 %v5411, %v5917
  %v5922 = vld [vmem:[%s4396 + $0x30] sm:$0xff]
  %v5923 = vld [vmem:[%s4396 + $0x38] sm:$0xff]
  %v5924 = vld [vmem:[%s4396 + $0x70] sm:$0xff]
  %v5925 = vld [vmem:[%s4396 + $0x78] sm:$0xff]
  %v5926 = vld [vmem:[%s4396 + $0xb0] sm:$0xff]
  %v5927 = vld [vmem:[%s4396 + $0xb8] sm:$0xff]
  %v5928 = vld [vmem:[%s4396 + $0xf0] sm:$0xff]
  %v5929 = vld [vmem:[%s4396 + $0xf8] sm:$0xff]
  %v5930 = vld [vmem:[%s4405 + $0xc] sm:$0xf]
  %v5932 = vlaneseq
  %v5933 = vshrl.u32 %v5932, 7
  %v5934 = vsub.s32 0, %v5933
  %v5935 = vrot.slane %v5930, %v5934
  %v5936 = vlaneseq
  %v5937 = vshrl.u32 %v5936, 7
  %v5938 = vsub.s32 1, %v5937
  %v5939 = vrot.slane %v5930, %v5938
  %v5940 = vlaneseq
  %v5941 = vshrl.u32 %v5940, 7
  %v5942 = vsub.s32 2, %v5941
  %v5943 = vrot.slane %v5930, %v5942
  %v5944 = vlaneseq
  %v5945 = vshrl.u32 %v5944, 7
  %v5946 = vsub.s32 3, %v5945
  %v5947 = vrot.slane %v5930, %v5946
  %v5960 = vunpack.c.l.b16 %v5922
  %v5961 = vunpack.c.h.b16 %v5922
  %v5962 = vunpack.c.l.b16 %v5923
  %v5963 = vunpack.c.h.b16 %v5923
  %v5964 = vunpack.c.l.b16 %v5924
  %v5965 = vunpack.c.h.b16 %v5924
  %v5966 = vunpack.c.l.b16 %v5925
  %v5967 = vunpack.c.h.b16 %v5925
  %v5968 = vunpack.c.l.b16 %v5926
  %v5969 = vunpack.c.h.b16 %v5926
  %v5970 = vunpack.c.l.b16 %v5927
  %v5971 = vunpack.c.h.b16 %v5927
  %v5972 = vunpack.c.l.b16 %v5928
  %v5973 = vunpack.c.h.b16 %v5928
  %v5974 = vunpack.c.l.b16 %v5929
  %v5975 = vunpack.c.h.b16 %v5929
  %v5976 = vpack.c.b16 %v5964, %v5960
  %v5977 = vpack.c.b16 %v5965, %v5961
  %v5978 = vpack.c.b16 %v5966, %v5962
  %v5979 = vpack.c.b16 %v5967, %v5963
  %v5980 = vpack.c.b16 %v5972, %v5968
  %v5981 = vpack.c.b16 %v5973, %v5969
  %v5982 = vpack.c.b16 %v5974, %v5970
  %v5983 = vpack.c.b16 %v5975, %v5971
  %5992 = vmatprep.subr.bf16.mxu0 %v5977
  %5993 = vmatpush1.bf16.msra.mxu0 %v5976
  %5994 = vmatprep.subr.bf16.mxu0 %v5981
  %5995 = vmatpush1.bf16.msra.mxu0 %v5980
  %5996 = vmatprep.subr.bf16.mxu0 0
  %5997 = vmatpush1.bf16.msra.mxu0 0
  %5998 = vmatprep.subr.bf16.mxu0 0
  %5999 = vmatpush1.bf16.msra.mxu0 0
  %6000 = vmatprep.subr.bf16.mxu0 0
  %6001 = vmatpush1.bf16.msra.mxu0 0
  %6002 = vmatprep.subr.bf16.mxu0 0
  %6003 = vmatpush1.bf16.msra.mxu0 0
  %6004 = vmatprep.subr.bf16.mxu0 0
  %6005 = vmatpush1.bf16.msra.mxu0 0
  %6006 = vmatprep.subr.bf16.mxu0 0
  %6007 = vmatpush1.bf16.msra.mxu0 0
  %6008 = vmatprep.subr.bf16.mxu0 0
  %6009 = vmatpush1.bf16.msra.mxu0 0
  %6010 = vmatprep.subr.bf16.mxu0 0
  %6011 = vmatpush1.bf16.msra.mxu0 0
  %6012 = vmatprep.subr.bf16.mxu0 0
  %6013 = vmatpush1.bf16.msra.mxu0 0
  %6014 = vmatprep.subr.bf16.mxu0 0
  %6015 = vmatpush1.bf16.msra.mxu0 0
  %6016 = vmatprep.subr.bf16.mxu0 0
  %6017 = vmatpush1.bf16.msra.mxu0 0
  %6018 = vmatprep.subr.bf16.mxu0 0
  %6019 = vmatpush1.bf16.msra.mxu0 0
  %6020 = vmatprep.subr.bf16.mxu0 0
  %6021 = vmatpush1.bf16.msra.mxu0 0
  %6022 = vmatprep.subr.bf16.mxu0 0
  %6023 = vmatpush1.bf16.msra.mxu0 0
  %6024 = vmatprep.mubr.bf16.mxu0 0
  %6025 = vmatmul.mubr.bf16.gmra.mrb[0].mxu0 %v4469
  %v6026 = vpop.f32.mrb[0].mxu0
  %v6027 = vadd.f32 %v5935, %v6026
  %v6028 = vpop.f32.mrb[0].mxu0
  %v6029 = vadd.f32 %v5939, %v6028
  %v6030 = vpop.f32.mrb[0].mxu0
  %v6031 = vadd.f32 %v5935, %v6030
  %v6032 = vpop.f32.mrb[0].mxu0
  %v6033 = vadd.f32 %v5939, %v6032
  %6034 = vdwg.mxu0
  %6035 = vmatprep.subr.bf16.mxu0 %v5979
  %6036 = vmatpush1.bf16.msra.mxu0 %v5978
  %6037 = vmatprep.subr.bf16.mxu0 %v5983
  %6038 = vmatpush1.bf16.msra.mxu0 %v5982
  %6039 = vmatprep.subr.bf16.mxu0 0
  %6040 = vmatpush1.bf16.msra.mxu0 0
  %6041 = vmatprep.subr.bf16.mxu0 0
  %6042 = vmatpush1.bf16.msra.mxu0 0
  %6043 = vmatprep.subr.bf16.mxu0 0
  %6044 = vmatpush1.bf16.msra.mxu0 0
  %6045 = vmatprep.subr.bf16.mxu0 0
  %6046 = vmatpush1.bf16.msra.mxu0 0
  %6047 = vmatprep.subr.bf16.mxu0 0
  %6048 = vmatpush1.bf16.msra.mxu0 0
  %6049 = vmatprep.subr.bf16.mxu0 0
  %6050 = vmatpush1.bf16.msra.mxu0 0
  %6051 = vmatprep.subr.bf16.mxu0 0
  %6052 = vmatpush1.bf16.msra.mxu0 0
  %6053 = vmatprep.subr.bf16.mxu0 0
  %6054 = vmatpush1.bf16.msra.mxu0 0
  %6055 = vmatprep.subr.bf16.mxu0 0
  %6056 = vmatpush1.bf16.msra.mxu0 0
  %6057 = vmatprep.subr.bf16.mxu0 0
  %6058 = vmatpush1.bf16.msra.mxu0 0
  %6059 = vmatprep.subr.bf16.mxu0 0
  %6060 = vmatpush1.bf16.msra.mxu0 0
  %6061 = vmatprep.subr.bf16.mxu0 0
  %6062 = vmatpush1.bf16.msra.mxu0 0
  %6063 = vmatprep.subr.bf16.mxu0 0
  %6064 = vmatpush1.bf16.msra.mxu0 0
  %6065 = vmatprep.subr.bf16.mxu0 0
  %6066 = vmatpush1.bf16.msra.mxu0 0
  %6067 = vmatprep.mubr.bf16.mxu0 0
  %6068 = vmatmul.mubr.bf16.gmra.mrb[0].mxu0 %v4469
  %v6069 = vpop.f32.mrb[0].mxu0
  %v6070 = vadd.f32 %v5943, %v6069
  %v6071 = vpop.f32.mrb[0].mxu0
  %v6072 = vadd.f32 %v5947, %v6071
  %v6073 = vpop.f32.mrb[0].mxu0
  %v6074 = vadd.f32 %v5943, %v6073
  %v6075 = vpop.f32.mrb[0].mxu0
  %v6076 = vadd.f32 %v5947, %v6075
  %6077 = vdwg.mxu0
  %v6078 = vmax.f32 %v6027, 0.0
  %v6079 = vmax.f32 %v6029, 0.0
  %v6080 = vmax.f32 %v6070, 0.0
  %v6081 = vmax.f32 %v6072, 0.0
  %v6082 = vmax.f32 %v6031, 0.0
  %v6083 = vmax.f32 %v6033, 0.0
  %v6084 = vmax.f32 %v6074, 0.0
  %v6085 = vmax.f32 %v6076, 0.0
  %v6086 = vpack.c.bf16 %v6082, %v6078
  %v6087 = vpack.c.bf16 %v6083, %v6079
  %v6088 = vpack.c.bf16 %v6084, %v6080
  %v6089 = vpack.c.bf16 %v6085, %v6081
  %v6090 = vld [vmem:[%s4569 + $0x300] sm:$0xf]
  %v6091 = vld [vmem:[%s4569 + $0x304] sm:$0xf]
  %v6092 = vld [vmem:[%s4569 + $0x308] sm:$0xf]
  %v6093 = vld [vmem:[%s4569 + $0x30c] sm:$0xf]
  %v6094 = vld [vmem:[%s4569 + $0x310] sm:$0xf]
  %v6095 = vld [vmem:[%s4569 + $0x314] sm:$0xf]
  %v6096 = vld [vmem:[%s4569 + $0x318] sm:$0xf]
  %v6097 = vld [vmem:[%s4569 + $0x31c] sm:$0xf]
  %v6098 = vld [vmem:[%s4569 + $0x320] sm:$0xf]
  %v6099 = vld [vmem:[%s4569 + $0x324] sm:$0xf]
  %v6100 = vld [vmem:[%s4569 + $0x328] sm:$0xf]
  %v6101 = vld [vmem:[%s4569 + $0x32c] sm:$0xf]
  %v6102 = vld [vmem:[%s4569 + $0x330] sm:$0xf]
  %v6103 = vld [vmem:[%s4569 + $0x334] sm:$0xf]
  %v6104 = vld [vmem:[%s4569 + $0x338] sm:$0xf]
  %v6105 = vld [vmem:[%s4569 + $0x33c] sm:$0xf]
  %v6106 = vld [vmem:[%s4569 + $0x340] sm:$0xf]
  %v6107 = vld [vmem:[%s4569 + $0x344] sm:$0xf]
  %v6108 = vld [vmem:[%s4569 + $0x348] sm:$0xf]
  %v6109 = vld [vmem:[%s4569 + $0x34c] sm:$0xf]
  %v6110 = vld [vmem:[%s4569 + $0x350] sm:$0xf]
  %v6111 = vld [vmem:[%s4569 + $0x354] sm:$0xf]
  %v6112 = vld [vmem:[%s4569 + $0x358] sm:$0xf]
  %v6113 = vld [vmem:[%s4569 + $0x35c] sm:$0xf]
  %v6114 = vld [vmem:[%s4569 + $0x360] sm:$0xf]
  %v6115 = vld [vmem:[%s4569 + $0x364] sm:$0xf]
  %v6116 = vld [vmem:[%s4569 + $0x368] sm:$0xf]
  %v6117 = vld [vmem:[%s4569 + $0x36c] sm:$0xf]
  %v6118 = vld [vmem:[%s4569 + $0x370] sm:$0xf]
  %v6119 = vld [vmem:[%s4569 + $0x374] sm:$0xf]
  %v6120 = vld [vmem:[%s4569 + $0x378] sm:$0xf]
  %v6121 = vld [vmem:[%s4569 + $0x37c] sm:$0xf]
  %v6122 = vld [vmem:[%s4569 + $0x380] sm:$0xf]
  %v6123 = vld [vmem:[%s4569 + $0x384] sm:$0xf]
  %v6124 = vld [vmem:[%s4569 + $0x388] sm:$0xf]
  %v6125 = vld [vmem:[%s4569 + $0x38c] sm:$0xf]
  %v6126 = vld [vmem:[%s4569 + $0x390] sm:$0xf]
  %v6127 = vld [vmem:[%s4569 + $0x394] sm:$0xf]
  %v6128 = vld [vmem:[%s4569 + $0x398] sm:$0xf]
  %v6129 = vld [vmem:[%s4569 + $0x39c] sm:$0xf]
  %v6130 = vld [vmem:[%s4569 + $0x3a0] sm:$0xf]
  %v6131 = vld [vmem:[%s4569 + $0x3a4] sm:$0xf]
  %v6132 = vld [vmem:[%s4569 + $0x3a8] sm:$0xf]
  %v6133 = vld [vmem:[%s4569 + $0x3ac] sm:$0xf]
  %v6134 = vld [vmem:[%s4569 + $0x3b0] sm:$0xf]
  %v6135 = vld [vmem:[%s4569 + $0x3b4] sm:$0xf]
  %v6136 = vld [vmem:[%s4569 + $0x3b8] sm:$0xf]
  %v6137 = vld [vmem:[%s4569 + $0x3bc] sm:$0xf]
  %v6138 = vld [vmem:[%s4569 + $0x3c0] sm:$0xf]
  %v6139 = vld [vmem:[%s4569 + $0x3c4] sm:$0xf]
  %v6140 = vld [vmem:[%s4569 + $0x3c8] sm:$0xf]
  %v6141 = vld [vmem:[%s4569 + $0x3cc] sm:$0xf]
  %v6142 = vld [vmem:[%s4569 + $0x3d0] sm:$0xf]
  %v6143 = vld [vmem:[%s4569 + $0x3d4] sm:$0xf]
  %v6144 = vld [vmem:[%s4569 + $0x3d8] sm:$0xf]
  %v6145 = vld [vmem:[%s4569 + $0x3dc] sm:$0xf]
  %v6146 = vld [vmem:[%s4569 + $0x3e0] sm:$0xf]
  %v6147 = vld [vmem:[%s4569 + $0x3e4] sm:$0xf]
  %v6148 = vld [vmem:[%s4569 + $0x3e8] sm:$0xf]
  %v6149 = vld [vmem:[%s4569 + $0x3ec] sm:$0xf]
  %v6150 = vld [vmem:[%s4569 + $0x3f0] sm:$0xf]
  %v6151 = vld [vmem:[%s4569 + $0x3f4] sm:$0xf]
  %v6152 = vld [vmem:[%s4569 + $0x3f8] sm:$0xf]
  %v6153 = vld [vmem:[%s4569 + $0x3fc] sm:$0xf]
  %v6218 = vunpack.c.l.b16 %v6090
  %v6219 = vunpack.c.l.b16 %v6091
  %v6220 = vunpack.c.l.b16 %v6092
  %v6221 = vunpack.c.l.b16 %v6093
  %v6222 = vunpack.c.l.b16 %v6094
  %v6223 = vunpack.c.l.b16 %v6095
  %v6224 = vunpack.c.l.b16 %v6096
  %v6225 = vunpack.c.l.b16 %v6097
  %v6226 = vunpack.c.l.b16 %v6098
  %v6227 = vunpack.c.l.b16 %v6099
  %v6228 = vunpack.c.l.b16 %v6100
  %v6229 = vunpack.c.l.b16 %v6101
  %v6230 = vunpack.c.l.b16 %v6102
  %v6231 = vunpack.c.l.b16 %v6103
  %v6232 = vunpack.c.l.b16 %v6104
  %v6233 = vunpack.c.l.b16 %v6105
  %v6234 = vunpack.c.l.b16 %v6106
  %v6235 = vunpack.c.l.b16 %v6107
  %v6236 = vunpack.c.l.b16 %v6108
  %v6237 = vunpack.c.l.b16 %v6109
  %v6238 = vunpack.c.l.b16 %v6110
  %v6239 = vunpack.c.l.b16 %v6111
  %v6240 = vunpack.c.l.b16 %v6112
  %v6241 = vunpack.c.l.b16 %v6113
  %v6242 = vunpack.c.l.b16 %v6114
  %v6243 = vunpack.c.l.b16 %v6115
  %v6244 = vunpack.c.l.b16 %v6116
  %v6245 = vunpack.c.l.b16 %v6117
  %v6246 = vunpack.c.l.b16 %v6118
  %v6247 = vunpack.c.l.b16 %v6119
  %v6248 = vunpack.c.l.b16 %v6120
  %v6249 = vunpack.c.l.b16 %v6121
  %v6250 = vunpack.c.l.b16 %v6122
  %v6251 = vunpack.c.l.b16 %v6123
  %v6252 = vunpack.c.l.b16 %v6124
  %v6253 = vunpack.c.l.b16 %v6125
  %v6254 = vunpack.c.l.b16 %v6126
  %v6255 = vunpack.c.l.b16 %v6127
  %v6256 = vunpack.c.l.b16 %v6128
  %v6257 = vunpack.c.l.b16 %v6129
  %v6258 = vunpack.c.l.b16 %v6130
  %v6259 = vunpack.c.l.b16 %v6131
  %v6260 = vunpack.c.l.b16 %v6132
  %v6261 = vunpack.c.l.b16 %v6133
  %v6262 = vunpack.c.l.b16 %v6134
  %v6263 = vunpack.c.l.b16 %v6135
  %v6264 = vunpack.c.l.b16 %v6136
  %v6265 = vunpack.c.l.b16 %v6137
  %v6266 = vunpack.c.l.b16 %v6138
  %v6267 = vunpack.c.l.b16 %v6139
  %v6268 = vunpack.c.l.b16 %v6140
  %v6269 = vunpack.c.l.b16 %v6141
  %v6270 = vunpack.c.l.b16 %v6142
  %v6271 = vunpack.c.l.b16 %v6143
  %v6272 = vunpack.c.l.b16 %v6144
  %v6273 = vunpack.c.l.b16 %v6145
  %v6274 = vunpack.c.l.b16 %v6146
  %v6275 = vunpack.c.l.b16 %v6147
  %v6276 = vunpack.c.l.b16 %v6148
  %v6277 = vunpack.c.l.b16 %v6149
  %v6278 = vunpack.c.l.b16 %v6150
  %v6279 = vunpack.c.l.b16 %v6151
  %v6280 = vunpack.c.l.b16 %v6152
  %v6281 = vunpack.c.l.b16 %v6153
  %v6282 = vpack.c.b16 %v6219, %v6218
  %v6283 = vpack.c.b16 %v6221, %v6220
  %v6284 = vpack.c.b16 %v6223, %v6222
  %v6285 = vpack.c.b16 %v6225, %v6224
  %v6286 = vpack.c.b16 %v6227, %v6226
  %v6287 = vpack.c.b16 %v6229, %v6228
  %v6288 = vpack.c.b16 %v6231, %v6230
  %v6289 = vpack.c.b16 %v6233, %v6232
  %v6290 = vpack.c.b16 %v6235, %v6234
  %v6291 = vpack.c.b16 %v6237, %v6236
  %v6292 = vpack.c.b16 %v6239, %v6238
  %v6293 = vpack.c.b16 %v6241, %v6240
  %v6294 = vpack.c.b16 %v6243, %v6242
  %v6295 = vpack.c.b16 %v6245, %v6244
  %v6296 = vpack.c.b16 %v6247, %v6246
  %v6297 = vpack.c.b16 %v6249, %v6248
  %v6298 = vpack.c.b16 %v6251, %v6250
  %v6299 = vpack.c.b16 %v6253, %v6252
  %v6300 = vpack.c.b16 %v6255, %v6254
  %v6301 = vpack.c.b16 %v6257, %v6256
  %v6302 = vpack.c.b16 %v6259, %v6258
  %v6303 = vpack.c.b16 %v6261, %v6260
  %v6304 = vpack.c.b16 %v6263, %v6262
  %v6305 = vpack.c.b16 %v6265, %v6264
  %v6306 = vpack.c.b16 %v6267, %v6266
  %v6307 = vpack.c.b16 %v6269, %v6268
  %v6308 = vpack.c.b16 %v6271, %v6270
  %v6309 = vpack.c.b16 %v6273, %v6272
  %v6310 = vpack.c.b16 %v6275, %v6274
  %v6311 = vpack.c.b16 %v6277, %v6276
  %v6312 = vpack.c.b16 %v6279, %v6278
  %v6313 = vpack.c.b16 %v6281, %v6280
  %6346 = vmatprep.subr.bf16.mxu0 0
  %6347 = vmatpush1.bf16.msra.mxu0 %v6282
  %6348 = vmatprep.subr.bf16.mxu0 0
  %6349 = vmatpush1.bf16.msra.mxu0 %v6283
  %6350 = vmatprep.subr.bf16.mxu0 0
  %6351 = vmatpush1.bf16.msra.mxu0 %v6284
  %6352 = vmatprep.subr.bf16.mxu0 0
  %6353 = vmatpush1.bf16.msra.mxu0 %v6285
  %6354 = vmatprep.subr.bf16.mxu0 0
  %6355 = vmatpush1.bf16.msra.mxu0 %v6286
  %6356 = vmatprep.subr.bf16.mxu0 0
  %6357 = vmatpush1.bf16.msra.mxu0 %v6287
  %6358 = vmatprep.subr.bf16.mxu0 0
  %6359 = vmatpush1.bf16.msra.mxu0 %v6288
  %6360 = vmatprep.subr.bf16.mxu0 0
  %6361 = vmatpush1.bf16.msra.mxu0 %v6289
  %6362 = vmatprep.subr.bf16.mxu0 0
  %6363 = vmatpush1.bf16.msra.mxu0 %v6290
  %6364 = vmatprep.subr.bf16.mxu0 0
  %6365 = vmatpush1.bf16.msra.mxu0 %v6291
  %6366 = vmatprep.subr.bf16.mxu0 0
  %6367 = vmatpush1.bf16.msra.mxu0 %v6292
  %6368 = vmatprep.subr.bf16.mxu0 0
  %6369 = vmatpush1.bf16.msra.mxu0 %v6293
  %6370 = vmatprep.subr.bf16.mxu0 0
  %6371 = vmatpush1.bf16.msra.mxu0 %v6294
  %6372 = vmatprep.subr.bf16.mxu0 0
  %6373 = vmatpush1.bf16.msra.mxu0 %v6295
  %6374 = vmatprep.subr.bf16.mxu0 0
  %6375 = vmatpush1.bf16.msra.mxu0 %v6296
  %6376 = vmatprep.subr.bf16.mxu0 0
  %6377 = vmatpush1.bf16.msra.mxu0 %v6297
  %6378 = vmatprep.mubr.bf16.mxu0 %v6087
  %6379 = vmatmul.mubr.bf16.gmra.mrb[0].mxu0 %v6086
  %v6380 = vpop.f32.mrb[0].mxu0
  %v6381 = vadd.f32 0.0, %v6380
  %v6382 = vpop.f32.mrb[0].mxu0
  %v6383 = vpop.f32.mrb[0].mxu0
  %v6384 = vadd.f32 0.0, %v6383
  %v6385 = vpop.f32.mrb[0].mxu0
  %6386 = vdwg.mxu0
  %6387 = vmatprep.subr.bf16.mxu0 0
  %6388 = vmatpush1.bf16.msra.mxu0 %v6298
  %6389 = vmatprep.subr.bf16.mxu0 0
  %6390 = vmatpush1.bf16.msra.mxu0 %v6299
  %6391 = vmatprep.subr.bf16.mxu0 0
  %6392 = vmatpush1.bf16.msra.mxu0 %v6300
  %6393 = vmatprep.subr.bf16.mxu0 0
  %6394 = vmatpush1.bf16.msra.mxu0 %v6301
  %6395 = vmatprep.subr.bf16.mxu0 0
  %6396 = vmatpush1.bf16.msra.mxu0 %v6302
  %6397 = vmatprep.subr.bf16.mxu0 0
  %6398 = vmatpush1.bf16.msra.mxu0 %v6303
  %6399 = vmatprep.subr.bf16.mxu0 0
  %6400 = vmatpush1.bf16.msra.mxu0 %v6304
  %6401 = vmatprep.subr.bf16.mxu0 0
  %6402 = vmatpush1.bf16.msra.mxu0 %v6305
  %6403 = vmatprep.subr.bf16.mxu0 0
  %6404 = vmatpush1.bf16.msra.mxu0 %v6306
  %6405 = vmatprep.subr.bf16.mxu0 0
  %6406 = vmatpush1.bf16.msra.mxu0 %v6307
  %6407 = vmatprep.subr.bf16.mxu0 0
  %6408 = vmatpush1.bf16.msra.mxu0 %v6308
  %6409 = vmatprep.subr.bf16.mxu0 0
  %6410 = vmatpush1.bf16.msra.mxu0 %v6309
  %6411 = vmatprep.subr.bf16.mxu0 0
  %6412 = vmatpush1.bf16.msra.mxu0 %v6310
  %6413 = vmatprep.subr.bf16.mxu0 0
  %6414 = vmatpush1.bf16.msra.mxu0 %v6311
  %6415 = vmatprep.subr.bf16.mxu0 0
  %6416 = vmatpush1.bf16.msra.mxu0 %v6312
  %6417 = vmatprep.subr.bf16.mxu0 0
  %6418 = vmatpush1.bf16.msra.mxu0 %v6313
  %6419 = vmatprep.mubr.bf16.mxu0 %v6089
  %6420 = vmatmul.mubr.bf16.gmra.mrb[0].mxu0 %v6088
  %v6421 = vpop.f32.mrb[0].mxu0
  %v6422 = vadd.f32 %v6381, %v6421
  %v6423 = vpop.f32.mrb[0].mxu0
  %v6424 = vpop.f32.mrb[0].mxu0
  %v6425 = vadd.f32 %v6384, %v6424
  %v6426 = vpop.f32.mrb[0].mxu0
  %6427 = vdwg.mxu0
  %v6428 = vadd.f32 %v5920, %v6422
  %v6429 = vadd.f32 %v5921, %v6425
  %s6430 = scalar_lea.vmem %s17, 1
  %v6431 = vld [vmem:[%s6430] sm:$0x1]
  %v6433 = vlaneseq
  %v6434 = vshrl.u32 %v6433, 7
  %v6435 = vsub.s32 0, %v6434
  %v6436 = vrot.slane %v6431, %v6435
  %v6438 = vadd.f32 %v6428, %v6436
  %v6439 = vadd.f32 %v6429, %v6436
  %v6440 = vadd.f32 %v4393, %v6438
  %v6441 = vadd.f32 %v4394, %v6439
  %v6442 = vld [vmem:[%s3761 + $0x2] sm:$0x1]
  %v6443 = vld [vmem:[%s3763 + $0x2] sm:$0x1]
  %v6444 = vsel %vm120, %v6440, 0.0
  %6445 = vadd.xlane.f32.xlu0 %v6444
  %v6446 = vpop.xlane.xlu0 %6445
  %v6447 = vsel %vm120, %v6441, 0.0
  %6448 = vadd.xlane.f32.xlu0 %v6447
  %v6449 = vpop.xlane.xlu0 %6448
  %v6450 = vmul.f32 %v6446, %v579
  %v6451 = vmul.f32 %v6449, %v579
  %v6452 = vsub.f32 %v6440, %v6450
  %v6453 = vsub.f32 %v6441, %v6451
  %v6454 = vmul.f32 %v6452, %v6452
  %v6455 = vmul.f32 %v6453, %v6453
  %v6456 = vsel %vm120, %v6454, 0.0
  %6457 = vadd.xlane.f32.xlu0 %v6456
  %v6458 = vpop.xlane.xlu0 %6457
  %v6459 = vsel %vm120, %v6455, 0.0
  %6460 = vadd.xlane.f32.xlu0 %v6459
  %v6461 = vpop.xlane.xlu0 %6460
  %v6462 = vmul.f32 %v6458, %v579
  %v6463 = vmul.f32 %v6461, %v579
  %v6464 = vadd.f32 %v6462, 1e-05
  %v6465 = vadd.f32 %v6463, 1e-05
  %v6466 = vrsqrt.pop %v6464
  %v6467 = vrsqrt.pop %v6465
  %v6468 = vmul.f32 %v6452, %v6466
  %v6469 = vmul.f32 %v6453, %v6467
  %v6470 = vlaneseq
  %v6471 = vshrl.u32 %v6470, 7
  %v6472 = vsub.s32 0, %v6471
  %v6473 = vrot.slane %v6442, %v6472
  %v6474 = vmul.f32 %v6468, %v6473
  %v6475 = vmul.f32 %v6469, %v6473
  %v6476 = vlaneseq
  %v6477 = vshrl.u32 %v6476, 7
  %v6478 = vsub.s32 0, %v6477
  %v6479 = vrot.slane %v6443, %v6478
  %v6480 = vadd.f32 %v6474, %v6479
  %v6481 = vadd.f32 %v6475, %v6479
  %v6482 = vpack.c.bf16 %v6481, %v6480
  %v6483 = vld [vmem:[%s20] sm:$0xf]
  %v6484 = vld [vmem:[%s20 + $0x4] sm:$0xf]
  %v6485 = vld [vmem:[%s20 + $0x8] sm:$0xf]
  %v6486 = vld [vmem:[%s20 + $0xc] sm:$0xf]
  %v6487 = vld [vmem:[%s21] sm:$0x1]
  %v6489 = vlaneseq
  %v6490 = vshrl.u32 %v6489, 7
  %v6491 = vsub.s32 0, %v6490
  %v6492 = vrot.slane %v6487, %v6491
  %v6498 = vunpack.c.l.b16 %v6483
  %v6499 = vunpack.c.l.b16 %v6484
  %v6500 = vunpack.c.l.b16 %v6485
  %v6501 = vunpack.c.l.b16 %v6486
  %v6502 = vpack.c.b16 %v6499, %v6498
  %v6503 = vpack.c.b16 %v6501, %v6500
  %v6507 = vsel %vm120, %v6482, 0
  %6509 = vmatprep.subr.bf16.mxu0 0
  %6510 = vmatpush1.bf16.msra.mxu0 %v6502
  %6511 = vmatprep.subr.bf16.mxu0 0
  %6512 = vmatpush1.bf16.msra.mxu0 %v6503
  %6513 = vmatprep.subr.bf16.mxu0 0
  %6514 = vmatpush1.bf16.msra.mxu0 0
  %6515 = vmatprep.subr.bf16.mxu0 0
  %6516 = vmatpush1.bf16.msra.mxu0 0
  %6517 = vmatprep.subr.bf16.mxu0 0
  %6518 = vmatpush1.bf16.msra.mxu0 0
  %6519 = vmatprep.subr.bf16.mxu0 0
  %6520 = vmatpush1.bf16.msra.mxu0 0
  %6521 = vmatprep.subr.bf16.mxu0 0
  %6522 = vmatpush1.bf16.msra.mxu0 0
  %6523 = vmatprep.subr.bf16.mxu0 0
  %6524 = vmatpush1.bf16.msra.mxu0 0
  %6525 = vmatprep.subr.bf16.mxu0 0
  %6526 = vmatpush1.bf16.msra.mxu0 0
  %6527 = vmatprep.subr.bf16.mxu0 0
  %6528 = vmatpush1.bf16.msra.mxu0 0
  %6529 = vmatprep.subr.bf16.mxu0 0
  %6530 = vmatpush1.bf16.msra.mxu0 0
  %6531 = vmatprep.subr.bf16.mxu0 0
  %6532 = vmatpush1.bf16.msra.mxu0 0
  %6533 = vmatprep.subr.bf16.mxu0 0
  %6534 = vmatpush1.bf16.msra.mxu0 0
  %6535 = vmatprep.subr.bf16.mxu0 0
  %6536 = vmatpush1.bf16.msra.mxu0 0
  %6537 = vmatprep.subr.bf16.mxu0 0
  %6538 = vmatpush1.bf16.msra.mxu0 0
  %6539 = vmatprep.subr.bf16.mxu0 0
  %6540 = vmatpush1.bf16.msra.mxu0 0
  %6541 = vmatprep.mubr.bf16.mxu0 0
  %6542 = vmatmul.mubr.bf16.gmra.mrb[0].mxu0 %v6507
  %v6543 = vpop.f32.mrb[0].mxu0
  %v6544 = vadd.f32 %v6492, %v6543
  %v6545 = vpop.f32.mrb[0].mxu0
  %v6546 = vpop.f32.mrb[0].mxu0
  %v6547 = vadd.f32 %v6492, %v6546
  %v6548 = vpop.f32.mrb[0].mxu0
  %6549 = vdwg.mxu0
  %6550 = vst [vmem:[%s22] sm:$0xff] %v6544
  %6551 = vst [vmem:[%s22 + $0x8] sm:$0xff] %v6547
  // Predicated region
  $region90: #{image_caption_forward.1} parent=0 // pred_check
    _
  $region91: #{image_caption_forward.1} parent=0 // pred_check_branch
    %6553 = sbr.rel (0) target = $region93
  $region92: #{image_caption_forward.1} parent=0 // pred_region
    _
  $region93: #{image_caption_forward.1} parent=0 // pred_fallthru
    _
  // Predicated region
  $region94: #{image_caption_forward.1} parent=0 // pred_check
    _
  $region95: #{image_caption_forward.1} parent=0 // pred_check_branch
    %6555 = sbr.rel (0) target = $region97
  $region96: #{image_caption_forward.1} parent=0 // pred_region
    _
  $region97: #{image_caption_forward.1} parent=0 // pred_fallthru
    _

</llo_original>
